<compile_context>
chip_gen: v7x
topology: tpu7x:2x2x1
jax: 0.10.0
libtpu: 0.0.40
codegen_flags: <defaults>
</compile_context>

<pallas_src>
import functools

import jax
import jax.numpy as jnp
from jax import lax
from jax.experimental import pallas as pl
from jax.experimental.pallas import tpu as pltpu

# ---------------- configuration consistent with Policy.__init__ (scaled) ----
D_MODEL = 128              # d_model (module default 512, scaled down; % nhead)
NHEAD = 8
HEAD_DIM = D_MODEL // NHEAD
DIM_FF = 4 * D_MODEL       # PyTorch TransformerEncoderLayer default = 4*d_model
NB_REQUESTS = 8
NB_VEHICLES = 2
NUM_LAYERS = 2
TIME_END = 100             # module default 1440, scaled down for small tables
ENV_SIZE = 10
NB_ACTIONS = NB_REQUESTS + 1
NB_TOKENS = NB_REQUESTS
N_TOK = 15                 # tokens stacked per request in Policy.embeddings
BATCH = 2
EPS = 1e-5                 # nn.LayerNorm default eps
CLS_PAD = 128              # lane-dense padded classifier width (real = 9)
SCALE = 1.0 / (HEAD_DIM ** 0.5)

LAYER_KEYS = ("wqkv", "bqkv", "wo", "bo", "w1", "b1", "w2", "b2",
              "g1", "be1", "g2", "be2")


# ---------------------------- in-kernel helpers ------------------------------
def _bf16_dot(a, w):
    """MXU matmul: bf16 operands, f32 accumulation."""
    return jnp.dot(a.astype(jnp.bfloat16), w.astype(jnp.bfloat16),
                   preferred_element_type=jnp.float32)


def _layer_norm(x, g, b):
    mu = jnp.mean(x, axis=-1, keepdims=True)
    var = jnp.mean((x - mu) ** 2, axis=-1, keepdims=True)
    return (x - mu) * lax.rsqrt(var + EPS) * g + b


def _softmax_ctx(scores, v_bcasts):
    """scores[t]: per-head logits broadcast across each head's lanes.
    v_bcasts[t]: value rows aligned with the query rows.  Softmax over t."""
    m = functools.reduce(jnp.maximum, scores)
    es = [jnp.exp(s - m) for s in scores]
    denom = functools.reduce(lambda a, b: a + b, es)
    inv = pl.reciprocal(denom, approx=True)
    ctx = functools.reduce(lambda a, b: a + b,
                           [e * v for e, v in zip(es, v_bcasts)])
    return ctx * inv


def _attn_over_outer(q, k, v, seg, n_seq, n_inner):
    """Rows = s*n_inner + n; attention runs over s (the outer blocks)."""
    scores, vbs = [], []
    for t in range(n_seq):
        kblk = k[t * n_inner:(t + 1) * n_inner]
        vblk = v[t * n_inner:(t + 1) * n_inner]
        kb = jnp.concatenate([kblk] * n_seq, axis=0)
        vbs.append(jnp.concatenate([vblk] * n_seq, axis=0))
        scores.append(_bf16_dot(q * kb, seg))     # per-head score, bcast on lanes
    return _softmax_ctx(scores, vbs)


def _attn_within_groups(q, k, v, seg, n_groups, n_seq):
    """Rows = g*n_seq + s; attention runs over s within each group g."""
    scores, vbs = [], []
    for t in range(n_seq):
        kb = jnp.concatenate(
            [jnp.broadcast_to(k[g * n_seq + t:g * n_seq + t + 1, :],
                              (n_seq, D_MODEL)) for g in range(n_groups)], axis=0)
        vb = jnp.concatenate(
            [jnp.broadcast_to(v[g * n_seq + t:g * n_seq + t + 1, :],
                              (n_seq, D_MODEL)) for g in range(n_groups)], axis=0)
        scores.append(_bf16_dot(q * kb, seg))
        vbs.append(vb)
    return _softmax_ctx(scores, vbs)


def _encoder_layer(x, prefs, seg, attn_fn):
    """One nn.TransformerEncoderLayer (post-norm, relu, no dropout)."""
    (wqkv, bqkv, wo, bo, w1, b1, w2, b2, g1, be1, g2, be2) = [r[...] for r in prefs]
    qkv = _bf16_dot(x, wqkv) + bqkv                     # (M, 3D)
    q = qkv[:, :D_MODEL] * SCALE                        # scale hoisted once
    k = qkv[:, D_MODEL:2 * D_MODEL]
    v = qkv[:, 2 * D_MODEL:3 * D_MODEL]
    ctx = attn_fn(q, k, v, seg)                         # (M, D)
    attn = _bf16_dot(ctx, wo) + bo
    y = _layer_norm(x + attn, g1, be1)
    h = jnp.maximum(_bf16_dot(y, w1) + b1, 0.0)
    z = _bf16_dot(h, w2) + b2
    return _layer_norm(y + z, g2, be2)


# ---------------------------- fused Pallas kernel ----------------------------
def _policy_kernel(*refs):
    x_ref, seg_ref = refs[0], refs[1]
    lrefs = [refs[2 + 12 * i: 2 + 12 * (i + 1)] for i in range(3)]
    rlw_ref, rlb_ref, clw_ref, clb_ref = refs[38:42]
    o_ref = refs[42]

    seg = seg_ref[...]                                  # (D, D) bf16 block-diag
    x = x_ref[...]                                      # (B*15*R, D), rows (b,t,r)

    # --- request encoder: attention over B (outer blocks of 15*R rows) -------
    x = _encoder_layer(
        x, lrefs[0], seg,
        lambda q, k, v, s: _attn_over_outer(q, k, v, s, BATCH, N_TOK * NB_REQUESTS))

    # --- request_linear: out(b,r) = sum_t x(b,t,r) @ W[t*D:(t+1)*D] + bias ----
    y = jnp.zeros((BATCH * NB_REQUESTS, D_MODEL), jnp.float32)
    for t in range(N_TOK):
        blocks = []
        for b in range(BATCH):
            start = b * (N_TOK * NB_REQUESTS) + t * NB_REQUESTS
            blocks.append(x[start:start + NB_REQUESTS])
        xt = jnp.concatenate(blocks, axis=0)            # (B*R, D), rows (b, r)
        y = y + _bf16_dot(xt, rlw_ref[t * D_MODEL:(t + 1) * D_MODEL, :])
    y = y + rlb_ref[...]

    # --- main encoder stack: attention over the R requests per batch item ----
    for li in range(NUM_LAYERS):
        y = _encoder_layer(
            y, lrefs[1 + li], seg,
            lambda q, k, v, s: _attn_within_groups(q, k, v, s, BATCH, NB_REQUESTS))

    # --- classifier on flattened (B, R*D); output is lane-padded to 128 ------
    logits = jnp.zeros((BATCH, CLS_PAD), jnp.float32)
    for r in range(NB_REQUESTS):
        xr = jnp.concatenate(
            [y[b * NB_REQUESTS + r: b * NB_REQUESTS + r + 1, :]
             for b in range(BATCH)], axis=0)            # (B, D)
        logits = logits + _bf16_dot(xr, clw_ref[r * D_MODEL:(r + 1) * D_MODEL, :])
    o_ref[...] = logits + clb_ref[...]


def _policy_transformer_call(x_in, seg, layers, rl_w, rl_b, cls_w, cls_b):
    args = [x_in, seg]
    for lp in layers:
        args.extend(lp[key] for key in LAYER_KEYS)
    args.extend([rl_w, rl_b, cls_w, cls_b])
    # Single grid step; all operands are whole-array VMEM blocks (~3 MiB total,
    # far under every generation's VMEM).  No grid -> nothing to mark parallel;
    # at this size one TensorCore is the right choice even on v7x.
    return pl.pallas_call(
        _policy_kernel,
        out_shape=jax.ShapeDtypeStruct((BATCH, CLS_PAD), jnp.float32),
        compiler_params=pltpu.CompilerParams(vmem_limit_bytes=32 * 1024 * 1024),
    )(*args)


# ---------------------------- parameter init ---------------------------------
def _init_encoder_layer(key):
    ks = jax.random.split(key, 4)
    s = 0.05
    d, ff = D_MODEL, DIM_FF
    return dict(
        wqkv=(s * jax.random.normal(ks[0], (d, 3 * d), jnp.float32)).astype(jnp.bfloat16),
        bqkv=jnp.zeros((1, 3 * d), jnp.float32),
        wo=(s * jax.random.normal(ks[1], (d, d), jnp.float32)).astype(jnp.bfloat16),
        bo=jnp.zeros((1, d), jnp.float32),
        w1=(s * jax.random.normal(ks[2], (d, ff), jnp.float32)).astype(jnp.bfloat16),
        b1=jnp.zeros((1, ff), jnp.float32),
        w2=(s * jax.random.normal(ks[3], (ff, d), jnp.float32)).astype(jnp.bfloat16),
        b2=jnp.zeros((1, d), jnp.float32),
        g1=jnp.ones((1, d), jnp.float32),
        be1=jnp.zeros((1, d), jnp.float32),
        g2=jnp.ones((1, d), jnp.float32),
        be2=jnp.zeros((1, d), jnp.float32),
    )


def init_params(key):
    ks = jax.random.split(key, 9)
    s = 0.05
    d = D_MODEL
    params = dict(
        emb_time=s * jax.random.normal(ks[0], (TIME_END * 10 + 1, d), jnp.float32),
        emb_pos=s * jax.random.normal(ks[1], (ENV_SIZE * 2 * 10 + 1, d), jnp.float32),
        emb_req_id=s * jax.random.normal(ks[2], (NB_REQUESTS + 1, d), jnp.float32),
        emb_req_status=s * jax.random.normal(ks[3], (3, d), jnp.float32),
        emb_being_served=s * jax.random.normal(ks[4], (NB_VEHICLES + 1, d), jnp.float32),
        request_encoder=_init_encoder_layer(ks[5]),
        req_lin_wT=(s * jax.random.normal(ks[6], (N_TOK * d, d), jnp.float32)).astype(jnp.bfloat16),
        req_lin_b=jnp.zeros((1, d), jnp.float32),
    )
    # Classifier padded to a lane-dense 128-wide output (real logits = first 9 cols).
    cls_w = s * jax.random.normal(ks[7], (NB_TOKENS * d, NB_ACTIONS), jnp.float32)
    cls_w_pad = jnp.zeros((NB_TOKENS * d, CLS_PAD), jnp.float32).at[:, :NB_ACTIONS].set(cls_w)
    params["cls_wT"] = cls_w_pad.astype(jnp.bfloat16)
    params["cls_b"] = jnp.zeros((1, CLS_PAD), jnp.float32)
    # nn.TransformerEncoder deep-copies the layer: both layers share initial
    # VALUES but are materialized as independent arrays here.
    layer0 = _init_encoder_layer(ks[8])
    params["encoders"] = [layer0, {k: v.copy() for k, v in layer0.items()}]
    # Block-diagonal head-segment matrix used by the in-kernel multi-head attn.
    head_id = jnp.arange(d) // HEAD_DIM
    params["seg"] = (head_id[:, None] == head_id[None, :]).astype(jnp.bfloat16)
    return params


# ---------------------------- embeddings (glue) ------------------------------
def embeddings(params, world, requests, vehicles):
    """world: (B, >=8), requests: (B, R, 11), vehicles: (B, 2).  Returns
    tokens (B, R, 15, D) matching Policy.embeddings' 15-token stack order."""
    # TODO(synk): embedding-table gathers are data-dependent lookups; they stay
    # in plain JAX (XLA gather) rather than inside the Pallas kernel.
    B = world.shape[0]
    R = NB_REQUESTS
    pos_idx = lambda x: jnp.round(x * 10.0 + ENV_SIZE * 10.0).astype(jnp.int32)
    tim_idx = lambda t: jnp.round(10.0 * t).astype(jnp.int32)
    E_pos, E_time = params["emb_pos"], params["emb_time"]

    veh0 = E_pos[pos_idx(vehicles[:, 0])]                 # (B, D)
    veh1 = E_pos[pos_idx(vehicles[:, 1])]
    wt6 = E_time[tim_idx(world[:, 6])]
    wt7 = E_time[tim_idx(world[:, 7])]

    e_id = params["emb_req_id"][requests[:, :, 0].astype(jnp.int32)]      # (B, R, D)
    e_pos = [E_pos[pos_idx(requests[:, :, c])] for c in (1, 2, 3, 4)]
    cur_t = world[:, 1:2]
    e_tim = [E_time[tim_idx(jnp.clip(requests[:, :, c] - cur_t, 0.0, float(TIME_END)))]
             for c in (5, 6, 7, 8)]
    e_stat = params["emb_req_status"][requests[:, :, 9].astype(jnp.int32)]
    e_srv = params["emb_being_served"][requests[:, :, 10].astype(jnp.int32)]

    bc = lambda a: jnp.broadcast_to(a[:, None, :], (B, R, D_MODEL))
    tokens = jnp.stack(
        [bc(veh0), bc(veh1), bc(wt6), bc(wt7), e_id,
         e_pos[0], e_pos[1], e_pos[2], e_pos[3],
         e_tim[0], e_tim[1], e_tim[2], e_tim[3], e_stat, e_srv],
        axis=2)                                            # (B, R, 15, D)
    return tokens


# ---------------------------- full forward ----------------------------------
@jax.jit
def policy_forward(params, world, requests, vehicles):
    tokens = embeddings(params, world.astype(jnp.float32),
                        requests.astype(jnp.float32), vehicles.astype(jnp.float32))
    # Kernel row layout: row = b*(15*R) + t*R + r
    x_in = jnp.transpose(tokens, (0, 2, 1, 3)).reshape(
        BATCH * N_TOK * NB_REQUESTS, D_MODEL)
    layers = [params["request_encoder"]] + list(params["encoders"])
    logits_pad = _policy_transformer_call(
        x_in, params["seg"], layers,
        params["req_lin_wT"], params["req_lin_b"],
        params["cls_wT"], params["cls_b"])
    return logits_pad[:, :NB_ACTIONS]
    # TODO(synk): Policy.act()'s Categorical sampling / masking is host-side
    # control flow and is not part of the kernelized forward pass.


# ---------------------------- driver -----------------------------------------
if __name__ == "__main__":
    key = jax.random.PRNGKey(0)
    kp, kw, kr, kv, kw67 = jax.random.split(key, 5)
    params = init_params(kp)

    B = BATCH
    world = jnp.zeros((B, 8), jnp.float32)
    world = world.at[:, 1].set(
        jax.random.uniform(kw, (B,), minval=0.0, maxval=TIME_END * 0.5))
    kw6, kw7 = jax.random.split(kw67)
    world = world.at[:, 6].set(
        jax.random.uniform(kw6, (B,), minval=0.0, maxval=float(TIME_END)))
    world = world.at[:, 7].set(
        jax.random.uniform(kw7, (B,), minval=0.0, maxval=float(TIME_END)))

    kr0, kr1, kr2, kr3, kr4 = jax.random.split(kr, 5)
    req_id = jax.random.randint(kr0, (B, NB_REQUESTS), 0, NB_REQUESTS + 1).astype(jnp.float32)
    req_pos = jax.random.uniform(kr1, (B, NB_REQUESTS, 4),
                                 minval=-float(ENV_SIZE), maxval=float(ENV_SIZE))
    req_tim = jax.random.uniform(kr2, (B, NB_REQUESTS, 4),
                                 minval=0.0, maxval=float(TIME_END))
    req_stat = jax.random.randint(kr3, (B, NB_REQUESTS), 0, 3).astype(jnp.float32)
    req_srv = jax.random.randint(kr4, (B, NB_REQUESTS), 0, NB_VEHICLES + 1).astype(jnp.float32)
    requests = jnp.concatenate(
        [req_id[..., None], req_pos, req_tim, req_stat[..., None], req_srv[..., None]],
        axis=-1)                                            # (B, R, 11)

    vehicles = jax.random.uniform(kv, (B, 2), minval=-float(ENV_SIZE),
                                  maxval=float(ENV_SIZE))

    logits = policy_forward(params, world, requests, vehicles)
    jax.block_until_ready(logits)
    assert logits.shape == (B, NB_ACTIONS) and logits.dtype == jnp.float32
    assert bool(jnp.all(jnp.isfinite(logits)))
    print("KERNEL_OK")
</pallas_src>

<mosaic_0001>
module attributes {stable_mosaic.version = 11 : i64} {
  func.func @_policy_kernel(%arg0: memref<240x128xf32, #tpu.memory_space<vmem>>, %arg1: memref<128x128xbf16, #tpu.memory_space<vmem>>, %arg2: memref<128x384xbf16, #tpu.memory_space<vmem>>, %arg3: memref<1x384xf32, #tpu.memory_space<vmem>>, %arg4: memref<128x128xbf16, #tpu.memory_space<vmem>>, %arg5: memref<1x128xf32, #tpu.memory_space<vmem>>, %arg6: memref<128x512xbf16, #tpu.memory_space<vmem>>, %arg7: memref<1x512xf32, #tpu.memory_space<vmem>>, %arg8: memref<512x128xbf16, #tpu.memory_space<vmem>>, %arg9: memref<1x128xf32, #tpu.memory_space<vmem>>, %arg10: memref<1x128xf32, #tpu.memory_space<vmem>>, %arg11: memref<1x128xf32, #tpu.memory_space<vmem>>, %arg12: memref<1x128xf32, #tpu.memory_space<vmem>>, %arg13: memref<1x128xf32, #tpu.memory_space<vmem>>, %arg14: memref<128x384xbf16, #tpu.memory_space<vmem>>, %arg15: memref<1x384xf32, #tpu.memory_space<vmem>>, %arg16: memref<128x128xbf16, #tpu.memory_space<vmem>>, %arg17: memref<1x128xf32, #tpu.memory_space<vmem>>, %arg18: memref<128x512xbf16, #tpu.memory_space<vmem>>, %arg19: memref<1x512xf32, #tpu.memory_space<vmem>>, %arg20: memref<512x128xbf16, #tpu.memory_space<vmem>>, %arg21: memref<1x128xf32, #tpu.memory_space<vmem>>, %arg22: memref<1x128xf32, #tpu.memory_space<vmem>>, %arg23: memref<1x128xf32, #tpu.memory_space<vmem>>, %arg24: memref<1x128xf32, #tpu.memory_space<vmem>>, %arg25: memref<1x128xf32, #tpu.memory_space<vmem>>, %arg26: memref<128x384xbf16, #tpu.memory_space<vmem>>, %arg27: memref<1x384xf32, #tpu.memory_space<vmem>>, %arg28: memref<128x128xbf16, #tpu.memory_space<vmem>>, %arg29: memref<1x128xf32, #tpu.memory_space<vmem>>, %arg30: memref<128x512xbf16, #tpu.memory_space<vmem>>, %arg31: memref<1x512xf32, #tpu.memory_space<vmem>>, %arg32: memref<512x128xbf16, #tpu.memory_space<vmem>>, %arg33: memref<1x128xf32, #tpu.memory_space<vmem>>, %arg34: memref<1x128xf32, #tpu.memory_space<vmem>>, %arg35: memref<1x128xf32, #tpu.memory_space<vmem>>, %arg36: memref<1x128xf32, #tpu.memory_space<vmem>>, %arg37: memref<1x128xf32, #tpu.memory_space<vmem>>, %arg38: memref<1920x128xbf16, #tpu.memory_space<vmem>>, %arg39: memref<1x128xf32, #tpu.memory_space<vmem>>, %arg40: memref<1024x128xbf16, #tpu.memory_space<vmem>>, %arg41: memref<1x128xf32, #tpu.memory_space<vmem>>, %arg42: memref<2x128xf32, #tpu.memory_space<vmem>>) attributes {dimension_semantics = [], scalar_prefetch = 0 : i64, scratch_operands = 0 : i64, tpu.core_type = #tpu.core_type<tc>} {
    %c0 = arith.constant 0 : index
    %c0_0 = arith.constant 0 : index
    %0 = vector.load %arg1[%c0, %c0_0] : memref<128x128xbf16, #tpu.memory_space<vmem>>, vector<128x128xbf16>
    %c0_1 = arith.constant 0 : index
    %c0_2 = arith.constant 0 : index
    %1 = vector.load %arg0[%c0_1, %c0_2] : memref<240x128xf32, #tpu.memory_space<vmem>>, vector<240x128xf32>
    %c0_3 = arith.constant 0 : index
    %c0_4 = arith.constant 0 : index
    %2 = vector.load %arg2[%c0_3, %c0_4] : memref<128x384xbf16, #tpu.memory_space<vmem>>, vector<128x384xbf16>
    %c0_5 = arith.constant 0 : index
    %c0_6 = arith.constant 0 : index
    %3 = vector.load %arg3[%c0_5, %c0_6] : memref<1x384xf32, #tpu.memory_space<vmem>>, vector<1x384xf32>
    %c0_7 = arith.constant 0 : index
    %c0_8 = arith.constant 0 : index
    %4 = vector.load %arg4[%c0_7, %c0_8] : memref<128x128xbf16, #tpu.memory_space<vmem>>, vector<128x128xbf16>
    %c0_9 = arith.constant 0 : index
    %c0_10 = arith.constant 0 : index
    %5 = vector.load %arg5[%c0_9, %c0_10] : memref<1x128xf32, #tpu.memory_space<vmem>>, vector<1x128xf32>
    %c0_11 = arith.constant 0 : index
    %c0_12 = arith.constant 0 : index
    %6 = vector.load %arg6[%c0_11, %c0_12] : memref<128x512xbf16, #tpu.memory_space<vmem>>, vector<128x512xbf16>
    %c0_13 = arith.constant 0 : index
    %c0_14 = arith.constant 0 : index
    %7 = vector.load %arg7[%c0_13, %c0_14] : memref<1x512xf32, #tpu.memory_space<vmem>>, vector<1x512xf32>
    %c0_15 = arith.constant 0 : index
    %c0_16 = arith.constant 0 : index
    %8 = vector.load %arg8[%c0_15, %c0_16] : memref<512x128xbf16, #tpu.memory_space<vmem>>, vector<512x128xbf16>
    %c0_17 = arith.constant 0 : index
    %c0_18 = arith.constant 0 : index
    %9 = vector.load %arg9[%c0_17, %c0_18] : memref<1x128xf32, #tpu.memory_space<vmem>>, vector<1x128xf32>
    %c0_19 = arith.constant 0 : index
    %c0_20 = arith.constant 0 : index
    %10 = vector.load %arg10[%c0_19, %c0_20] : memref<1x128xf32, #tpu.memory_space<vmem>>, vector<1x128xf32>
    %c0_21 = arith.constant 0 : index
    %c0_22 = arith.constant 0 : index
    %11 = vector.load %arg11[%c0_21, %c0_22] : memref<1x128xf32, #tpu.memory_space<vmem>>, vector<1x128xf32>
    %c0_23 = arith.constant 0 : index
    %c0_24 = arith.constant 0 : index
    %12 = vector.load %arg12[%c0_23, %c0_24] : memref<1x128xf32, #tpu.memory_space<vmem>>, vector<1x128xf32>
    %c0_25 = arith.constant 0 : index
    %c0_26 = arith.constant 0 : index
    %13 = vector.load %arg13[%c0_25, %c0_26] : memref<1x128xf32, #tpu.memory_space<vmem>>, vector<1x128xf32>
    %14 = arith.truncf %1 : vector<240x128xf32> to vector<240x128xbf16>
    %cst = arith.constant dense<0.000000e+00> : vector<240x384xf32>
    %15 = tpu.matmul %14, %2, %cst {dimension_numbers = #tpu.dot_dimension_numbers<[1], [0], [0], [1], [0, 0, 1, 1], [], []>} : vector<240x128xbf16>, vector<128x384xbf16>, vector<240x384xf32> -> vector<240x384xf32>
    %16 = vector.broadcast %3 : vector<1x384xf32> to vector<240x384xf32>
    %17 = arith.addf %15, %16 : vector<240x384xf32>
    %18 = vector.extract_strided_slice %17 {offsets = [0, 0], sizes = [240, 128], strides = [1, 1]} : vector<240x384xf32> to vector<240x128xf32>
    %cst_27 = arith.constant 2.500000e-01 : f32
    %19 = vector.broadcast %cst_27 : f32 to vector<240x128xf32>
    %20 = arith.mulf %18, %19 : vector<240x128xf32>
    %21 = vector.extract_strided_slice %17 {offsets = [0, 128], sizes = [240, 128], strides = [1, 1]} : vector<240x384xf32> to vector<240x128xf32>
    %22 = vector.extract_strided_slice %17 {offsets = [0, 256], sizes = [240, 128], strides = [1, 1]} : vector<240x384xf32> to vector<240x128xf32>
    %23 = vector.extract_strided_slice %21 {offsets = [0, 0], sizes = [120, 128], strides = [1, 1]} : vector<240x128xf32> to vector<120x128xf32>
    %24 = vector.extract_strided_slice %22 {offsets = [0, 0], sizes = [120, 128], strides = [1, 1]} : vector<240x128xf32> to vector<120x128xf32>
    %25 = tpu.concatenate %23, %23 in 0 : vector<120x128xf32>, vector<120x128xf32> -> vector<240x128xf32>
    %26 = tpu.concatenate %24, %24 in 0 : vector<120x128xf32>, vector<120x128xf32> -> vector<240x128xf32>
    %27 = arith.mulf %20, %25 : vector<240x128xf32>
    %28 = arith.truncf %27 : vector<240x128xf32> to vector<240x128xbf16>
    %cst_28 = arith.constant dense<0.000000e+00> : vector<240x128xf32>
    %29 = tpu.matmul %28, %0, %cst_28 {dimension_numbers = #tpu.dot_dimension_numbers<[1], [0], [0], [1], [0, 0, 1, 1], [], []>} : vector<240x128xbf16>, vector<128x128xbf16>, vector<240x128xf32> -> vector<240x128xf32>
    %30 = vector.extract_strided_slice %21 {offsets = [120, 0], sizes = [120, 128], strides = [1, 1]} : vector<240x128xf32> to vector<120x128xf32>
    %31 = vector.extract_strided_slice %22 {offsets = [120, 0], sizes = [120, 128], strides = [1, 1]} : vector<240x128xf32> to vector<120x128xf32>
    %32 = tpu.concatenate %30, %30 in 0 : vector<120x128xf32>, vector<120x128xf32> -> vector<240x128xf32>
    %33 = tpu.concatenate %31, %31 in 0 : vector<120x128xf32>, vector<120x128xf32> -> vector<240x128xf32>
    %34 = arith.mulf %20, %32 : vector<240x128xf32>
    %35 = arith.truncf %34 : vector<240x128xf32> to vector<240x128xbf16>
    %cst_29 = arith.constant dense<0.000000e+00> : vector<240x128xf32>
    %36 = tpu.matmul %35, %0, %cst_29 {dimension_numbers = #tpu.dot_dimension_numbers<[1], [0], [0], [1], [0, 0, 1, 1], [], []>} : vector<240x128xbf16>, vector<128x128xbf16>, vector<240x128xf32> -> vector<240x128xf32>
    %37 = arith.maximumf %29, %36 : vector<240x128xf32>
    %38 = arith.subf %29, %37 : vector<240x128xf32>
    %39 = math.exp %38 : vector<240x128xf32>
    %40 = arith.subf %36, %37 : vector<240x128xf32>
    %41 = math.exp %40 : vector<240x128xf32>
    %42 = arith.addf %39, %41 : vector<240x128xf32>
    %43 = tpu.reciprocal %42 {approx = true} : vector<240x128xf32> -> vector<240x128xf32>
    %44 = arith.mulf %39, %26 : vector<240x128xf32>
    %45 = arith.mulf %41, %33 : vector<240x128xf32>
    %46 = arith.addf %44, %45 : vector<240x128xf32>
    %47 = arith.mulf %46, %43 : vector<240x128xf32>
    %48 = arith.truncf %47 : vector<240x128xf32> to vector<240x128xbf16>
    %cst_30 = arith.constant dense<0.000000e+00> : vector<240x128xf32>
    %49 = tpu.matmul %48, %4, %cst_30 {dimension_numbers = #tpu.dot_dimension_numbers<[1], [0], [0], [1], [0, 0, 1, 1], [], []>} : vector<240x128xbf16>, vector<128x128xbf16>, vector<240x128xf32> -> vector<240x128xf32>
    %50 = vector.broadcast %5 : vector<1x128xf32> to vector<240x128xf32>
    %51 = arith.addf %49, %50 : vector<240x128xf32>
    %52 = arith.addf %1, %51 : vector<240x128xf32>
    %cst_31 = arith.constant dense<0.000000e+00> : vector<240xf32>
    %53 = vector.multi_reduction <add>, %52, %cst_31 [1] : vector<240x128xf32> to vector<240xf32>
    %54 = vector.shape_cast %53 : vector<240xf32> to vector<240x1xf32>
    %cst_32 = arith.constant 1.280000e+02 : f32
    %55 = vector.broadcast %cst_32 : f32 to vector<240x1xf32>
    %56 = arith.divf %54, %55 : vector<240x1xf32>
    %57 = vector.broadcast %56 : vector<240x1xf32> to vector<240x128xf32>
    %58 = arith.subf %52, %57 : vector<240x128xf32>
    %59 = arith.mulf %58, %58 : vector<240x128xf32>
    %cst_33 = arith.constant dense<0.000000e+00> : vector<240xf32>
    %60 = vector.multi_reduction <add>, %59, %cst_33 [1] : vector<240x128xf32> to vector<240xf32>
    %61 = vector.shape_cast %60 : vector<240xf32> to vector<240x1xf32>
    %cst_34 = arith.constant 1.280000e+02 : f32
    %62 = vector.broadcast %cst_34 : f32 to vector<240x1xf32>
    %63 = arith.divf %61, %62 : vector<240x1xf32>
    %64 = vector.broadcast %56 : vector<240x1xf32> to vector<240x128xf32>
    %65 = arith.subf %52, %64 : vector<240x128xf32>
    %cst_35 = arith.constant 9.99999974E-6 : f32
    %66 = vector.broadcast %cst_35 : f32 to vector<240x1xf32>
    %67 = arith.addf %63, %66 : vector<240x1xf32>
    %68 = math.rsqrt %67 : vector<240x1xf32>
    %69 = vector.broadcast %68 : vector<240x1xf32> to vector<240x128xf32>
    %70 = arith.mulf %65, %69 : vector<240x128xf32>
    %71 = vector.broadcast %10 : vector<1x128xf32> to vector<240x128xf32>
    %72 = arith.mulf %70, %71 : vector<240x128xf32>
    %73 = vector.broadcast %11 : vector<1x128xf32> to vector<240x128xf32>
    %74 = arith.addf %72, %73 : vector<240x128xf32>
    %75 = arith.truncf %74 : vector<240x128xf32> to vector<240x128xbf16>
    %cst_36 = arith.constant dense<0.000000e+00> : vector<240x512xf32>
    %76 = tpu.matmul %75, %6, %cst_36 {dimension_numbers = #tpu.dot_dimension_numbers<[1], [0], [0], [1], [0, 0, 1, 1], [], []>} : vector<240x128xbf16>, vector<128x512xbf16>, vector<240x512xf32> -> vector<240x512xf32>
    %77 = vector.broadcast %7 : vector<1x512xf32> to vector<240x512xf32>
    %78 = arith.addf %76, %77 : vector<240x512xf32>
    %cst_37 = arith.constant 0.000000e+00 : f32
    %79 = vector.broadcast %cst_37 : f32 to vector<240x512xf32>
    %80 = arith.maximumf %78, %79 : vector<240x512xf32>
    %81 = arith.truncf %80 : vector<240x512xf32> to vector<240x512xbf16>
    %cst_38 = arith.constant dense<0.000000e+00> : vector<240x128xf32>
    %82 = tpu.matmul %81, %8, %cst_38 {dimension_numbers = #tpu.dot_dimension_numbers<[1], [0], [0], [1], [0, 0, 1, 1], [], []>} : vector<240x512xbf16>, vector<512x128xbf16>, vector<240x128xf32> -> vector<240x128xf32>
    %83 = vector.broadcast %9 : vector<1x128xf32> to vector<240x128xf32>
    %84 = arith.addf %82, %83 : vector<240x128xf32>
    %85 = arith.addf %74, %84 : vector<240x128xf32>
    %cst_39 = arith.constant dense<0.000000e+00> : vector<240xf32>
    %86 = vector.multi_reduction <add>, %85, %cst_39 [1] : vector<240x128xf32> to vector<240xf32>
    %87 = vector.shape_cast %86 : vector<240xf32> to vector<240x1xf32>
    %cst_40 = arith.constant 1.280000e+02 : f32
    %88 = vector.broadcast %cst_40 : f32 to vector<240x1xf32>
    %89 = arith.divf %87, %88 : vector<240x1xf32>
    %90 = vector.broadcast %89 : vector<240x1xf32> to vector<240x128xf32>
    %91 = arith.subf %85, %90 : vector<240x128xf32>
    %92 = arith.mulf %91, %91 : vector<240x128xf32>
    %cst_41 = arith.constant dense<0.000000e+00> : vector<240xf32>
    %93 = vector.multi_reduction <add>, %92, %cst_41 [1] : vector<240x128xf32> to vector<240xf32>
    %94 = vector.shape_cast %93 : vector<240xf32> to vector<240x1xf32>
    %cst_42 = arith.constant 1.280000e+02 : f32
    %95 = vector.broadcast %cst_42 : f32 to vector<240x1xf32>
    %96 = arith.divf %94, %95 : vector<240x1xf32>
    %97 = vector.broadcast %89 : vector<240x1xf32> to vector<240x128xf32>
    %98 = arith.subf %85, %97 : vector<240x128xf32>
    %cst_43 = arith.constant 9.99999974E-6 : f32
    %99 = vector.broadcast %cst_43 : f32 to vector<240x1xf32>
    %100 = arith.addf %96, %99 : vector<240x1xf32>
    %101 = math.rsqrt %100 : vector<240x1xf32>
    %102 = vector.broadcast %101 : vector<240x1xf32> to vector<240x128xf32>
    %103 = arith.mulf %98, %102 : vector<240x128xf32>
    %104 = vector.broadcast %12 : vector<1x128xf32> to vector<240x128xf32>
    %105 = arith.mulf %103, %104 : vector<240x128xf32>
    %106 = vector.broadcast %13 : vector<1x128xf32> to vector<240x128xf32>
    %107 = arith.addf %105, %106 : vector<240x128xf32>
    %cst_44 = arith.constant 0.000000e+00 : f32
    %108 = vector.broadcast %cst_44 : f32 to vector<16x128xf32>
    %109 = vector.extract_strided_slice %107 {offsets = [0, 0], sizes = [8, 128], strides = [1, 1]} : vector<240x128xf32> to vector<8x128xf32>
    %110 = vector.extract_strided_slice %107 {offsets = [120, 0], sizes = [8, 128], strides = [1, 1]} : vector<240x128xf32> to vector<8x128xf32>
    %111 = tpu.concatenate %109, %110 in 0 : vector<8x128xf32>, vector<8x128xf32> -> vector<16x128xf32>
    %c0_45 = arith.constant 0 : index
    %c0_46 = arith.constant 0 : index
    %112 = vector.load %arg38[%c0_45, %c0_46] : memref<1920x128xbf16, #tpu.memory_space<vmem>>, vector<128x128xbf16>
    %113 = arith.truncf %111 : vector<16x128xf32> to vector<16x128xbf16>
    %cst_47 = arith.constant dense<0.000000e+00> : vector<16x128xf32>
    %114 = tpu.matmul %113, %112, %cst_47 {dimension_numbers = #tpu.dot_dimension_numbers<[1], [0], [0], [1], [0, 0, 1, 1], [], []>} : vector<16x128xbf16>, vector<128x128xbf16>, vector<16x128xf32> -> vector<16x128xf32>
    %115 = arith.addf %108, %114 : vector<16x128xf32>
    %116 = vector.extract_strided_slice %107 {offsets = [8, 0], sizes = [8, 128], strides = [1, 1]} : vector<240x128xf32> to vector<8x128xf32>
    %117 = vector.extract_strided_slice %107 {offsets = [128, 0], sizes = [8, 128], strides = [1, 1]} : vector<240x128xf32> to vector<8x128xf32>
    %118 = tpu.concatenate %116, %117 in 0 : vector<8x128xf32>, vector<8x128xf32> -> vector<16x128xf32>
    %c128 = arith.constant 128 : index
    %c0_48 = arith.constant 0 : index
    %119 = vector.load %arg38[%c128, %c0_48] : memref<1920x128xbf16, #tpu.memory_space<vmem>>, vector<128x128xbf16>
    %120 = arith.truncf %118 : vector<16x128xf32> to vector<16x128xbf16>
    %cst_49 = arith.constant dense<0.000000e+00> : vector<16x128xf32>
    %121 = tpu.matmul %120, %119, %cst_49 {dimension_numbers = #tpu.dot_dimension_numbers<[1], [0], [0], [1], [0, 0, 1, 1], [], []>} : vector<16x128xbf16>, vector<128x128xbf16>, vector<16x128xf32> -> vector<16x128xf32>
    %122 = arith.addf %115, %121 : vector<16x128xf32>
    %123 = vector.extract_strided_slice %107 {offsets = [16, 0], sizes = [8, 128], strides = [1, 1]} : vector<240x128xf32> to vector<8x128xf32>
    %124 = vector.extract_strided_slice %107 {offsets = [136, 0], sizes = [8, 128], strides = [1, 1]} : vector<240x128xf32> to vector<8x128xf32>
    %125 = tpu.concatenate %123, %124 in 0 : vector<8x128xf32>, vector<8x128xf32> -> vector<16x128xf32>
    %c256 = arith.constant 256 : index
    %c0_50 = arith.constant 0 : index
    %126 = vector.load %arg38[%c256, %c0_50] : memref<1920x128xbf16, #tpu.memory_space<vmem>>, vector<128x128xbf16>
    %127 = arith.truncf %125 : vector<16x128xf32> to vector<16x128xbf16>
    %cst_51 = arith.constant dense<0.000000e+00> : vector<16x128xf32>
    %128 = tpu.matmul %127, %126, %cst_51 {dimension_numbers = #tpu.dot_dimension_numbers<[1], [0], [0], [1], [0, 0, 1, 1], [], []>} : vector<16x128xbf16>, vector<128x128xbf16>, vector<16x128xf32> -> vector<16x128xf32>
    %129 = arith.addf %122, %128 : vector<16x128xf32>
    %130 = vector.extract_strided_slice %107 {offsets = [24, 0], sizes = [8, 128], strides = [1, 1]} : vector<240x128xf32> to vector<8x128xf32>
    %131 = vector.extract_strided_slice %107 {offsets = [144, 0], sizes = [8, 128], strides = [1, 1]} : vector<240x128xf32> to vector<8x128xf32>
    %132 = tpu.concatenate %130, %131 in 0 : vector<8x128xf32>, vector<8x128xf32> -> vector<16x128xf32>
    %c384 = arith.constant 384 : index
    %c0_52 = arith.constant 0 : index
    %133 = vector.load %arg38[%c384, %c0_52] : memref<1920x128xbf16, #tpu.memory_space<vmem>>, vector<128x128xbf16>
    %134 = arith.truncf %132 : vector<16x128xf32> to vector<16x128xbf16>
    %cst_53 = arith.constant dense<0.000000e+00> : vector<16x128xf32>
    %135 = tpu.matmul %134, %133, %cst_53 {dimension_numbers = #tpu.dot_dimension_numbers<[1], [0], [0], [1], [0, 0, 1, 1], [], []>} : vector<16x128xbf16>, vector<128x128xbf16>, vector<16x128xf32> -> vector<16x128xf32>
    %136 = arith.addf %129, %135 : vector<16x128xf32>
    %137 = vector.extract_strided_slice %107 {offsets = [32, 0], sizes = [8, 128], strides = [1, 1]} : vector<240x128xf32> to vector<8x128xf32>
    %138 = vector.extract_strided_slice %107 {offsets = [152, 0], sizes = [8, 128], strides = [1, 1]} : vector<240x128xf32> to vector<8x128xf32>
    %139 = tpu.concatenate %137, %138 in 0 : vector<8x128xf32>, vector<8x128xf32> -> vector<16x128xf32>
    %c512 = arith.constant 512 : index
    %c0_54 = arith.constant 0 : index
    %140 = vector.load %arg38[%c512, %c0_54] : memref<1920x128xbf16, #tpu.memory_space<vmem>>, vector<128x128xbf16>
    %141 = arith.truncf %139 : vector<16x128xf32> to vector<16x128xbf16>
    %cst_55 = arith.constant dense<0.000000e+00> : vector<16x128xf32>
    %142 = tpu.matmul %141, %140, %cst_55 {dimension_numbers = #tpu.dot_dimension_numbers<[1], [0], [0], [1], [0, 0, 1, 1], [], []>} : vector<16x128xbf16>, vector<128x128xbf16>, vector<16x128xf32> -> vector<16x128xf32>
    %143 = arith.addf %136, %142 : vector<16x128xf32>
    %144 = vector.extract_strided_slice %107 {offsets = [40, 0], sizes = [8, 128], strides = [1, 1]} : vector<240x128xf32> to vector<8x128xf32>
    %145 = vector.extract_strided_slice %107 {offsets = [160, 0], sizes = [8, 128], strides = [1, 1]} : vector<240x128xf32> to vector<8x128xf32>
    %146 = tpu.concatenate %144, %145 in 0 : vector<8x128xf32>, vector<8x128xf32> -> vector<16x128xf32>
    %c640 = arith.constant 640 : index
    %c0_56 = arith.constant 0 : index
    %147 = vector.load %arg38[%c640, %c0_56] : memref<1920x128xbf16, #tpu.memory_space<vmem>>, vector<128x128xbf16>
    %148 = arith.truncf %146 : vector<16x128xf32> to vector<16x128xbf16>
    %cst_57 = arith.constant dense<0.000000e+00> : vector<16x128xf32>
    %149 = tpu.matmul %148, %147, %cst_57 {dimension_numbers = #tpu.dot_dimension_numbers<[1], [0], [0], [1], [0, 0, 1, 1], [], []>} : vector<16x128xbf16>, vector<128x128xbf16>, vector<16x128xf32> -> vector<16x128xf32>
    %150 = arith.addf %143, %149 : vector<16x128xf32>
    %151 = vector.extract_strided_slice %107 {offsets = [48, 0], sizes = [8, 128], strides = [1, 1]} : vector<240x128xf32> to vector<8x128xf32>
    %152 = vector.extract_strided_slice %107 {offsets = [168, 0], sizes = [8, 128], strides = [1, 1]} : vector<240x128xf32> to vector<8x128xf32>
    %153 = tpu.concatenate %151, %152 in 0 : vector<8x128xf32>, vector<8x128xf32> -> vector<16x128xf32>
    %c768 = arith.constant 768 : index
    %c0_58 = arith.constant 0 : index
    %154 = vector.load %arg38[%c768, %c0_58] : memref<1920x128xbf16, #tpu.memory_space<vmem>>, vector<128x128xbf16>
    %155 = arith.truncf %153 : vector<16x128xf32> to vector<16x128xbf16>
    %cst_59 = arith.constant dense<0.000000e+00> : vector<16x128xf32>
    %156 = tpu.matmul %155, %154, %cst_59 {dimension_numbers = #tpu.dot_dimension_numbers<[1], [0], [0], [1], [0, 0, 1, 1], [], []>} : vector<16x128xbf16>, vector<128x128xbf16>, vector<16x128xf32> -> vector<16x128xf32>
    %157 = arith.addf %150, %156 : vector<16x128xf32>
    %158 = vector.extract_strided_slice %107 {offsets = [56, 0], sizes = [8, 128], strides = [1, 1]} : vector<240x128xf32> to vector<8x128xf32>
    %159 = vector.extract_strided_slice %107 {offsets = [176, 0], sizes = [8, 128], strides = [1, 1]} : vector<240x128xf32> to vector<8x128xf32>
    %160 = tpu.concatenate %158, %159 in 0 : vector<8x128xf32>, vector<8x128xf32> -> vector<16x128xf32>
    %c896 = arith.constant 896 : index
    %c0_60 = arith.constant 0 : index
    %161 = vector.load %arg38[%c896, %c0_60] : memref<1920x128xbf16, #tpu.memory_space<vmem>>, vector<128x128xbf16>
    %162 = arith.truncf %160 : vector<16x128xf32> to vector<16x128xbf16>
    %cst_61 = arith.constant dense<0.000000e+00> : vector<16x128xf32>
    %163 = tpu.matmul %162, %161, %cst_61 {dimension_numbers = #tpu.dot_dimension_numbers<[1], [0], [0], [1], [0, 0, 1, 1], [], []>} : vector<16x128xbf16>, vector<128x128xbf16>, vector<16x128xf32> -> vector<16x128xf32>
    %164 = arith.addf %157, %163 : vector<16x128xf32>
    %165 = vector.extract_strided_slice %107 {offsets = [64, 0], sizes = [8, 128], strides = [1, 1]} : vector<240x128xf32> to vector<8x128xf32>
    %166 = vector.extract_strided_slice %107 {offsets = [184, 0], sizes = [8, 128], strides = [1, 1]} : vector<240x128xf32> to vector<8x128xf32>
    %167 = tpu.concatenate %165, %166 in 0 : vector<8x128xf32>, vector<8x128xf32> -> vector<16x128xf32>
    %c1024 = arith.constant 1024 : index
    %c0_62 = arith.constant 0 : index
    %168 = vector.load %arg38[%c1024, %c0_62] : memref<1920x128xbf16, #tpu.memory_space<vmem>>, vector<128x128xbf16>
    %169 = arith.truncf %167 : vector<16x128xf32> to vector<16x128xbf16>
    %cst_63 = arith.constant dense<0.000000e+00> : vector<16x128xf32>
    %170 = tpu.matmul %169, %168, %cst_63 {dimension_numbers = #tpu.dot_dimension_numbers<[1], [0], [0], [1], [0, 0, 1, 1], [], []>} : vector<16x128xbf16>, vector<128x128xbf16>, vector<16x128xf32> -> vector<16x128xf32>
    %171 = arith.addf %164, %170 : vector<16x128xf32>
    %172 = vector.extract_strided_slice %107 {offsets = [72, 0], sizes = [8, 128], strides = [1, 1]} : vector<240x128xf32> to vector<8x128xf32>
    %173 = vector.extract_strided_slice %107 {offsets = [192, 0], sizes = [8, 128], strides = [1, 1]} : vector<240x128xf32> to vector<8x128xf32>
    %174 = tpu.concatenate %172, %173 in 0 : vector<8x128xf32>, vector<8x128xf32> -> vector<16x128xf32>
    %c1152 = arith.constant 1152 : index
    %c0_64 = arith.constant 0 : index
    %175 = vector.load %arg38[%c1152, %c0_64] : memref<1920x128xbf16, #tpu.memory_space<vmem>>, vector<128x128xbf16>
    %176 = arith.truncf %174 : vector<16x128xf32> to vector<16x128xbf16>
    %cst_65 = arith.constant dense<0.000000e+00> : vector<16x128xf32>
    %177 = tpu.matmul %176, %175, %cst_65 {dimension_numbers = #tpu.dot_dimension_numbers<[1], [0], [0], [1], [0, 0, 1, 1], [], []>} : vector<16x128xbf16>, vector<128x128xbf16>, vector<16x128xf32> -> vector<16x128xf32>
    %178 = arith.addf %171, %177 : vector<16x128xf32>
    %179 = vector.extract_strided_slice %107 {offsets = [80, 0], sizes = [8, 128], strides = [1, 1]} : vector<240x128xf32> to vector<8x128xf32>
    %180 = vector.extract_strided_slice %107 {offsets = [200, 0], sizes = [8, 128], strides = [1, 1]} : vector<240x128xf32> to vector<8x128xf32>
    %181 = tpu.concatenate %179, %180 in 0 : vector<8x128xf32>, vector<8x128xf32> -> vector<16x128xf32>
    %c1280 = arith.constant 1280 : index
    %c0_66 = arith.constant 0 : index
    %182 = vector.load %arg38[%c1280, %c0_66] : memref<1920x128xbf16, #tpu.memory_space<vmem>>, vector<128x128xbf16>
    %183 = arith.truncf %181 : vector<16x128xf32> to vector<16x128xbf16>
    %cst_67 = arith.constant dense<0.000000e+00> : vector<16x128xf32>
    %184 = tpu.matmul %183, %182, %cst_67 {dimension_numbers = #tpu.dot_dimension_numbers<[1], [0], [0], [1], [0, 0, 1, 1], [], []>} : vector<16x128xbf16>, vector<128x128xbf16>, vector<16x128xf32> -> vector<16x128xf32>
    %185 = arith.addf %178, %184 : vector<16x128xf32>
    %186 = vector.extract_strided_slice %107 {offsets = [88, 0], sizes = [8, 128], strides = [1, 1]} : vector<240x128xf32> to vector<8x128xf32>
    %187 = vector.extract_strided_slice %107 {offsets = [208, 0], sizes = [8, 128], strides = [1, 1]} : vector<240x128xf32> to vector<8x128xf32>
    %188 = tpu.concatenate %186, %187 in 0 : vector<8x128xf32>, vector<8x128xf32> -> vector<16x128xf32>
    %c1408 = arith.constant 1408 : index
    %c0_68 = arith.constant 0 : index
    %189 = vector.load %arg38[%c1408, %c0_68] : memref<1920x128xbf16, #tpu.memory_space<vmem>>, vector<128x128xbf16>
    %190 = arith.truncf %188 : vector<16x128xf32> to vector<16x128xbf16>
    %cst_69 = arith.constant dense<0.000000e+00> : vector<16x128xf32>
    %191 = tpu.matmul %190, %189, %cst_69 {dimension_numbers = #tpu.dot_dimension_numbers<[1], [0], [0], [1], [0, 0, 1, 1], [], []>} : vector<16x128xbf16>, vector<128x128xbf16>, vector<16x128xf32> -> vector<16x128xf32>
    %192 = arith.addf %185, %191 : vector<16x128xf32>
    %193 = vector.extract_strided_slice %107 {offsets = [96, 0], sizes = [8, 128], strides = [1, 1]} : vector<240x128xf32> to vector<8x128xf32>
    %194 = vector.extract_strided_slice %107 {offsets = [216, 0], sizes = [8, 128], strides = [1, 1]} : vector<240x128xf32> to vector<8x128xf32>
    %195 = tpu.concatenate %193, %194 in 0 : vector<8x128xf32>, vector<8x128xf32> -> vector<16x128xf32>
    %c1536 = arith.constant 1536 : index
    %c0_70 = arith.constant 0 : index
    %196 = vector.load %arg38[%c1536, %c0_70] : memref<1920x128xbf16, #tpu.memory_space<vmem>>, vector<128x128xbf16>
    %197 = arith.truncf %195 : vector<16x128xf32> to vector<16x128xbf16>
    %cst_71 = arith.constant dense<0.000000e+00> : vector<16x128xf32>
    %198 = tpu.matmul %197, %196, %cst_71 {dimension_numbers = #tpu.dot_dimension_numbers<[1], [0], [0], [1], [0, 0, 1, 1], [], []>} : vector<16x128xbf16>, vector<128x128xbf16>, vector<16x128xf32> -> vector<16x128xf32>
    %199 = arith.addf %192, %198 : vector<16x128xf32>
    %200 = vector.extract_strided_slice %107 {offsets = [104, 0], sizes = [8, 128], strides = [1, 1]} : vector<240x128xf32> to vector<8x128xf32>
    %201 = vector.extract_strided_slice %107 {offsets = [224, 0], sizes = [8, 128], strides = [1, 1]} : vector<240x128xf32> to vector<8x128xf32>
    %202 = tpu.concatenate %200, %201 in 0 : vector<8x128xf32>, vector<8x128xf32> -> vector<16x128xf32>
    %c1664 = arith.constant 1664 : index
    %c0_72 = arith.constant 0 : index
    %203 = vector.load %arg38[%c1664, %c0_72] : memref<1920x128xbf16, #tpu.memory_space<vmem>>, vector<128x128xbf16>
    %204 = arith.truncf %202 : vector<16x128xf32> to vector<16x128xbf16>
    %cst_73 = arith.constant dense<0.000000e+00> : vector<16x128xf32>
    %205 = tpu.matmul %204, %203, %cst_73 {dimension_numbers = #tpu.dot_dimension_numbers<[1], [0], [0], [1], [0, 0, 1, 1], [], []>} : vector<16x128xbf16>, vector<128x128xbf16>, vector<16x128xf32> -> vector<16x128xf32>
    %206 = arith.addf %199, %205 : vector<16x128xf32>
    %207 = vector.extract_strided_slice %107 {offsets = [112, 0], sizes = [8, 128], strides = [1, 1]} : vector<240x128xf32> to vector<8x128xf32>
    %208 = vector.extract_strided_slice %107 {offsets = [232, 0], sizes = [8, 128], strides = [1, 1]} : vector<240x128xf32> to vector<8x128xf32>
    %209 = tpu.concatenate %207, %208 in 0 : vector<8x128xf32>, vector<8x128xf32> -> vector<16x128xf32>
    %c1792 = arith.constant 1792 : index
    %c0_74 = arith.constant 0 : index
    %210 = vector.load %arg38[%c1792, %c0_74] : memref<1920x128xbf16, #tpu.memory_space<vmem>>, vector<128x128xbf16>
    %211 = arith.truncf %209 : vector<16x128xf32> to vector<16x128xbf16>
    %cst_75 = arith.constant dense<0.000000e+00> : vector<16x128xf32>
    %212 = tpu.matmul %211, %210, %cst_75 {dimension_numbers = #tpu.dot_dimension_numbers<[1], [0], [0], [1], [0, 0, 1, 1], [], []>} : vector<16x128xbf16>, vector<128x128xbf16>, vector<16x128xf32> -> vector<16x128xf32>
    %213 = arith.addf %206, %212 : vector<16x128xf32>
    %c0_76 = arith.constant 0 : index
    %c0_77 = arith.constant 0 : index
    %214 = vector.load %arg39[%c0_76, %c0_77] : memref<1x128xf32, #tpu.memory_space<vmem>>, vector<1x128xf32>
    %215 = vector.broadcast %214 : vector<1x128xf32> to vector<16x128xf32>
    %216 = arith.addf %213, %215 : vector<16x128xf32>
    %c0_78 = arith.constant 0 : index
    %c0_79 = arith.constant 0 : index
    %217 = vector.load %arg14[%c0_78, %c0_79] : memref<128x384xbf16, #tpu.memory_space<vmem>>, vector<128x384xbf16>
    %c0_80 = arith.constant 0 : index
    %c0_81 = arith.constant 0 : index
    %218 = vector.load %arg15[%c0_80, %c0_81] : memref<1x384xf32, #tpu.memory_space<vmem>>, vector<1x384xf32>
    %c0_82 = arith.constant 0 : index
    %c0_83 = arith.constant 0 : index
    %219 = vector.load %arg16[%c0_82, %c0_83] : memref<128x128xbf16, #tpu.memory_space<vmem>>, vector<128x128xbf16>
    %c0_84 = arith.constant 0 : index
    %c0_85 = arith.constant 0 : index
    %220 = vector.load %arg17[%c0_84, %c0_85] : memref<1x128xf32, #tpu.memory_space<vmem>>, vector<1x128xf32>
    %c0_86 = arith.constant 0 : index
    %c0_87 = arith.constant 0 : index
    %221 = vector.load %arg18[%c0_86, %c0_87] : memref<128x512xbf16, #tpu.memory_space<vmem>>, vector<128x512xbf16>
    %c0_88 = arith.constant 0 : index
    %c0_89 = arith.constant 0 : index
    %222 = vector.load %arg19[%c0_88, %c0_89] : memref<1x512xf32, #tpu.memory_space<vmem>>, vector<1x512xf32>
    %c0_90 = arith.constant 0 : index
    %c0_91 = arith.constant 0 : index
    %223 = vector.load %arg20[%c0_90, %c0_91] : memref<512x128xbf16, #tpu.memory_space<vmem>>, vector<512x128xbf16>
    %c0_92 = arith.constant 0 : index
    %c0_93 = arith.constant 0 : index
    %224 = vector.load %arg21[%c0_92, %c0_93] : memref<1x128xf32, #tpu.memory_space<vmem>>, vector<1x128xf32>
    %c0_94 = arith.constant 0 : index
    %c0_95 = arith.constant 0 : index
    %225 = vector.load %arg22[%c0_94, %c0_95] : memref<1x128xf32, #tpu.memory_space<vmem>>, vector<1x128xf32>
    %c0_96 = arith.constant 0 : index
    %c0_97 = arith.constant 0 : index
    %226 = vector.load %arg23[%c0_96, %c0_97] : memref<1x128xf32, #tpu.memory_space<vmem>>, vector<1x128xf32>
    %c0_98 = arith.constant 0 : index
    %c0_99 = arith.constant 0 : index
    %227 = vector.load %arg24[%c0_98, %c0_99] : memref<1x128xf32, #tpu.memory_space<vmem>>, vector<1x128xf32>
    %c0_100 = arith.constant 0 : index
    %c0_101 = arith.constant 0 : index
    %228 = vector.load %arg25[%c0_100, %c0_101] : memref<1x128xf32, #tpu.memory_space<vmem>>, vector<1x128xf32>
    %229 = arith.truncf %216 : vector<16x128xf32> to vector<16x128xbf16>
    %cst_102 = arith.constant dense<0.000000e+00> : vector<16x384xf32>
    %230 = tpu.matmul %229, %217, %cst_102 {dimension_numbers = #tpu.dot_dimension_numbers<[1], [0], [0], [1], [0, 0, 1, 1], [], []>} : vector<16x128xbf16>, vector<128x384xbf16>, vector<16x384xf32> -> vector<16x384xf32>
    %231 = vector.broadcast %218 : vector<1x384xf32> to vector<16x384xf32>
    %232 = arith.addf %230, %231 : vector<16x384xf32>
    %233 = vector.extract_strided_slice %232 {offsets = [0, 0], sizes = [16, 128], strides = [1, 1]} : vector<16x384xf32> to vector<16x128xf32>
    %cst_103 = arith.constant 2.500000e-01 : f32
    %234 = vector.broadcast %cst_103 : f32 to vector<16x128xf32>
    %235 = arith.mulf %233, %234 : vector<16x128xf32>
    %236 = vector.extract_strided_slice %232 {offsets = [0, 128], sizes = [16, 128], strides = [1, 1]} : vector<16x384xf32> to vector<16x128xf32>
    %237 = vector.extract_strided_slice %232 {offsets = [0, 256], sizes = [16, 128], strides = [1, 1]} : vector<16x384xf32> to vector<16x128xf32>
    %238 = vector.extract_strided_slice %236 {offsets = [0, 0], sizes = [1, 128], strides = [1, 1]} : vector<16x128xf32> to vector<1x128xf32>
    %239 = vector.shape_cast %238 : vector<1x128xf32> to vector<1x128xf32>
    %240 = vector.broadcast %239 : vector<1x128xf32> to vector<8x128xf32>
    %241 = vector.extract_strided_slice %236 {offsets = [8, 0], sizes = [1, 128], strides = [1, 1]} : vector<16x128xf32> to vector<1x128xf32>
    %242 = vector.shape_cast %241 : vector<1x128xf32> to vector<1x128xf32>
    %243 = vector.broadcast %242 : vector<1x128xf32> to vector<8x128xf32>
    %244 = tpu.concatenate %240, %243 in 0 : vector<8x128xf32>, vector<8x128xf32> -> vector<16x128xf32>
    %245 = vector.extract_strided_slice %237 {offsets = [0, 0], sizes = [1, 128], strides = [1, 1]} : vector<16x128xf32> to vector<1x128xf32>
    %246 = vector.shape_cast %245 : vector<1x128xf32> to vector<1x128xf32>
    %247 = vector.broadcast %246 : vector<1x128xf32> to vector<8x128xf32>
    %248 = vector.extract_strided_slice %237 {offsets = [8, 0], sizes = [1, 128], strides = [1, 1]} : vector<16x128xf32> to vector<1x128xf32>
    %249 = vector.shape_cast %248 : vector<1x128xf32> to vector<1x128xf32>
    %250 = vector.broadcast %249 : vector<1x128xf32> to vector<8x128xf32>
    %251 = tpu.concatenate %247, %250 in 0 : vector<8x128xf32>, vector<8x128xf32> -> vector<16x128xf32>
    %252 = arith.mulf %235, %244 : vector<16x128xf32>
    %253 = arith.truncf %252 : vector<16x128xf32> to vector<16x128xbf16>
    %cst_104 = arith.constant dense<0.000000e+00> : vector<16x128xf32>
    %254 = tpu.matmul %253, %0, %cst_104 {dimension_numbers = #tpu.dot_dimension_numbers<[1], [0], [0], [1], [0, 0, 1, 1], [], []>} : vector<16x128xbf16>, vector<128x128xbf16>, vector<16x128xf32> -> vector<16x128xf32>
    %255 = vector.extract_strided_slice %236 {offsets = [1, 0], sizes = [1, 128], strides = [1, 1]} : vector<16x128xf32> to vector<1x128xf32>
    %256 = vector.shape_cast %255 : vector<1x128xf32> to vector<1x128xf32>
    %257 = vector.broadcast %256 : vector<1x128xf32> to vector<8x128xf32>
    %258 = vector.extract_strided_slice %236 {offsets = [9, 0], sizes = [1, 128], strides = [1, 1]} : vector<16x128xf32> to vector<1x128xf32>
    %259 = vector.shape_cast %258 : vector<1x128xf32> to vector<1x128xf32>
    %260 = vector.broadcast %259 : vector<1x128xf32> to vector<8x128xf32>
    %261 = tpu.concatenate %257, %260 in 0 : vector<8x128xf32>, vector<8x128xf32> -> vector<16x128xf32>
    %262 = vector.extract_strided_slice %237 {offsets = [1, 0], sizes = [1, 128], strides = [1, 1]} : vector<16x128xf32> to vector<1x128xf32>
    %263 = vector.shape_cast %262 : vector<1x128xf32> to vector<1x128xf32>
    %264 = vector.broadcast %263 : vector<1x128xf32> to vector<8x128xf32>
    %265 = vector.extract_strided_slice %237 {offsets = [9, 0], sizes = [1, 128], strides = [1, 1]} : vector<16x128xf32> to vector<1x128xf32>
    %266 = vector.shape_cast %265 : vector<1x128xf32> to vector<1x128xf32>
    %267 = vector.broadcast %266 : vector<1x128xf32> to vector<8x128xf32>
    %268 = tpu.concatenate %264, %267 in 0 : vector<8x128xf32>, vector<8x128xf32> -> vector<16x128xf32>
    %269 = arith.mulf %235, %261 : vector<16x128xf32>
    %270 = arith.truncf %269 : vector<16x128xf32> to vector<16x128xbf16>
    %cst_105 = arith.constant dense<0.000000e+00> : vector<16x128xf32>
    %271 = tpu.matmul %270, %0, %cst_105 {dimension_numbers = #tpu.dot_dimension_numbers<[1], [0], [0], [1], [0, 0, 1, 1], [], []>} : vector<16x128xbf16>, vector<128x128xbf16>, vector<16x128xf32> -> vector<16x128xf32>
    %272 = vector.extract_strided_slice %236 {offsets = [2, 0], sizes = [1, 128], strides = [1, 1]} : vector<16x128xf32> to vector<1x128xf32>
    %273 = vector.shape_cast %272 : vector<1x128xf32> to vector<1x128xf32>
    %274 = vector.broadcast %273 : vector<1x128xf32> to vector<8x128xf32>
    %275 = vector.extract_strided_slice %236 {offsets = [10, 0], sizes = [1, 128], strides = [1, 1]} : vector<16x128xf32> to vector<1x128xf32>
    %276 = vector.shape_cast %275 : vector<1x128xf32> to vector<1x128xf32>
    %277 = vector.broadcast %276 : vector<1x128xf32> to vector<8x128xf32>
    %278 = tpu.concatenate %274, %277 in 0 : vector<8x128xf32>, vector<8x128xf32> -> vector<16x128xf32>
    %279 = vector.extract_strided_slice %237 {offsets = [2, 0], sizes = [1, 128], strides = [1, 1]} : vector<16x128xf32> to vector<1x128xf32>
    %280 = vector.shape_cast %279 : vector<1x128xf32> to vector<1x128xf32>
    %281 = vector.broadcast %280 : vector<1x128xf32> to vector<8x128xf32>
    %282 = vector.extract_strided_slice %237 {offsets = [10, 0], sizes = [1, 128], strides = [1, 1]} : vector<16x128xf32> to vector<1x128xf32>
    %283 = vector.shape_cast %282 : vector<1x128xf32> to vector<1x128xf32>
    %284 = vector.broadcast %283 : vector<1x128xf32> to vector<8x128xf32>
    %285 = tpu.concatenate %281, %284 in 0 : vector<8x128xf32>, vector<8x128xf32> -> vector<16x128xf32>
    %286 = arith.mulf %235, %278 : vector<16x128xf32>
    %287 = arith.truncf %286 : vector<16x128xf32> to vector<16x128xbf16>
    %cst_106 = arith.constant dense<0.000000e+00> : vector<16x128xf32>
    %288 = tpu.matmul %287, %0, %cst_106 {dimension_numbers = #tpu.dot_dimension_numbers<[1], [0], [0], [1], [0, 0, 1, 1], [], []>} : vector<16x128xbf16>, vector<128x128xbf16>, vector<16x128xf32> -> vector<16x128xf32>
    %289 = vector.extract_strided_slice %236 {offsets = [3, 0], sizes = [1, 128], strides = [1, 1]} : vector<16x128xf32> to vector<1x128xf32>
    %290 = vector.shape_cast %289 : vector<1x128xf32> to vector<1x128xf32>
    %291 = vector.broadcast %290 : vector<1x128xf32> to vector<8x128xf32>
    %292 = vector.extract_strided_slice %236 {offsets = [11, 0], sizes = [1, 128], strides = [1, 1]} : vector<16x128xf32> to vector<1x128xf32>
    %293 = vector.shape_cast %292 : vector<1x128xf32> to vector<1x128xf32>
    %294 = vector.broadcast %293 : vector<1x128xf32> to vector<8x128xf32>
    %295 = tpu.concatenate %291, %294 in 0 : vector<8x128xf32>, vector<8x128xf32> -> vector<16x128xf32>
    %296 = vector.extract_strided_slice %237 {offsets = [3, 0], sizes = [1, 128], strides = [1, 1]} : vector<16x128xf32> to vector<1x128xf32>
    %297 = vector.shape_cast %296 : vector<1x128xf32> to vector<1x128xf32>
    %298 = vector.broadcast %297 : vector<1x128xf32> to vector<8x128xf32>
    %299 = vector.extract_strided_slice %237 {offsets = [11, 0], sizes = [1, 128], strides = [1, 1]} : vector<16x128xf32> to vector<1x128xf32>
    %300 = vector.shape_cast %299 : vector<1x128xf32> to vector<1x128xf32>
    %301 = vector.broadcast %300 : vector<1x128xf32> to vector<8x128xf32>
    %302 = tpu.concatenate %298, %301 in 0 : vector<8x128xf32>, vector<8x128xf32> -> vector<16x128xf32>
    %303 = arith.mulf %235, %295 : vector<16x128xf32>
    %304 = arith.truncf %303 : vector<16x128xf32> to vector<16x128xbf16>
    %cst_107 = arith.constant dense<0.000000e+00> : vector<16x128xf32>
    %305 = tpu.matmul %304, %0, %cst_107 {dimension_numbers = #tpu.dot_dimension_numbers<[1], [0], [0], [1], [0, 0, 1, 1], [], []>} : vector<16x128xbf16>, vector<128x128xbf16>, vector<16x128xf32> -> vector<16x128xf32>
    %306 = vector.extract_strided_slice %236 {offsets = [4, 0], sizes = [1, 128], strides = [1, 1]} : vector<16x128xf32> to vector<1x128xf32>
    %307 = vector.shape_cast %306 : vector<1x128xf32> to vector<1x128xf32>
    %308 = vector.broadcast %307 : vector<1x128xf32> to vector<8x128xf32>
    %309 = vector.extract_strided_slice %236 {offsets = [12, 0], sizes = [1, 128], strides = [1, 1]} : vector<16x128xf32> to vector<1x128xf32>
    %310 = vector.shape_cast %309 : vector<1x128xf32> to vector<1x128xf32>
    %311 = vector.broadcast %310 : vector<1x128xf32> to vector<8x128xf32>
    %312 = tpu.concatenate %308, %311 in 0 : vector<8x128xf32>, vector<8x128xf32> -> vector<16x128xf32>
    %313 = vector.extract_strided_slice %237 {offsets = [4, 0], sizes = [1, 128], strides = [1, 1]} : vector<16x128xf32> to vector<1x128xf32>
    %314 = vector.shape_cast %313 : vector<1x128xf32> to vector<1x128xf32>
    %315 = vector.broadcast %314 : vector<1x128xf32> to vector<8x128xf32>
    %316 = vector.extract_strided_slice %237 {offsets = [12, 0], sizes = [1, 128], strides = [1, 1]} : vector<16x128xf32> to vector<1x128xf32>
    %317 = vector.shape_cast %316 : vector<1x128xf32> to vector<1x128xf32>
    %318 = vector.broadcast %317 : vector<1x128xf32> to vector<8x128xf32>
    %319 = tpu.concatenate %315, %318 in 0 : vector<8x128xf32>, vector<8x128xf32> -> vector<16x128xf32>
    %320 = arith.mulf %235, %312 : vector<16x128xf32>
    %321 = arith.truncf %320 : vector<16x128xf32> to vector<16x128xbf16>
    %cst_108 = arith.constant dense<0.000000e+00> : vector<16x128xf32>
    %322 = tpu.matmul %321, %0, %cst_108 {dimension_numbers = #tpu.dot_dimension_numbers<[1], [0], [0], [1], [0, 0, 1, 1], [], []>} : vector<16x128xbf16>, vector<128x128xbf16>, vector<16x128xf32> -> vector<16x128xf32>
    %323 = vector.extract_strided_slice %236 {offsets = [5, 0], sizes = [1, 128], strides = [1, 1]} : vector<16x128xf32> to vector<1x128xf32>
    %324 = vector.shape_cast %323 : vector<1x128xf32> to vector<1x128xf32>
    %325 = vector.broadcast %324 : vector<1x128xf32> to vector<8x128xf32>
    %326 = vector.extract_strided_slice %236 {offsets = [13, 0], sizes = [1, 128], strides = [1, 1]} : vector<16x128xf32> to vector<1x128xf32>
    %327 = vector.shape_cast %326 : vector<1x128xf32> to vector<1x128xf32>
    %328 = vector.broadcast %327 : vector<1x128xf32> to vector<8x128xf32>
    %329 = tpu.concatenate %325, %328 in 0 : vector<8x128xf32>, vector<8x128xf32> -> vector<16x128xf32>
    %330 = vector.extract_strided_slice %237 {offsets = [5, 0], sizes = [1, 128], strides = [1, 1]} : vector<16x128xf32> to vector<1x128xf32>
    %331 = vector.shape_cast %330 : vector<1x128xf32> to vector<1x128xf32>
    %332 = vector.broadcast %331 : vector<1x128xf32> to vector<8x128xf32>
    %333 = vector.extract_strided_slice %237 {offsets = [13, 0], sizes = [1, 128], strides = [1, 1]} : vector<16x128xf32> to vector<1x128xf32>
    %334 = vector.shape_cast %333 : vector<1x128xf32> to vector<1x128xf32>
    %335 = vector.broadcast %334 : vector<1x128xf32> to vector<8x128xf32>
    %336 = tpu.concatenate %332, %335 in 0 : vector<8x128xf32>, vector<8x128xf32> -> vector<16x128xf32>
    %337 = arith.mulf %235, %329 : vector<16x128xf32>
    %338 = arith.truncf %337 : vector<16x128xf32> to vector<16x128xbf16>
    %cst_109 = arith.constant dense<0.000000e+00> : vector<16x128xf32>
    %339 = tpu.matmul %338, %0, %cst_109 {dimension_numbers = #tpu.dot_dimension_numbers<[1], [0], [0], [1], [0, 0, 1, 1], [], []>} : vector<16x128xbf16>, vector<128x128xbf16>, vector<16x128xf32> -> vector<16x128xf32>
    %340 = vector.extract_strided_slice %236 {offsets = [6, 0], sizes = [1, 128], strides = [1, 1]} : vector<16x128xf32> to vector<1x128xf32>
    %341 = vector.shape_cast %340 : vector<1x128xf32> to vector<1x128xf32>
    %342 = vector.broadcast %341 : vector<1x128xf32> to vector<8x128xf32>
    %343 = vector.extract_strided_slice %236 {offsets = [14, 0], sizes = [1, 128], strides = [1, 1]} : vector<16x128xf32> to vector<1x128xf32>
    %344 = vector.shape_cast %343 : vector<1x128xf32> to vector<1x128xf32>
    %345 = vector.broadcast %344 : vector<1x128xf32> to vector<8x128xf32>
    %346 = tpu.concatenate %342, %345 in 0 : vector<8x128xf32>, vector<8x128xf32> -> vector<16x128xf32>
    %347 = vector.extract_strided_slice %237 {offsets = [6, 0], sizes = [1, 128], strides = [1, 1]} : vector<16x128xf32> to vector<1x128xf32>
    %348 = vector.shape_cast %347 : vector<1x128xf32> to vector<1x128xf32>
    %349 = vector.broadcast %348 : vector<1x128xf32> to vector<8x128xf32>
    %350 = vector.extract_strided_slice %237 {offsets = [14, 0], sizes = [1, 128], strides = [1, 1]} : vector<16x128xf32> to vector<1x128xf32>
    %351 = vector.shape_cast %350 : vector<1x128xf32> to vector<1x128xf32>
    %352 = vector.broadcast %351 : vector<1x128xf32> to vector<8x128xf32>
    %353 = tpu.concatenate %349, %352 in 0 : vector<8x128xf32>, vector<8x128xf32> -> vector<16x128xf32>
    %354 = arith.mulf %235, %346 : vector<16x128xf32>
    %355 = arith.truncf %354 : vector<16x128xf32> to vector<16x128xbf16>
    %cst_110 = arith.constant dense<0.000000e+00> : vector<16x128xf32>
    %356 = tpu.matmul %355, %0, %cst_110 {dimension_numbers = #tpu.dot_dimension_numbers<[1], [0], [0], [1], [0, 0, 1, 1], [], []>} : vector<16x128xbf16>, vector<128x128xbf16>, vector<16x128xf32> -> vector<16x128xf32>
    %357 = vector.extract_strided_slice %236 {offsets = [7, 0], sizes = [1, 128], strides = [1, 1]} : vector<16x128xf32> to vector<1x128xf32>
    %358 = vector.shape_cast %357 : vector<1x128xf32> to vector<1x128xf32>
    %359 = vector.broadcast %358 : vector<1x128xf32> to vector<8x128xf32>
    %360 = vector.extract_strided_slice %236 {offsets = [15, 0], sizes = [1, 128], strides = [1, 1]} : vector<16x128xf32> to vector<1x128xf32>
    %361 = vector.shape_cast %360 : vector<1x128xf32> to vector<1x128xf32>
    %362 = vector.broadcast %361 : vector<1x128xf32> to vector<8x128xf32>
    %363 = tpu.concatenate %359, %362 in 0 : vector<8x128xf32>, vector<8x128xf32> -> vector<16x128xf32>
    %364 = vector.extract_strided_slice %237 {offsets = [7, 0], sizes = [1, 128], strides = [1, 1]} : vector<16x128xf32> to vector<1x128xf32>
    %365 = vector.shape_cast %364 : vector<1x128xf32> to vector<1x128xf32>
    %366 = vector.broadcast %365 : vector<1x128xf32> to vector<8x128xf32>
    %367 = vector.extract_strided_slice %237 {offsets = [15, 0], sizes = [1, 128], strides = [1, 1]} : vector<16x128xf32> to vector<1x128xf32>
    %368 = vector.shape_cast %367 : vector<1x128xf32> to vector<1x128xf32>
    %369 = vector.broadcast %368 : vector<1x128xf32> to vector<8x128xf32>
    %370 = tpu.concatenate %366, %369 in 0 : vector<8x128xf32>, vector<8x128xf32> -> vector<16x128xf32>
    %371 = arith.mulf %235, %363 : vector<16x128xf32>
    %372 = arith.truncf %371 : vector<16x128xf32> to vector<16x128xbf16>
    %cst_111 = arith.constant dense<0.000000e+00> : vector<16x128xf32>
    %373 = tpu.matmul %372, %0, %cst_111 {dimension_numbers = #tpu.dot_dimension_numbers<[1], [0], [0], [1], [0, 0, 1, 1], [], []>} : vector<16x128xbf16>, vector<128x128xbf16>, vector<16x128xf32> -> vector<16x128xf32>
    %374 = arith.maximumf %254, %271 : vector<16x128xf32>
    %375 = arith.maximumf %374, %288 : vector<16x128xf32>
    %376 = arith.maximumf %375, %305 : vector<16x128xf32>
    %377 = arith.maximumf %376, %322 : vector<16x128xf32>
    %378 = arith.maximumf %377, %339 : vector<16x128xf32>
    %379 = arith.maximumf %378, %356 : vector<16x128xf32>
    %380 = arith.maximumf %379, %373 : vector<16x128xf32>
    %381 = arith.subf %254, %380 : vector<16x128xf32>
    %382 = math.exp %381 : vector<16x128xf32>
    %383 = arith.subf %271, %380 : vector<16x128xf32>
    %384 = math.exp %383 : vector<16x128xf32>
    %385 = arith.subf %288, %380 : vector<16x128xf32>
    %386 = math.exp %385 : vector<16x128xf32>
    %387 = arith.subf %305, %380 : vector<16x128xf32>
    %388 = math.exp %387 : vector<16x128xf32>
    %389 = arith.subf %322, %380 : vector<16x128xf32>
    %390 = math.exp %389 : vector<16x128xf32>
    %391 = arith.subf %339, %380 : vector<16x128xf32>
    %392 = math.exp %391 : vector<16x128xf32>
    %393 = arith.subf %356, %380 : vector<16x128xf32>
    %394 = math.exp %393 : vector<16x128xf32>
    %395 = arith.subf %373, %380 : vector<16x128xf32>
    %396 = math.exp %395 : vector<16x128xf32>
    %397 = arith.addf %382, %384 : vector<16x128xf32>
    %398 = arith.addf %397, %386 : vector<16x128xf32>
    %399 = arith.addf %398, %388 : vector<16x128xf32>
    %400 = arith.addf %399, %390 : vector<16x128xf32>
    %401 = arith.addf %400, %392 : vector<16x128xf32>
    %402 = arith.addf %401, %394 : vector<16x128xf32>
    %403 = arith.addf %402, %396 : vector<16x128xf32>
    %404 = tpu.reciprocal %403 {approx = true} : vector<16x128xf32> -> vector<16x128xf32>
    %405 = arith.mulf %382, %251 : vector<16x128xf32>
    %406 = arith.mulf %384, %268 : vector<16x128xf32>
    %407 = arith.mulf %386, %285 : vector<16x128xf32>
    %408 = arith.mulf %388, %302 : vector<16x128xf32>
    %409 = arith.mulf %390, %319 : vector<16x128xf32>
    %410 = arith.mulf %392, %336 : vector<16x128xf32>
    %411 = arith.mulf %394, %353 : vector<16x128xf32>
    %412 = arith.mulf %396, %370 : vector<16x128xf32>
    %413 = arith.addf %405, %406 : vector<16x128xf32>
    %414 = arith.addf %413, %407 : vector<16x128xf32>
    %415 = arith.addf %414, %408 : vector<16x128xf32>
    %416 = arith.addf %415, %409 : vector<16x128xf32>
    %417 = arith.addf %416, %410 : vector<16x128xf32>
    %418 = arith.addf %417, %411 : vector<16x128xf32>
    %419 = arith.addf %418, %412 : vector<16x128xf32>
    %420 = arith.mulf %419, %404 : vector<16x128xf32>
    %421 = arith.truncf %420 : vector<16x128xf32> to vector<16x128xbf16>
    %cst_112 = arith.constant dense<0.000000e+00> : vector<16x128xf32>
    %422 = tpu.matmul %421, %219, %cst_112 {dimension_numbers = #tpu.dot_dimension_numbers<[1], [0], [0], [1], [0, 0, 1, 1], [], []>} : vector<16x128xbf16>, vector<128x128xbf16>, vector<16x128xf32> -> vector<16x128xf32>
    %423 = vector.broadcast %220 : vector<1x128xf32> to vector<16x128xf32>
    %424 = arith.addf %422, %423 : vector<16x128xf32>
    %425 = arith.addf %216, %424 : vector<16x128xf32>
    %cst_113 = arith.constant dense<0.000000e+00> : vector<16xf32>
    %426 = vector.multi_reduction <add>, %425, %cst_113 [1] : vector<16x128xf32> to vector<16xf32>
    %427 = vector.shape_cast %426 : vector<16xf32> to vector<16x1xf32>
    %cst_114 = arith.constant 1.280000e+02 : f32
    %428 = vector.broadcast %cst_114 : f32 to vector<16x1xf32>
    %429 = arith.divf %427, %428 : vector<16x1xf32>
    %430 = vector.broadcast %429 : vector<16x1xf32> to vector<16x128xf32>
    %431 = arith.subf %425, %430 : vector<16x128xf32>
    %432 = arith.mulf %431, %431 : vector<16x128xf32>
    %cst_115 = arith.constant dense<0.000000e+00> : vector<16xf32>
    %433 = vector.multi_reduction <add>, %432, %cst_115 [1] : vector<16x128xf32> to vector<16xf32>
    %434 = vector.shape_cast %433 : vector<16xf32> to vector<16x1xf32>
    %cst_116 = arith.constant 1.280000e+02 : f32
    %435 = vector.broadcast %cst_116 : f32 to vector<16x1xf32>
    %436 = arith.divf %434, %435 : vector<16x1xf32>
    %437 = vector.broadcast %429 : vector<16x1xf32> to vector<16x128xf32>
    %438 = arith.subf %425, %437 : vector<16x128xf32>
    %cst_117 = arith.constant 9.99999974E-6 : f32
    %439 = vector.broadcast %cst_117 : f32 to vector<16x1xf32>
    %440 = arith.addf %436, %439 : vector<16x1xf32>
    %441 = math.rsqrt %440 : vector<16x1xf32>
    %442 = vector.broadcast %441 : vector<16x1xf32> to vector<16x128xf32>
    %443 = arith.mulf %438, %442 : vector<16x128xf32>
    %444 = vector.broadcast %225 : vector<1x128xf32> to vector<16x128xf32>
    %445 = arith.mulf %443, %444 : vector<16x128xf32>
    %446 = vector.broadcast %226 : vector<1x128xf32> to vector<16x128xf32>
    %447 = arith.addf %445, %446 : vector<16x128xf32>
    %448 = arith.truncf %447 : vector<16x128xf32> to vector<16x128xbf16>
    %cst_118 = arith.constant dense<0.000000e+00> : vector<16x512xf32>
    %449 = tpu.matmul %448, %221, %cst_118 {dimension_numbers = #tpu.dot_dimension_numbers<[1], [0], [0], [1], [0, 0, 1, 1], [], []>} : vector<16x128xbf16>, vector<128x512xbf16>, vector<16x512xf32> -> vector<16x512xf32>
    %450 = vector.broadcast %222 : vector<1x512xf32> to vector<16x512xf32>
    %451 = arith.addf %449, %450 : vector<16x512xf32>
    %cst_119 = arith.constant 0.000000e+00 : f32
    %452 = vector.broadcast %cst_119 : f32 to vector<16x512xf32>
    %453 = arith.maximumf %451, %452 : vector<16x512xf32>
    %454 = arith.truncf %453 : vector<16x512xf32> to vector<16x512xbf16>
    %cst_120 = arith.constant dense<0.000000e+00> : vector<16x128xf32>
    %455 = tpu.matmul %454, %223, %cst_120 {dimension_numbers = #tpu.dot_dimension_numbers<[1], [0], [0], [1], [0, 0, 1, 1], [], []>} : vector<16x512xbf16>, vector<512x128xbf16>, vector<16x128xf32> -> vector<16x128xf32>
    %456 = vector.broadcast %224 : vector<1x128xf32> to vector<16x128xf32>
    %457 = arith.addf %455, %456 : vector<16x128xf32>
    %458 = arith.addf %447, %457 : vector<16x128xf32>
    %cst_121 = arith.constant dense<0.000000e+00> : vector<16xf32>
    %459 = vector.multi_reduction <add>, %458, %cst_121 [1] : vector<16x128xf32> to vector<16xf32>
    %460 = vector.shape_cast %459 : vector<16xf32> to vector<16x1xf32>
    %cst_122 = arith.constant 1.280000e+02 : f32
    %461 = vector.broadcast %cst_122 : f32 to vector<16x1xf32>
    %462 = arith.divf %460, %461 : vector<16x1xf32>
    %463 = vector.broadcast %462 : vector<16x1xf32> to vector<16x128xf32>
    %464 = arith.subf %458, %463 : vector<16x128xf32>
    %465 = arith.mulf %464, %464 : vector<16x128xf32>
    %cst_123 = arith.constant dense<0.000000e+00> : vector<16xf32>
    %466 = vector.multi_reduction <add>, %465, %cst_123 [1] : vector<16x128xf32> to vector<16xf32>
    %467 = vector.shape_cast %466 : vector<16xf32> to vector<16x1xf32>
    %cst_124 = arith.constant 1.280000e+02 : f32
    %468 = vector.broadcast %cst_124 : f32 to vector<16x1xf32>
    %469 = arith.divf %467, %468 : vector<16x1xf32>
    %470 = vector.broadcast %462 : vector<16x1xf32> to vector<16x128xf32>
    %471 = arith.subf %458, %470 : vector<16x128xf32>
    %cst_125 = arith.constant 9.99999974E-6 : f32
    %472 = vector.broadcast %cst_125 : f32 to vector<16x1xf32>
    %473 = arith.addf %469, %472 : vector<16x1xf32>
    %474 = math.rsqrt %473 : vector<16x1xf32>
    %475 = vector.broadcast %474 : vector<16x1xf32> to vector<16x128xf32>
    %476 = arith.mulf %471, %475 : vector<16x128xf32>
    %477 = vector.broadcast %227 : vector<1x128xf32> to vector<16x128xf32>
    %478 = arith.mulf %476, %477 : vector<16x128xf32>
    %479 = vector.broadcast %228 : vector<1x128xf32> to vector<16x128xf32>
    %480 = arith.addf %478, %479 : vector<16x128xf32>
    %c0_126 = arith.constant 0 : index
    %c0_127 = arith.constant 0 : index
    %481 = vector.load %arg26[%c0_126, %c0_127] : memref<128x384xbf16, #tpu.memory_space<vmem>>, vector<128x384xbf16>
    %c0_128 = arith.constant 0 : index
    %c0_129 = arith.constant 0 : index
    %482 = vector.load %arg27[%c0_128, %c0_129] : memref<1x384xf32, #tpu.memory_space<vmem>>, vector<1x384xf32>
    %c0_130 = arith.constant 0 : index
    %c0_131 = arith.constant 0 : index
    %483 = vector.load %arg28[%c0_130, %c0_131] : memref<128x128xbf16, #tpu.memory_space<vmem>>, vector<128x128xbf16>
    %c0_132 = arith.constant 0 : index
    %c0_133 = arith.constant 0 : index
    %484 = vector.load %arg29[%c0_132, %c0_133] : memref<1x128xf32, #tpu.memory_space<vmem>>, vector<1x128xf32>
    %c0_134 = arith.constant 0 : index
    %c0_135 = arith.constant 0 : index
    %485 = vector.load %arg30[%c0_134, %c0_135] : memref<128x512xbf16, #tpu.memory_space<vmem>>, vector<128x512xbf16>
    %c0_136 = arith.constant 0 : index
    %c0_137 = arith.constant 0 : index
    %486 = vector.load %arg31[%c0_136, %c0_137] : memref<1x512xf32, #tpu.memory_space<vmem>>, vector<1x512xf32>
    %c0_138 = arith.constant 0 : index
    %c0_139 = arith.constant 0 : index
    %487 = vector.load %arg32[%c0_138, %c0_139] : memref<512x128xbf16, #tpu.memory_space<vmem>>, vector<512x128xbf16>
    %c0_140 = arith.constant 0 : index
    %c0_141 = arith.constant 0 : index
    %488 = vector.load %arg33[%c0_140, %c0_141] : memref<1x128xf32, #tpu.memory_space<vmem>>, vector<1x128xf32>
    %c0_142 = arith.constant 0 : index
    %c0_143 = arith.constant 0 : index
    %489 = vector.load %arg34[%c0_142, %c0_143] : memref<1x128xf32, #tpu.memory_space<vmem>>, vector<1x128xf32>
    %c0_144 = arith.constant 0 : index
    %c0_145 = arith.constant 0 : index
    %490 = vector.load %arg35[%c0_144, %c0_145] : memref<1x128xf32, #tpu.memory_space<vmem>>, vector<1x128xf32>
    %c0_146 = arith.constant 0 : index
    %c0_147 = arith.constant 0 : index
    %491 = vector.load %arg36[%c0_146, %c0_147] : memref<1x128xf32, #tpu.memory_space<vmem>>, vector<1x128xf32>
    %c0_148 = arith.constant 0 : index
    %c0_149 = arith.constant 0 : index
    %492 = vector.load %arg37[%c0_148, %c0_149] : memref<1x128xf32, #tpu.memory_space<vmem>>, vector<1x128xf32>
    %493 = arith.truncf %480 : vector<16x128xf32> to vector<16x128xbf16>
    %cst_150 = arith.constant dense<0.000000e+00> : vector<16x384xf32>
    %494 = tpu.matmul %493, %481, %cst_150 {dimension_numbers = #tpu.dot_dimension_numbers<[1], [0], [0], [1], [0, 0, 1, 1], [], []>} : vector<16x128xbf16>, vector<128x384xbf16>, vector<16x384xf32> -> vector<16x384xf32>
    %495 = vector.broadcast %482 : vector<1x384xf32> to vector<16x384xf32>
    %496 = arith.addf %494, %495 : vector<16x384xf32>
    %497 = vector.extract_strided_slice %496 {offsets = [0, 0], sizes = [16, 128], strides = [1, 1]} : vector<16x384xf32> to vector<16x128xf32>
    %cst_151 = arith.constant 2.500000e-01 : f32
    %498 = vector.broadcast %cst_151 : f32 to vector<16x128xf32>
    %499 = arith.mulf %497, %498 : vector<16x128xf32>
    %500 = vector.extract_strided_slice %496 {offsets = [0, 128], sizes = [16, 128], strides = [1, 1]} : vector<16x384xf32> to vector<16x128xf32>
    %501 = vector.extract_strided_slice %496 {offsets = [0, 256], sizes = [16, 128], strides = [1, 1]} : vector<16x384xf32> to vector<16x128xf32>
    %502 = vector.extract_strided_slice %500 {offsets = [0, 0], sizes = [1, 128], strides = [1, 1]} : vector<16x128xf32> to vector<1x128xf32>
    %503 = vector.shape_cast %502 : vector<1x128xf32> to vector<1x128xf32>
    %504 = vector.broadcast %503 : vector<1x128xf32> to vector<8x128xf32>
    %505 = vector.extract_strided_slice %500 {offsets = [8, 0], sizes = [1, 128], strides = [1, 1]} : vector<16x128xf32> to vector<1x128xf32>
    %506 = vector.shape_cast %505 : vector<1x128xf32> to vector<1x128xf32>
    %507 = vector.broadcast %506 : vector<1x128xf32> to vector<8x128xf32>
    %508 = tpu.concatenate %504, %507 in 0 : vector<8x128xf32>, vector<8x128xf32> -> vector<16x128xf32>
    %509 = vector.extract_strided_slice %501 {offsets = [0, 0], sizes = [1, 128], strides = [1, 1]} : vector<16x128xf32> to vector<1x128xf32>
    %510 = vector.shape_cast %509 : vector<1x128xf32> to vector<1x128xf32>
    %511 = vector.broadcast %510 : vector<1x128xf32> to vector<8x128xf32>
    %512 = vector.extract_strided_slice %501 {offsets = [8, 0], sizes = [1, 128], strides = [1, 1]} : vector<16x128xf32> to vector<1x128xf32>
    %513 = vector.shape_cast %512 : vector<1x128xf32> to vector<1x128xf32>
    %514 = vector.broadcast %513 : vector<1x128xf32> to vector<8x128xf32>
    %515 = tpu.concatenate %511, %514 in 0 : vector<8x128xf32>, vector<8x128xf32> -> vector<16x128xf32>
    %516 = arith.mulf %499, %508 : vector<16x128xf32>
    %517 = arith.truncf %516 : vector<16x128xf32> to vector<16x128xbf16>
    %cst_152 = arith.constant dense<0.000000e+00> : vector<16x128xf32>
    %518 = tpu.matmul %517, %0, %cst_152 {dimension_numbers = #tpu.dot_dimension_numbers<[1], [0], [0], [1], [0, 0, 1, 1], [], []>} : vector<16x128xbf16>, vector<128x128xbf16>, vector<16x128xf32> -> vector<16x128xf32>
    %519 = vector.extract_strided_slice %500 {offsets = [1, 0], sizes = [1, 128], strides = [1, 1]} : vector<16x128xf32> to vector<1x128xf32>
    %520 = vector.shape_cast %519 : vector<1x128xf32> to vector<1x128xf32>
    %521 = vector.broadcast %520 : vector<1x128xf32> to vector<8x128xf32>
    %522 = vector.extract_strided_slice %500 {offsets = [9, 0], sizes = [1, 128], strides = [1, 1]} : vector<16x128xf32> to vector<1x128xf32>
    %523 = vector.shape_cast %522 : vector<1x128xf32> to vector<1x128xf32>
    %524 = vector.broadcast %523 : vector<1x128xf32> to vector<8x128xf32>
    %525 = tpu.concatenate %521, %524 in 0 : vector<8x128xf32>, vector<8x128xf32> -> vector<16x128xf32>
    %526 = vector.extract_strided_slice %501 {offsets = [1, 0], sizes = [1, 128], strides = [1, 1]} : vector<16x128xf32> to vector<1x128xf32>
    %527 = vector.shape_cast %526 : vector<1x128xf32> to vector<1x128xf32>
    %528 = vector.broadcast %527 : vector<1x128xf32> to vector<8x128xf32>
    %529 = vector.extract_strided_slice %501 {offsets = [9, 0], sizes = [1, 128], strides = [1, 1]} : vector<16x128xf32> to vector<1x128xf32>
    %530 = vector.shape_cast %529 : vector<1x128xf32> to vector<1x128xf32>
    %531 = vector.broadcast %530 : vector<1x128xf32> to vector<8x128xf32>
    %532 = tpu.concatenate %528, %531 in 0 : vector<8x128xf32>, vector<8x128xf32> -> vector<16x128xf32>
    %533 = arith.mulf %499, %525 : vector<16x128xf32>
    %534 = arith.truncf %533 : vector<16x128xf32> to vector<16x128xbf16>
    %cst_153 = arith.constant dense<0.000000e+00> : vector<16x128xf32>
    %535 = tpu.matmul %534, %0, %cst_153 {dimension_numbers = #tpu.dot_dimension_numbers<[1], [0], [0], [1], [0, 0, 1, 1], [], []>} : vector<16x128xbf16>, vector<128x128xbf16>, vector<16x128xf32> -> vector<16x128xf32>
    %536 = vector.extract_strided_slice %500 {offsets = [2, 0], sizes = [1, 128], strides = [1, 1]} : vector<16x128xf32> to vector<1x128xf32>
    %537 = vector.shape_cast %536 : vector<1x128xf32> to vector<1x128xf32>
    %538 = vector.broadcast %537 : vector<1x128xf32> to vector<8x128xf32>
    %539 = vector.extract_strided_slice %500 {offsets = [10, 0], sizes = [1, 128], strides = [1, 1]} : vector<16x128xf32> to vector<1x128xf32>
    %540 = vector.shape_cast %539 : vector<1x128xf32> to vector<1x128xf32>
    %541 = vector.broadcast %540 : vector<1x128xf32> to vector<8x128xf32>
    %542 = tpu.concatenate %538, %541 in 0 : vector<8x128xf32>, vector<8x128xf32> -> vector<16x128xf32>
    %543 = vector.extract_strided_slice %501 {offsets = [2, 0], sizes = [1, 128], strides = [1, 1]} : vector<16x128xf32> to vector<1x128xf32>
    %544 = vector.shape_cast %543 : vector<1x128xf32> to vector<1x128xf32>
    %545 = vector.broadcast %544 : vector<1x128xf32> to vector<8x128xf32>
    %546 = vector.extract_strided_slice %501 {offsets = [10, 0], sizes = [1, 128], strides = [1, 1]} : vector<16x128xf32> to vector<1x128xf32>
    %547 = vector.shape_cast %546 : vector<1x128xf32> to vector<1x128xf32>
    %548 = vector.broadcast %547 : vector<1x128xf32> to vector<8x128xf32>
    %549 = tpu.concatenate %545, %548 in 0 : vector<8x128xf32>, vector<8x128xf32> -> vector<16x128xf32>
    %550 = arith.mulf %499, %542 : vector<16x128xf32>
    %551 = arith.truncf %550 : vector<16x128xf32> to vector<16x128xbf16>
    %cst_154 = arith.constant dense<0.000000e+00> : vector<16x128xf32>
    %552 = tpu.matmul %551, %0, %cst_154 {dimension_numbers = #tpu.dot_dimension_numbers<[1], [0], [0], [1], [0, 0, 1, 1], [], []>} : vector<16x128xbf16>, vector<128x128xbf16>, vector<16x128xf32> -> vector<16x128xf32>
    %553 = vector.extract_strided_slice %500 {offsets = [3, 0], sizes = [1, 128], strides = [1, 1]} : vector<16x128xf32> to vector<1x128xf32>
    %554 = vector.shape_cast %553 : vector<1x128xf32> to vector<1x128xf32>
    %555 = vector.broadcast %554 : vector<1x128xf32> to vector<8x128xf32>
    %556 = vector.extract_strided_slice %500 {offsets = [11, 0], sizes = [1, 128], strides = [1, 1]} : vector<16x128xf32> to vector<1x128xf32>
    %557 = vector.shape_cast %556 : vector<1x128xf32> to vector<1x128xf32>
    %558 = vector.broadcast %557 : vector<1x128xf32> to vector<8x128xf32>
    %559 = tpu.concatenate %555, %558 in 0 : vector<8x128xf32>, vector<8x128xf32> -> vector<16x128xf32>
    %560 = vector.extract_strided_slice %501 {offsets = [3, 0], sizes = [1, 128], strides = [1, 1]} : vector<16x128xf32> to vector<1x128xf32>
    %561 = vector.shape_cast %560 : vector<1x128xf32> to vector<1x128xf32>
    %562 = vector.broadcast %561 : vector<1x128xf32> to vector<8x128xf32>
    %563 = vector.extract_strided_slice %501 {offsets = [11, 0], sizes = [1, 128], strides = [1, 1]} : vector<16x128xf32> to vector<1x128xf32>
    %564 = vector.shape_cast %563 : vector<1x128xf32> to vector<1x128xf32>
    %565 = vector.broadcast %564 : vector<1x128xf32> to vector<8x128xf32>
    %566 = tpu.concatenate %562, %565 in 0 : vector<8x128xf32>, vector<8x128xf32> -> vector<16x128xf32>
    %567 = arith.mulf %499, %559 : vector<16x128xf32>
    %568 = arith.truncf %567 : vector<16x128xf32> to vector<16x128xbf16>
    %cst_155 = arith.constant dense<0.000000e+00> : vector<16x128xf32>
    %569 = tpu.matmul %568, %0, %cst_155 {dimension_numbers = #tpu.dot_dimension_numbers<[1], [0], [0], [1], [0, 0, 1, 1], [], []>} : vector<16x128xbf16>, vector<128x128xbf16>, vector<16x128xf32> -> vector<16x128xf32>
    %570 = vector.extract_strided_slice %500 {offsets = [4, 0], sizes = [1, 128], strides = [1, 1]} : vector<16x128xf32> to vector<1x128xf32>
    %571 = vector.shape_cast %570 : vector<1x128xf32> to vector<1x128xf32>
    %572 = vector.broadcast %571 : vector<1x128xf32> to vector<8x128xf32>
    %573 = vector.extract_strided_slice %500 {offsets = [12, 0], sizes = [1, 128], strides = [1, 1]} : vector<16x128xf32> to vector<1x128xf32>
    %574 = vector.shape_cast %573 : vector<1x128xf32> to vector<1x128xf32>
    %575 = vector.broadcast %574 : vector<1x128xf32> to vector<8x128xf32>
    %576 = tpu.concatenate %572, %575 in 0 : vector<8x128xf32>, vector<8x128xf32> -> vector<16x128xf32>
    %577 = vector.extract_strided_slice %501 {offsets = [4, 0], sizes = [1, 128], strides = [1, 1]} : vector<16x128xf32> to vector<1x128xf32>
    %578 = vector.shape_cast %577 : vector<1x128xf32> to vector<1x128xf32>
    %579 = vector.broadcast %578 : vector<1x128xf32> to vector<8x128xf32>
    %580 = vector.extract_strided_slice %501 {offsets = [12, 0], sizes = [1, 128], strides = [1, 1]} : vector<16x128xf32> to vector<1x128xf32>
    %581 = vector.shape_cast %580 : vector<1x128xf32> to vector<1x128xf32>
    %582 = vector.broadcast %581 : vector<1x128xf32> to vector<8x128xf32>
    %583 = tpu.concatenate %579, %582 in 0 : vector<8x128xf32>, vector<8x128xf32> -> vector<16x128xf32>
    %584 = arith.mulf %499, %576 : vector<16x128xf32>
    %585 = arith.truncf %584 : vector<16x128xf32> to vector<16x128xbf16>
    %cst_156 = arith.constant dense<0.000000e+00> : vector<16x128xf32>
    %586 = tpu.matmul %585, %0, %cst_156 {dimension_numbers = #tpu.dot_dimension_numbers<[1], [0], [0], [1], [0, 0, 1, 1], [], []>} : vector<16x128xbf16>, vector<128x128xbf16>, vector<16x128xf32> -> vector<16x128xf32>
    %587 = vector.extract_strided_slice %500 {offsets = [5, 0], sizes = [1, 128], strides = [1, 1]} : vector<16x128xf32> to vector<1x128xf32>
    %588 = vector.shape_cast %587 : vector<1x128xf32> to vector<1x128xf32>
    %589 = vector.broadcast %588 : vector<1x128xf32> to vector<8x128xf32>
    %590 = vector.extract_strided_slice %500 {offsets = [13, 0], sizes = [1, 128], strides = [1, 1]} : vector<16x128xf32> to vector<1x128xf32>
    %591 = vector.shape_cast %590 : vector<1x128xf32> to vector<1x128xf32>
    %592 = vector.broadcast %591 : vector<1x128xf32> to vector<8x128xf32>
    %593 = tpu.concatenate %589, %592 in 0 : vector<8x128xf32>, vector<8x128xf32> -> vector<16x128xf32>
    %594 = vector.extract_strided_slice %501 {offsets = [5, 0], sizes = [1, 128], strides = [1, 1]} : vector<16x128xf32> to vector<1x128xf32>
    %595 = vector.shape_cast %594 : vector<1x128xf32> to vector<1x128xf32>
    %596 = vector.broadcast %595 : vector<1x128xf32> to vector<8x128xf32>
    %597 = vector.extract_strided_slice %501 {offsets = [13, 0], sizes = [1, 128], strides = [1, 1]} : vector<16x128xf32> to vector<1x128xf32>
    %598 = vector.shape_cast %597 : vector<1x128xf32> to vector<1x128xf32>
    %599 = vector.broadcast %598 : vector<1x128xf32> to vector<8x128xf32>
    %600 = tpu.concatenate %596, %599 in 0 : vector<8x128xf32>, vector<8x128xf32> -> vector<16x128xf32>
    %601 = arith.mulf %499, %593 : vector<16x128xf32>
    %602 = arith.truncf %601 : vector<16x128xf32> to vector<16x128xbf16>
    %cst_157 = arith.constant dense<0.000000e+00> : vector<16x128xf32>
    %603 = tpu.matmul %602, %0, %cst_157 {dimension_numbers = #tpu.dot_dimension_numbers<[1], [0], [0], [1], [0, 0, 1, 1], [], []>} : vector<16x128xbf16>, vector<128x128xbf16>, vector<16x128xf32> -> vector<16x128xf32>
    %604 = vector.extract_strided_slice %500 {offsets = [6, 0], sizes = [1, 128], strides = [1, 1]} : vector<16x128xf32> to vector<1x128xf32>
    %605 = vector.shape_cast %604 : vector<1x128xf32> to vector<1x128xf32>
    %606 = vector.broadcast %605 : vector<1x128xf32> to vector<8x128xf32>
    %607 = vector.extract_strided_slice %500 {offsets = [14, 0], sizes = [1, 128], strides = [1, 1]} : vector<16x128xf32> to vector<1x128xf32>
    %608 = vector.shape_cast %607 : vector<1x128xf32> to vector<1x128xf32>
    %609 = vector.broadcast %608 : vector<1x128xf32> to vector<8x128xf32>
    %610 = tpu.concatenate %606, %609 in 0 : vector<8x128xf32>, vector<8x128xf32> -> vector<16x128xf32>
    %611 = vector.extract_strided_slice %501 {offsets = [6, 0], sizes = [1, 128], strides = [1, 1]} : vector<16x128xf32> to vector<1x128xf32>
    %612 = vector.shape_cast %611 : vector<1x128xf32> to vector<1x128xf32>
    %613 = vector.broadcast %612 : vector<1x128xf32> to vector<8x128xf32>
    %614 = vector.extract_strided_slice %501 {offsets = [14, 0], sizes = [1, 128], strides = [1, 1]} : vector<16x128xf32> to vector<1x128xf32>
    %615 = vector.shape_cast %614 : vector<1x128xf32> to vector<1x128xf32>
    %616 = vector.broadcast %615 : vector<1x128xf32> to vector<8x128xf32>
    %617 = tpu.concatenate %613, %616 in 0 : vector<8x128xf32>, vector<8x128xf32> -> vector<16x128xf32>
    %618 = arith.mulf %499, %610 : vector<16x128xf32>
    %619 = arith.truncf %618 : vector<16x128xf32> to vector<16x128xbf16>
    %cst_158 = arith.constant dense<0.000000e+00> : vector<16x128xf32>
    %620 = tpu.matmul %619, %0, %cst_158 {dimension_numbers = #tpu.dot_dimension_numbers<[1], [0], [0], [1], [0, 0, 1, 1], [], []>} : vector<16x128xbf16>, vector<128x128xbf16>, vector<16x128xf32> -> vector<16x128xf32>
    %621 = vector.extract_strided_slice %500 {offsets = [7, 0], sizes = [1, 128], strides = [1, 1]} : vector<16x128xf32> to vector<1x128xf32>
    %622 = vector.shape_cast %621 : vector<1x128xf32> to vector<1x128xf32>
    %623 = vector.broadcast %622 : vector<1x128xf32> to vector<8x128xf32>
    %624 = vector.extract_strided_slice %500 {offsets = [15, 0], sizes = [1, 128], strides = [1, 1]} : vector<16x128xf32> to vector<1x128xf32>
    %625 = vector.shape_cast %624 : vector<1x128xf32> to vector<1x128xf32>
    %626 = vector.broadcast %625 : vector<1x128xf32> to vector<8x128xf32>
    %627 = tpu.concatenate %623, %626 in 0 : vector<8x128xf32>, vector<8x128xf32> -> vector<16x128xf32>
    %628 = vector.extract_strided_slice %501 {offsets = [7, 0], sizes = [1, 128], strides = [1, 1]} : vector<16x128xf32> to vector<1x128xf32>
    %629 = vector.shape_cast %628 : vector<1x128xf32> to vector<1x128xf32>
    %630 = vector.broadcast %629 : vector<1x128xf32> to vector<8x128xf32>
    %631 = vector.extract_strided_slice %501 {offsets = [15, 0], sizes = [1, 128], strides = [1, 1]} : vector<16x128xf32> to vector<1x128xf32>
    %632 = vector.shape_cast %631 : vector<1x128xf32> to vector<1x128xf32>
    %633 = vector.broadcast %632 : vector<1x128xf32> to vector<8x128xf32>
    %634 = tpu.concatenate %630, %633 in 0 : vector<8x128xf32>, vector<8x128xf32> -> vector<16x128xf32>
    %635 = arith.mulf %499, %627 : vector<16x128xf32>
    %636 = arith.truncf %635 : vector<16x128xf32> to vector<16x128xbf16>
    %cst_159 = arith.constant dense<0.000000e+00> : vector<16x128xf32>
    %637 = tpu.matmul %636, %0, %cst_159 {dimension_numbers = #tpu.dot_dimension_numbers<[1], [0], [0], [1], [0, 0, 1, 1], [], []>} : vector<16x128xbf16>, vector<128x128xbf16>, vector<16x128xf32> -> vector<16x128xf32>
    %638 = arith.maximumf %518, %535 : vector<16x128xf32>
    %639 = arith.maximumf %638, %552 : vector<16x128xf32>
    %640 = arith.maximumf %639, %569 : vector<16x128xf32>
    %641 = arith.maximumf %640, %586 : vector<16x128xf32>
    %642 = arith.maximumf %641, %603 : vector<16x128xf32>
    %643 = arith.maximumf %642, %620 : vector<16x128xf32>
    %644 = arith.maximumf %643, %637 : vector<16x128xf32>
    %645 = arith.subf %518, %644 : vector<16x128xf32>
    %646 = math.exp %645 : vector<16x128xf32>
    %647 = arith.subf %535, %644 : vector<16x128xf32>
    %648 = math.exp %647 : vector<16x128xf32>
    %649 = arith.subf %552, %644 : vector<16x128xf32>
    %650 = math.exp %649 : vector<16x128xf32>
    %651 = arith.subf %569, %644 : vector<16x128xf32>
    %652 = math.exp %651 : vector<16x128xf32>
    %653 = arith.subf %586, %644 : vector<16x128xf32>
    %654 = math.exp %653 : vector<16x128xf32>
    %655 = arith.subf %603, %644 : vector<16x128xf32>
    %656 = math.exp %655 : vector<16x128xf32>
    %657 = arith.subf %620, %644 : vector<16x128xf32>
    %658 = math.exp %657 : vector<16x128xf32>
    %659 = arith.subf %637, %644 : vector<16x128xf32>
    %660 = math.exp %659 : vector<16x128xf32>
    %661 = arith.addf %646, %648 : vector<16x128xf32>
    %662 = arith.addf %661, %650 : vector<16x128xf32>
    %663 = arith.addf %662, %652 : vector<16x128xf32>
    %664 = arith.addf %663, %654 : vector<16x128xf32>
    %665 = arith.addf %664, %656 : vector<16x128xf32>
    %666 = arith.addf %665, %658 : vector<16x128xf32>
    %667 = arith.addf %666, %660 : vector<16x128xf32>
    %668 = tpu.reciprocal %667 {approx = true} : vector<16x128xf32> -> vector<16x128xf32>
    %669 = arith.mulf %646, %515 : vector<16x128xf32>
    %670 = arith.mulf %648, %532 : vector<16x128xf32>
    %671 = arith.mulf %650, %549 : vector<16x128xf32>
    %672 = arith.mulf %652, %566 : vector<16x128xf32>
    %673 = arith.mulf %654, %583 : vector<16x128xf32>
    %674 = arith.mulf %656, %600 : vector<16x128xf32>
    %675 = arith.mulf %658, %617 : vector<16x128xf32>
    %676 = arith.mulf %660, %634 : vector<16x128xf32>
    %677 = arith.addf %669, %670 : vector<16x128xf32>
    %678 = arith.addf %677, %671 : vector<16x128xf32>
    %679 = arith.addf %678, %672 : vector<16x128xf32>
    %680 = arith.addf %679, %673 : vector<16x128xf32>
    %681 = arith.addf %680, %674 : vector<16x128xf32>
    %682 = arith.addf %681, %675 : vector<16x128xf32>
    %683 = arith.addf %682, %676 : vector<16x128xf32>
    %684 = arith.mulf %683, %668 : vector<16x128xf32>
    %685 = arith.truncf %684 : vector<16x128xf32> to vector<16x128xbf16>
    %cst_160 = arith.constant dense<0.000000e+00> : vector<16x128xf32>
    %686 = tpu.matmul %685, %483, %cst_160 {dimension_numbers = #tpu.dot_dimension_numbers<[1], [0], [0], [1], [0, 0, 1, 1], [], []>} : vector<16x128xbf16>, vector<128x128xbf16>, vector<16x128xf32> -> vector<16x128xf32>
    %687 = vector.broadcast %484 : vector<1x128xf32> to vector<16x128xf32>
    %688 = arith.addf %686, %687 : vector<16x128xf32>
    %689 = arith.addf %480, %688 : vector<16x128xf32>
    %cst_161 = arith.constant dense<0.000000e+00> : vector<16xf32>
    %690 = vector.multi_reduction <add>, %689, %cst_161 [1] : vector<16x128xf32> to vector<16xf32>
    %691 = vector.shape_cast %690 : vector<16xf32> to vector<16x1xf32>
    %cst_162 = arith.constant 1.280000e+02 : f32
    %692 = vector.broadcast %cst_162 : f32 to vector<16x1xf32>
    %693 = arith.divf %691, %692 : vector<16x1xf32>
    %694 = vector.broadcast %693 : vector<16x1xf32> to vector<16x128xf32>
    %695 = arith.subf %689, %694 : vector<16x128xf32>
    %696 = arith.mulf %695, %695 : vector<16x128xf32>
    %cst_163 = arith.constant dense<0.000000e+00> : vector<16xf32>
    %697 = vector.multi_reduction <add>, %696, %cst_163 [1] : vector<16x128xf32> to vector<16xf32>
    %698 = vector.shape_cast %697 : vector<16xf32> to vector<16x1xf32>
    %cst_164 = arith.constant 1.280000e+02 : f32
    %699 = vector.broadcast %cst_164 : f32 to vector<16x1xf32>
    %700 = arith.divf %698, %699 : vector<16x1xf32>
    %701 = vector.broadcast %693 : vector<16x1xf32> to vector<16x128xf32>
    %702 = arith.subf %689, %701 : vector<16x128xf32>
    %cst_165 = arith.constant 9.99999974E-6 : f32
    %703 = vector.broadcast %cst_165 : f32 to vector<16x1xf32>
    %704 = arith.addf %700, %703 : vector<16x1xf32>
    %705 = math.rsqrt %704 : vector<16x1xf32>
    %706 = vector.broadcast %705 : vector<16x1xf32> to vector<16x128xf32>
    %707 = arith.mulf %702, %706 : vector<16x128xf32>
    %708 = vector.broadcast %489 : vector<1x128xf32> to vector<16x128xf32>
    %709 = arith.mulf %707, %708 : vector<16x128xf32>
    %710 = vector.broadcast %490 : vector<1x128xf32> to vector<16x128xf32>
    %711 = arith.addf %709, %710 : vector<16x128xf32>
    %712 = arith.truncf %711 : vector<16x128xf32> to vector<16x128xbf16>
    %cst_166 = arith.constant dense<0.000000e+00> : vector<16x512xf32>
    %713 = tpu.matmul %712, %485, %cst_166 {dimension_numbers = #tpu.dot_dimension_numbers<[1], [0], [0], [1], [0, 0, 1, 1], [], []>} : vector<16x128xbf16>, vector<128x512xbf16>, vector<16x512xf32> -> vector<16x512xf32>
    %714 = vector.broadcast %486 : vector<1x512xf32> to vector<16x512xf32>
    %715 = arith.addf %713, %714 : vector<16x512xf32>
    %cst_167 = arith.constant 0.000000e+00 : f32
    %716 = vector.broadcast %cst_167 : f32 to vector<16x512xf32>
    %717 = arith.maximumf %715, %716 : vector<16x512xf32>
    %718 = arith.truncf %717 : vector<16x512xf32> to vector<16x512xbf16>
    %cst_168 = arith.constant dense<0.000000e+00> : vector<16x128xf32>
    %719 = tpu.matmul %718, %487, %cst_168 {dimension_numbers = #tpu.dot_dimension_numbers<[1], [0], [0], [1], [0, 0, 1, 1], [], []>} : vector<16x512xbf16>, vector<512x128xbf16>, vector<16x128xf32> -> vector<16x128xf32>
    %720 = vector.broadcast %488 : vector<1x128xf32> to vector<16x128xf32>
    %721 = arith.addf %719, %720 : vector<16x128xf32>
    %722 = arith.addf %711, %721 : vector<16x128xf32>
    %cst_169 = arith.constant dense<0.000000e+00> : vector<16xf32>
    %723 = vector.multi_reduction <add>, %722, %cst_169 [1] : vector<16x128xf32> to vector<16xf32>
    %724 = vector.shape_cast %723 : vector<16xf32> to vector<16x1xf32>
    %cst_170 = arith.constant 1.280000e+02 : f32
    %725 = vector.broadcast %cst_170 : f32 to vector<16x1xf32>
    %726 = arith.divf %724, %725 : vector<16x1xf32>
    %727 = vector.broadcast %726 : vector<16x1xf32> to vector<16x128xf32>
    %728 = arith.subf %722, %727 : vector<16x128xf32>
    %729 = arith.mulf %728, %728 : vector<16x128xf32>
    %cst_171 = arith.constant dense<0.000000e+00> : vector<16xf32>
    %730 = vector.multi_reduction <add>, %729, %cst_171 [1] : vector<16x128xf32> to vector<16xf32>
    %731 = vector.shape_cast %730 : vector<16xf32> to vector<16x1xf32>
    %cst_172 = arith.constant 1.280000e+02 : f32
    %732 = vector.broadcast %cst_172 : f32 to vector<16x1xf32>
    %733 = arith.divf %731, %732 : vector<16x1xf32>
    %734 = vector.broadcast %726 : vector<16x1xf32> to vector<16x128xf32>
    %735 = arith.subf %722, %734 : vector<16x128xf32>
    %cst_173 = arith.constant 9.99999974E-6 : f32
    %736 = vector.broadcast %cst_173 : f32 to vector<16x1xf32>
    %737 = arith.addf %733, %736 : vector<16x1xf32>
    %738 = math.rsqrt %737 : vector<16x1xf32>
    %739 = vector.broadcast %738 : vector<16x1xf32> to vector<16x128xf32>
    %740 = arith.mulf %735, %739 : vector<16x128xf32>
    %741 = vector.broadcast %491 : vector<1x128xf32> to vector<16x128xf32>
    %742 = arith.mulf %740, %741 : vector<16x128xf32>
    %743 = vector.broadcast %492 : vector<1x128xf32> to vector<16x128xf32>
    %744 = arith.addf %742, %743 : vector<16x128xf32>
    %cst_174 = arith.constant 0.000000e+00 : f32
    %745 = vector.broadcast %cst_174 : f32 to vector<2x128xf32>
    %746 = vector.extract_strided_slice %744 {offsets = [0, 0], sizes = [1, 128], strides = [1, 1]} : vector<16x128xf32> to vector<1x128xf32>
    %747 = vector.extract_strided_slice %744 {offsets = [8, 0], sizes = [1, 128], strides = [1, 1]} : vector<16x128xf32> to vector<1x128xf32>
    %748 = tpu.concatenate %746, %747 in 0 : vector<1x128xf32>, vector<1x128xf32> -> vector<2x128xf32>
    %c0_175 = arith.constant 0 : index
    %c0_176 = arith.constant 0 : index
    %749 = vector.load %arg40[%c0_175, %c0_176] : memref<1024x128xbf16, #tpu.memory_space<vmem>>, vector<128x128xbf16>
    %750 = arith.truncf %748 : vector<2x128xf32> to vector<2x128xbf16>
    %cst_177 = arith.constant dense<0.000000e+00> : vector<2x128xf32>
    %751 = tpu.matmul %750, %749, %cst_177 {dimension_numbers = #tpu.dot_dimension_numbers<[1], [0], [0], [1], [0, 0, 1, 1], [], []>} : vector<2x128xbf16>, vector<128x128xbf16>, vector<2x128xf32> -> vector<2x128xf32>
    %752 = arith.addf %745, %751 : vector<2x128xf32>
    %753 = vector.extract_strided_slice %744 {offsets = [1, 0], sizes = [1, 128], strides = [1, 1]} : vector<16x128xf32> to vector<1x128xf32>
    %754 = vector.extract_strided_slice %744 {offsets = [9, 0], sizes = [1, 128], strides = [1, 1]} : vector<16x128xf32> to vector<1x128xf32>
    %755 = tpu.concatenate %753, %754 in 0 : vector<1x128xf32>, vector<1x128xf32> -> vector<2x128xf32>
    %c128_178 = arith.constant 128 : index
    %c0_179 = arith.constant 0 : index
    %756 = vector.load %arg40[%c128_178, %c0_179] : memref<1024x128xbf16, #tpu.memory_space<vmem>>, vector<128x128xbf16>
    %757 = arith.truncf %755 : vector<2x128xf32> to vector<2x128xbf16>
    %cst_180 = arith.constant dense<0.000000e+00> : vector<2x128xf32>
    %758 = tpu.matmul %757, %756, %cst_180 {dimension_numbers = #tpu.dot_dimension_numbers<[1], [0], [0], [1], [0, 0, 1, 1], [], []>} : vector<2x128xbf16>, vector<128x128xbf16>, vector<2x128xf32> -> vector<2x128xf32>
    %759 = arith.addf %752, %758 : vector<2x128xf32>
    %760 = vector.extract_strided_slice %744 {offsets = [2, 0], sizes = [1, 128], strides = [1, 1]} : vector<16x128xf32> to vector<1x128xf32>
    %761 = vector.extract_strided_slice %744 {offsets = [10, 0], sizes = [1, 128], strides = [1, 1]} : vector<16x128xf32> to vector<1x128xf32>
    %762 = tpu.concatenate %760, %761 in 0 : vector<1x128xf32>, vector<1x128xf32> -> vector<2x128xf32>
    %c256_181 = arith.constant 256 : index
    %c0_182 = arith.constant 0 : index
    %763 = vector.load %arg40[%c256_181, %c0_182] : memref<1024x128xbf16, #tpu.memory_space<vmem>>, vector<128x128xbf16>
    %764 = arith.truncf %762 : vector<2x128xf32> to vector<2x128xbf16>
    %cst_183 = arith.constant dense<0.000000e+00> : vector<2x128xf32>
    %765 = tpu.matmul %764, %763, %cst_183 {dimension_numbers = #tpu.dot_dimension_numbers<[1], [0], [0], [1], [0, 0, 1, 1], [], []>} : vector<2x128xbf16>, vector<128x128xbf16>, vector<2x128xf32> -> vector<2x128xf32>
    %766 = arith.addf %759, %765 : vector<2x128xf32>
    %767 = vector.extract_strided_slice %744 {offsets = [3, 0], sizes = [1, 128], strides = [1, 1]} : vector<16x128xf32> to vector<1x128xf32>
    %768 = vector.extract_strided_slice %744 {offsets = [11, 0], sizes = [1, 128], strides = [1, 1]} : vector<16x128xf32> to vector<1x128xf32>
    %769 = tpu.concatenate %767, %768 in 0 : vector<1x128xf32>, vector<1x128xf32> -> vector<2x128xf32>
    %c384_184 = arith.constant 384 : index
    %c0_185 = arith.constant 0 : index
    %770 = vector.load %arg40[%c384_184, %c0_185] : memref<1024x128xbf16, #tpu.memory_space<vmem>>, vector<128x128xbf16>
    %771 = arith.truncf %769 : vector<2x128xf32> to vector<2x128xbf16>
    %cst_186 = arith.constant dense<0.000000e+00> : vector<2x128xf32>
    %772 = tpu.matmul %771, %770, %cst_186 {dimension_numbers = #tpu.dot_dimension_numbers<[1], [0], [0], [1], [0, 0, 1, 1], [], []>} : vector<2x128xbf16>, vector<128x128xbf16>, vector<2x128xf32> -> vector<2x128xf32>
    %773 = arith.addf %766, %772 : vector<2x128xf32>
    %774 = vector.extract_strided_slice %744 {offsets = [4, 0], sizes = [1, 128], strides = [1, 1]} : vector<16x128xf32> to vector<1x128xf32>
    %775 = vector.extract_strided_slice %744 {offsets = [12, 0], sizes = [1, 128], strides = [1, 1]} : vector<16x128xf32> to vector<1x128xf32>
    %776 = tpu.concatenate %774, %775 in 0 : vector<1x128xf32>, vector<1x128xf32> -> vector<2x128xf32>
    %c512_187 = arith.constant 512 : index
    %c0_188 = arith.constant 0 : index
    %777 = vector.load %arg40[%c512_187, %c0_188] : memref<1024x128xbf16, #tpu.memory_space<vmem>>, vector<128x128xbf16>
    %778 = arith.truncf %776 : vector<2x128xf32> to vector<2x128xbf16>
    %cst_189 = arith.constant dense<0.000000e+00> : vector<2x128xf32>
    %779 = tpu.matmul %778, %777, %cst_189 {dimension_numbers = #tpu.dot_dimension_numbers<[1], [0], [0], [1], [0, 0, 1, 1], [], []>} : vector<2x128xbf16>, vector<128x128xbf16>, vector<2x128xf32> -> vector<2x128xf32>
    %780 = arith.addf %773, %779 : vector<2x128xf32>
    %781 = vector.extract_strided_slice %744 {offsets = [5, 0], sizes = [1, 128], strides = [1, 1]} : vector<16x128xf32> to vector<1x128xf32>
    %782 = vector.extract_strided_slice %744 {offsets = [13, 0], sizes = [1, 128], strides = [1, 1]} : vector<16x128xf32> to vector<1x128xf32>
    %783 = tpu.concatenate %781, %782 in 0 : vector<1x128xf32>, vector<1x128xf32> -> vector<2x128xf32>
    %c640_190 = arith.constant 640 : index
    %c0_191 = arith.constant 0 : index
    %784 = vector.load %arg40[%c640_190, %c0_191] : memref<1024x128xbf16, #tpu.memory_space<vmem>>, vector<128x128xbf16>
    %785 = arith.truncf %783 : vector<2x128xf32> to vector<2x128xbf16>
    %cst_192 = arith.constant dense<0.000000e+00> : vector<2x128xf32>
    %786 = tpu.matmul %785, %784, %cst_192 {dimension_numbers = #tpu.dot_dimension_numbers<[1], [0], [0], [1], [0, 0, 1, 1], [], []>} : vector<2x128xbf16>, vector<128x128xbf16>, vector<2x128xf32> -> vector<2x128xf32>
    %787 = arith.addf %780, %786 : vector<2x128xf32>
    %788 = vector.extract_strided_slice %744 {offsets = [6, 0], sizes = [1, 128], strides = [1, 1]} : vector<16x128xf32> to vector<1x128xf32>
    %789 = vector.extract_strided_slice %744 {offsets = [14, 0], sizes = [1, 128], strides = [1, 1]} : vector<16x128xf32> to vector<1x128xf32>
    %790 = tpu.concatenate %788, %789 in 0 : vector<1x128xf32>, vector<1x128xf32> -> vector<2x128xf32>
    %c768_193 = arith.constant 768 : index
    %c0_194 = arith.constant 0 : index
    %791 = vector.load %arg40[%c768_193, %c0_194] : memref<1024x128xbf16, #tpu.memory_space<vmem>>, vector<128x128xbf16>
    %792 = arith.truncf %790 : vector<2x128xf32> to vector<2x128xbf16>
    %cst_195 = arith.constant dense<0.000000e+00> : vector<2x128xf32>
    %793 = tpu.matmul %792, %791, %cst_195 {dimension_numbers = #tpu.dot_dimension_numbers<[1], [0], [0], [1], [0, 0, 1, 1], [], []>} : vector<2x128xbf16>, vector<128x128xbf16>, vector<2x128xf32> -> vector<2x128xf32>
    %794 = arith.addf %787, %793 : vector<2x128xf32>
    %795 = vector.extract_strided_slice %744 {offsets = [7, 0], sizes = [1, 128], strides = [1, 1]} : vector<16x128xf32> to vector<1x128xf32>
    %796 = vector.extract_strided_slice %744 {offsets = [15, 0], sizes = [1, 128], strides = [1, 1]} : vector<16x128xf32> to vector<1x128xf32>
    %797 = tpu.concatenate %795, %796 in 0 : vector<1x128xf32>, vector<1x128xf32> -> vector<2x128xf32>
    %c896_196 = arith.constant 896 : index
    %c0_197 = arith.constant 0 : index
    %798 = vector.load %arg40[%c896_196, %c0_197] : memref<1024x128xbf16, #tpu.memory_space<vmem>>, vector<128x128xbf16>
    %799 = arith.truncf %797 : vector<2x128xf32> to vector<2x128xbf16>
    %cst_198 = arith.constant dense<0.000000e+00> : vector<2x128xf32>
    %800 = tpu.matmul %799, %798, %cst_198 {dimension_numbers = #tpu.dot_dimension_numbers<[1], [0], [0], [1], [0, 0, 1, 1], [], []>} : vector<2x128xbf16>, vector<128x128xbf16>, vector<2x128xf32> -> vector<2x128xf32>
    %801 = arith.addf %794, %800 : vector<2x128xf32>
    %c0_199 = arith.constant 0 : index
    %c0_200 = arith.constant 0 : index
    %802 = vector.load %arg41[%c0_199, %c0_200] : memref<1x128xf32, #tpu.memory_space<vmem>>, vector<1x128xf32>
    %803 = vector.broadcast %802 : vector<1x128xf32> to vector<2x128xf32>
    %804 = arith.addf %801, %803 : vector<2x128xf32>
    %c0_201 = arith.constant 0 : index
    %c0_202 = arith.constant 0 : index
    %805 = vector.load %arg42[%c0_201, %c0_202] : memref<2x128xf32, #tpu.memory_space<vmem>>, vector<2x128xf32>
    tpu.vector_store %arg42[%c0_201, %c0_202], %804 {strides = array<i32>} : memref<2x128xf32, #tpu.memory_space<vmem>>, vector<2x128xf32>,
    return
  }
}

</mosaic_0001>

<llo_original>
// kernel: policy_forward.1
$region0: #{policy_forward.1}
  #allocation0 [shape = 'u32[]', space=smem, size = 0x4, offset = 0x4, fixed_abs, tag = 'smem constant byte address 0x4 - core index']
  #allocation1 [shape = 'u32[144,128]{1,0:T(1,128)}', space=vmem, size = 0x12000, scoped, tag = 'internal scratch']
  %s0 = inlined_call_operand.smem [shape: u32[43], index: -1, kind: input, shape index: {}]
  %s1 = sld [smem:[%s0]]
  %s2 = scalar_lea.smem %s0, 1
  %s3 = sld [smem:[%s2]]
  %s4 = scalar_lea.smem %s0, 2
  %s5 = sld [smem:[%s4]]
  %s6 = scalar_lea.smem %s0, 3
  %s7 = sld [smem:[%s6]]
  %s8 = scalar_lea.smem %s0, 4
  %s9 = sld [smem:[%s8]]
  %s10 = scalar_lea.smem %s0, 5
  %s11 = sld [smem:[%s10]]
  %s12 = scalar_lea.smem %s0, 6
  %s13 = sld [smem:[%s12]]
  %s14 = scalar_lea.smem %s0, 7
  %s15 = sld [smem:[%s14]]
  %s16 = scalar_lea.smem %s0, 8
  %s17 = sld [smem:[%s16]]
  %s18 = scalar_lea.smem %s0, 9
  %s19 = sld [smem:[%s18]]
  %s20 = scalar_lea.smem %s0, 10
  %s21 = sld [smem:[%s20]]
  %s22 = scalar_lea.smem %s0, 11
  %s23 = sld [smem:[%s22]]
  %s24 = scalar_lea.smem %s0, 12
  %s25 = sld [smem:[%s24]]
  %s26 = scalar_lea.smem %s0, 13
  %s27 = sld [smem:[%s26]]
  %s28 = scalar_lea.smem %s0, 14
  %s29 = sld [smem:[%s28]]
  %s30 = scalar_lea.smem %s0, 15
  %s31 = sld [smem:[%s30]]
  %s32 = scalar_lea.smem %s0, 16
  %s33 = sld [smem:[%s32]]
  %s34 = scalar_lea.smem %s0, 17
  %s35 = sld [smem:[%s34]]
  %s36 = scalar_lea.smem %s0, 18
  %s37 = sld [smem:[%s36]]
  %s38 = scalar_lea.smem %s0, 19
  %s39 = sld [smem:[%s38]]
  %s40 = scalar_lea.smem %s0, 20
  %s41 = sld [smem:[%s40]]
  %s42 = scalar_lea.smem %s0, 21
  %s43 = sld [smem:[%s42]]
  %s44 = scalar_lea.smem %s0, 22
  %s45 = sld [smem:[%s44]]
  %s46 = scalar_lea.smem %s0, 23
  %s47 = sld [smem:[%s46]]
  %s48 = scalar_lea.smem %s0, 24
  %s49 = sld [smem:[%s48]]
  %s50 = scalar_lea.smem %s0, 25
  %s51 = sld [smem:[%s50]]
  %s52 = scalar_lea.smem %s0, 26
  %s53 = sld [smem:[%s52]]
  %s54 = scalar_lea.smem %s0, 27
  %s55 = sld [smem:[%s54]]
  %s56 = scalar_lea.smem %s0, 28
  %s57 = sld [smem:[%s56]]
  %s58 = scalar_lea.smem %s0, 29
  %s59 = sld [smem:[%s58]]
  %s60 = scalar_lea.smem %s0, 30
  %s61 = sld [smem:[%s60]]
  %s62 = scalar_lea.smem %s0, 31
  %s63 = sld [smem:[%s62]]
  %s64 = scalar_lea.smem %s0, 32
  %s65 = sld [smem:[%s64]]
  %s66 = scalar_lea.smem %s0, 33
  %s67 = sld [smem:[%s66]]
  %s68 = scalar_lea.smem %s0, 34
  %s69 = sld [smem:[%s68]]
  %s70 = scalar_lea.smem %s0, 35
  %s71 = sld [smem:[%s70]]
  %s72 = scalar_lea.smem %s0, 36
  %s73 = sld [smem:[%s72]]
  %s74 = scalar_lea.smem %s0, 37
  %s75 = sld [smem:[%s74]]
  %s76 = scalar_lea.smem %s0, 38
  %s77 = sld [smem:[%s76]]
  %s78 = scalar_lea.smem %s0, 39
  %s79 = sld [smem:[%s78]]
  %s80 = scalar_lea.smem %s0, 40
  %s81 = sld [smem:[%s80]]
  %s82 = scalar_lea.smem %s0, 41
  %s83 = sld [smem:[%s82]]
  %s84 = scalar_lea.smem %s0, 42
  %s85 = sld [smem:[%s84]]
  %s86 = sld [smem:[#allocation0]]
  $region206: #{policy_forward.1} parent=0
    _
  %s88 = ssub.s32 1, %s86
  %s89 = scalar_select 0, %s88, %s86
  $region1: #{policy_forward.1} parent=0
    #allocation2 [shape = 'u8[131072]{0}', space=vmem, size = 0x20000, scoped, tag = 'input window, operand 8, single buffered']
    #allocation3 [shape = 's32[1]{0}', space=sflag, size = 0x4, scoped, tag = 'scoped memory for policy_forward.1']
    #allocation4 [shape = 's32[1]{0}', space=sflag, size = 0x4, scoped, tag = 'scoped memory for policy_forward.1']
    #allocation5 [shape = 'u8[131072]{0}', space=vmem, size = 0x20000, scoped, tag = 'input window, operand 18, single buffered']
    #allocation6 [shape = 's32[1]{0}', space=sflag, size = 0x4, scoped, tag = 'scoped memory for policy_forward.1']
    #allocation7 [shape = 'u8[131072]{0}', space=vmem, size = 0x20000, scoped, tag = 'input window, operand 20, single buffered']
    #allocation8 [shape = 'u8[98304]{0}', space=vmem, size = 0x18000, scoped, tag = 'input window, operand 26, single buffered']
    #allocation9 [shape = 's32[1]{0}', space=sflag, size = 0x4, scoped, tag = 'scoped memory for policy_forward.1']
    #allocation10 [shape = 'u8[32768]{0}', space=vmem, size = 0x8000, scoped, tag = 'input window, operand 28, single buffered']
    #allocation11 [shape = 'u8[131072]{0}', space=vmem, size = 0x20000, scoped, tag = 'input window, operand 30, single buffered']
    #allocation12 [shape = 's32[1]{0}', space=sflag, size = 0x4, scoped, tag = 'scoped memory for policy_forward.1']
    #allocation13 [shape = 'u8[131072]{0}', space=vmem, size = 0x20000, scoped, tag = 'input window, operand 32, single buffered']
    #allocation14 [shape = 'u8[1024]{0}', space=vmem, size = 0x400, scoped, tag = 'output window, operand 0, single buffered']
    %90 = vsyncpa [#allocation3], 0
    %91 = vsyncpa [#allocation6], 0
    %92 = vsyncpa [#allocation9], 0
    %93 = vsyncpa [#allocation12], 0
    %94 = vsyncpa [#allocation4], 0
    // Predicated region
    $region2: #{policy_forward.1} parent=1 // pred_check
      _
    $region3: #{policy_forward.1} parent=1 // pred_check_branch
      %96 = sbr.rel (0) target = $region5
    $region4: #{policy_forward.1} parent=1 // pred_region
      _
    $region5: #{policy_forward.1} parent=1 // pred_fallthru
      _
    // Predicated region
    $region6: #{policy_forward.1} parent=1 // pred_check
      _
    $region7: #{policy_forward.1} parent=1 // pred_check_branch
      %98 = sbr.rel (0) target = $region9
    $region8: #{policy_forward.1} parent=1 // pred_region
      _
    $region9: #{policy_forward.1} parent=1 // pred_fallthru
      _
    // Predicated region
    $region10: #{policy_forward.1} parent=1 // pred_check
      _
    $region11: #{policy_forward.1} parent=1 // pred_check_branch
      %100 = sbr.rel (0) target = $region13
    $region12: #{policy_forward.1} parent=1 // pred_region
      _
    $region13: #{policy_forward.1} parent=1 // pred_fallthru
      _
    // Predicated region
    $region14: #{policy_forward.1} parent=1 // pred_check
      _
    $region15: #{policy_forward.1} parent=1 // pred_check_branch
      %102 = sbr.rel (0) target = $region17
    $region16: #{policy_forward.1} parent=1 // pred_region
      _
    $region17: #{policy_forward.1} parent=1 // pred_fallthru
      _
    // Predicated region
    $region18: #{policy_forward.1} parent=1 // pred_check
      _
    $region19: #{policy_forward.1} parent=1 // pred_check_branch
      %104 = sbr.rel (0) target = $region21
    $region20: #{policy_forward.1} parent=1 // pred_region
      _
    $region21: #{policy_forward.1} parent=1 // pred_fallthru
      _
    // Predicated region
    $region22: #{policy_forward.1} parent=1 // pred_check
      _
    $region23: #{policy_forward.1} parent=1 // pred_check_branch
      %106 = sbr.rel (0) target = $region25
    $region24: #{policy_forward.1} parent=1 // pred_region
      _
    $region25: #{policy_forward.1} parent=1 // pred_fallthru
      _
    // Predicated region
    $region26: #{policy_forward.1} parent=1 // pred_check
      _
    $region27: #{policy_forward.1} parent=1 // pred_check_branch
      %108 = sbr.rel (0) target = $region29
    $region28: #{policy_forward.1} parent=1 // pred_region
      _
    $region29: #{policy_forward.1} parent=1 // pred_fallthru
      _
    // Predicated region
    $region30: #{policy_forward.1} parent=1 // pred_check
      _
    $region31: #{policy_forward.1} parent=1 // pred_check_branch
      %110 = sbr.rel (0) target = $region33
    $region32: #{policy_forward.1} parent=1 // pred_region
      _
    $region33: #{policy_forward.1} parent=1 // pred_fallthru
      _
    // Predicated region
    $region34: #{policy_forward.1} parent=1 // pred_check
      _
    $region35: #{policy_forward.1} parent=1 // pred_check_branch
      %112 = sbr.rel (0) target = $region37
    $region36: #{policy_forward.1} parent=1 // pred_region
      %s114 = ssub.s32 4096, 4096
      %115 = vsyncadd [#allocation3], %s114
      %s116 = sshll.u32 [#allocation2], 4
      %s117 = int_to_ptr.vmem [resolvable:$true] %s116
      %122 = dma.hbm_to_vmem [thread:$0]  %s17, 4096, %s117, [#allocation3], 64, 64, 4
    $region37: #{policy_forward.1} parent=1 // pred_fallthru
      _
    // Predicated region
    $region38: #{policy_forward.1} parent=1 // pred_check
      _
    $region39: #{policy_forward.1} parent=1 // pred_check_branch
      %124 = sbr.rel (0) target = $region41
    $region40: #{policy_forward.1} parent=1 // pred_region
      _
    $region41: #{policy_forward.1} parent=1 // pred_fallthru
      _
    // Predicated region
    $region42: #{policy_forward.1} parent=1 // pred_check
      _
    $region43: #{policy_forward.1} parent=1 // pred_check_branch
      %126 = sbr.rel (0) target = $region45
    $region44: #{policy_forward.1} parent=1 // pred_region
      _
    $region45: #{policy_forward.1} parent=1 // pred_fallthru
      _
    // Predicated region
    $region46: #{policy_forward.1} parent=1 // pred_check
      _
    $region47: #{policy_forward.1} parent=1 // pred_check_branch
      %128 = sbr.rel (0) target = $region49
    $region48: #{policy_forward.1} parent=1 // pred_region
      _
    $region49: #{policy_forward.1} parent=1 // pred_fallthru
      _
    // Predicated region
    $region50: #{policy_forward.1} parent=1 // pred_check
      _
    $region51: #{policy_forward.1} parent=1 // pred_check_branch
      %130 = sbr.rel (0) target = $region53
    $region52: #{policy_forward.1} parent=1 // pred_region
      _
    $region53: #{policy_forward.1} parent=1 // pred_fallthru
      _
    // Predicated region
    $region54: #{policy_forward.1} parent=1 // pred_check
      _
    $region55: #{policy_forward.1} parent=1 // pred_check_branch
      %132 = sbr.rel (0) target = $region57
    $region56: #{policy_forward.1} parent=1 // pred_region
      _
    $region57: #{policy_forward.1} parent=1 // pred_fallthru
      _
    // Predicated region
    $region58: #{policy_forward.1} parent=1 // pred_check
      _
    $region59: #{policy_forward.1} parent=1 // pred_check_branch
      %134 = sbr.rel (0) target = $region61
    $region60: #{policy_forward.1} parent=1 // pred_region
      _
    $region61: #{policy_forward.1} parent=1 // pred_fallthru
      _
    // Predicated region
    $region62: #{policy_forward.1} parent=1 // pred_check
      _
    $region63: #{policy_forward.1} parent=1 // pred_check_branch
      %136 = sbr.rel (0) target = $region65
    $region64: #{policy_forward.1} parent=1 // pred_region
      _
    $region65: #{policy_forward.1} parent=1 // pred_fallthru
      _
    // Predicated region
    $region66: #{policy_forward.1} parent=1 // pred_check
      _
    $region67: #{policy_forward.1} parent=1 // pred_check_branch
      %138 = sbr.rel (0) target = $region69
    $region68: #{policy_forward.1} parent=1 // pred_region
      _
    $region69: #{policy_forward.1} parent=1 // pred_fallthru
      _
    // Predicated region
    $region70: #{policy_forward.1} parent=1 // pred_check
      _
    $region71: #{policy_forward.1} parent=1 // pred_check_branch
      %140 = sbr.rel (0) target = $region73
    $region72: #{policy_forward.1} parent=1 // pred_region
      _
    $region73: #{policy_forward.1} parent=1 // pred_fallthru
      _
    // Predicated region
    $region74: #{policy_forward.1} parent=1 // pred_check
      _
    $region75: #{policy_forward.1} parent=1 // pred_check_branch
      %142 = sbr.rel (0) target = $region77
    $region76: #{policy_forward.1} parent=1 // pred_region
      %s144 = ssub.s32 4096, 4096
      %145 = vsyncadd [#allocation6], %s144
      %s146 = sshll.u32 [#allocation5], 4
      %s147 = int_to_ptr.vmem [resolvable:$true] %s146
      %152 = dma.hbm_to_vmem [thread:$0]  %s37, 4096, %s147, [#allocation6], 256, 256, 16
    $region77: #{policy_forward.1} parent=1 // pred_fallthru
      _
    // Predicated region
    $region78: #{policy_forward.1} parent=1 // pred_check
      _
    $region79: #{policy_forward.1} parent=1 // pred_check_branch
      %154 = sbr.rel (0) target = $region81
    $region80: #{policy_forward.1} parent=1 // pred_region
      _
    $region81: #{policy_forward.1} parent=1 // pred_fallthru
      _
    // Predicated region
    $region82: #{policy_forward.1} parent=1 // pred_check
      _
    $region83: #{policy_forward.1} parent=1 // pred_check_branch
      %156 = sbr.rel (0) target = $region85
    $region84: #{policy_forward.1} parent=1 // pred_region
      %s158 = ssub.s32 4096, 4096
      %159 = vsyncadd [#allocation6], %s158
      %s160 = sshll.u32 [#allocation7], 4
      %s161 = int_to_ptr.vmem [resolvable:$true] %s160
      %166 = dma.hbm_to_vmem [thread:$0]  %s41, 4096, %s161, [#allocation6], 64, 64, 4
    $region85: #{policy_forward.1} parent=1 // pred_fallthru
      _
    // Predicated region
    $region86: #{policy_forward.1} parent=1 // pred_check
      _
    $region87: #{policy_forward.1} parent=1 // pred_check_branch
      %168 = sbr.rel (0) target = $region89
    $region88: #{policy_forward.1} parent=1 // pred_region
      _
    $region89: #{policy_forward.1} parent=1 // pred_fallthru
      _
    // Predicated region
    $region90: #{policy_forward.1} parent=1 // pred_check
      _
    $region91: #{policy_forward.1} parent=1 // pred_check_branch
      %170 = sbr.rel (0) target = $region93
    $region92: #{policy_forward.1} parent=1 // pred_region
      _
    $region93: #{policy_forward.1} parent=1 // pred_fallthru
      _
    // Predicated region
    $region94: #{policy_forward.1} parent=1 // pred_check
      _
    $region95: #{policy_forward.1} parent=1 // pred_check_branch
      %172 = sbr.rel (0) target = $region97
    $region96: #{policy_forward.1} parent=1 // pred_region
      _
    $region97: #{policy_forward.1} parent=1 // pred_fallthru
      _
    // Predicated region
    $region98: #{policy_forward.1} parent=1 // pred_check
      _
    $region99: #{policy_forward.1} parent=1 // pred_check_branch
      %174 = sbr.rel (0) target = $region101
    $region100: #{policy_forward.1} parent=1 // pred_region
      _
    $region101: #{policy_forward.1} parent=1 // pred_fallthru
      _
    // Predicated region
    $region102: #{policy_forward.1} parent=1 // pred_check
      _
    $region103: #{policy_forward.1} parent=1 // pred_check_branch
      %176 = sbr.rel (0) target = $region105
    $region104: #{policy_forward.1} parent=1 // pred_region
      _
    $region105: #{policy_forward.1} parent=1 // pred_fallthru
      _
    // Predicated region
    $region106: #{policy_forward.1} parent=1 // pred_check
      _
    $region107: #{policy_forward.1} parent=1 // pred_check_branch
      %178 = sbr.rel (0) target = $region109
    $region108: #{policy_forward.1} parent=1 // pred_region
      %s180 = ssub.s32 3072, 3072
      %181 = vsyncadd [#allocation9], %s180
      %s182 = sshll.u32 [#allocation8], 4
      %s183 = int_to_ptr.vmem [resolvable:$true] %s182
      %188 = dma.hbm_to_vmem [thread:$0]  %s53, 3072, %s183, [#allocation9], 192, 192, 12
    $region109: #{policy_forward.1} parent=1 // pred_fallthru
      _
    // Predicated region
    $region110: #{policy_forward.1} parent=1 // pred_check
      _
    $region111: #{policy_forward.1} parent=1 // pred_check_branch
      %190 = sbr.rel (0) target = $region113
    $region112: #{policy_forward.1} parent=1 // pred_region
      _
    $region113: #{policy_forward.1} parent=1 // pred_fallthru
      _
    // Predicated region
    $region114: #{policy_forward.1} parent=1 // pred_check
      _
    $region115: #{policy_forward.1} parent=1 // pred_check_branch
      %192 = sbr.rel (0) target = $region117
    $region116: #{policy_forward.1} parent=1 // pred_region
      %s194 = ssub.s32 1024, 1024
      %195 = vsyncadd [#allocation9], %s194
      %s196 = sshll.u32 [#allocation10], 4
      %s197 = int_to_ptr.vmem [resolvable:$true] %s196
      %202 = dma.hbm_to_vmem [thread:$0]  %s57, 1024, %s197, [#allocation9], 64, 64, 4
    $region117: #{policy_forward.1} parent=1 // pred_fallthru
      _
    // Predicated region
    $region118: #{policy_forward.1} parent=1 // pred_check
      _
    $region119: #{policy_forward.1} parent=1 // pred_check_branch
      %204 = sbr.rel (0) target = $region121
    $region120: #{policy_forward.1} parent=1 // pred_region
      _
    $region121: #{policy_forward.1} parent=1 // pred_fallthru
      _
    // Predicated region
    $region122: #{policy_forward.1} parent=1 // pred_check
      _
    $region123: #{policy_forward.1} parent=1 // pred_check_branch
      %206 = sbr.rel (0) target = $region125
    $region124: #{policy_forward.1} parent=1 // pred_region
      %s208 = ssub.s32 4096, 4096
      %209 = vsyncadd [#allocation12], %s208
      %s210 = sshll.u32 [#allocation11], 4
      %s211 = int_to_ptr.vmem [resolvable:$true] %s210
      %216 = dma.hbm_to_vmem [thread:$0]  %s61, 4096, %s211, [#allocation12], 256, 256, 16
    $region125: #{policy_forward.1} parent=1 // pred_fallthru
      _
    // Predicated region
    $region126: #{policy_forward.1} parent=1 // pred_check
      _
    $region127: #{policy_forward.1} parent=1 // pred_check_branch
      %218 = sbr.rel (0) target = $region129
    $region128: #{policy_forward.1} parent=1 // pred_region
      _
    $region129: #{policy_forward.1} parent=1 // pred_fallthru
      _
    // Predicated region
    $region130: #{policy_forward.1} parent=1 // pred_check
      _
    $region131: #{policy_forward.1} parent=1 // pred_check_branch
      %220 = sbr.rel (0) target = $region133
    $region132: #{policy_forward.1} parent=1 // pred_region
      %s222 = ssub.s32 4096, 4096
      %223 = vsyncadd [#allocation12], %s222
      %s224 = sshll.u32 [#allocation13], 4
      %s225 = int_to_ptr.vmem [resolvable:$true] %s224
      %230 = dma.hbm_to_vmem [thread:$0]  %s65, 4096, %s225, [#allocation12], 64, 64, 4
    $region133: #{policy_forward.1} parent=1 // pred_fallthru
      _
    // Predicated region
    $region134: #{policy_forward.1} parent=1 // pred_check
      _
    $region135: #{policy_forward.1} parent=1 // pred_check_branch
      %232 = sbr.rel (0) target = $region137
    $region136: #{policy_forward.1} parent=1 // pred_region
      _
    $region137: #{policy_forward.1} parent=1 // pred_fallthru
      _
    // Predicated region
    $region138: #{policy_forward.1} parent=1 // pred_check
      _
    $region139: #{policy_forward.1} parent=1 // pred_check_branch
      %234 = sbr.rel (0) target = $region141
    $region140: #{policy_forward.1} parent=1 // pred_region
      _
    $region141: #{policy_forward.1} parent=1 // pred_fallthru
      _
    // Predicated region
    $region142: #{policy_forward.1} parent=1 // pred_check
      _
    $region143: #{policy_forward.1} parent=1 // pred_check_branch
      %236 = sbr.rel (0) target = $region145
    $region144: #{policy_forward.1} parent=1 // pred_region
      _
    $region145: #{policy_forward.1} parent=1 // pred_fallthru
      _
    // Predicated region
    $region146: #{policy_forward.1} parent=1 // pred_check
      _
    $region147: #{policy_forward.1} parent=1 // pred_check_branch
      %238 = sbr.rel (0) target = $region149
    $region148: #{policy_forward.1} parent=1 // pred_region
      _
    $region149: #{policy_forward.1} parent=1 // pred_fallthru
      _
    // Predicated region
    $region150: #{policy_forward.1} parent=1 // pred_check
      _
    $region151: #{policy_forward.1} parent=1 // pred_check_branch
      %240 = sbr.rel (0) target = $region153
    $region152: #{policy_forward.1} parent=1 // pred_region
      _
    $region153: #{policy_forward.1} parent=1 // pred_fallthru
      _
    // Predicated region
    $region154: #{policy_forward.1} parent=1 // pred_check
      _
    $region155: #{policy_forward.1} parent=1 // pred_check_branch
      %242 = sbr.rel (0) target = $region157
    $region156: #{policy_forward.1} parent=1 // pred_region
      _
    $region157: #{policy_forward.1} parent=1 // pred_fallthru
      _
    // Predicated region
    $region158: #{policy_forward.1} parent=1 // pred_check
      _
    $region159: #{policy_forward.1} parent=1 // pred_check_branch
      %244 = sbr.rel (0) target = $region161
    $region160: #{policy_forward.1} parent=1 // pred_region
      _
    $region161: #{policy_forward.1} parent=1 // pred_fallthru
      _
    // Predicated region
    $region162: #{policy_forward.1} parent=1 // pred_check
      _
    $region163: #{policy_forward.1} parent=1 // pred_check_branch
      %246 = sbr.rel (0) target = $region165
    $region164: #{policy_forward.1} parent=1 // pred_region
      _
    $region165: #{policy_forward.1} parent=1 // pred_fallthru
      _
    // Predicated region
    $region166: #{policy_forward.1} parent=1 // pred_check
      _
    $region167: #{policy_forward.1} parent=1 // pred_check_branch
      %248 = sbr.rel (0) target = $region169
    $region168: #{policy_forward.1} parent=1 // pred_region
      _
    $region169: #{policy_forward.1} parent=1 // pred_fallthru
      _
    // Predicated region
    $region170: #{policy_forward.1} parent=1 // pred_check
      _
    $region171: #{policy_forward.1} parent=1 // pred_check_branch
      %250 = sbr.rel (0) target = $region173
    $region172: #{policy_forward.1} parent=1 // pred_region
      %251 = dma.done [#allocation3], 4096
    $region173: #{policy_forward.1} parent=1 // pred_fallthru
      _
    // Predicated region
    $region174: #{policy_forward.1} parent=1 // pred_check
      _
    $region175: #{policy_forward.1} parent=1 // pred_check_branch
      %253 = sbr.rel (0) target = $region177
    $region176: #{policy_forward.1} parent=1 // pred_region
      %254 = dma.done [#allocation6], 4096
    $region177: #{policy_forward.1} parent=1 // pred_fallthru
      _
    // Predicated region
    $region178: #{policy_forward.1} parent=1 // pred_check
      _
    $region179: #{policy_forward.1} parent=1 // pred_check_branch
      %256 = sbr.rel (0) target = $region181
    $region180: #{policy_forward.1} parent=1 // pred_region
      %257 = dma.done [#allocation6], 4096
    $region181: #{policy_forward.1} parent=1 // pred_fallthru
      _
    // Predicated region
    $region182: #{policy_forward.1} parent=1 // pred_check
      _
    $region183: #{policy_forward.1} parent=1 // pred_check_branch
      %259 = sbr.rel (0) target = $region185
    $region184: #{policy_forward.1} parent=1 // pred_region
      %260 = dma.done [#allocation9], 3072
    $region185: #{policy_forward.1} parent=1 // pred_fallthru
      _
    // Predicated region
    $region186: #{policy_forward.1} parent=1 // pred_check
      _
    $region187: #{policy_forward.1} parent=1 // pred_check_branch
      %262 = sbr.rel (0) target = $region189
    $region188: #{policy_forward.1} parent=1 // pred_region
      %263 = dma.done [#allocation9], 1024
    $region189: #{policy_forward.1} parent=1 // pred_fallthru
      _
    // Predicated region
    $region190: #{policy_forward.1} parent=1 // pred_check
      _
    $region191: #{policy_forward.1} parent=1 // pred_check_branch
      %265 = sbr.rel (0) target = $region193
    $region192: #{policy_forward.1} parent=1 // pred_region
      %266 = dma.done [#allocation12], 4096
    $region193: #{policy_forward.1} parent=1 // pred_fallthru
      _
    // Predicated region
    $region194: #{policy_forward.1} parent=1 // pred_check
      _
    $region195: #{policy_forward.1} parent=1 // pred_check_branch
      %268 = sbr.rel (0) target = $region197
    $region196: #{policy_forward.1} parent=1 // pred_region
      %269 = dma.done [#allocation12], 4096
    $region197: #{policy_forward.1} parent=1 // pred_fallthru
      _
    %v271 = vld [vmem:[%s3] sm:$0xf]
    %v272 = vld [vmem:[%s3 + $0x4] sm:$0xf]
    %v273 = vld [vmem:[%s3 + $0x8] sm:$0xf]
    %v274 = vld [vmem:[%s3 + $0xc] sm:$0xf]
    %v275 = vld [vmem:[%s3 + $0x10] sm:$0xf]
    %v276 = vld [vmem:[%s3 + $0x14] sm:$0xf]
    %v277 = vld [vmem:[%s3 + $0x18] sm:$0xf]
    %v278 = vld [vmem:[%s3 + $0x1c] sm:$0xf]
    %v279 = vld [vmem:[%s3 + $0x20] sm:$0xf]
    %v280 = vld [vmem:[%s3 + $0x24] sm:$0xf]
    %v281 = vld [vmem:[%s3 + $0x28] sm:$0xf]
    %v282 = vld [vmem:[%s3 + $0x2c] sm:$0xf]
    %v283 = vld [vmem:[%s3 + $0x30] sm:$0xf]
    %v284 = vld [vmem:[%s3 + $0x34] sm:$0xf]
    %v285 = vld [vmem:[%s3 + $0x38] sm:$0xf]
    %v286 = vld [vmem:[%s3 + $0x3c] sm:$0xf]
    %v287 = vld [vmem:[%s1] sm:$0xff]
    %v288 = vld [vmem:[%s1 + $0x8] sm:$0xff]
    %v289 = vld [vmem:[%s1 + $0x10] sm:$0xff]
    %v290 = vld [vmem:[%s1 + $0x18] sm:$0xff]
    %v291 = vld [vmem:[%s1 + $0x20] sm:$0xff]
    %v292 = vld [vmem:[%s1 + $0x28] sm:$0xff]
    %v293 = vld [vmem:[%s1 + $0x30] sm:$0xff]
    %v294 = vld [vmem:[%s1 + $0x38] sm:$0xff]
    %v295 = vld [vmem:[%s1 + $0x40] sm:$0xff]
    %v296 = vld [vmem:[%s1 + $0x48] sm:$0xff]
    %v297 = vld [vmem:[%s1 + $0x50] sm:$0xff]
    %v298 = vld [vmem:[%s1 + $0x58] sm:$0xff]
    %v299 = vld [vmem:[%s1 + $0x60] sm:$0xff]
    %v300 = vld [vmem:[%s1 + $0x68] sm:$0xff]
    %v301 = vld [vmem:[%s1 + $0x70] sm:$0xff]
    %v302 = vld [vmem:[%s1 + $0x78] sm:$0xff]
    %v303 = vld [vmem:[%s1 + $0x80] sm:$0xff]
    %v304 = vld [vmem:[%s1 + $0x88] sm:$0xff]
    %v305 = vld [vmem:[%s1 + $0x90] sm:$0xff]
    %v306 = vld [vmem:[%s1 + $0x98] sm:$0xff]
    %v307 = vld [vmem:[%s1 + $0xa0] sm:$0xff]
    %v308 = vld [vmem:[%s1 + $0xa8] sm:$0xff]
    %v309 = vld [vmem:[%s1 + $0xb0] sm:$0xff]
    %v310 = vld [vmem:[%s1 + $0xb8] sm:$0xff]
    %v311 = vld [vmem:[%s1 + $0xc0] sm:$0xff]
    %v312 = vld [vmem:[%s1 + $0xc8] sm:$0xff]
    %v313 = vld [vmem:[%s1 + $0xd0] sm:$0xff]
    %v314 = vld [vmem:[%s1 + $0xd8] sm:$0xff]
    %v315 = vld [vmem:[%s1 + $0xe0] sm:$0xff]
    %v316 = vld [vmem:[%s1 + $0xe8] sm:$0xff]
    %v317 = vld [vmem:[%s5] sm:$0xff]
    %v318 = vld [vmem:[%s5 + $0x8] sm:$0xf]
    %v319 = vld [vmem:[%s5 + $0xc] sm:$0xff]
    %v320 = vld [vmem:[%s5 + $0x14] sm:$0xf]
    %v321 = vld [vmem:[%s5 + $0x18] sm:$0xff]
    %v322 = vld [vmem:[%s5 + $0x20] sm:$0xf]
    %v323 = vld [vmem:[%s5 + $0x24] sm:$0xff]
    %v324 = vld [vmem:[%s5 + $0x2c] sm:$0xf]
    %v325 = vld [vmem:[%s5 + $0x30] sm:$0xff]
    %v326 = vld [vmem:[%s5 + $0x38] sm:$0xf]
    %v327 = vld [vmem:[%s5 + $0x3c] sm:$0xff]
    %v328 = vld [vmem:[%s5 + $0x44] sm:$0xf]
    %v329 = vld [vmem:[%s5 + $0x48] sm:$0xff]
    %v330 = vld [vmem:[%s5 + $0x50] sm:$0xf]
    %v331 = vld [vmem:[%s5 + $0x54] sm:$0xff]
    %v332 = vld [vmem:[%s5 + $0x5c] sm:$0xf]
    %v333 = vld [vmem:[%s5 + $0x60] sm:$0xff]
    %v334 = vld [vmem:[%s5 + $0x68] sm:$0xf]
    %v335 = vld [vmem:[%s5 + $0x6c] sm:$0xff]
    %v336 = vld [vmem:[%s5 + $0x74] sm:$0xf]
    %v337 = vld [vmem:[%s5 + $0x78] sm:$0xff]
    %v338 = vld [vmem:[%s5 + $0x80] sm:$0xf]
    %v339 = vld [vmem:[%s5 + $0x84] sm:$0xff]
    %v340 = vld [vmem:[%s5 + $0x8c] sm:$0xf]
    %v341 = vld [vmem:[%s5 + $0x90] sm:$0xff]
    %v342 = vld [vmem:[%s5 + $0x98] sm:$0xf]
    %v343 = vld [vmem:[%s5 + $0x9c] sm:$0xff]
    %v344 = vld [vmem:[%s5 + $0xa4] sm:$0xf]
    %v345 = vld [vmem:[%s5 + $0xa8] sm:$0xff]
    %v346 = vld [vmem:[%s5 + $0xb0] sm:$0xf]
    %v347 = vld [vmem:[%s5 + $0xb4] sm:$0xff]
    %v348 = vld [vmem:[%s5 + $0xbc] sm:$0xf]
    %v349 = vld [vmem:[%s7] sm:$0x7]
    %v350 = vld [vmem:[%s9] sm:$0xf]
    %v351 = vld [vmem:[%s9 + $0x4] sm:$0xf]
    %v352 = vld [vmem:[%s9 + $0x8] sm:$0xf]
    %v353 = vld [vmem:[%s9 + $0xc] sm:$0xf]
    %v354 = vld [vmem:[%s9 + $0x10] sm:$0xf]
    %v355 = vld [vmem:[%s9 + $0x14] sm:$0xf]
    %v356 = vld [vmem:[%s9 + $0x18] sm:$0xf]
    %v357 = vld [vmem:[%s9 + $0x1c] sm:$0xf]
    %v358 = vld [vmem:[%s9 + $0x20] sm:$0xf]
    %v359 = vld [vmem:[%s9 + $0x24] sm:$0xf]
    %v360 = vld [vmem:[%s9 + $0x28] sm:$0xf]
    %v361 = vld [vmem:[%s9 + $0x2c] sm:$0xf]
    %v362 = vld [vmem:[%s9 + $0x30] sm:$0xf]
    %v363 = vld [vmem:[%s9 + $0x34] sm:$0xf]
    %v364 = vld [vmem:[%s9 + $0x38] sm:$0xf]
    %v365 = vld [vmem:[%s9 + $0x3c] sm:$0xf]
    %v366 = vld [vmem:[%s11] sm:$0x1]
    %v367 = vld [vmem:[%s13] sm:$0xff]
    %v368 = vld [vmem:[%s13 + $0x8] sm:$0xff]
    %v369 = vld [vmem:[%s13 + $0x10] sm:$0xff]
    %v370 = vld [vmem:[%s13 + $0x18] sm:$0xff]
    %v371 = vld [vmem:[%s13 + $0x20] sm:$0xff]
    %v372 = vld [vmem:[%s13 + $0x28] sm:$0xff]
    %v373 = vld [vmem:[%s13 + $0x30] sm:$0xff]
    %v374 = vld [vmem:[%s13 + $0x38] sm:$0xff]
    %v375 = vld [vmem:[%s13 + $0x40] sm:$0xff]
    %v376 = vld [vmem:[%s13 + $0x48] sm:$0xff]
    %v377 = vld [vmem:[%s13 + $0x50] sm:$0xff]
    %v378 = vld [vmem:[%s13 + $0x58] sm:$0xff]
    %v379 = vld [vmem:[%s13 + $0x60] sm:$0xff]
    %v380 = vld [vmem:[%s13 + $0x68] sm:$0xff]
    %v381 = vld [vmem:[%s13 + $0x70] sm:$0xff]
    %v382 = vld [vmem:[%s13 + $0x78] sm:$0xff]
    %v383 = vld [vmem:[%s13 + $0x80] sm:$0xff]
    %v384 = vld [vmem:[%s13 + $0x88] sm:$0xff]
    %v385 = vld [vmem:[%s13 + $0x90] sm:$0xff]
    %v386 = vld [vmem:[%s13 + $0x98] sm:$0xff]
    %v387 = vld [vmem:[%s13 + $0xa0] sm:$0xff]
    %v388 = vld [vmem:[%s13 + $0xa8] sm:$0xff]
    %v389 = vld [vmem:[%s13 + $0xb0] sm:$0xff]
    %v390 = vld [vmem:[%s13 + $0xb8] sm:$0xff]
    %v391 = vld [vmem:[%s13 + $0xc0] sm:$0xff]
    %v392 = vld [vmem:[%s13 + $0xc8] sm:$0xff]
    %v393 = vld [vmem:[%s13 + $0xd0] sm:$0xff]
    %v394 = vld [vmem:[%s13 + $0xd8] sm:$0xff]
    %v395 = vld [vmem:[%s13 + $0xe0] sm:$0xff]
    %v396 = vld [vmem:[%s13 + $0xe8] sm:$0xff]
    %v397 = vld [vmem:[%s13 + $0xf0] sm:$0xff]
    %v398 = vld [vmem:[%s13 + $0xf8] sm:$0xff]
    %v399 = vld [vmem:[%s15] sm:$0xf]
    %v400 = vld [vmem:[#allocation2] sm:$0xf]
    %v401 = vld [vmem:[#allocation2 + $0x4] sm:$0xf]
    %v402 = vld [vmem:[#allocation2 + $0x8] sm:$0xf]
    %v403 = vld [vmem:[#allocation2 + $0xc] sm:$0xf]
    %v404 = vld [vmem:[#allocation2 + $0x10] sm:$0xf]
    %v405 = vld [vmem:[#allocation2 + $0x14] sm:$0xf]
    %v406 = vld [vmem:[#allocation2 + $0x18] sm:$0xf]
    %v407 = vld [vmem:[#allocation2 + $0x1c] sm:$0xf]
    %v408 = vld [vmem:[#allocation2 + $0x20] sm:$0xf]
    %v409 = vld [vmem:[#allocation2 + $0x24] sm:$0xf]
    %v410 = vld [vmem:[#allocation2 + $0x28] sm:$0xf]
    %v411 = vld [vmem:[#allocation2 + $0x2c] sm:$0xf]
    %v412 = vld [vmem:[#allocation2 + $0x30] sm:$0xf]
    %v413 = vld [vmem:[#allocation2 + $0x34] sm:$0xf]
    %v414 = vld [vmem:[#allocation2 + $0x38] sm:$0xf]
    %v415 = vld [vmem:[#allocation2 + $0x3c] sm:$0xf]
    %v416 = vld [vmem:[#allocation2 + $0x40] sm:$0xf]
    %v417 = vld [vmem:[#allocation2 + $0x44] sm:$0xf]
    %v418 = vld [vmem:[#allocation2 + $0x48] sm:$0xf]
    %v419 = vld [vmem:[#allocation2 + $0x4c] sm:$0xf]
    %v420 = vld [vmem:[#allocation2 + $0x50] sm:$0xf]
    %v421 = vld [vmem:[#allocation2 + $0x54] sm:$0xf]
    %v422 = vld [vmem:[#allocation2 + $0x58] sm:$0xf]
    %v423 = vld [vmem:[#allocation2 + $0x5c] sm:$0xf]
    %v424 = vld [vmem:[#allocation2 + $0x60] sm:$0xf]
    %v425 = vld [vmem:[#allocation2 + $0x64] sm:$0xf]
    %v426 = vld [vmem:[#allocation2 + $0x68] sm:$0xf]
    %v427 = vld [vmem:[#allocation2 + $0x6c] sm:$0xf]
    %v428 = vld [vmem:[#allocation2 + $0x70] sm:$0xf]
    %v429 = vld [vmem:[#allocation2 + $0x74] sm:$0xf]
    %v430 = vld [vmem:[#allocation2 + $0x78] sm:$0xf]
    %v431 = vld [vmem:[#allocation2 + $0x7c] sm:$0xf]
    %v432 = vld [vmem:[#allocation2 + $0x80] sm:$0xf]
    %v433 = vld [vmem:[#allocation2 + $0x84] sm:$0xf]
    %v434 = vld [vmem:[#allocation2 + $0x88] sm:$0xf]
    %v435 = vld [vmem:[#allocation2 + $0x8c] sm:$0xf]
    %v436 = vld [vmem:[#allocation2 + $0x90] sm:$0xf]
    %v437 = vld [vmem:[#allocation2 + $0x94] sm:$0xf]
    %v438 = vld [vmem:[#allocation2 + $0x98] sm:$0xf]
    %v439 = vld [vmem:[#allocation2 + $0x9c] sm:$0xf]
    %v440 = vld [vmem:[#allocation2 + $0xa0] sm:$0xf]
    %v441 = vld [vmem:[#allocation2 + $0xa4] sm:$0xf]
    %v442 = vld [vmem:[#allocation2 + $0xa8] sm:$0xf]
    %v443 = vld [vmem:[#allocation2 + $0xac] sm:$0xf]
    %v444 = vld [vmem:[#allocation2 + $0xb0] sm:$0xf]
    %v445 = vld [vmem:[#allocation2 + $0xb4] sm:$0xf]
    %v446 = vld [vmem:[#allocation2 + $0xb8] sm:$0xf]
    %v447 = vld [vmem:[#allocation2 + $0xbc] sm:$0xf]
    %v448 = vld [vmem:[#allocation2 + $0xc0] sm:$0xf]
    %v449 = vld [vmem:[#allocation2 + $0xc4] sm:$0xf]
    %v450 = vld [vmem:[#allocation2 + $0xc8] sm:$0xf]
    %v451 = vld [vmem:[#allocation2 + $0xcc] sm:$0xf]
    %v452 = vld [vmem:[#allocation2 + $0xd0] sm:$0xf]
    %v453 = vld [vmem:[#allocation2 + $0xd4] sm:$0xf]
    %v454 = vld [vmem:[#allocation2 + $0xd8] sm:$0xf]
    %v455 = vld [vmem:[#allocation2 + $0xdc] sm:$0xf]
    %v456 = vld [vmem:[#allocation2 + $0xe0] sm:$0xf]
    %v457 = vld [vmem:[#allocation2 + $0xe4] sm:$0xf]
    %v458 = vld [vmem:[#allocation2 + $0xe8] sm:$0xf]
    %v459 = vld [vmem:[#allocation2 + $0xec] sm:$0xf]
    %v460 = vld [vmem:[#allocation2 + $0xf0] sm:$0xf]
    %v461 = vld [vmem:[#allocation2 + $0xf4] sm:$0xf]
    %v462 = vld [vmem:[#allocation2 + $0xf8] sm:$0xf]
    %v463 = vld [vmem:[#allocation2 + $0xfc] sm:$0xf]
    %v464 = vld [vmem:[%s19] sm:$0x1]
    %v465 = vld [vmem:[%s21] sm:$0x1]
    %v466 = vld [vmem:[%s23] sm:$0x1]
    %v467 = vld [vmem:[%s25] sm:$0x1]
    %v468 = vld [vmem:[%s27] sm:$0x1]
    %v469 = vpack.c.bf16 %v288, %v287
    %v470 = vpack.c.bf16 %v290, %v289
    %v471 = vpack.c.bf16 %v292, %v291
    %v472 = vpack.c.bf16 %v294, %v293
    %v473 = vpack.c.bf16 %v296, %v295
    %v474 = vpack.c.bf16 %v298, %v297
    %v475 = vpack.c.bf16 %v300, %v299
    %v476 = vpack.c.bf16 %v302, %v301
    %v477 = vpack.c.bf16 %v304, %v303
    %v478 = vpack.c.bf16 %v306, %v305
    %v479 = vpack.c.bf16 %v308, %v307
    %v480 = vpack.c.bf16 %v310, %v309
    %v481 = vpack.c.bf16 %v312, %v311
    %v482 = vpack.c.bf16 %v314, %v313
    %v483 = vpack.c.bf16 %v316, %v315
    %v485 = vlaneseq
    %v486 = vshrl.u32 %v485, 7
    %v487 = vsub.s32 0, %v486
    %v488 = vrot.slane %v349, %v487
    %v489 = vlaneseq
    %v490 = vshrl.u32 %v489, 7
    %v491 = vsub.s32 1, %v490
    %v492 = vrot.slane %v349, %v491
    %v493 = vlaneseq
    %v494 = vshrl.u32 %v493, 7
    %v495 = vsub.s32 2, %v494
    %v496 = vrot.slane %v349, %v495
    %v532 = vunpack.c.l.b16 %v317
    %v533 = vunpack.c.h.b16 %v317
    %v534 = vunpack.c.l.b16 %v318
    %v535 = vunpack.c.l.b16 %v319
    %v536 = vunpack.c.h.b16 %v319
    %v537 = vunpack.c.l.b16 %v320
    %v538 = vunpack.c.l.b16 %v321
    %v539 = vunpack.c.h.b16 %v321
    %v540 = vunpack.c.l.b16 %v322
    %v541 = vunpack.c.l.b16 %v323
    %v542 = vunpack.c.h.b16 %v323
    %v543 = vunpack.c.l.b16 %v324
    %v544 = vunpack.c.l.b16 %v325
    %v545 = vunpack.c.h.b16 %v325
    %v546 = vunpack.c.l.b16 %v326
    %v547 = vunpack.c.l.b16 %v327
    %v548 = vunpack.c.h.b16 %v327
    %v549 = vunpack.c.l.b16 %v328
    %v550 = vunpack.c.l.b16 %v329
    %v551 = vunpack.c.h.b16 %v329
    %v552 = vunpack.c.l.b16 %v330
    %v553 = vunpack.c.l.b16 %v331
    %v554 = vunpack.c.h.b16 %v331
    %v555 = vunpack.c.l.b16 %v332
    %v556 = vunpack.c.l.b16 %v333
    %v557 = vunpack.c.h.b16 %v333
    %v558 = vunpack.c.l.b16 %v334
    %v559 = vunpack.c.l.b16 %v335
    %v560 = vunpack.c.h.b16 %v335
    %v561 = vunpack.c.l.b16 %v336
    %v562 = vunpack.c.l.b16 %v337
    %v563 = vunpack.c.h.b16 %v337
    %v564 = vunpack.c.l.b16 %v338
    %v565 = vunpack.c.l.b16 %v339
    %v566 = vunpack.c.h.b16 %v339
    %v567 = vunpack.c.l.b16 %v340
    %v568 = vunpack.c.l.b16 %v341
    %v569 = vunpack.c.h.b16 %v341
    %v570 = vunpack.c.l.b16 %v342
    %v571 = vunpack.c.l.b16 %v343
    %v572 = vunpack.c.h.b16 %v343
    %v573 = vunpack.c.l.b16 %v344
    %v574 = vunpack.c.l.b16 %v345
    %v575 = vunpack.c.h.b16 %v345
    %v576 = vunpack.c.l.b16 %v346
    %v577 = vunpack.c.l.b16 %v347
    %v578 = vunpack.c.h.b16 %v347
    %v579 = vunpack.c.l.b16 %v348
    %v580 = vpack.c.b16 %v535, %v532
    %v581 = vpack.c.b16 %v536, %v533
    %v582 = vpack.c.b16 %v537, %v534
    %v583 = vpack.c.b16 %v541, %v538
    %v584 = vpack.c.b16 %v542, %v539
    %v585 = vpack.c.b16 %v543, %v540
    %v586 = vpack.c.b16 %v547, %v544
    %v587 = vpack.c.b16 %v548, %v545
    %v588 = vpack.c.b16 %v549, %v546
    %v589 = vpack.c.b16 %v553, %v550
    %v590 = vpack.c.b16 %v554, %v551
    %v591 = vpack.c.b16 %v555, %v552
    %v592 = vpack.c.b16 %v559, %v556
    %v593 = vpack.c.b16 %v560, %v557
    %v594 = vpack.c.b16 %v561, %v558
    %v595 = vpack.c.b16 %v565, %v562
    %v596 = vpack.c.b16 %v566, %v563
    %v597 = vpack.c.b16 %v567, %v564
    %v598 = vpack.c.b16 %v571, %v568
    %v599 = vpack.c.b16 %v572, %v569
    %v600 = vpack.c.b16 %v573, %v570
    %v601 = vpack.c.b16 %v577, %v574
    %v602 = vpack.c.b16 %v578, %v575
    %v603 = vpack.c.b16 %v579, %v576
    %628 = vmatprep.subr.bf16.mxu0 %v581
    %629 = vmatpush1.bf16.msra.mxu0 %v580
    %630 = vmatprep.subr.bf16.mxu0 %v584
    %631 = vmatpush1.bf16.msra.mxu0 %v583
    %632 = vmatprep.subr.bf16.mxu0 %v587
    %633 = vmatpush1.bf16.msra.mxu0 %v586
    %634 = vmatprep.subr.bf16.mxu0 %v590
    %635 = vmatpush1.bf16.msra.mxu0 %v589
    %636 = vmatprep.subr.bf16.mxu0 %v593
    %637 = vmatpush1.bf16.msra.mxu0 %v592
    %638 = vmatprep.subr.bf16.mxu0 %v596
    %639 = vmatpush1.bf16.msra.mxu0 %v595
    %640 = vmatprep.subr.bf16.mxu0 %v599
    %641 = vmatpush1.bf16.msra.mxu0 %v598
    %642 = vmatprep.subr.bf16.mxu0 %v602
    %643 = vmatpush1.bf16.msra.mxu0 %v601
    %644 = vmatprep.subr.bf16.mxu0 0
    %645 = vmatpush1.bf16.msra.mxu0 0
    %646 = vmatprep.subr.bf16.mxu0 0
    %647 = vmatpush1.bf16.msra.mxu0 0
    %648 = vmatprep.subr.bf16.mxu0 0
    %649 = vmatpush1.bf16.msra.mxu0 0
    %650 = vmatprep.subr.bf16.mxu0 0
    %651 = vmatpush1.bf16.msra.mxu0 0
    %652 = vmatprep.subr.bf16.mxu0 0
    %653 = vmatpush1.bf16.msra.mxu0 0
    %654 = vmatprep.subr.bf16.mxu0 0
    %655 = vmatpush1.bf16.msra.mxu0 0
    %656 = vmatprep.subr.bf16.mxu0 0
    %657 = vmatpush1.bf16.msra.mxu0 0
    %658 = vmatprep.subr.bf16.mxu0 0
    %659 = vmatpush1.bf16.msra.mxu0 0
    %660 = vmatprep.mubr.bf16.mxu0 0
    %661 = vmatmul.mubr.bf16.gmra.mrb[0].mxu0 %v469
    %v662 = vpop.f32.mrb[0].mxu0
    %v663 = vadd.f32 %v488, %v662
    %v664 = vpop.f32.mrb[0].mxu0
    %v665 = vadd.f32 %v492, %v664
    %v666 = vpop.f32.mrb[0].mxu0
    %v667 = vadd.f32 %v488, %v666
    %v668 = vpop.f32.mrb[0].mxu0
    %v669 = vadd.f32 %v492, %v668
    %670 = vmatprep.mubr.bf16.mxu0 0
    %671 = vmatmul.mubr.bf16.gmra.mrb[0].mxu0 %v470
    %v672 = vpop.f32.mrb[0].mxu0
    %v673 = vadd.f32 %v488, %v672
    %v674 = vpop.f32.mrb[0].mxu0
    %v675 = vadd.f32 %v492, %v674
    %v676 = vpop.f32.mrb[0].mxu0
    %v677 = vadd.f32 %v488, %v676
    %v678 = vpop.f32.mrb[0].mxu0
    %v679 = vadd.f32 %v492, %v678
    %680 = vmatprep.mubr.bf16.mxu0 0
    %681 = vmatmul.mubr.bf16.gmra.mrb[0].mxu0 %v471
    %v682 = vpop.f32.mrb[0].mxu0
    %v683 = vadd.f32 %v488, %v682
    %v684 = vpop.f32.mrb[0].mxu0
    %v685 = vadd.f32 %v492, %v684
    %v686 = vpop.f32.mrb[0].mxu0
    %v687 = vadd.f32 %v488, %v686
    %v688 = vpop.f32.mrb[0].mxu0
    %v689 = vadd.f32 %v492, %v688
    %690 = vmatprep.mubr.bf16.mxu0 0
    %691 = vmatmul.mubr.bf16.gmra.mrb[0].mxu0 %v472
    %v692 = vpop.f32.mrb[0].mxu0
    %v693 = vadd.f32 %v488, %v692
    %v694 = vpop.f32.mrb[0].mxu0
    %v695 = vadd.f32 %v492, %v694
    %v696 = vpop.f32.mrb[0].mxu0
    %v697 = vadd.f32 %v488, %v696
    %v698 = vpop.f32.mrb[0].mxu0
    %v699 = vadd.f32 %v492, %v698
    %700 = vmatprep.mubr.bf16.mxu0 0
    %701 = vmatmul.mubr.bf16.gmra.mrb[0].mxu0 %v473
    %v702 = vpop.f32.mrb[0].mxu0
    %v703 = vadd.f32 %v488, %v702
    %v704 = vpop.f32.mrb[0].mxu0
    %v705 = vadd.f32 %v492, %v704
    %v706 = vpop.f32.mrb[0].mxu0
    %v707 = vadd.f32 %v488, %v706
    %v708 = vpop.f32.mrb[0].mxu0
    %v709 = vadd.f32 %v492, %v708
    %710 = vmatprep.mubr.bf16.mxu0 0
    %711 = vmatmul.mubr.bf16.gmra.mrb[0].mxu0 %v474
    %v712 = vpop.f32.mrb[0].mxu0
    %v713 = vadd.f32 %v488, %v712
    %v714 = vpop.f32.mrb[0].mxu0
    %v715 = vadd.f32 %v492, %v714
    %v716 = vpop.f32.mrb[0].mxu0
    %v717 = vadd.f32 %v488, %v716
    %v718 = vpop.f32.mrb[0].mxu0
    %v719 = vadd.f32 %v492, %v718
    %720 = vmatprep.mubr.bf16.mxu0 0
    %721 = vmatmul.mubr.bf16.gmra.mrb[0].mxu0 %v475
    %v722 = vpop.f32.mrb[0].mxu0
    %v723 = vadd.f32 %v488, %v722
    %v724 = vpop.f32.mrb[0].mxu0
    %v725 = vadd.f32 %v492, %v724
    %v726 = vpop.f32.mrb[0].mxu0
    %v727 = vadd.f32 %v488, %v726
    %v728 = vpop.f32.mrb[0].mxu0
    %v729 = vadd.f32 %v492, %v728
    %730 = vmatprep.mubr.bf16.mxu0 0
    %731 = vmatmul.mubr.bf16.gmra.mrb[0].mxu0 %v476
    %v732 = vpop.f32.mrb[0].mxu0
    %v733 = vadd.f32 %v488, %v732
    %v734 = vpop.f32.mrb[0].mxu0
    %v735 = vadd.f32 %v492, %v734
    %v736 = vpop.f32.mrb[0].mxu0
    %v737 = vadd.f32 %v488, %v736
    %v738 = vpop.f32.mrb[0].mxu0
    %v739 = vadd.f32 %v492, %v738
    %740 = vmatprep.mubr.bf16.mxu0 0
    %741 = vmatmul.mubr.bf16.gmra.mrb[0].mxu0 %v477
    %v742 = vpop.f32.mrb[0].mxu0
    %v743 = vadd.f32 %v488, %v742
    %v744 = vpop.f32.mrb[0].mxu0
    %v745 = vadd.f32 %v492, %v744
    %v746 = vpop.f32.mrb[0].mxu0
    %v747 = vadd.f32 %v488, %v746
    %v748 = vpop.f32.mrb[0].mxu0
    %v749 = vadd.f32 %v492, %v748
    %750 = vmatprep.mubr.bf16.mxu0 0
    %751 = vmatmul.mubr.bf16.gmra.mrb[0].mxu0 %v478
    %v752 = vpop.f32.mrb[0].mxu0
    %v753 = vadd.f32 %v488, %v752
    %v754 = vpop.f32.mrb[0].mxu0
    %v755 = vadd.f32 %v492, %v754
    %v756 = vpop.f32.mrb[0].mxu0
    %v757 = vadd.f32 %v488, %v756
    %v758 = vpop.f32.mrb[0].mxu0
    %v759 = vadd.f32 %v492, %v758
    %760 = vmatprep.mubr.bf16.mxu0 0
    %761 = vmatmul.mubr.bf16.gmra.mrb[0].mxu0 %v479
    %v762 = vpop.f32.mrb[0].mxu0
    %v763 = vadd.f32 %v488, %v762
    %v764 = vpop.f32.mrb[0].mxu0
    %v765 = vadd.f32 %v492, %v764
    %v766 = vpop.f32.mrb[0].mxu0
    %v767 = vadd.f32 %v488, %v766
    %v768 = vpop.f32.mrb[0].mxu0
    %v769 = vadd.f32 %v492, %v768
    %770 = vmatprep.mubr.bf16.mxu0 0
    %771 = vmatmul.mubr.bf16.gmra.mrb[0].mxu0 %v480
    %v772 = vpop.f32.mrb[0].mxu0
    %v773 = vadd.f32 %v488, %v772
    %v774 = vpop.f32.mrb[0].mxu0
    %v775 = vadd.f32 %v492, %v774
    %v776 = vpop.f32.mrb[0].mxu0
    %v777 = vadd.f32 %v488, %v776
    %v778 = vpop.f32.mrb[0].mxu0
    %v779 = vadd.f32 %v492, %v778
    %780 = vmatprep.mubr.bf16.mxu0 0
    %781 = vmatmul.mubr.bf16.gmra.mrb[0].mxu0 %v481
    %v782 = vpop.f32.mrb[0].mxu0
    %v783 = vadd.f32 %v488, %v782
    %v784 = vpop.f32.mrb[0].mxu0
    %v785 = vadd.f32 %v492, %v784
    %v786 = vpop.f32.mrb[0].mxu0
    %v787 = vadd.f32 %v488, %v786
    %v788 = vpop.f32.mrb[0].mxu0
    %v789 = vadd.f32 %v492, %v788
    %790 = vmatprep.mubr.bf16.mxu0 0
    %791 = vmatmul.mubr.bf16.gmra.mrb[0].mxu0 %v482
    %v792 = vpop.f32.mrb[0].mxu0
    %v793 = vadd.f32 %v488, %v792
    %v794 = vpop.f32.mrb[0].mxu0
    %v795 = vadd.f32 %v492, %v794
    %v796 = vpop.f32.mrb[0].mxu0
    %v797 = vadd.f32 %v488, %v796
    %v798 = vpop.f32.mrb[0].mxu0
    %v799 = vadd.f32 %v492, %v798
    %800 = vmatprep.mubr.bf16.mxu0 0
    %801 = vmatmul.mubr.bf16.gmra.mrb[0].mxu0 %v483
    %v802 = vpop.f32.mrb[0].mxu0
    %v803 = vadd.f32 %v488, %v802
    %v804 = vpop.f32.mrb[0].mxu0
    %v805 = vadd.f32 %v492, %v804
    %v806 = vpop.f32.mrb[0].mxu0
    %v807 = vadd.f32 %v488, %v806
    %v808 = vpop.f32.mrb[0].mxu0
    %v809 = vadd.f32 %v492, %v808
    %810 = vdwg.mxu0
    %811 = vmatprep.subr.bf16.mxu0 0
    %812 = vmatpush1.bf16.msra.mxu0 %v582
    %813 = vmatprep.subr.bf16.mxu0 0
    %814 = vmatpush1.bf16.msra.mxu0 %v585
    %815 = vmatprep.subr.bf16.mxu0 0
    %816 = vmatpush1.bf16.msra.mxu0 %v588
    %817 = vmatprep.subr.bf16.mxu0 0
    %818 = vmatpush1.bf16.msra.mxu0 %v591
    %819 = vmatprep.subr.bf16.mxu0 0
    %820 = vmatpush1.bf16.msra.mxu0 %v594
    %821 = vmatprep.subr.bf16.mxu0 0
    %822 = vmatpush1.bf16.msra.mxu0 %v597
    %823 = vmatprep.subr.bf16.mxu0 0
    %824 = vmatpush1.bf16.msra.mxu0 %v600
    %825 = vmatprep.subr.bf16.mxu0 0
    %826 = vmatpush1.bf16.msra.mxu0 %v603
    %827 = vmatprep.subr.bf16.mxu0 0
    %828 = vmatpush1.bf16.msra.mxu0 0
    %829 = vmatprep.subr.bf16.mxu0 0
    %830 = vmatpush1.bf16.msra.mxu0 0
    %831 = vmatprep.subr.bf16.mxu0 0
    %832 = vmatpush1.bf16.msra.mxu0 0
    %833 = vmatprep.subr.bf16.mxu0 0
    %834 = vmatpush1.bf16.msra.mxu0 0
    %835 = vmatprep.subr.bf16.mxu0 0
    %836 = vmatpush1.bf16.msra.mxu0 0
    %837 = vmatprep.subr.bf16.mxu0 0
    %838 = vmatpush1.bf16.msra.mxu0 0
    %839 = vmatprep.subr.bf16.mxu0 0
    %840 = vmatpush1.bf16.msra.mxu0 0
    %841 = vmatprep.subr.bf16.mxu0 0
    %842 = vmatpush1.bf16.msra.mxu0 0
    %843 = vmatprep.mubr.bf16.mxu0 0
    %844 = vmatmul.mubr.bf16.gmra.mrb[0].mxu0 %v469
    %v845 = vpop.f32.mrb[0].mxu0
    %v846 = vadd.f32 %v496, %v845
    %v847 = vpop.f32.mrb[0].mxu0
    %v848 = vpop.f32.mrb[0].mxu0
    %v849 = vadd.f32 %v496, %v848
    %v850 = vpop.f32.mrb[0].mxu0
    %851 = vmatprep.mubr.bf16.mxu0 0
    %852 = vmatmul.mubr.bf16.gmra.mrb[0].mxu0 %v470
    %v853 = vpop.f32.mrb[0].mxu0
    %v854 = vadd.f32 %v496, %v853
    %v855 = vpop.f32.mrb[0].mxu0
    %v856 = vpop.f32.mrb[0].mxu0
    %v857 = vadd.f32 %v496, %v856
    %v858 = vpop.f32.mrb[0].mxu0
    %859 = vmatprep.mubr.bf16.mxu0 0
    %860 = vmatmul.mubr.bf16.gmra.mrb[0].mxu0 %v471
    %v861 = vpop.f32.mrb[0].mxu0
    %v862 = vadd.f32 %v496, %v861
    %v863 = vpop.f32.mrb[0].mxu0
    %v864 = vpop.f32.mrb[0].mxu0
    %v865 = vadd.f32 %v496, %v864
    %v866 = vpop.f32.mrb[0].mxu0
    %867 = vmatprep.mubr.bf16.mxu0 0
    %868 = vmatmul.mubr.bf16.gmra.mrb[0].mxu0 %v472
    %v869 = vpop.f32.mrb[0].mxu0
    %v870 = vadd.f32 %v496, %v869
    %v871 = vpop.f32.mrb[0].mxu0
    %v872 = vpop.f32.mrb[0].mxu0
    %v873 = vadd.f32 %v496, %v872
    %v874 = vpop.f32.mrb[0].mxu0
    %875 = vmatprep.mubr.bf16.mxu0 0
    %876 = vmatmul.mubr.bf16.gmra.mrb[0].mxu0 %v473
    %v877 = vpop.f32.mrb[0].mxu0
    %v878 = vadd.f32 %v496, %v877
    %v879 = vpop.f32.mrb[0].mxu0
    %v880 = vpop.f32.mrb[0].mxu0
    %v881 = vadd.f32 %v496, %v880
    %v882 = vpop.f32.mrb[0].mxu0
    %883 = vmatprep.mubr.bf16.mxu0 0
    %884 = vmatmul.mubr.bf16.gmra.mrb[0].mxu0 %v474
    %v885 = vpop.f32.mrb[0].mxu0
    %v886 = vadd.f32 %v496, %v885
    %v887 = vpop.f32.mrb[0].mxu0
    %v888 = vpop.f32.mrb[0].mxu0
    %v889 = vadd.f32 %v496, %v888
    %v890 = vpop.f32.mrb[0].mxu0
    %891 = vmatprep.mubr.bf16.mxu0 0
    %892 = vmatmul.mubr.bf16.gmra.mrb[0].mxu0 %v475
    %v893 = vpop.f32.mrb[0].mxu0
    %v894 = vadd.f32 %v496, %v893
    %v895 = vpop.f32.mrb[0].mxu0
    %v896 = vpop.f32.mrb[0].mxu0
    %v897 = vadd.f32 %v496, %v896
    %v898 = vpop.f32.mrb[0].mxu0
    %899 = vmatprep.mubr.bf16.mxu0 0
    %900 = vmatmul.mubr.bf16.gmra.mrb[0].mxu0 %v476
    %v901 = vpop.f32.mrb[0].mxu0
    %v902 = vadd.f32 %v496, %v901
    %v903 = vpop.f32.mrb[0].mxu0
    %v904 = vpop.f32.mrb[0].mxu0
    %v905 = vadd.f32 %v496, %v904
    %v906 = vpop.f32.mrb[0].mxu0
    %907 = vmatprep.mubr.bf16.mxu0 0
    %908 = vmatmul.mubr.bf16.gmra.mrb[0].mxu0 %v477
    %v909 = vpop.f32.mrb[0].mxu0
    %v910 = vadd.f32 %v496, %v909
    %v911 = vpop.f32.mrb[0].mxu0
    %v912 = vpop.f32.mrb[0].mxu0
    %v913 = vadd.f32 %v496, %v912
    %v914 = vpop.f32.mrb[0].mxu0
    %915 = vmatprep.mubr.bf16.mxu0 0
    %916 = vmatmul.mubr.bf16.gmra.mrb[0].mxu0 %v478
    %v917 = vpop.f32.mrb[0].mxu0
    %v918 = vadd.f32 %v496, %v917
    %v919 = vpop.f32.mrb[0].mxu0
    %v920 = vpop.f32.mrb[0].mxu0
    %v921 = vadd.f32 %v496, %v920
    %v922 = vpop.f32.mrb[0].mxu0
    %923 = vmatprep.mubr.bf16.mxu0 0
    %924 = vmatmul.mubr.bf16.gmra.mrb[0].mxu0 %v479
    %v925 = vpop.f32.mrb[0].mxu0
    %v926 = vadd.f32 %v496, %v925
    %v927 = vpop.f32.mrb[0].mxu0
    %v928 = vpop.f32.mrb[0].mxu0
    %v929 = vadd.f32 %v496, %v928
    %v930 = vpop.f32.mrb[0].mxu0
    %931 = vmatprep.mubr.bf16.mxu0 0
    %932 = vmatmul.mubr.bf16.gmra.mrb[0].mxu0 %v480
    %v933 = vpop.f32.mrb[0].mxu0
    %v934 = vadd.f32 %v496, %v933
    %v935 = vpop.f32.mrb[0].mxu0
    %v936 = vpop.f32.mrb[0].mxu0
    %v937 = vadd.f32 %v496, %v936
    %v938 = vpop.f32.mrb[0].mxu0
    %939 = vmatprep.mubr.bf16.mxu0 0
    %940 = vmatmul.mubr.bf16.gmra.mrb[0].mxu0 %v481
    %v941 = vpop.f32.mrb[0].mxu0
    %v942 = vadd.f32 %v496, %v941
    %v943 = vpop.f32.mrb[0].mxu0
    %v944 = vpop.f32.mrb[0].mxu0
    %v945 = vadd.f32 %v496, %v944
    %v946 = vpop.f32.mrb[0].mxu0
    %947 = vmatprep.mubr.bf16.mxu0 0
    %948 = vmatmul.mubr.bf16.gmra.mrb[0].mxu0 %v482
    %v949 = vpop.f32.mrb[0].mxu0
    %v950 = vadd.f32 %v496, %v949
    %v951 = vpop.f32.mrb[0].mxu0
    %v952 = vpop.f32.mrb[0].mxu0
    %v953 = vadd.f32 %v496, %v952
    %v954 = vpop.f32.mrb[0].mxu0
    %955 = vmatprep.mubr.bf16.mxu0 0
    %956 = vmatmul.mubr.bf16.gmra.mrb[0].mxu0 %v483
    %v957 = vpop.f32.mrb[0].mxu0
    %v958 = vadd.f32 %v496, %v957
    %v959 = vpop.f32.mrb[0].mxu0
    %v960 = vpop.f32.mrb[0].mxu0
    %v961 = vadd.f32 %v496, %v960
    %v962 = vpop.f32.mrb[0].mxu0
    %963 = vdwg.mxu0
    %v964 = vmul.f32 %v663, 0.25
    %v965 = vmul.f32 %v667, 0.25
    %v966 = vmul.f32 %v673, 0.25
    %v967 = vmul.f32 %v677, 0.25
    %v968 = vmul.f32 %v683, 0.25
    %v969 = vmul.f32 %v687, 0.25
    %v970 = vmul.f32 %v693, 0.25
    %v971 = vmul.f32 %v697, 0.25
    %v972 = vmul.f32 %v703, 0.25
    %v973 = vmul.f32 %v707, 0.25
    %v974 = vmul.f32 %v713, 0.25
    %v975 = vmul.f32 %v717, 0.25
    %v976 = vmul.f32 %v723, 0.25
    %v977 = vmul.f32 %v727, 0.25
    %v978 = vmul.f32 %v733, 0.25
    %v979 = vmul.f32 %v737, 0.25
    %v980 = vmul.f32 %v743, 0.25
    %v981 = vmul.f32 %v747, 0.25
    %v982 = vmul.f32 %v753, 0.25
    %v983 = vmul.f32 %v757, 0.25
    %v984 = vmul.f32 %v763, 0.25
    %v985 = vmul.f32 %v767, 0.25
    %v986 = vmul.f32 %v773, 0.25
    %v987 = vmul.f32 %v777, 0.25
    %v988 = vmul.f32 %v783, 0.25
    %v989 = vmul.f32 %v787, 0.25
    %v990 = vmul.f32 %v793, 0.25
    %v991 = vmul.f32 %v797, 0.25
    %v992 = vmul.f32 %v803, 0.25
    %v993 = vmul.f32 %v807, 0.25
    %v994 = vmul.f32 %v964, %v665
    %v995 = vmul.f32 %v965, %v669
    %v996 = vmul.f32 %v966, %v675
    %v997 = vmul.f32 %v967, %v679
    %v998 = vmul.f32 %v968, %v685
    %v999 = vmul.f32 %v969, %v689
    %v1000 = vmul.f32 %v970, %v695
    %v1001 = vmul.f32 %v971, %v699
    %v1002 = vmul.f32 %v972, %v705
    %v1003 = vmul.f32 %v973, %v709
    %v1004 = vmul.f32 %v974, %v715
    %v1005 = vmul.f32 %v975, %v719
    %v1006 = vmul.f32 %v976, %v725
    %v1007 = vmul.f32 %v977, %v729
    %v1008 = vmul.f32 %v978, %v735
    %v1009 = vmul.f32 %v979, %v665
    %v1010 = vmul.f32 %v980, %v669
    %v1011 = vmul.f32 %v981, %v675
    %v1012 = vmul.f32 %v982, %v679
    %v1013 = vmul.f32 %v983, %v685
    %v1014 = vmul.f32 %v984, %v689
    %v1015 = vmul.f32 %v985, %v695
    %v1016 = vmul.f32 %v986, %v699
    %v1017 = vmul.f32 %v987, %v705
    %v1018 = vmul.f32 %v988, %v709
    %v1019 = vmul.f32 %v989, %v715
    %v1020 = vmul.f32 %v990, %v719
    %v1021 = vmul.f32 %v991, %v725
    %v1022 = vmul.f32 %v992, %v729
    %v1023 = vmul.f32 %v993, %v735
    %v1024 = vpack.c.bf16 %v995, %v994
    %v1025 = vpack.c.bf16 %v997, %v996
    %v1026 = vpack.c.bf16 %v999, %v998
    %v1027 = vpack.c.bf16 %v1001, %v1000
    %v1028 = vpack.c.bf16 %v1003, %v1002
    %v1029 = vpack.c.bf16 %v1005, %v1004
    %v1030 = vpack.c.bf16 %v1007, %v1006
    %v1031 = vpack.c.bf16 %v1009, %v1008
    %v1032 = vpack.c.bf16 %v1011, %v1010
    %v1033 = vpack.c.bf16 %v1013, %v1012
    %v1034 = vpack.c.bf16 %v1015, %v1014
    %v1035 = vpack.c.bf16 %v1017, %v1016
    %v1036 = vpack.c.bf16 %v1019, %v1018
    %v1037 = vpack.c.bf16 %v1021, %v1020
    %v1038 = vpack.c.bf16 %v1023, %v1022
    %v1055 = vunpack.c.l.b16 %v271
    %v1056 = vunpack.c.l.b16 %v272
    %v1057 = vunpack.c.l.b16 %v273
    %v1058 = vunpack.c.l.b16 %v274
    %v1059 = vunpack.c.l.b16 %v275
    %v1060 = vunpack.c.l.b16 %v276
    %v1061 = vunpack.c.l.b16 %v277
    %v1062 = vunpack.c.l.b16 %v278
    %v1063 = vunpack.c.l.b16 %v279
    %v1064 = vunpack.c.l.b16 %v280
    %v1065 = vunpack.c.l.b16 %v281
    %v1066 = vunpack.c.l.b16 %v282
    %v1067 = vunpack.c.l.b16 %v283
    %v1068 = vunpack.c.l.b16 %v284
    %v1069 = vunpack.c.l.b16 %v285
    %v1070 = vunpack.c.l.b16 %v286
    %v1071 = vpack.c.b16 %v1056, %v1055
    %v1072 = vpack.c.b16 %v1058, %v1057
    %v1073 = vpack.c.b16 %v1060, %v1059
    %v1074 = vpack.c.b16 %v1062, %v1061
    %v1075 = vpack.c.b16 %v1064, %v1063
    %v1076 = vpack.c.b16 %v1066, %v1065
    %v1077 = vpack.c.b16 %v1068, %v1067
    %v1078 = vpack.c.b16 %v1070, %v1069
    %1087 = vmatprep.subr.bf16.mxu0 0
    %1088 = vmatpush1.bf16.msra.mxu0 %v1071
    %1089 = vmatprep.subr.bf16.mxu0 0
    %1090 = vmatpush1.bf16.msra.mxu0 %v1072
    %1091 = vmatprep.subr.bf16.mxu0 0
    %1092 = vmatpush1.bf16.msra.mxu0 %v1073
    %1093 = vmatprep.subr.bf16.mxu0 0
    %1094 = vmatpush1.bf16.msra.mxu0 %v1074
    %1095 = vmatprep.subr.bf16.mxu0 0
    %1096 = vmatpush1.bf16.msra.mxu0 %v1075
    %1097 = vmatprep.subr.bf16.mxu0 0
    %1098 = vmatpush1.bf16.msra.mxu0 %v1076
    %1099 = vmatprep.subr.bf16.mxu0 0
    %1100 = vmatpush1.bf16.msra.mxu0 %v1077
    %1101 = vmatprep.subr.bf16.mxu0 0
    %1102 = vmatpush1.bf16.msra.mxu0 %v1078
    %1103 = vmatprep.subr.bf16.mxu0 0
    %1104 = vmatpush1.bf16.msra.mxu0 0
    %1105 = vmatprep.subr.bf16.mxu0 0
    %1106 = vmatpush1.bf16.msra.mxu0 0
    %1107 = vmatprep.subr.bf16.mxu0 0
    %1108 = vmatpush1.bf16.msra.mxu0 0
    %1109 = vmatprep.subr.bf16.mxu0 0
    %1110 = vmatpush1.bf16.msra.mxu0 0
    %1111 = vmatprep.subr.bf16.mxu0 0
    %1112 = vmatpush1.bf16.msra.mxu0 0
    %1113 = vmatprep.subr.bf16.mxu0 0
    %1114 = vmatpush1.bf16.msra.mxu0 0
    %1115 = vmatprep.subr.bf16.mxu0 0
    %1116 = vmatpush1.bf16.msra.mxu0 0
    %1117 = vmatprep.subr.bf16.mxu0 0
    %1118 = vmatpush1.bf16.msra.mxu0 0
    %1119 = vmatprep.mubr.bf16.mxu0 0
    %1120 = vmatmul.mubr.bf16.gmra.mrb[0].mxu0 %v1024
    %v1121 = vpop.f32.mrb[0].mxu0
    %v1122 = vadd.f32 0.0, %v1121
    %v1123 = vpop.f32.mrb[0].mxu0
    %v1124 = vpop.f32.mrb[0].mxu0
    %v1125 = vadd.f32 0.0, %v1124
    %v1126 = vpop.f32.mrb[0].mxu0
    %1127 = vmatprep.mubr.bf16.mxu0 0
    %1128 = vmatmul.mubr.bf16.gmra.mrb[0].mxu0 %v1025
    %v1129 = vpop.f32.mrb[0].mxu0
    %v1130 = vadd.f32 0.0, %v1129
    %v1131 = vpop.f32.mrb[0].mxu0
    %v1132 = vpop.f32.mrb[0].mxu0
    %v1133 = vadd.f32 0.0, %v1132
    %v1134 = vpop.f32.mrb[0].mxu0
    %1135 = vmatprep.mubr.bf16.mxu0 0
    %1136 = vmatmul.mubr.bf16.gmra.mrb[0].mxu0 %v1026
    %v1137 = vpop.f32.mrb[0].mxu0
    %v1138 = vadd.f32 0.0, %v1137
    %v1139 = vpop.f32.mrb[0].mxu0
    %v1140 = vpop.f32.mrb[0].mxu0
    %v1141 = vadd.f32 0.0, %v1140
    %v1142 = vpop.f32.mrb[0].mxu0
    %1143 = vmatprep.mubr.bf16.mxu0 0
    %1144 = vmatmul.mubr.bf16.gmra.mrb[0].mxu0 %v1027
    %v1145 = vpop.f32.mrb[0].mxu0
    %v1146 = vadd.f32 0.0, %v1145
    %v1147 = vpop.f32.mrb[0].mxu0
    %v1148 = vpop.f32.mrb[0].mxu0
    %v1149 = vadd.f32 0.0, %v1148
    %v1150 = vpop.f32.mrb[0].mxu0
    %1151 = vmatprep.mubr.bf16.mxu0 0
    %1152 = vmatmul.mubr.bf16.gmra.mrb[0].mxu0 %v1028
    %v1153 = vpop.f32.mrb[0].mxu0
    %v1154 = vadd.f32 0.0, %v1153
    %v1155 = vpop.f32.mrb[0].mxu0
    %v1156 = vpop.f32.mrb[0].mxu0
    %v1157 = vadd.f32 0.0, %v1156
    %v1158 = vpop.f32.mrb[0].mxu0
    %1159 = vmatprep.mubr.bf16.mxu0 0
    %1160 = vmatmul.mubr.bf16.gmra.mrb[0].mxu0 %v1029
    %v1161 = vpop.f32.mrb[0].mxu0
    %v1162 = vadd.f32 0.0, %v1161
    %v1163 = vpop.f32.mrb[0].mxu0
    %v1164 = vpop.f32.mrb[0].mxu0
    %v1165 = vadd.f32 0.0, %v1164
    %v1166 = vpop.f32.mrb[0].mxu0
    %1167 = vmatprep.mubr.bf16.mxu0 0
    %1168 = vmatmul.mubr.bf16.gmra.mrb[0].mxu0 %v1030
    %v1169 = vpop.f32.mrb[0].mxu0
    %v1170 = vadd.f32 0.0, %v1169
    %v1171 = vpop.f32.mrb[0].mxu0
    %v1172 = vpop.f32.mrb[0].mxu0
    %v1173 = vadd.f32 0.0, %v1172
    %v1174 = vpop.f32.mrb[0].mxu0
    %1175 = vmatprep.mubr.bf16.mxu0 0
    %1176 = vmatmul.mubr.bf16.gmra.mrb[0].mxu0 %v1031
    %v1177 = vpop.f32.mrb[0].mxu0
    %v1178 = vadd.f32 0.0, %v1177
    %v1179 = vpop.f32.mrb[0].mxu0
    %v1180 = vpop.f32.mrb[0].mxu0
    %v1181 = vadd.f32 0.0, %v1180
    %v1182 = vpop.f32.mrb[0].mxu0
    %1183 = vmatprep.mubr.bf16.mxu0 0
    %1184 = vmatmul.mubr.bf16.gmra.mrb[0].mxu0 %v1032
    %v1185 = vpop.f32.mrb[0].mxu0
    %v1186 = vadd.f32 0.0, %v1185
    %v1187 = vpop.f32.mrb[0].mxu0
    %v1188 = vpop.f32.mrb[0].mxu0
    %v1189 = vadd.f32 0.0, %v1188
    %v1190 = vpop.f32.mrb[0].mxu0
    %1191 = vmatprep.mubr.bf16.mxu0 0
    %1192 = vmatmul.mubr.bf16.gmra.mrb[0].mxu0 %v1033
    %v1193 = vpop.f32.mrb[0].mxu0
    %v1194 = vadd.f32 0.0, %v1193
    %v1195 = vpop.f32.mrb[0].mxu0
    %v1196 = vpop.f32.mrb[0].mxu0
    %v1197 = vadd.f32 0.0, %v1196
    %v1198 = vpop.f32.mrb[0].mxu0
    %1199 = vmatprep.mubr.bf16.mxu0 0
    %1200 = vmatmul.mubr.bf16.gmra.mrb[0].mxu0 %v1034
    %v1201 = vpop.f32.mrb[0].mxu0
    %v1202 = vadd.f32 0.0, %v1201
    %v1203 = vpop.f32.mrb[0].mxu0
    %v1204 = vpop.f32.mrb[0].mxu0
    %v1205 = vadd.f32 0.0, %v1204
    %v1206 = vpop.f32.mrb[0].mxu0
    %1207 = vmatprep.mubr.bf16.mxu0 0
    %1208 = vmatmul.mubr.bf16.gmra.mrb[0].mxu0 %v1035
    %v1209 = vpop.f32.mrb[0].mxu0
    %v1210 = vadd.f32 0.0, %v1209
    %v1211 = vpop.f32.mrb[0].mxu0
    %v1212 = vpop.f32.mrb[0].mxu0
    %v1213 = vadd.f32 0.0, %v1212
    %v1214 = vpop.f32.mrb[0].mxu0
    %1215 = vmatprep.mubr.bf16.mxu0 0
    %1216 = vmatmul.mubr.bf16.gmra.mrb[0].mxu0 %v1036
    %v1217 = vpop.f32.mrb[0].mxu0
    %v1218 = vadd.f32 0.0, %v1217
    %v1219 = vpop.f32.mrb[0].mxu0
    %v1220 = vpop.f32.mrb[0].mxu0
    %v1221 = vadd.f32 0.0, %v1220
    %v1222 = vpop.f32.mrb[0].mxu0
    %1223 = vmatprep.mubr.bf16.mxu0 0
    %1224 = vmatmul.mubr.bf16.gmra.mrb[0].mxu0 %v1037
    %v1225 = vpop.f32.mrb[0].mxu0
    %v1226 = vadd.f32 0.0, %v1225
    %v1227 = vpop.f32.mrb[0].mxu0
    %v1228 = vpop.f32.mrb[0].mxu0
    %v1229 = vadd.f32 0.0, %v1228
    %v1230 = vpop.f32.mrb[0].mxu0
    %1231 = vmatprep.mubr.bf16.mxu0 0
    %1232 = vmatmul.mubr.bf16.gmra.mrb[0].mxu0 %v1038
    %v1233 = vpop.f32.mrb[0].mxu0
    %v1234 = vadd.f32 0.0, %v1233
    %v1235 = vpop.f32.mrb[0].mxu0
    %v1236 = vpop.f32.mrb[0].mxu0
    %v1237 = vadd.f32 0.0, %v1236
    %v1238 = vpop.f32.mrb[0].mxu0
    %1239 = vdwg.mxu0
    %v1240 = vmul.f32 %v964, %v739
    %v1241 = vmul.f32 %v965, %v745
    %v1242 = vmul.f32 %v966, %v749
    %v1243 = vmul.f32 %v967, %v755
    %v1244 = vmul.f32 %v968, %v759
    %v1245 = vmul.f32 %v969, %v765
    %v1246 = vmul.f32 %v970, %v769
    %v1247 = vmul.f32 %v971, %v775
    %v1248 = vmul.f32 %v972, %v779
    %v1249 = vmul.f32 %v973, %v785
    %v1250 = vmul.f32 %v974, %v789
    %v1251 = vmul.f32 %v975, %v795
    %v1252 = vmul.f32 %v976, %v799
    %v1253 = vmul.f32 %v977, %v805
    %v1254 = vmul.f32 %v978, %v809
    %v1255 = vmul.f32 %v979, %v739
    %v1256 = vmul.f32 %v980, %v745
    %v1257 = vmul.f32 %v981, %v749
    %v1258 = vmul.f32 %v982, %v755
    %v1259 = vmul.f32 %v983, %v759
    %v1260 = vmul.f32 %v984, %v765
    %v1261 = vmul.f32 %v985, %v769
    %v1262 = vmul.f32 %v986, %v775
    %v1263 = vmul.f32 %v987, %v779
    %v1264 = vmul.f32 %v988, %v785
    %v1265 = vmul.f32 %v989, %v789
    %v1266 = vmul.f32 %v990, %v795
    %v1267 = vmul.f32 %v991, %v799
    %v1268 = vmul.f32 %v992, %v805
    %v1269 = vmul.f32 %v993, %v809
    %v1270 = vpack.c.bf16 %v1241, %v1240
    %v1271 = vpack.c.bf16 %v1243, %v1242
    %v1272 = vpack.c.bf16 %v1245, %v1244
    %v1273 = vpack.c.bf16 %v1247, %v1246
    %v1274 = vpack.c.bf16 %v1249, %v1248
    %v1275 = vpack.c.bf16 %v1251, %v1250
    %v1276 = vpack.c.bf16 %v1253, %v1252
    %v1277 = vpack.c.bf16 %v1255, %v1254
    %v1278 = vpack.c.bf16 %v1257, %v1256
    %v1279 = vpack.c.bf16 %v1259, %v1258
    %v1280 = vpack.c.bf16 %v1261, %v1260
    %v1281 = vpack.c.bf16 %v1263, %v1262
    %v1282 = vpack.c.bf16 %v1265, %v1264
    %v1283 = vpack.c.bf16 %v1267, %v1266
    %v1284 = vpack.c.bf16 %v1269, %v1268
    %1285 = vmatprep.subr.bf16.mxu0 0
    %1286 = vmatpush1.bf16.msra.mxu0 %v1071
    %1287 = vmatprep.subr.bf16.mxu0 0
    %1288 = vmatpush1.bf16.msra.mxu0 %v1072
    %1289 = vmatprep.subr.bf16.mxu0 0
    %1290 = vmatpush1.bf16.msra.mxu0 %v1073
    %1291 = vmatprep.subr.bf16.mxu0 0
    %1292 = vmatpush1.bf16.msra.mxu0 %v1074
    %1293 = vmatprep.subr.bf16.mxu0 0
    %1294 = vmatpush1.bf16.msra.mxu0 %v1075
    %1295 = vmatprep.subr.bf16.mxu0 0
    %1296 = vmatpush1.bf16.msra.mxu0 %v1076
    %1297 = vmatprep.subr.bf16.mxu0 0
    %1298 = vmatpush1.bf16.msra.mxu0 %v1077
    %1299 = vmatprep.subr.bf16.mxu0 0
    %1300 = vmatpush1.bf16.msra.mxu0 %v1078
    %1301 = vmatprep.subr.bf16.mxu0 0
    %1302 = vmatpush1.bf16.msra.mxu0 0
    %1303 = vmatprep.subr.bf16.mxu0 0
    %1304 = vmatpush1.bf16.msra.mxu0 0
    %1305 = vmatprep.subr.bf16.mxu0 0
    %1306 = vmatpush1.bf16.msra.mxu0 0
    %1307 = vmatprep.subr.bf16.mxu0 0
    %1308 = vmatpush1.bf16.msra.mxu0 0
    %1309 = vmatprep.subr.bf16.mxu0 0
    %1310 = vmatpush1.bf16.msra.mxu0 0
    %1311 = vmatprep.subr.bf16.mxu0 0
    %1312 = vmatpush1.bf16.msra.mxu0 0
    %1313 = vmatprep.subr.bf16.mxu0 0
    %1314 = vmatpush1.bf16.msra.mxu0 0
    %1315 = vmatprep.subr.bf16.mxu0 0
    %1316 = vmatpush1.bf16.msra.mxu0 0
    %1317 = vmatprep.mubr.bf16.mxu0 0
    %1318 = vmatmul.mubr.bf16.gmra.mrb[0].mxu0 %v1270
    %v1319 = vpop.f32.mrb[0].mxu0
    %v1320 = vadd.f32 0.0, %v1319
    %v1321 = vpop.f32.mrb[0].mxu0
    %v1322 = vpop.f32.mrb[0].mxu0
    %v1323 = vadd.f32 0.0, %v1322
    %v1324 = vpop.f32.mrb[0].mxu0
    %1325 = vmatprep.mubr.bf16.mxu0 0
    %1326 = vmatmul.mubr.bf16.gmra.mrb[0].mxu0 %v1271
    %v1327 = vpop.f32.mrb[0].mxu0
    %v1328 = vadd.f32 0.0, %v1327
    %v1329 = vpop.f32.mrb[0].mxu0
    %v1330 = vpop.f32.mrb[0].mxu0
    %v1331 = vadd.f32 0.0, %v1330
    %v1332 = vpop.f32.mrb[0].mxu0
    %1333 = vmatprep.mubr.bf16.mxu0 0
    %1334 = vmatmul.mubr.bf16.gmra.mrb[0].mxu0 %v1272
    %v1335 = vpop.f32.mrb[0].mxu0
    %v1336 = vadd.f32 0.0, %v1335
    %v1337 = vpop.f32.mrb[0].mxu0
    %v1338 = vpop.f32.mrb[0].mxu0
    %v1339 = vadd.f32 0.0, %v1338
    %v1340 = vpop.f32.mrb[0].mxu0
    %1341 = vmatprep.mubr.bf16.mxu0 0
    %1342 = vmatmul.mubr.bf16.gmra.mrb[0].mxu0 %v1273
    %v1343 = vpop.f32.mrb[0].mxu0
    %v1344 = vadd.f32 0.0, %v1343
    %v1345 = vpop.f32.mrb[0].mxu0
    %v1346 = vpop.f32.mrb[0].mxu0
    %v1347 = vadd.f32 0.0, %v1346
    %v1348 = vpop.f32.mrb[0].mxu0
    %1349 = vmatprep.mubr.bf16.mxu0 0
    %1350 = vmatmul.mubr.bf16.gmra.mrb[0].mxu0 %v1274
    %v1351 = vpop.f32.mrb[0].mxu0
    %v1352 = vadd.f32 0.0, %v1351
    %v1353 = vpop.f32.mrb[0].mxu0
    %v1354 = vpop.f32.mrb[0].mxu0
    %v1355 = vadd.f32 0.0, %v1354
    %v1356 = vpop.f32.mrb[0].mxu0
    %1357 = vmatprep.mubr.bf16.mxu0 0
    %1358 = vmatmul.mubr.bf16.gmra.mrb[0].mxu0 %v1275
    %v1359 = vpop.f32.mrb[0].mxu0
    %v1360 = vadd.f32 0.0, %v1359
    %v1361 = vpop.f32.mrb[0].mxu0
    %v1362 = vpop.f32.mrb[0].mxu0
    %v1363 = vadd.f32 0.0, %v1362
    %v1364 = vpop.f32.mrb[0].mxu0
    %1365 = vmatprep.mubr.bf16.mxu0 0
    %1366 = vmatmul.mubr.bf16.gmra.mrb[0].mxu0 %v1276
    %v1367 = vpop.f32.mrb[0].mxu0
    %v1368 = vadd.f32 0.0, %v1367
    %v1369 = vpop.f32.mrb[0].mxu0
    %v1370 = vpop.f32.mrb[0].mxu0
    %v1371 = vadd.f32 0.0, %v1370
    %v1372 = vpop.f32.mrb[0].mxu0
    %1373 = vmatprep.mubr.bf16.mxu0 0
    %1374 = vmatmul.mubr.bf16.gmra.mrb[0].mxu0 %v1277
    %v1375 = vpop.f32.mrb[0].mxu0
    %v1376 = vadd.f32 0.0, %v1375
    %v1377 = vpop.f32.mrb[0].mxu0
    %v1378 = vpop.f32.mrb[0].mxu0
    %v1379 = vadd.f32 0.0, %v1378
    %v1380 = vpop.f32.mrb[0].mxu0
    %1381 = vmatprep.mubr.bf16.mxu0 0
    %1382 = vmatmul.mubr.bf16.gmra.mrb[0].mxu0 %v1278
    %v1383 = vpop.f32.mrb[0].mxu0
    %v1384 = vadd.f32 0.0, %v1383
    %v1385 = vpop.f32.mrb[0].mxu0
    %v1386 = vpop.f32.mrb[0].mxu0
    %v1387 = vadd.f32 0.0, %v1386
    %v1388 = vpop.f32.mrb[0].mxu0
    %1389 = vmatprep.mubr.bf16.mxu0 0
    %1390 = vmatmul.mubr.bf16.gmra.mrb[0].mxu0 %v1279
    %v1391 = vpop.f32.mrb[0].mxu0
    %v1392 = vadd.f32 0.0, %v1391
    %v1393 = vpop.f32.mrb[0].mxu0
    %v1394 = vpop.f32.mrb[0].mxu0
    %v1395 = vadd.f32 0.0, %v1394
    %v1396 = vpop.f32.mrb[0].mxu0
    %1397 = vmatprep.mubr.bf16.mxu0 0
    %1398 = vmatmul.mubr.bf16.gmra.mrb[0].mxu0 %v1280
    %v1399 = vpop.f32.mrb[0].mxu0
    %v1400 = vadd.f32 0.0, %v1399
    %v1401 = vpop.f32.mrb[0].mxu0
    %v1402 = vpop.f32.mrb[0].mxu0
    %v1403 = vadd.f32 0.0, %v1402
    %v1404 = vpop.f32.mrb[0].mxu0
    %1405 = vmatprep.mubr.bf16.mxu0 0
    %1406 = vmatmul.mubr.bf16.gmra.mrb[0].mxu0 %v1281
    %v1407 = vpop.f32.mrb[0].mxu0
    %v1408 = vadd.f32 0.0, %v1407
    %v1409 = vpop.f32.mrb[0].mxu0
    %v1410 = vpop.f32.mrb[0].mxu0
    %v1411 = vadd.f32 0.0, %v1410
    %v1412 = vpop.f32.mrb[0].mxu0
    %1413 = vmatprep.mubr.bf16.mxu0 0
    %1414 = vmatmul.mubr.bf16.gmra.mrb[0].mxu0 %v1282
    %v1415 = vpop.f32.mrb[0].mxu0
    %v1416 = vadd.f32 0.0, %v1415
    %v1417 = vpop.f32.mrb[0].mxu0
    %v1418 = vpop.f32.mrb[0].mxu0
    %v1419 = vadd.f32 0.0, %v1418
    %v1420 = vpop.f32.mrb[0].mxu0
    %1421 = vmatprep.mubr.bf16.mxu0 0
    %1422 = vmatmul.mubr.bf16.gmra.mrb[0].mxu0 %v1283
    %v1423 = vpop.f32.mrb[0].mxu0
    %v1424 = vadd.f32 0.0, %v1423
    %v1425 = vpop.f32.mrb[0].mxu0
    %v1426 = vpop.f32.mrb[0].mxu0
    %v1427 = vadd.f32 0.0, %v1426
    %v1428 = vpop.f32.mrb[0].mxu0
    %1429 = vmatprep.mubr.bf16.mxu0 0
    %1430 = vmatmul.mubr.bf16.gmra.mrb[0].mxu0 %v1284
    %v1431 = vpop.f32.mrb[0].mxu0
    %v1432 = vadd.f32 0.0, %v1431
    %v1433 = vpop.f32.mrb[0].mxu0
    %v1434 = vpop.f32.mrb[0].mxu0
    %v1435 = vadd.f32 0.0, %v1434
    %v1436 = vpop.f32.mrb[0].mxu0
    %1437 = vdwg.mxu0
    %v1438 = vmax.f32 %v1122, %v1320
    %v1439 = vmax.f32 %v1125, %v1323
    %v1440 = vmax.f32 %v1130, %v1328
    %v1441 = vmax.f32 %v1133, %v1331
    %v1442 = vmax.f32 %v1138, %v1336
    %v1443 = vmax.f32 %v1141, %v1339
    %v1444 = vmax.f32 %v1146, %v1344
    %v1445 = vmax.f32 %v1149, %v1347
    %v1446 = vmax.f32 %v1154, %v1352
    %v1447 = vmax.f32 %v1157, %v1355
    %v1448 = vmax.f32 %v1162, %v1360
    %v1449 = vmax.f32 %v1165, %v1363
    %v1450 = vmax.f32 %v1170, %v1368
    %v1451 = vmax.f32 %v1173, %v1371
    %v1452 = vmax.f32 %v1178, %v1376
    %v1453 = vmax.f32 %v1181, %v1379
    %v1454 = vmax.f32 %v1186, %v1384
    %v1455 = vmax.f32 %v1189, %v1387
    %v1456 = vmax.f32 %v1194, %v1392
    %v1457 = vmax.f32 %v1197, %v1395
    %v1458 = vmax.f32 %v1202, %v1400
    %v1459 = vmax.f32 %v1205, %v1403
    %v1460 = vmax.f32 %v1210, %v1408
    %v1461 = vmax.f32 %v1213, %v1411
    %v1462 = vmax.f32 %v1218, %v1416
    %v1463 = vmax.f32 %v1221, %v1419
    %v1464 = vmax.f32 %v1226, %v1424
    %v1465 = vmax.f32 %v1229, %v1427
    %v1466 = vmax.f32 %v1234, %v1432
    %v1467 = vmax.f32 %v1237, %v1435
    %v1468 = vsub.f32 %v1122, %v1438
    %v1469 = vsub.f32 %v1125, %v1439
    %v1470 = vsub.f32 %v1130, %v1440
    %v1471 = vsub.f32 %v1133, %v1441
    %v1472 = vsub.f32 %v1138, %v1442
    %v1473 = vsub.f32 %v1141, %v1443
    %v1474 = vsub.f32 %v1146, %v1444
    %v1475 = vsub.f32 %v1149, %v1445
    %v1476 = vsub.f32 %v1154, %v1446
    %v1477 = vsub.f32 %v1157, %v1447
    %v1478 = vsub.f32 %v1162, %v1448
    %v1479 = vsub.f32 %v1165, %v1449
    %v1480 = vsub.f32 %v1170, %v1450
    %v1481 = vsub.f32 %v1173, %v1451
    %v1482 = vsub.f32 %v1178, %v1452
    %v1483 = vsub.f32 %v1181, %v1453
    %v1484 = vsub.f32 %v1186, %v1454
    %v1485 = vsub.f32 %v1189, %v1455
    %v1486 = vsub.f32 %v1194, %v1456
    %v1487 = vsub.f32 %v1197, %v1457
    %v1488 = vsub.f32 %v1202, %v1458
    %v1489 = vsub.f32 %v1205, %v1459
    %v1490 = vsub.f32 %v1210, %v1460
    %v1491 = vsub.f32 %v1213, %v1461
    %v1492 = vsub.f32 %v1218, %v1462
    %v1493 = vsub.f32 %v1221, %v1463
    %v1494 = vsub.f32 %v1226, %v1464
    %v1495 = vsub.f32 %v1229, %v1465
    %v1496 = vsub.f32 %v1234, %v1466
    %v1497 = vsub.f32 %v1237, %v1467
    %v1498 = vmul.f32 %v1468, 1.442695
    %v1499 = vpow.pop %v1498
    %v1500 = vmul.f32 %v1469, 1.442695
    %v1501 = vpow.pop %v1500
    %v1502 = vmul.f32 %v1470, 1.442695
    %v1503 = vpow.pop %v1502
    %v1504 = vmul.f32 %v1471, 1.442695
    %v1505 = vpow.pop %v1504
    %v1506 = vmul.f32 %v1472, 1.442695
    %v1507 = vpow.pop %v1506
    %v1508 = vmul.f32 %v1473, 1.442695
    %v1509 = vpow.pop %v1508
    %v1510 = vmul.f32 %v1474, 1.442695
    %v1511 = vpow.pop %v1510
    %v1512 = vmul.f32 %v1475, 1.442695
    %v1513 = vpow.pop %v1512
    %v1514 = vmul.f32 %v1476, 1.442695
    %v1515 = vpow.pop %v1514
    %v1516 = vmul.f32 %v1477, 1.442695
    %v1517 = vpow.pop %v1516
    %v1518 = vmul.f32 %v1478, 1.442695
    %v1519 = vpow.pop %v1518
    %v1520 = vmul.f32 %v1479, 1.442695
    %v1521 = vpow.pop %v1520
    %v1522 = vmul.f32 %v1480, 1.442695
    %v1523 = vpow.pop %v1522
    %v1524 = vmul.f32 %v1481, 1.442695
    %v1525 = vpow.pop %v1524
    %v1526 = vmul.f32 %v1482, 1.442695
    %v1527 = vpow.pop %v1526
    %v1528 = vmul.f32 %v1483, 1.442695
    %v1529 = vpow.pop %v1528
    %v1530 = vmul.f32 %v1484, 1.442695
    %v1531 = vpow.pop %v1530
    %v1532 = vmul.f32 %v1485, 1.442695
    %v1533 = vpow.pop %v1532
    %v1534 = vmul.f32 %v1486, 1.442695
    %v1535 = vpow.pop %v1534
    %v1536 = vmul.f32 %v1487, 1.442695
    %v1537 = vpow.pop %v1536
    %v1538 = vmul.f32 %v1488, 1.442695
    %v1539 = vpow.pop %v1538
    %v1540 = vmul.f32 %v1489, 1.442695
    %v1541 = vpow.pop %v1540
    %v1542 = vmul.f32 %v1490, 1.442695
    %v1543 = vpow.pop %v1542
    %v1544 = vmul.f32 %v1491, 1.442695
    %v1545 = vpow.pop %v1544
    %v1546 = vmul.f32 %v1492, 1.442695
    %v1547 = vpow.pop %v1546
    %v1548 = vmul.f32 %v1493, 1.442695
    %v1549 = vpow.pop %v1548
    %v1550 = vmul.f32 %v1494, 1.442695
    %v1551 = vpow.pop %v1550
    %v1552 = vmul.f32 %v1495, 1.442695
    %v1553 = vpow.pop %v1552
    %v1554 = vmul.f32 %v1496, 1.442695
    %v1555 = vpow.pop %v1554
    %v1556 = vmul.f32 %v1497, 1.442695
    %v1557 = vpow.pop %v1556
    %v1558 = vsub.f32 %v1320, %v1438
    %v1559 = vsub.f32 %v1323, %v1439
    %v1560 = vsub.f32 %v1328, %v1440
    %v1561 = vsub.f32 %v1331, %v1441
    %v1562 = vsub.f32 %v1336, %v1442
    %v1563 = vsub.f32 %v1339, %v1443
    %v1564 = vsub.f32 %v1344, %v1444
    %v1565 = vsub.f32 %v1347, %v1445
    %v1566 = vsub.f32 %v1352, %v1446
    %v1567 = vsub.f32 %v1355, %v1447
    %v1568 = vsub.f32 %v1360, %v1448
    %v1569 = vsub.f32 %v1363, %v1449
    %v1570 = vsub.f32 %v1368, %v1450
    %v1571 = vsub.f32 %v1371, %v1451
    %v1572 = vsub.f32 %v1376, %v1452
    %v1573 = vsub.f32 %v1379, %v1453
    %v1574 = vsub.f32 %v1384, %v1454
    %v1575 = vsub.f32 %v1387, %v1455
    %v1576 = vsub.f32 %v1392, %v1456
    %v1577 = vsub.f32 %v1395, %v1457
    %v1578 = vsub.f32 %v1400, %v1458
    %v1579 = vsub.f32 %v1403, %v1459
    %v1580 = vsub.f32 %v1408, %v1460
    %v1581 = vsub.f32 %v1411, %v1461
    %v1582 = vsub.f32 %v1416, %v1462
    %v1583 = vsub.f32 %v1419, %v1463
    %v1584 = vsub.f32 %v1424, %v1464
    %v1585 = vsub.f32 %v1427, %v1465
    %v1586 = vsub.f32 %v1432, %v1466
    %v1587 = vsub.f32 %v1435, %v1467
    %v1588 = vmul.f32 %v1558, 1.442695
    %v1589 = vpow.pop %v1588
    %v1590 = vmul.f32 %v1559, 1.442695
    %v1591 = vpow.pop %v1590
    %v1592 = vmul.f32 %v1560, 1.442695
    %v1593 = vpow.pop %v1592
    %v1594 = vmul.f32 %v1561, 1.442695
    %v1595 = vpow.pop %v1594
    %v1596 = vmul.f32 %v1562, 1.442695
    %v1597 = vpow.pop %v1596
    %v1598 = vmul.f32 %v1563, 1.442695
    %v1599 = vpow.pop %v1598
    %v1600 = vmul.f32 %v1564, 1.442695
    %v1601 = vpow.pop %v1600
    %v1602 = vmul.f32 %v1565, 1.442695
    %v1603 = vpow.pop %v1602
    %v1604 = vmul.f32 %v1566, 1.442695
    %v1605 = vpow.pop %v1604
    %v1606 = vmul.f32 %v1567, 1.442695
    %v1607 = vpow.pop %v1606
    %v1608 = vmul.f32 %v1568, 1.442695
    %v1609 = vpow.pop %v1608
    %v1610 = vmul.f32 %v1569, 1.442695
    %v1611 = vpow.pop %v1610
    %v1612 = vmul.f32 %v1570, 1.442695
    %v1613 = vpow.pop %v1612
    %v1614 = vmul.f32 %v1571, 1.442695
    %v1615 = vpow.pop %v1614
    %v1616 = vmul.f32 %v1572, 1.442695
    %v1617 = vpow.pop %v1616
    %v1618 = vmul.f32 %v1573, 1.442695
    %v1619 = vpow.pop %v1618
    %v1620 = vmul.f32 %v1574, 1.442695
    %v1621 = vpow.pop %v1620
    %v1622 = vmul.f32 %v1575, 1.442695
    %v1623 = vpow.pop %v1622
    %v1624 = vmul.f32 %v1576, 1.442695
    %v1625 = vpow.pop %v1624
    %v1626 = vmul.f32 %v1577, 1.442695
    %v1627 = vpow.pop %v1626
    %v1628 = vmul.f32 %v1578, 1.442695
    %v1629 = vpow.pop %v1628
    %v1630 = vmul.f32 %v1579, 1.442695
    %v1631 = vpow.pop %v1630
    %v1632 = vmul.f32 %v1580, 1.442695
    %v1633 = vpow.pop %v1632
    %v1634 = vmul.f32 %v1581, 1.442695
    %v1635 = vpow.pop %v1634
    %v1636 = vmul.f32 %v1582, 1.442695
    %v1637 = vpow.pop %v1636
    %v1638 = vmul.f32 %v1583, 1.442695
    %v1639 = vpow.pop %v1638
    %v1640 = vmul.f32 %v1584, 1.442695
    %v1641 = vpow.pop %v1640
    %v1642 = vmul.f32 %v1585, 1.442695
    %v1643 = vpow.pop %v1642
    %v1644 = vmul.f32 %v1586, 1.442695
    %v1645 = vpow.pop %v1644
    %v1646 = vmul.f32 %v1587, 1.442695
    %v1647 = vpow.pop %v1646
    %v1648 = vadd.f32 %v1499, %v1589
    %v1649 = vadd.f32 %v1501, %v1591
    %v1650 = vadd.f32 %v1503, %v1593
    %v1651 = vadd.f32 %v1505, %v1595
    %v1652 = vadd.f32 %v1507, %v1597
    %v1653 = vadd.f32 %v1509, %v1599
    %v1654 = vadd.f32 %v1511, %v1601
    %v1655 = vadd.f32 %v1513, %v1603
    %v1656 = vadd.f32 %v1515, %v1605
    %v1657 = vadd.f32 %v1517, %v1607
    %v1658 = vadd.f32 %v1519, %v1609
    %v1659 = vadd.f32 %v1521, %v1611
    %v1660 = vadd.f32 %v1523, %v1613
    %v1661 = vadd.f32 %v1525, %v1615
    %v1662 = vadd.f32 %v1527, %v1617
    %v1663 = vadd.f32 %v1529, %v1619
    %v1664 = vadd.f32 %v1531, %v1621
    %v1665 = vadd.f32 %v1533, %v1623
    %v1666 = vadd.f32 %v1535, %v1625
    %v1667 = vadd.f32 %v1537, %v1627
    %v1668 = vadd.f32 %v1539, %v1629
    %v1669 = vadd.f32 %v1541, %v1631
    %v1670 = vadd.f32 %v1543, %v1633
    %v1671 = vadd.f32 %v1545, %v1635
    %v1672 = vadd.f32 %v1547, %v1637
    %v1673 = vadd.f32 %v1549, %v1639
    %v1674 = vadd.f32 %v1551, %v1641
    %v1675 = vadd.f32 %v1553, %v1643
    %v1676 = vadd.f32 %v1555, %v1645
    %v1677 = vadd.f32 %v1557, %v1647
    %v1678 = vrcp.pop %v1648
    %v1679 = vrcp.pop %v1649
    %v1680 = vrcp.pop %v1650
    %v1681 = vrcp.pop %v1651
    %v1682 = vrcp.pop %v1652
    %v1683 = vrcp.pop %v1653
    %v1684 = vrcp.pop %v1654
    %v1685 = vrcp.pop %v1655
    %v1686 = vrcp.pop %v1656
    %v1687 = vrcp.pop %v1657
    %v1688 = vrcp.pop %v1658
    %v1689 = vrcp.pop %v1659
    %v1690 = vrcp.pop %v1660
    %v1691 = vrcp.pop %v1661
    %v1692 = vrcp.pop %v1662
    %v1693 = vrcp.pop %v1663
    %v1694 = vrcp.pop %v1664
    %v1695 = vrcp.pop %v1665
    %v1696 = vrcp.pop %v1666
    %v1697 = vrcp.pop %v1667
    %v1698 = vrcp.pop %v1668
    %v1699 = vrcp.pop %v1669
    %v1700 = vrcp.pop %v1670
    %v1701 = vrcp.pop %v1671
    %v1702 = vrcp.pop %v1672
    %v1703 = vrcp.pop %v1673
    %v1704 = vrcp.pop %v1674
    %v1705 = vrcp.pop %v1675
    %v1706 = vrcp.pop %v1676
    %v1707 = vrcp.pop %v1677
    %v1708 = vmul.f32 %v1499, %v846
    %v1709 = vmul.f32 %v1501, %v849
    %v1710 = vmul.f32 %v1503, %v854
    %v1711 = vmul.f32 %v1505, %v857
    %v1712 = vmul.f32 %v1507, %v862
    %v1713 = vmul.f32 %v1509, %v865
    %v1714 = vmul.f32 %v1511, %v870
    %v1715 = vmul.f32 %v1513, %v873
    %v1716 = vmul.f32 %v1515, %v878
    %v1717 = vmul.f32 %v1517, %v881
    %v1718 = vmul.f32 %v1519, %v886
    %v1719 = vmul.f32 %v1521, %v889
    %v1720 = vmul.f32 %v1523, %v894
    %v1721 = vmul.f32 %v1525, %v897
    %v1722 = vmul.f32 %v1527, %v902
    %v1723 = vmul.f32 %v1529, %v846
    %v1724 = vmul.f32 %v1531, %v849
    %v1725 = vmul.f32 %v1533, %v854
    %v1726 = vmul.f32 %v1535, %v857
    %v1727 = vmul.f32 %v1537, %v862
    %v1728 = vmul.f32 %v1539, %v865
    %v1729 = vmul.f32 %v1541, %v870
    %v1730 = vmul.f32 %v1543, %v873
    %v1731 = vmul.f32 %v1545, %v878
    %v1732 = vmul.f32 %v1547, %v881
    %v1733 = vmul.f32 %v1549, %v886
    %v1734 = vmul.f32 %v1551, %v889
    %v1735 = vmul.f32 %v1553, %v894
    %v1736 = vmul.f32 %v1555, %v897
    %v1737 = vmul.f32 %v1557, %v902
    %v1738 = vmul.f32 %v1589, %v905
    %v1739 = vmul.f32 %v1591, %v910
    %v1740 = vmul.f32 %v1593, %v913
    %v1741 = vmul.f32 %v1595, %v918
    %v1742 = vmul.f32 %v1597, %v921
    %v1743 = vmul.f32 %v1599, %v926
    %v1744 = vmul.f32 %v1601, %v929
    %v1745 = vmul.f32 %v1603, %v934
    %v1746 = vmul.f32 %v1605, %v937
    %v1747 = vmul.f32 %v1607, %v942
    %v1748 = vmul.f32 %v1609, %v945
    %v1749 = vmul.f32 %v1611, %v950
    %v1750 = vmul.f32 %v1613, %v953
    %v1751 = vmul.f32 %v1615, %v958
    %v1752 = vmul.f32 %v1617, %v961
    %v1753 = vmul.f32 %v1619, %v905
    %v1754 = vmul.f32 %v1621, %v910
    %v1755 = vmul.f32 %v1623, %v913
    %v1756 = vmul.f32 %v1625, %v918
    %v1757 = vmul.f32 %v1627, %v921
    %v1758 = vmul.f32 %v1629, %v926
    %v1759 = vmul.f32 %v1631, %v929
    %v1760 = vmul.f32 %v1633, %v934
    %v1761 = vmul.f32 %v1635, %v937
    %v1762 = vmul.f32 %v1637, %v942
    %v1763 = vmul.f32 %v1639, %v945
    %v1764 = vmul.f32 %v1641, %v950
    %v1765 = vmul.f32 %v1643, %v953
    %v1766 = vmul.f32 %v1645, %v958
    %v1767 = vmul.f32 %v1647, %v961
    %v1768 = vadd.f32 %v1708, %v1738
    %v1769 = vadd.f32 %v1709, %v1739
    %v1770 = vadd.f32 %v1710, %v1740
    %v1771 = vadd.f32 %v1711, %v1741
    %v1772 = vadd.f32 %v1712, %v1742
    %v1773 = vadd.f32 %v1713, %v1743
    %v1774 = vadd.f32 %v1714, %v1744
    %v1775 = vadd.f32 %v1715, %v1745
    %v1776 = vadd.f32 %v1716, %v1746
    %v1777 = vadd.f32 %v1717, %v1747
    %v1778 = vadd.f32 %v1718, %v1748
    %v1779 = vadd.f32 %v1719, %v1749
    %v1780 = vadd.f32 %v1720, %v1750
    %v1781 = vadd.f32 %v1721, %v1751
    %v1782 = vadd.f32 %v1722, %v1752
    %v1783 = vadd.f32 %v1723, %v1753
    %v1784 = vadd.f32 %v1724, %v1754
    %v1785 = vadd.f32 %v1725, %v1755
    %v1786 = vadd.f32 %v1726, %v1756
    %v1787 = vadd.f32 %v1727, %v1757
    %v1788 = vadd.f32 %v1728, %v1758
    %v1789 = vadd.f32 %v1729, %v1759
    %v1790 = vadd.f32 %v1730, %v1760
    %v1791 = vadd.f32 %v1731, %v1761
    %v1792 = vadd.f32 %v1732, %v1762
    %v1793 = vadd.f32 %v1733, %v1763
    %v1794 = vadd.f32 %v1734, %v1764
    %v1795 = vadd.f32 %v1735, %v1765
    %v1796 = vadd.f32 %v1736, %v1766
    %v1797 = vadd.f32 %v1737, %v1767
    %v1798 = vmul.f32 %v1768, %v1678
    %v1799 = vmul.f32 %v1769, %v1679
    %v1800 = vmul.f32 %v1770, %v1680
    %v1801 = vmul.f32 %v1771, %v1681
    %v1802 = vmul.f32 %v1772, %v1682
    %v1803 = vmul.f32 %v1773, %v1683
    %v1804 = vmul.f32 %v1774, %v1684
    %v1805 = vmul.f32 %v1775, %v1685
    %v1806 = vmul.f32 %v1776, %v1686
    %v1807 = vmul.f32 %v1777, %v1687
    %v1808 = vmul.f32 %v1778, %v1688
    %v1809 = vmul.f32 %v1779, %v1689
    %v1810 = vmul.f32 %v1780, %v1690
    %v1811 = vmul.f32 %v1781, %v1691
    %v1812 = vmul.f32 %v1782, %v1692
    %v1813 = vmul.f32 %v1783, %v1693
    %v1814 = vmul.f32 %v1784, %v1694
    %v1815 = vmul.f32 %v1785, %v1695
    %v1816 = vmul.f32 %v1786, %v1696
    %v1817 = vmul.f32 %v1787, %v1697
    %v1818 = vmul.f32 %v1788, %v1698
    %v1819 = vmul.f32 %v1789, %v1699
    %v1820 = vmul.f32 %v1790, %v1700
    %v1821 = vmul.f32 %v1791, %v1701
    %v1822 = vmul.f32 %v1792, %v1702
    %v1823 = vmul.f32 %v1793, %v1703
    %v1824 = vmul.f32 %v1794, %v1704
    %v1825 = vmul.f32 %v1795, %v1705
    %v1826 = vmul.f32 %v1796, %v1706
    %v1827 = vmul.f32 %v1797, %v1707
    %v1828 = vpack.c.bf16 %v1799, %v1798
    %v1829 = vpack.c.bf16 %v1801, %v1800
    %v1830 = vpack.c.bf16 %v1803, %v1802
    %v1831 = vpack.c.bf16 %v1805, %v1804
    %v1832 = vpack.c.bf16 %v1807, %v1806
    %v1833 = vpack.c.bf16 %v1809, %v1808
    %v1834 = vpack.c.bf16 %v1811, %v1810
    %v1835 = vpack.c.bf16 %v1813, %v1812
    %v1836 = vpack.c.bf16 %v1815, %v1814
    %v1837 = vpack.c.bf16 %v1817, %v1816
    %v1838 = vpack.c.bf16 %v1819, %v1818
    %v1839 = vpack.c.bf16 %v1821, %v1820
    %v1840 = vpack.c.bf16 %v1823, %v1822
    %v1841 = vpack.c.bf16 %v1825, %v1824
    %v1842 = vpack.c.bf16 %v1827, %v1826
    %v1844 = vlaneseq
    %v1845 = vshrl.u32 %v1844, 7
    %v1846 = vsub.s32 0, %v1845
    %v1847 = vrot.slane %v366, %v1846
    %v1865 = vunpack.c.l.b16 %v350
    %v1866 = vunpack.c.l.b16 %v351
    %v1867 = vunpack.c.l.b16 %v352
    %v1868 = vunpack.c.l.b16 %v353
    %v1869 = vunpack.c.l.b16 %v354
    %v1870 = vunpack.c.l.b16 %v355
    %v1871 = vunpack.c.l.b16 %v356
    %v1872 = vunpack.c.l.b16 %v357
    %v1873 = vunpack.c.l.b16 %v358
    %v1874 = vunpack.c.l.b16 %v359
    %v1875 = vunpack.c.l.b16 %v360
    %v1876 = vunpack.c.l.b16 %v361
    %v1877 = vunpack.c.l.b16 %v362
    %v1878 = vunpack.c.l.b16 %v363
    %v1879 = vunpack.c.l.b16 %v364
    %v1880 = vunpack.c.l.b16 %v365
    %v1881 = vpack.c.b16 %v1866, %v1865
    %v1882 = vpack.c.b16 %v1868, %v1867
    %v1883 = vpack.c.b16 %v1870, %v1869
    %v1884 = vpack.c.b16 %v1872, %v1871
    %v1885 = vpack.c.b16 %v1874, %v1873
    %v1886 = vpack.c.b16 %v1876, %v1875
    %v1887 = vpack.c.b16 %v1878, %v1877
    %v1888 = vpack.c.b16 %v1880, %v1879
    %1897 = vmatprep.subr.bf16.mxu0 0
    %1898 = vmatpush1.bf16.msra.mxu0 %v1881
    %1899 = vmatprep.subr.bf16.mxu0 0
    %1900 = vmatpush1.bf16.msra.mxu0 %v1882
    %1901 = vmatprep.subr.bf16.mxu0 0
    %1902 = vmatpush1.bf16.msra.mxu0 %v1883
    %1903 = vmatprep.subr.bf16.mxu0 0
    %1904 = vmatpush1.bf16.msra.mxu0 %v1884
    %1905 = vmatprep.subr.bf16.mxu0 0
    %1906 = vmatpush1.bf16.msra.mxu0 %v1885
    %1907 = vmatprep.subr.bf16.mxu0 0
    %1908 = vmatpush1.bf16.msra.mxu0 %v1886
    %1909 = vmatprep.subr.bf16.mxu0 0
    %1910 = vmatpush1.bf16.msra.mxu0 %v1887
    %1911 = vmatprep.subr.bf16.mxu0 0
    %1912 = vmatpush1.bf16.msra.mxu0 %v1888
    %1913 = vmatprep.subr.bf16.mxu0 0
    %1914 = vmatpush1.bf16.msra.mxu0 0
    %1915 = vmatprep.subr.bf16.mxu0 0
    %1916 = vmatpush1.bf16.msra.mxu0 0
    %1917 = vmatprep.subr.bf16.mxu0 0
    %1918 = vmatpush1.bf16.msra.mxu0 0
    %1919 = vmatprep.subr.bf16.mxu0 0
    %1920 = vmatpush1.bf16.msra.mxu0 0
    %1921 = vmatprep.subr.bf16.mxu0 0
    %1922 = vmatpush1.bf16.msra.mxu0 0
    %1923 = vmatprep.subr.bf16.mxu0 0
    %1924 = vmatpush1.bf16.msra.mxu0 0
    %1925 = vmatprep.subr.bf16.mxu0 0
    %1926 = vmatpush1.bf16.msra.mxu0 0
    %1927 = vmatprep.subr.bf16.mxu0 0
    %1928 = vmatpush1.bf16.msra.mxu0 0
    %1929 = vmatprep.mubr.bf16.mxu0 0
    %1930 = vmatmul.mubr.bf16.gmra.mrb[0].mxu0 %v1828
    %v1931 = vpop.f32.mrb[0].mxu0
    %v1932 = vadd.f32 %v1847, %v1931
    %v1933 = vpop.f32.mrb[0].mxu0
    %v1934 = vpop.f32.mrb[0].mxu0
    %v1935 = vadd.f32 %v1847, %v1934
    %v1936 = vpop.f32.mrb[0].mxu0
    %1937 = vmatprep.mubr.bf16.mxu0 0
    %1938 = vmatmul.mubr.bf16.gmra.mrb[0].mxu0 %v1829
    %v1939 = vpop.f32.mrb[0].mxu0
    %v1940 = vadd.f32 %v1847, %v1939
    %v1941 = vpop.f32.mrb[0].mxu0
    %v1942 = vpop.f32.mrb[0].mxu0
    %v1943 = vadd.f32 %v1847, %v1942
    %v1944 = vpop.f32.mrb[0].mxu0
    %1945 = vmatprep.mubr.bf16.mxu0 0
    %1946 = vmatmul.mubr.bf16.gmra.mrb[0].mxu0 %v1830
    %v1947 = vpop.f32.mrb[0].mxu0
    %v1948 = vadd.f32 %v1847, %v1947
    %v1949 = vpop.f32.mrb[0].mxu0
    %v1950 = vpop.f32.mrb[0].mxu0
    %v1951 = vadd.f32 %v1847, %v1950
    %v1952 = vpop.f32.mrb[0].mxu0
    %1953 = vmatprep.mubr.bf16.mxu0 0
    %1954 = vmatmul.mubr.bf16.gmra.mrb[0].mxu0 %v1831
    %v1955 = vpop.f32.mrb[0].mxu0
    %v1956 = vadd.f32 %v1847, %v1955
    %v1957 = vpop.f32.mrb[0].mxu0
    %v1958 = vpop.f32.mrb[0].mxu0
    %v1959 = vadd.f32 %v1847, %v1958
    %v1960 = vpop.f32.mrb[0].mxu0
    %1961 = vmatprep.mubr.bf16.mxu0 0
    %1962 = vmatmul.mubr.bf16.gmra.mrb[0].mxu0 %v1832
    %v1963 = vpop.f32.mrb[0].mxu0
    %v1964 = vadd.f32 %v1847, %v1963
    %v1965 = vpop.f32.mrb[0].mxu0
    %v1966 = vpop.f32.mrb[0].mxu0
    %v1967 = vadd.f32 %v1847, %v1966
    %v1968 = vpop.f32.mrb[0].mxu0
    %1969 = vmatprep.mubr.bf16.mxu0 0
    %1970 = vmatmul.mubr.bf16.gmra.mrb[0].mxu0 %v1833
    %v1971 = vpop.f32.mrb[0].mxu0
    %v1972 = vadd.f32 %v1847, %v1971
    %v1973 = vpop.f32.mrb[0].mxu0
    %v1974 = vpop.f32.mrb[0].mxu0
    %v1975 = vadd.f32 %v1847, %v1974
    %v1976 = vpop.f32.mrb[0].mxu0
    %1977 = vmatprep.mubr.bf16.mxu0 0
    %1978 = vmatmul.mubr.bf16.gmra.mrb[0].mxu0 %v1834
    %v1979 = vpop.f32.mrb[0].mxu0
    %v1980 = vadd.f32 %v1847, %v1979
    %v1981 = vpop.f32.mrb[0].mxu0
    %v1982 = vpop.f32.mrb[0].mxu0
    %v1983 = vadd.f32 %v1847, %v1982
    %v1984 = vpop.f32.mrb[0].mxu0
    %1985 = vmatprep.mubr.bf16.mxu0 0
    %1986 = vmatmul.mubr.bf16.gmra.mrb[0].mxu0 %v1835
    %v1987 = vpop.f32.mrb[0].mxu0
    %v1988 = vadd.f32 %v1847, %v1987
    %v1989 = vpop.f32.mrb[0].mxu0
    %v1990 = vpop.f32.mrb[0].mxu0
    %v1991 = vadd.f32 %v1847, %v1990
    %v1992 = vpop.f32.mrb[0].mxu0
    %1993 = vmatprep.mubr.bf16.mxu0 0
    %1994 = vmatmul.mubr.bf16.gmra.mrb[0].mxu0 %v1836
    %v1995 = vpop.f32.mrb[0].mxu0
    %v1996 = vadd.f32 %v1847, %v1995
    %v1997 = vpop.f32.mrb[0].mxu0
    %v1998 = vpop.f32.mrb[0].mxu0
    %v1999 = vadd.f32 %v1847, %v1998
    %v2000 = vpop.f32.mrb[0].mxu0
    %2001 = vmatprep.mubr.bf16.mxu0 0
    %2002 = vmatmul.mubr.bf16.gmra.mrb[0].mxu0 %v1837
    %v2003 = vpop.f32.mrb[0].mxu0
    %v2004 = vadd.f32 %v1847, %v2003
    %v2005 = vpop.f32.mrb[0].mxu0
    %v2006 = vpop.f32.mrb[0].mxu0
    %v2007 = vadd.f32 %v1847, %v2006
    %v2008 = vpop.f32.mrb[0].mxu0
    %2009 = vmatprep.mubr.bf16.mxu0 0
    %2010 = vmatmul.mubr.bf16.gmra.mrb[0].mxu0 %v1838
    %v2011 = vpop.f32.mrb[0].mxu0
    %v2012 = vadd.f32 %v1847, %v2011
    %v2013 = vpop.f32.mrb[0].mxu0
    %v2014 = vpop.f32.mrb[0].mxu0
    %v2015 = vadd.f32 %v1847, %v2014
    %v2016 = vpop.f32.mrb[0].mxu0
    %2017 = vmatprep.mubr.bf16.mxu0 0
    %2018 = vmatmul.mubr.bf16.gmra.mrb[0].mxu0 %v1839
    %v2019 = vpop.f32.mrb[0].mxu0
    %v2020 = vadd.f32 %v1847, %v2019
    %v2021 = vpop.f32.mrb[0].mxu0
    %v2022 = vpop.f32.mrb[0].mxu0
    %v2023 = vadd.f32 %v1847, %v2022
    %v2024 = vpop.f32.mrb[0].mxu0
    %2025 = vmatprep.mubr.bf16.mxu0 0
    %2026 = vmatmul.mubr.bf16.gmra.mrb[0].mxu0 %v1840
    %v2027 = vpop.f32.mrb[0].mxu0
    %v2028 = vadd.f32 %v1847, %v2027
    %v2029 = vpop.f32.mrb[0].mxu0
    %v2030 = vpop.f32.mrb[0].mxu0
    %v2031 = vadd.f32 %v1847, %v2030
    %v2032 = vpop.f32.mrb[0].mxu0
    %2033 = vmatprep.mubr.bf16.mxu0 0
    %2034 = vmatmul.mubr.bf16.gmra.mrb[0].mxu0 %v1841
    %v2035 = vpop.f32.mrb[0].mxu0
    %v2036 = vadd.f32 %v1847, %v2035
    %v2037 = vpop.f32.mrb[0].mxu0
    %v2038 = vpop.f32.mrb[0].mxu0
    %v2039 = vadd.f32 %v1847, %v2038
    %v2040 = vpop.f32.mrb[0].mxu0
    %2041 = vmatprep.mubr.bf16.mxu0 0
    %2042 = vmatmul.mubr.bf16.gmra.mrb[0].mxu0 %v1842
    %v2043 = vpop.f32.mrb[0].mxu0
    %v2044 = vadd.f32 %v1847, %v2043
    %v2045 = vpop.f32.mrb[0].mxu0
    %v2046 = vpop.f32.mrb[0].mxu0
    %v2047 = vadd.f32 %v1847, %v2046
    %v2048 = vpop.f32.mrb[0].mxu0
    %2049 = vdwg.mxu0
    %v2050 = vadd.f32 %v287, %v1932
    %v2051 = vadd.f32 %v288, %v1935
    %v2052 = vadd.f32 %v289, %v1940
    %v2053 = vadd.f32 %v290, %v1943
    %v2054 = vadd.f32 %v291, %v1948
    %v2055 = vadd.f32 %v292, %v1951
    %v2056 = vadd.f32 %v293, %v1956
    %v2057 = vadd.f32 %v294, %v1959
    %v2058 = vadd.f32 %v295, %v1964
    %v2059 = vadd.f32 %v296, %v1967
    %v2060 = vadd.f32 %v297, %v1972
    %v2061 = vadd.f32 %v298, %v1975
    %v2062 = vadd.f32 %v299, %v1980
    %v2063 = vadd.f32 %v300, %v1983
    %v2064 = vadd.f32 %v301, %v1988
    %v2065 = vadd.f32 %v302, %v1991
    %v2066 = vadd.f32 %v303, %v1996
    %v2067 = vadd.f32 %v304, %v1999
    %v2068 = vadd.f32 %v305, %v2004
    %v2069 = vadd.f32 %v306, %v2007
    %v2070 = vadd.f32 %v307, %v2012
    %v2071 = vadd.f32 %v308, %v2015
    %v2072 = vadd.f32 %v309, %v2020
    %v2073 = vadd.f32 %v310, %v2023
    %v2074 = vadd.f32 %v311, %v2028
    %v2075 = vadd.f32 %v312, %v2031
    %v2076 = vadd.f32 %v313, %v2036
    %v2077 = vadd.f32 %v314, %v2039
    %v2078 = vadd.f32 %v315, %v2044
    %v2079 = vadd.f32 %v316, %v2047
    %2080 = vadd.xlane.f32.xlu0 %v2050
    %v2081 = vpop.xlane.xlu0 %2080
    %2082 = vadd.xlane.f32.xlu0 %v2051
    %v2083 = vpop.xlane.xlu0 %2082
    %2084 = vadd.xlane.f32.xlu0 %v2052
    %v2085 = vpop.xlane.xlu0 %2084
    %2086 = vadd.xlane.f32.xlu0 %v2053
    %v2087 = vpop.xlane.xlu0 %2086
    %2088 = vadd.xlane.f32.xlu0 %v2054
    %v2089 = vpop.xlane.xlu0 %2088
    %2090 = vadd.xlane.f32.xlu0 %v2055
    %v2091 = vpop.xlane.xlu0 %2090
    %2092 = vadd.xlane.f32.xlu0 %v2056
    %v2093 = vpop.xlane.xlu0 %2092
    %2094 = vadd.xlane.f32.xlu0 %v2057
    %v2095 = vpop.xlane.xlu0 %2094
    %2096 = vadd.xlane.f32.xlu0 %v2058
    %v2097 = vpop.xlane.xlu0 %2096
    %2098 = vadd.xlane.f32.xlu0 %v2059
    %v2099 = vpop.xlane.xlu0 %2098
    %2100 = vadd.xlane.f32.xlu0 %v2060
    %v2101 = vpop.xlane.xlu0 %2100
    %2102 = vadd.xlane.f32.xlu0 %v2061
    %v2103 = vpop.xlane.xlu0 %2102
    %2104 = vadd.xlane.f32.xlu0 %v2062
    %v2105 = vpop.xlane.xlu0 %2104
    %2106 = vadd.xlane.f32.xlu0 %v2063
    %v2107 = vpop.xlane.xlu0 %2106
    %2108 = vadd.xlane.f32.xlu0 %v2064
    %v2109 = vpop.xlane.xlu0 %2108
    %2110 = vadd.xlane.f32.xlu0 %v2065
    %v2111 = vpop.xlane.xlu0 %2110
    %2112 = vadd.xlane.f32.xlu0 %v2066
    %v2113 = vpop.xlane.xlu0 %2112
    %2114 = vadd.xlane.f32.xlu0 %v2067
    %v2115 = vpop.xlane.xlu0 %2114
    %2116 = vadd.xlane.f32.xlu0 %v2068
    %v2117 = vpop.xlane.xlu0 %2116
    %2118 = vadd.xlane.f32.xlu0 %v2069
    %v2119 = vpop.xlane.xlu0 %2118
    %2120 = vadd.xlane.f32.xlu0 %v2070
    %v2121 = vpop.xlane.xlu0 %2120
    %2122 = vadd.xlane.f32.xlu0 %v2071
    %v2123 = vpop.xlane.xlu0 %2122
    %2124 = vadd.xlane.f32.xlu0 %v2072
    %v2125 = vpop.xlane.xlu0 %2124
    %2126 = vadd.xlane.f32.xlu0 %v2073
    %v2127 = vpop.xlane.xlu0 %2126
    %2128 = vadd.xlane.f32.xlu0 %v2074
    %v2129 = vpop.xlane.xlu0 %2128
    %2130 = vadd.xlane.f32.xlu0 %v2075
    %v2131 = vpop.xlane.xlu0 %2130
    %2132 = vadd.xlane.f32.xlu0 %v2076
    %v2133 = vpop.xlane.xlu0 %2132
    %2134 = vadd.xlane.f32.xlu0 %v2077
    %v2135 = vpop.xlane.xlu0 %2134
    %2136 = vadd.xlane.f32.xlu0 %v2078
    %v2137 = vpop.xlane.xlu0 %2136
    %2138 = vadd.xlane.f32.xlu0 %v2079
    %v2139 = vpop.xlane.xlu0 %2138
    %v2140 = vrcp.pop 128.0
    %v2141 = vmul.f32 %v2081, %v2140
    %v2142 = vmul.f32 %v2083, %v2140
    %v2143 = vmul.f32 %v2085, %v2140
    %v2144 = vmul.f32 %v2087, %v2140
    %v2145 = vmul.f32 %v2089, %v2140
    %v2146 = vmul.f32 %v2091, %v2140
    %v2147 = vmul.f32 %v2093, %v2140
    %v2148 = vmul.f32 %v2095, %v2140
    %v2149 = vmul.f32 %v2097, %v2140
    %v2150 = vmul.f32 %v2099, %v2140
    %v2151 = vmul.f32 %v2101, %v2140
    %v2152 = vmul.f32 %v2103, %v2140
    %v2153 = vmul.f32 %v2105, %v2140
    %v2154 = vmul.f32 %v2107, %v2140
    %v2155 = vmul.f32 %v2109, %v2140
    %v2156 = vmul.f32 %v2111, %v2140
    %v2157 = vmul.f32 %v2113, %v2140
    %v2158 = vmul.f32 %v2115, %v2140
    %v2159 = vmul.f32 %v2117, %v2140
    %v2160 = vmul.f32 %v2119, %v2140
    %v2161 = vmul.f32 %v2121, %v2140
    %v2162 = vmul.f32 %v2123, %v2140
    %v2163 = vmul.f32 %v2125, %v2140
    %v2164 = vmul.f32 %v2127, %v2140
    %v2165 = vmul.f32 %v2129, %v2140
    %v2166 = vmul.f32 %v2131, %v2140
    %v2167 = vmul.f32 %v2133, %v2140
    %v2168 = vmul.f32 %v2135, %v2140
    %v2169 = vmul.f32 %v2137, %v2140
    %v2170 = vmul.f32 %v2139, %v2140
    %v2171 = vsub.f32 %v2050, %v2141
    %v2172 = vsub.f32 %v2051, %v2142
    %v2173 = vsub.f32 %v2052, %v2143
    %v2174 = vsub.f32 %v2053, %v2144
    %v2175 = vsub.f32 %v2054, %v2145
    %v2176 = vsub.f32 %v2055, %v2146
    %v2177 = vsub.f32 %v2056, %v2147
    %v2178 = vsub.f32 %v2057, %v2148
    %v2179 = vsub.f32 %v2058, %v2149
    %v2180 = vsub.f32 %v2059, %v2150
    %v2181 = vsub.f32 %v2060, %v2151
    %v2182 = vsub.f32 %v2061, %v2152
    %v2183 = vsub.f32 %v2062, %v2153
    %v2184 = vsub.f32 %v2063, %v2154
    %v2185 = vsub.f32 %v2064, %v2155
    %v2186 = vsub.f32 %v2065, %v2156
    %v2187 = vsub.f32 %v2066, %v2157
    %v2188 = vsub.f32 %v2067, %v2158
    %v2189 = vsub.f32 %v2068, %v2159
    %v2190 = vsub.f32 %v2069, %v2160
    %v2191 = vsub.f32 %v2070, %v2161
    %v2192 = vsub.f32 %v2071, %v2162
    %v2193 = vsub.f32 %v2072, %v2163
    %v2194 = vsub.f32 %v2073, %v2164
    %v2195 = vsub.f32 %v2074, %v2165
    %v2196 = vsub.f32 %v2075, %v2166
    %v2197 = vsub.f32 %v2076, %v2167
    %v2198 = vsub.f32 %v2077, %v2168
    %v2199 = vsub.f32 %v2078, %v2169
    %v2200 = vsub.f32 %v2079, %v2170
    %v2201 = vmul.f32 %v2171, %v2171
    %v2202 = vmul.f32 %v2172, %v2172
    %v2203 = vmul.f32 %v2173, %v2173
    %v2204 = vmul.f32 %v2174, %v2174
    %v2205 = vmul.f32 %v2175, %v2175
    %v2206 = vmul.f32 %v2176, %v2176
    %v2207 = vmul.f32 %v2177, %v2177
    %v2208 = vmul.f32 %v2178, %v2178
    %v2209 = vmul.f32 %v2179, %v2179
    %v2210 = vmul.f32 %v2180, %v2180
    %v2211 = vmul.f32 %v2181, %v2181
    %v2212 = vmul.f32 %v2182, %v2182
    %v2213 = vmul.f32 %v2183, %v2183
    %v2214 = vmul.f32 %v2184, %v2184
    %v2215 = vmul.f32 %v2185, %v2185
    %v2216 = vmul.f32 %v2186, %v2186
    %v2217 = vmul.f32 %v2187, %v2187
    %v2218 = vmul.f32 %v2188, %v2188
    %v2219 = vmul.f32 %v2189, %v2189
    %v2220 = vmul.f32 %v2190, %v2190
    %v2221 = vmul.f32 %v2191, %v2191
    %v2222 = vmul.f32 %v2192, %v2192
    %v2223 = vmul.f32 %v2193, %v2193
    %v2224 = vmul.f32 %v2194, %v2194
    %v2225 = vmul.f32 %v2195, %v2195
    %v2226 = vmul.f32 %v2196, %v2196
    %v2227 = vmul.f32 %v2197, %v2197
    %v2228 = vmul.f32 %v2198, %v2198
    %v2229 = vmul.f32 %v2199, %v2199
    %v2230 = vmul.f32 %v2200, %v2200
    %2231 = vadd.xlane.f32.xlu0 %v2201
    %v2232 = vpop.xlane.xlu0 %2231
    %2233 = vadd.xlane.f32.xlu0 %v2202
    %v2234 = vpop.xlane.xlu0 %2233
    %2235 = vadd.xlane.f32.xlu0 %v2203
    %v2236 = vpop.xlane.xlu0 %2235
    %2237 = vadd.xlane.f32.xlu0 %v2204
    %v2238 = vpop.xlane.xlu0 %2237
    %2239 = vadd.xlane.f32.xlu0 %v2205
    %v2240 = vpop.xlane.xlu0 %2239
    %2241 = vadd.xlane.f32.xlu0 %v2206
    %v2242 = vpop.xlane.xlu0 %2241
    %2243 = vadd.xlane.f32.xlu0 %v2207
    %v2244 = vpop.xlane.xlu0 %2243
    %2245 = vadd.xlane.f32.xlu0 %v2208
    %v2246 = vpop.xlane.xlu0 %2245
    %2247 = vadd.xlane.f32.xlu0 %v2209
    %v2248 = vpop.xlane.xlu0 %2247
    %2249 = vadd.xlane.f32.xlu0 %v2210
    %v2250 = vpop.xlane.xlu0 %2249
    %2251 = vadd.xlane.f32.xlu0 %v2211
    %v2252 = vpop.xlane.xlu0 %2251
    %2253 = vadd.xlane.f32.xlu0 %v2212
    %v2254 = vpop.xlane.xlu0 %2253
    %2255 = vadd.xlane.f32.xlu0 %v2213
    %v2256 = vpop.xlane.xlu0 %2255
    %2257 = vadd.xlane.f32.xlu0 %v2214
    %v2258 = vpop.xlane.xlu0 %2257
    %2259 = vadd.xlane.f32.xlu0 %v2215
    %v2260 = vpop.xlane.xlu0 %2259
    %2261 = vadd.xlane.f32.xlu0 %v2216
    %v2262 = vpop.xlane.xlu0 %2261
    %2263 = vadd.xlane.f32.xlu0 %v2217
    %v2264 = vpop.xlane.xlu0 %2263
    %2265 = vadd.xlane.f32.xlu0 %v2218
    %v2266 = vpop.xlane.xlu0 %2265
    %2267 = vadd.xlane.f32.xlu0 %v2219
    %v2268 = vpop.xlane.xlu0 %2267
    %2269 = vadd.xlane.f32.xlu0 %v2220
    %v2270 = vpop.xlane.xlu0 %2269
    %2271 = vadd.xlane.f32.xlu0 %v2221
    %v2272 = vpop.xlane.xlu0 %2271
    %2273 = vadd.xlane.f32.xlu0 %v2222
    %v2274 = vpop.xlane.xlu0 %2273
    %2275 = vadd.xlane.f32.xlu0 %v2223
    %v2276 = vpop.xlane.xlu0 %2275
    %2277 = vadd.xlane.f32.xlu0 %v2224
    %v2278 = vpop.xlane.xlu0 %2277
    %2279 = vadd.xlane.f32.xlu0 %v2225
    %v2280 = vpop.xlane.xlu0 %2279
    %2281 = vadd.xlane.f32.xlu0 %v2226
    %v2282 = vpop.xlane.xlu0 %2281
    %2283 = vadd.xlane.f32.xlu0 %v2227
    %v2284 = vpop.xlane.xlu0 %2283
    %2285 = vadd.xlane.f32.xlu0 %v2228
    %v2286 = vpop.xlane.xlu0 %2285
    %2287 = vadd.xlane.f32.xlu0 %v2229
    %v2288 = vpop.xlane.xlu0 %2287
    %2289 = vadd.xlane.f32.xlu0 %v2230
    %v2290 = vpop.xlane.xlu0 %2289
    %v2291 = vmul.f32 %v2232, %v2140
    %v2292 = vmul.f32 %v2234, %v2140
    %v2293 = vmul.f32 %v2236, %v2140
    %v2294 = vmul.f32 %v2238, %v2140
    %v2295 = vmul.f32 %v2240, %v2140
    %v2296 = vmul.f32 %v2242, %v2140
    %v2297 = vmul.f32 %v2244, %v2140
    %v2298 = vmul.f32 %v2246, %v2140
    %v2299 = vmul.f32 %v2248, %v2140
    %v2300 = vmul.f32 %v2250, %v2140
    %v2301 = vmul.f32 %v2252, %v2140
    %v2302 = vmul.f32 %v2254, %v2140
    %v2303 = vmul.f32 %v2256, %v2140
    %v2304 = vmul.f32 %v2258, %v2140
    %v2305 = vmul.f32 %v2260, %v2140
    %v2306 = vmul.f32 %v2262, %v2140
    %v2307 = vmul.f32 %v2264, %v2140
    %v2308 = vmul.f32 %v2266, %v2140
    %v2309 = vmul.f32 %v2268, %v2140
    %v2310 = vmul.f32 %v2270, %v2140
    %v2311 = vmul.f32 %v2272, %v2140
    %v2312 = vmul.f32 %v2274, %v2140
    %v2313 = vmul.f32 %v2276, %v2140
    %v2314 = vmul.f32 %v2278, %v2140
    %v2315 = vmul.f32 %v2280, %v2140
    %v2316 = vmul.f32 %v2282, %v2140
    %v2317 = vmul.f32 %v2284, %v2140
    %v2318 = vmul.f32 %v2286, %v2140
    %v2319 = vmul.f32 %v2288, %v2140
    %v2320 = vmul.f32 %v2290, %v2140
    %v2321 = vadd.f32 %v2291, 1e-05
    %v2322 = vadd.f32 %v2292, 1e-05
    %v2323 = vadd.f32 %v2293, 1e-05
    %v2324 = vadd.f32 %v2294, 1e-05
    %v2325 = vadd.f32 %v2295, 1e-05
    %v2326 = vadd.f32 %v2296, 1e-05
    %v2327 = vadd.f32 %v2297, 1e-05
    %v2328 = vadd.f32 %v2298, 1e-05
    %v2329 = vadd.f32 %v2299, 1e-05
    %v2330 = vadd.f32 %v2300, 1e-05
    %v2331 = vadd.f32 %v2301, 1e-05
    %v2332 = vadd.f32 %v2302, 1e-05
    %v2333 = vadd.f32 %v2303, 1e-05
    %v2334 = vadd.f32 %v2304, 1e-05
    %v2335 = vadd.f32 %v2305, 1e-05
    %v2336 = vadd.f32 %v2306, 1e-05
    %v2337 = vadd.f32 %v2307, 1e-05
    %v2338 = vadd.f32 %v2308, 1e-05
    %v2339 = vadd.f32 %v2309, 1e-05
    %v2340 = vadd.f32 %v2310, 1e-05
    %v2341 = vadd.f32 %v2311, 1e-05
    %v2342 = vadd.f32 %v2312, 1e-05
    %v2343 = vadd.f32 %v2313, 1e-05
    %v2344 = vadd.f32 %v2314, 1e-05
    %v2345 = vadd.f32 %v2315, 1e-05
    %v2346 = vadd.f32 %v2316, 1e-05
    %v2347 = vadd.f32 %v2317, 1e-05
    %v2348 = vadd.f32 %v2318, 1e-05
    %v2349 = vadd.f32 %v2319, 1e-05
    %v2350 = vadd.f32 %v2320, 1e-05
    %v2351 = vrsqrt.pop %v2321
    %v2352 = vrsqrt.pop %v2322
    %v2353 = vrsqrt.pop %v2323
    %v2354 = vrsqrt.pop %v2324
    %v2355 = vrsqrt.pop %v2325
    %v2356 = vrsqrt.pop %v2326
    %v2357 = vrsqrt.pop %v2327
    %v2358 = vrsqrt.pop %v2328
    %v2359 = vrsqrt.pop %v2329
    %v2360 = vrsqrt.pop %v2330
    %v2361 = vrsqrt.pop %v2331
    %v2362 = vrsqrt.pop %v2332
    %v2363 = vrsqrt.pop %v2333
    %v2364 = vrsqrt.pop %v2334
    %v2365 = vrsqrt.pop %v2335
    %v2366 = vrsqrt.pop %v2336
    %v2367 = vrsqrt.pop %v2337
    %v2368 = vrsqrt.pop %v2338
    %v2369 = vrsqrt.pop %v2339
    %v2370 = vrsqrt.pop %v2340
    %v2371 = vrsqrt.pop %v2341
    %v2372 = vrsqrt.pop %v2342
    %v2373 = vrsqrt.pop %v2343
    %v2374 = vrsqrt.pop %v2344
    %v2375 = vrsqrt.pop %v2345
    %v2376 = vrsqrt.pop %v2346
    %v2377 = vrsqrt.pop %v2347
    %v2378 = vrsqrt.pop %v2348
    %v2379 = vrsqrt.pop %v2349
    %v2380 = vrsqrt.pop %v2350
    %v2381 = vmul.f32 %v2171, %v2351
    %v2382 = vmul.f32 %v2172, %v2352
    %v2383 = vmul.f32 %v2173, %v2353
    %v2384 = vmul.f32 %v2174, %v2354
    %v2385 = vmul.f32 %v2175, %v2355
    %v2386 = vmul.f32 %v2176, %v2356
    %v2387 = vmul.f32 %v2177, %v2357
    %v2388 = vmul.f32 %v2178, %v2358
    %v2389 = vmul.f32 %v2179, %v2359
    %v2390 = vmul.f32 %v2180, %v2360
    %v2391 = vmul.f32 %v2181, %v2361
    %v2392 = vmul.f32 %v2182, %v2362
    %v2393 = vmul.f32 %v2183, %v2363
    %v2394 = vmul.f32 %v2184, %v2364
    %v2395 = vmul.f32 %v2185, %v2365
    %v2396 = vmul.f32 %v2186, %v2366
    %v2397 = vmul.f32 %v2187, %v2367
    %v2398 = vmul.f32 %v2188, %v2368
    %v2399 = vmul.f32 %v2189, %v2369
    %v2400 = vmul.f32 %v2190, %v2370
    %v2401 = vmul.f32 %v2191, %v2371
    %v2402 = vmul.f32 %v2192, %v2372
    %v2403 = vmul.f32 %v2193, %v2373
    %v2404 = vmul.f32 %v2194, %v2374
    %v2405 = vmul.f32 %v2195, %v2375
    %v2406 = vmul.f32 %v2196, %v2376
    %v2407 = vmul.f32 %v2197, %v2377
    %v2408 = vmul.f32 %v2198, %v2378
    %v2409 = vmul.f32 %v2199, %v2379
    %v2410 = vmul.f32 %v2200, %v2380
    %v2412 = vlaneseq
    %v2413 = vshrl.u32 %v2412, 7
    %v2414 = vsub.s32 0, %v2413
    %v2415 = vrot.slane %v465, %v2414
    %v2417 = vmul.f32 %v2381, %v2415
    %v2418 = vmul.f32 %v2382, %v2415
    %v2419 = vmul.f32 %v2383, %v2415
    %v2420 = vmul.f32 %v2384, %v2415
    %v2421 = vmul.f32 %v2385, %v2415
    %v2422 = vmul.f32 %v2386, %v2415
    %v2423 = vmul.f32 %v2387, %v2415
    %v2424 = vmul.f32 %v2388, %v2415
    %v2425 = vmul.f32 %v2389, %v2415
    %v2426 = vmul.f32 %v2390, %v2415
    %v2427 = vmul.f32 %v2391, %v2415
    %v2428 = vmul.f32 %v2392, %v2415
    %v2429 = vmul.f32 %v2393, %v2415
    %v2430 = vmul.f32 %v2394, %v2415
    %v2431 = vmul.f32 %v2395, %v2415
    %v2432 = vmul.f32 %v2396, %v2415
    %v2433 = vmul.f32 %v2397, %v2415
    %v2434 = vmul.f32 %v2398, %v2415
    %v2435 = vmul.f32 %v2399, %v2415
    %v2436 = vmul.f32 %v2400, %v2415
    %v2437 = vmul.f32 %v2401, %v2415
    %v2438 = vmul.f32 %v2402, %v2415
    %v2439 = vmul.f32 %v2403, %v2415
    %v2440 = vmul.f32 %v2404, %v2415
    %v2441 = vmul.f32 %v2405, %v2415
    %v2442 = vmul.f32 %v2406, %v2415
    %v2443 = vmul.f32 %v2407, %v2415
    %v2444 = vmul.f32 %v2408, %v2415
    %v2445 = vmul.f32 %v2409, %v2415
    %v2446 = vmul.f32 %v2410, %v2415
    %v2448 = vlaneseq
    %v2449 = vshrl.u32 %v2448, 7
    %v2450 = vsub.s32 0, %v2449
    %v2451 = vrot.slane %v466, %v2450
    %v2453 = vadd.f32 %v2417, %v2451
    %v2454 = vadd.f32 %v2418, %v2451
    %v2455 = vadd.f32 %v2419, %v2451
    %v2456 = vadd.f32 %v2420, %v2451
    %v2457 = vadd.f32 %v2421, %v2451
    %v2458 = vadd.f32 %v2422, %v2451
    %v2459 = vadd.f32 %v2423, %v2451
    %v2460 = vadd.f32 %v2424, %v2451
    %v2461 = vadd.f32 %v2425, %v2451
    %v2462 = vadd.f32 %v2426, %v2451
    %v2463 = vadd.f32 %v2427, %v2451
    %v2464 = vadd.f32 %v2428, %v2451
    %v2465 = vadd.f32 %v2429, %v2451
    %v2466 = vadd.f32 %v2430, %v2451
    %v2467 = vadd.f32 %v2431, %v2451
    %v2468 = vadd.f32 %v2432, %v2451
    %v2469 = vadd.f32 %v2433, %v2451
    %v2470 = vadd.f32 %v2434, %v2451
    %v2471 = vadd.f32 %v2435, %v2451
    %v2472 = vadd.f32 %v2436, %v2451
    %v2473 = vadd.f32 %v2437, %v2451
    %v2474 = vadd.f32 %v2438, %v2451
    %v2475 = vadd.f32 %v2439, %v2451
    %v2476 = vadd.f32 %v2440, %v2451
    %v2477 = vadd.f32 %v2441, %v2451
    %v2478 = vadd.f32 %v2442, %v2451
    %v2479 = vadd.f32 %v2443, %v2451
    %v2480 = vadd.f32 %v2444, %v2451
    %v2481 = vadd.f32 %v2445, %v2451
    %v2482 = vadd.f32 %v2446, %v2451
    %v2483 = vpack.c.bf16 %v2454, %v2453
    %v2484 = vpack.c.bf16 %v2456, %v2455
    %v2485 = vpack.c.bf16 %v2458, %v2457
    %v2486 = vpack.c.bf16 %v2460, %v2459
    %v2487 = vpack.c.bf16 %v2462, %v2461
    %v2488 = vpack.c.bf16 %v2464, %v2463
    %v2489 = vpack.c.bf16 %v2466, %v2465
    %v2490 = vpack.c.bf16 %v2468, %v2467
    %v2491 = vpack.c.bf16 %v2470, %v2469
    %v2492 = vpack.c.bf16 %v2472, %v2471
    %v2493 = vpack.c.bf16 %v2474, %v2473
    %v2494 = vpack.c.bf16 %v2476, %v2475
    %v2495 = vpack.c.bf16 %v2478, %v2477
    %v2496 = vpack.c.bf16 %v2480, %v2479
    %v2497 = vpack.c.bf16 %v2482, %v2481
    %v2499 = vlaneseq
    %v2500 = vshrl.u32 %v2499, 7
    %v2501 = vsub.s32 0, %v2500
    %v2502 = vrot.slane %v399, %v2501
    %v2503 = vlaneseq
    %v2504 = vshrl.u32 %v2503, 7
    %v2505 = vsub.s32 1, %v2504
    %v2506 = vrot.slane %v399, %v2505
    %v2507 = vlaneseq
    %v2508 = vshrl.u32 %v2507, 7
    %v2509 = vsub.s32 2, %v2508
    %v2510 = vrot.slane %v399, %v2509
    %v2511 = vlaneseq
    %v2512 = vshrl.u32 %v2511, 7
    %v2513 = vsub.s32 3, %v2512
    %v2514 = vrot.slane %v399, %v2513
    %v2551 = vunpack.c.l.b16 %v367
    %v2552 = vunpack.c.h.b16 %v367
    %v2553 = vunpack.c.l.b16 %v368
    %v2554 = vunpack.c.h.b16 %v368
    %v2555 = vunpack.c.l.b16 %v369
    %v2556 = vunpack.c.h.b16 %v369
    %v2557 = vunpack.c.l.b16 %v370
    %v2558 = vunpack.c.h.b16 %v370
    %v2559 = vunpack.c.l.b16 %v371
    %v2560 = vunpack.c.h.b16 %v371
    %v2561 = vunpack.c.l.b16 %v372
    %v2562 = vunpack.c.h.b16 %v372
    %v2563 = vunpack.c.l.b16 %v373
    %v2564 = vunpack.c.h.b16 %v373
    %v2565 = vunpack.c.l.b16 %v374
    %v2566 = vunpack.c.h.b16 %v374
    %v2567 = vunpack.c.l.b16 %v375
    %v2568 = vunpack.c.h.b16 %v375
    %v2569 = vunpack.c.l.b16 %v376
    %v2570 = vunpack.c.h.b16 %v376
    %v2571 = vunpack.c.l.b16 %v377
    %v2572 = vunpack.c.h.b16 %v377
    %v2573 = vunpack.c.l.b16 %v378
    %v2574 = vunpack.c.h.b16 %v378
    %v2575 = vunpack.c.l.b16 %v379
    %v2576 = vunpack.c.h.b16 %v379
    %v2577 = vunpack.c.l.b16 %v380
    %v2578 = vunpack.c.h.b16 %v380
    %v2579 = vunpack.c.l.b16 %v381
    %v2580 = vunpack.c.h.b16 %v381
    %v2581 = vunpack.c.l.b16 %v382
    %v2582 = vunpack.c.h.b16 %v382
    %v2583 = vunpack.c.l.b16 %v383
    %v2584 = vunpack.c.h.b16 %v383
    %v2585 = vunpack.c.l.b16 %v384
    %v2586 = vunpack.c.h.b16 %v384
    %v2587 = vunpack.c.l.b16 %v385
    %v2588 = vunpack.c.h.b16 %v385
    %v2589 = vunpack.c.l.b16 %v386
    %v2590 = vunpack.c.h.b16 %v386
    %v2591 = vunpack.c.l.b16 %v387
    %v2592 = vunpack.c.h.b16 %v387
    %v2593 = vunpack.c.l.b16 %v388
    %v2594 = vunpack.c.h.b16 %v388
    %v2595 = vunpack.c.l.b16 %v389
    %v2596 = vunpack.c.h.b16 %v389
    %v2597 = vunpack.c.l.b16 %v390
    %v2598 = vunpack.c.h.b16 %v390
    %v2599 = vunpack.c.l.b16 %v391
    %v2600 = vunpack.c.h.b16 %v391
    %v2601 = vunpack.c.l.b16 %v392
    %v2602 = vunpack.c.h.b16 %v392
    %v2603 = vunpack.c.l.b16 %v393
    %v2604 = vunpack.c.h.b16 %v393
    %v2605 = vunpack.c.l.b16 %v394
    %v2606 = vunpack.c.h.b16 %v394
    %v2607 = vunpack.c.l.b16 %v395
    %v2608 = vunpack.c.h.b16 %v395
    %v2609 = vunpack.c.l.b16 %v396
    %v2610 = vunpack.c.h.b16 %v396
    %v2611 = vunpack.c.l.b16 %v397
    %v2612 = vunpack.c.h.b16 %v397
    %v2613 = vunpack.c.l.b16 %v398
    %v2614 = vunpack.c.h.b16 %v398
    %v2615 = vpack.c.b16 %v2555, %v2551
    %v2616 = vpack.c.b16 %v2556, %v2552
    %v2617 = vpack.c.b16 %v2557, %v2553
    %v2618 = vpack.c.b16 %v2558, %v2554
    %v2619 = vpack.c.b16 %v2563, %v2559
    %v2620 = vpack.c.b16 %v2564, %v2560
    %v2621 = vpack.c.b16 %v2565, %v2561
    %v2622 = vpack.c.b16 %v2566, %v2562
    %v2623 = vpack.c.b16 %v2571, %v2567
    %v2624 = vpack.c.b16 %v2572, %v2568
    %v2625 = vpack.c.b16 %v2573, %v2569
    %v2626 = vpack.c.b16 %v2574, %v2570
    %v2627 = vpack.c.b16 %v2579, %v2575
    %v2628 = vpack.c.b16 %v2580, %v2576
    %v2629 = vpack.c.b16 %v2581, %v2577
    %v2630 = vpack.c.b16 %v2582, %v2578
    %v2631 = vpack.c.b16 %v2587, %v2583
    %v2632 = vpack.c.b16 %v2588, %v2584
    %v2633 = vpack.c.b16 %v2589, %v2585
    %v2634 = vpack.c.b16 %v2590, %v2586
    %v2635 = vpack.c.b16 %v2595, %v2591
    %v2636 = vpack.c.b16 %v2596, %v2592
    %v2637 = vpack.c.b16 %v2597, %v2593
    %v2638 = vpack.c.b16 %v2598, %v2594
    %v2639 = vpack.c.b16 %v2603, %v2599
    %v2640 = vpack.c.b16 %v2604, %v2600
    %v2641 = vpack.c.b16 %v2605, %v2601
    %v2642 = vpack.c.b16 %v2606, %v2602
    %v2643 = vpack.c.b16 %v2611, %v2607
    %v2644 = vpack.c.b16 %v2612, %v2608
    %v2645 = vpack.c.b16 %v2613, %v2609
    %v2646 = vpack.c.b16 %v2614, %v2610
    %2679 = vmatprep.subr.bf16.mxu0 %v2616
    %2680 = vmatpush1.bf16.msra.mxu0 %v2615
    %2681 = vmatprep.subr.bf16.mxu0 %v2620
    %2682 = vmatpush1.bf16.msra.mxu0 %v2619
    %2683 = vmatprep.subr.bf16.mxu0 %v2624
    %2684 = vmatpush1.bf16.msra.mxu0 %v2623
    %2685 = vmatprep.subr.bf16.mxu0 %v2628
    %2686 = vmatpush1.bf16.msra.mxu0 %v2627
    %2687 = vmatprep.subr.bf16.mxu0 %v2632
    %2688 = vmatpush1.bf16.msra.mxu0 %v2631
    %2689 = vmatprep.subr.bf16.mxu0 %v2636
    %2690 = vmatpush1.bf16.msra.mxu0 %v2635
    %2691 = vmatprep.subr.bf16.mxu0 %v2640
    %2692 = vmatpush1.bf16.msra.mxu0 %v2639
    %2693 = vmatprep.subr.bf16.mxu0 %v2644
    %2694 = vmatpush1.bf16.msra.mxu0 %v2643
    %2695 = vmatprep.subr.bf16.mxu0 0
    %2696 = vmatpush1.bf16.msra.mxu0 0
    %2697 = vmatprep.subr.bf16.mxu0 0
    %2698 = vmatpush1.bf16.msra.mxu0 0
    %2699 = vmatprep.subr.bf16.mxu0 0
    %2700 = vmatpush1.bf16.msra.mxu0 0
    %2701 = vmatprep.subr.bf16.mxu0 0
    %2702 = vmatpush1.bf16.msra.mxu0 0
    %2703 = vmatprep.subr.bf16.mxu0 0
    %2704 = vmatpush1.bf16.msra.mxu0 0
    %2705 = vmatprep.subr.bf16.mxu0 0
    %2706 = vmatpush1.bf16.msra.mxu0 0
    %2707 = vmatprep.subr.bf16.mxu0 0
    %2708 = vmatpush1.bf16.msra.mxu0 0
    %2709 = vmatprep.subr.bf16.mxu0 0
    %2710 = vmatpush1.bf16.msra.mxu0 0
    %2711 = vmatprep.mubr.bf16.mxu0 0
    %2712 = vmatmul.mubr.bf16.gmra.mrb[0].mxu0 %v2483
    %v2713 = vpop.f32.mrb[0].mxu0
    %v2714 = vadd.f32 %v2502, %v2713
    %v2715 = vpop.f32.mrb[0].mxu0
    %v2716 = vadd.f32 %v2506, %v2715
    %v2717 = vpop.f32.mrb[0].mxu0
    %v2718 = vadd.f32 %v2502, %v2717
    %v2719 = vpop.f32.mrb[0].mxu0
    %v2720 = vadd.f32 %v2506, %v2719
    %2721 = vmatprep.mubr.bf16.mxu0 0
    %2722 = vmatmul.mubr.bf16.gmra.mrb[0].mxu0 %v2484
    %v2723 = vpop.f32.mrb[0].mxu0
    %v2724 = vadd.f32 %v2502, %v2723
    %v2725 = vpop.f32.mrb[0].mxu0
    %v2726 = vadd.f32 %v2506, %v2725
    %v2727 = vpop.f32.mrb[0].mxu0
    %v2728 = vadd.f32 %v2502, %v2727
    %v2729 = vpop.f32.mrb[0].mxu0
    %v2730 = vadd.f32 %v2506, %v2729
    %2731 = vmatprep.mubr.bf16.mxu0 0
    %2732 = vmatmul.mubr.bf16.gmra.mrb[0].mxu0 %v2485
    %v2733 = vpop.f32.mrb[0].mxu0
    %v2734 = vadd.f32 %v2502, %v2733
    %v2735 = vpop.f32.mrb[0].mxu0
    %v2736 = vadd.f32 %v2506, %v2735
    %v2737 = vpop.f32.mrb[0].mxu0
    %v2738 = vadd.f32 %v2502, %v2737
    %v2739 = vpop.f32.mrb[0].mxu0
    %v2740 = vadd.f32 %v2506, %v2739
    %2741 = vmatprep.mubr.bf16.mxu0 0
    %2742 = vmatmul.mubr.bf16.gmra.mrb[0].mxu0 %v2486
    %v2743 = vpop.f32.mrb[0].mxu0
    %v2744 = vadd.f32 %v2502, %v2743
    %v2745 = vpop.f32.mrb[0].mxu0
    %v2746 = vadd.f32 %v2506, %v2745
    %v2747 = vpop.f32.mrb[0].mxu0
    %v2748 = vadd.f32 %v2502, %v2747
    %v2749 = vpop.f32.mrb[0].mxu0
    %v2750 = vadd.f32 %v2506, %v2749
    %2751 = vmatprep.mubr.bf16.mxu0 0
    %2752 = vmatmul.mubr.bf16.gmra.mrb[0].mxu0 %v2487
    %v2753 = vpop.f32.mrb[0].mxu0
    %v2754 = vadd.f32 %v2502, %v2753
    %v2755 = vpop.f32.mrb[0].mxu0
    %v2756 = vadd.f32 %v2506, %v2755
    %v2757 = vpop.f32.mrb[0].mxu0
    %v2758 = vadd.f32 %v2502, %v2757
    %v2759 = vpop.f32.mrb[0].mxu0
    %v2760 = vadd.f32 %v2506, %v2759
    %2761 = vmatprep.mubr.bf16.mxu0 0
    %2762 = vmatmul.mubr.bf16.gmra.mrb[0].mxu0 %v2488
    %v2763 = vpop.f32.mrb[0].mxu0
    %v2764 = vadd.f32 %v2502, %v2763
    %v2765 = vpop.f32.mrb[0].mxu0
    %v2766 = vadd.f32 %v2506, %v2765
    %v2767 = vpop.f32.mrb[0].mxu0
    %v2768 = vadd.f32 %v2502, %v2767
    %v2769 = vpop.f32.mrb[0].mxu0
    %v2770 = vadd.f32 %v2506, %v2769
    %2771 = vmatprep.mubr.bf16.mxu0 0
    %2772 = vmatmul.mubr.bf16.gmra.mrb[0].mxu0 %v2489
    %v2773 = vpop.f32.mrb[0].mxu0
    %v2774 = vadd.f32 %v2502, %v2773
    %v2775 = vpop.f32.mrb[0].mxu0
    %v2776 = vadd.f32 %v2506, %v2775
    %v2777 = vpop.f32.mrb[0].mxu0
    %v2778 = vadd.f32 %v2502, %v2777
    %v2779 = vpop.f32.mrb[0].mxu0
    %v2780 = vadd.f32 %v2506, %v2779
    %2781 = vmatprep.mubr.bf16.mxu0 0
    %2782 = vmatmul.mubr.bf16.gmra.mrb[0].mxu0 %v2490
    %v2783 = vpop.f32.mrb[0].mxu0
    %v2784 = vadd.f32 %v2502, %v2783
    %v2785 = vpop.f32.mrb[0].mxu0
    %v2786 = vadd.f32 %v2506, %v2785
    %v2787 = vpop.f32.mrb[0].mxu0
    %v2788 = vadd.f32 %v2502, %v2787
    %v2789 = vpop.f32.mrb[0].mxu0
    %v2790 = vadd.f32 %v2506, %v2789
    %2791 = vmatprep.mubr.bf16.mxu0 0
    %2792 = vmatmul.mubr.bf16.gmra.mrb[0].mxu0 %v2491
    %v2793 = vpop.f32.mrb[0].mxu0
    %v2794 = vadd.f32 %v2502, %v2793
    %v2795 = vpop.f32.mrb[0].mxu0
    %v2796 = vadd.f32 %v2506, %v2795
    %v2797 = vpop.f32.mrb[0].mxu0
    %v2798 = vadd.f32 %v2502, %v2797
    %v2799 = vpop.f32.mrb[0].mxu0
    %v2800 = vadd.f32 %v2506, %v2799
    %2801 = vmatprep.mubr.bf16.mxu0 0
    %2802 = vmatmul.mubr.bf16.gmra.mrb[0].mxu0 %v2492
    %v2803 = vpop.f32.mrb[0].mxu0
    %v2804 = vadd.f32 %v2502, %v2803
    %v2805 = vpop.f32.mrb[0].mxu0
    %v2806 = vadd.f32 %v2506, %v2805
    %v2807 = vpop.f32.mrb[0].mxu0
    %v2808 = vadd.f32 %v2502, %v2807
    %v2809 = vpop.f32.mrb[0].mxu0
    %v2810 = vadd.f32 %v2506, %v2809
    %2811 = vmatprep.mubr.bf16.mxu0 0
    %2812 = vmatmul.mubr.bf16.gmra.mrb[0].mxu0 %v2493
    %v2813 = vpop.f32.mrb[0].mxu0
    %v2814 = vadd.f32 %v2502, %v2813
    %v2815 = vpop.f32.mrb[0].mxu0
    %v2816 = vadd.f32 %v2506, %v2815
    %v2817 = vpop.f32.mrb[0].mxu0
    %v2818 = vadd.f32 %v2502, %v2817
    %v2819 = vpop.f32.mrb[0].mxu0
    %v2820 = vadd.f32 %v2506, %v2819
    %2821 = vmatprep.mubr.bf16.mxu0 0
    %2822 = vmatmul.mubr.bf16.gmra.mrb[0].mxu0 %v2494
    %v2823 = vpop.f32.mrb[0].mxu0
    %v2824 = vadd.f32 %v2502, %v2823
    %v2825 = vpop.f32.mrb[0].mxu0
    %v2826 = vadd.f32 %v2506, %v2825
    %v2827 = vpop.f32.mrb[0].mxu0
    %v2828 = vadd.f32 %v2502, %v2827
    %v2829 = vpop.f32.mrb[0].mxu0
    %v2830 = vadd.f32 %v2506, %v2829
    %2831 = vmatprep.mubr.bf16.mxu0 0
    %2832 = vmatmul.mubr.bf16.gmra.mrb[0].mxu0 %v2495
    %v2833 = vpop.f32.mrb[0].mxu0
    %v2834 = vadd.f32 %v2502, %v2833
    %v2835 = vpop.f32.mrb[0].mxu0
    %v2836 = vadd.f32 %v2506, %v2835
    %v2837 = vpop.f32.mrb[0].mxu0
    %v2838 = vadd.f32 %v2502, %v2837
    %v2839 = vpop.f32.mrb[0].mxu0
    %v2840 = vadd.f32 %v2506, %v2839
    %2841 = vmatprep.mubr.bf16.mxu0 0
    %2842 = vmatmul.mubr.bf16.gmra.mrb[0].mxu0 %v2496
    %v2843 = vpop.f32.mrb[0].mxu0
    %v2844 = vadd.f32 %v2502, %v2843
    %v2845 = vpop.f32.mrb[0].mxu0
    %v2846 = vadd.f32 %v2506, %v2845
    %v2847 = vpop.f32.mrb[0].mxu0
    %v2848 = vadd.f32 %v2502, %v2847
    %v2849 = vpop.f32.mrb[0].mxu0
    %v2850 = vadd.f32 %v2506, %v2849
    %2851 = vmatprep.mubr.bf16.mxu0 0
    %2852 = vmatmul.mubr.bf16.gmra.mrb[0].mxu0 %v2497
    %v2853 = vpop.f32.mrb[0].mxu0
    %v2854 = vadd.f32 %v2502, %v2853
    %v2855 = vpop.f32.mrb[0].mxu0
    %v2856 = vadd.f32 %v2506, %v2855
    %v2857 = vpop.f32.mrb[0].mxu0
    %v2858 = vadd.f32 %v2502, %v2857
    %v2859 = vpop.f32.mrb[0].mxu0
    %v2860 = vadd.f32 %v2506, %v2859
    %2861 = vdwg.mxu0
    %2862 = vmatprep.subr.bf16.mxu0 %v2618
    %2863 = vmatpush1.bf16.msra.mxu0 %v2617
    %2864 = vmatprep.subr.bf16.mxu0 %v2622
    %2865 = vmatpush1.bf16.msra.mxu0 %v2621
    %2866 = vmatprep.subr.bf16.mxu0 %v2626
    %2867 = vmatpush1.bf16.msra.mxu0 %v2625
    %2868 = vmatprep.subr.bf16.mxu0 %v2630
    %2869 = vmatpush1.bf16.msra.mxu0 %v2629
    %2870 = vmatprep.subr.bf16.mxu0 %v2634
    %2871 = vmatpush1.bf16.msra.mxu0 %v2633
    %2872 = vmatprep.subr.bf16.mxu0 %v2638
    %2873 = vmatpush1.bf16.msra.mxu0 %v2637
    %2874 = vmatprep.subr.bf16.mxu0 %v2642
    %2875 = vmatpush1.bf16.msra.mxu0 %v2641
    %2876 = vmatprep.subr.bf16.mxu0 %v2646
    %2877 = vmatpush1.bf16.msra.mxu0 %v2645
    %2878 = vmatprep.subr.bf16.mxu0 0
    %2879 = vmatpush1.bf16.msra.mxu0 0
    %2880 = vmatprep.subr.bf16.mxu0 0
    %2881 = vmatpush1.bf16.msra.mxu0 0
    %2882 = vmatprep.subr.bf16.mxu0 0
    %2883 = vmatpush1.bf16.msra.mxu0 0
    %2884 = vmatprep.subr.bf16.mxu0 0
    %2885 = vmatpush1.bf16.msra.mxu0 0
    %2886 = vmatprep.subr.bf16.mxu0 0
    %2887 = vmatpush1.bf16.msra.mxu0 0
    %2888 = vmatprep.subr.bf16.mxu0 0
    %2889 = vmatpush1.bf16.msra.mxu0 0
    %2890 = vmatprep.subr.bf16.mxu0 0
    %2891 = vmatpush1.bf16.msra.mxu0 0
    %2892 = vmatprep.subr.bf16.mxu0 0
    %2893 = vmatpush1.bf16.msra.mxu0 0
    %2894 = vmatprep.mubr.bf16.mxu0 0
    %2895 = vmatmul.mubr.bf16.gmra.mrb[0].mxu0 %v2483
    %v2896 = vpop.f32.mrb[0].mxu0
    %v2897 = vadd.f32 %v2510, %v2896
    %v2898 = vpop.f32.mrb[0].mxu0
    %v2899 = vadd.f32 %v2514, %v2898
    %v2900 = vpop.f32.mrb[0].mxu0
    %v2901 = vadd.f32 %v2510, %v2900
    %v2902 = vpop.f32.mrb[0].mxu0
    %v2903 = vadd.f32 %v2514, %v2902
    %2904 = vmatprep.mubr.bf16.mxu0 0
    %2905 = vmatmul.mubr.bf16.gmra.mrb[0].mxu0 %v2484
    %v2906 = vpop.f32.mrb[0].mxu0
    %v2907 = vadd.f32 %v2510, %v2906
    %v2908 = vpop.f32.mrb[0].mxu0
    %v2909 = vadd.f32 %v2514, %v2908
    %v2910 = vpop.f32.mrb[0].mxu0
    %v2911 = vadd.f32 %v2510, %v2910
    %v2912 = vpop.f32.mrb[0].mxu0
    %v2913 = vadd.f32 %v2514, %v2912
    %2914 = vmatprep.mubr.bf16.mxu0 0
    %2915 = vmatmul.mubr.bf16.gmra.mrb[0].mxu0 %v2485
    %v2916 = vpop.f32.mrb[0].mxu0
    %v2917 = vadd.f32 %v2510, %v2916
    %v2918 = vpop.f32.mrb[0].mxu0
    %v2919 = vadd.f32 %v2514, %v2918
    %v2920 = vpop.f32.mrb[0].mxu0
    %v2921 = vadd.f32 %v2510, %v2920
    %v2922 = vpop.f32.mrb[0].mxu0
    %v2923 = vadd.f32 %v2514, %v2922
    %2924 = vmatprep.mubr.bf16.mxu0 0
    %2925 = vmatmul.mubr.bf16.gmra.mrb[0].mxu0 %v2486
    %v2926 = vpop.f32.mrb[0].mxu0
    %v2927 = vadd.f32 %v2510, %v2926
    %v2928 = vpop.f32.mrb[0].mxu0
    %v2929 = vadd.f32 %v2514, %v2928
    %v2930 = vpop.f32.mrb[0].mxu0
    %v2931 = vadd.f32 %v2510, %v2930
    %v2932 = vpop.f32.mrb[0].mxu0
    %v2933 = vadd.f32 %v2514, %v2932
    %2934 = vmatprep.mubr.bf16.mxu0 0
    %2935 = vmatmul.mubr.bf16.gmra.mrb[0].mxu0 %v2487
    %v2936 = vpop.f32.mrb[0].mxu0
    %v2937 = vadd.f32 %v2510, %v2936
    %v2938 = vpop.f32.mrb[0].mxu0
    %v2939 = vadd.f32 %v2514, %v2938
    %v2940 = vpop.f32.mrb[0].mxu0
    %v2941 = vadd.f32 %v2510, %v2940
    %v2942 = vpop.f32.mrb[0].mxu0
    %v2943 = vadd.f32 %v2514, %v2942
    %2944 = vmatprep.mubr.bf16.mxu0 0
    %2945 = vmatmul.mubr.bf16.gmra.mrb[0].mxu0 %v2488
    %v2946 = vpop.f32.mrb[0].mxu0
    %v2947 = vadd.f32 %v2510, %v2946
    %v2948 = vpop.f32.mrb[0].mxu0
    %v2949 = vadd.f32 %v2514, %v2948
    %v2950 = vpop.f32.mrb[0].mxu0
    %v2951 = vadd.f32 %v2510, %v2950
    %v2952 = vpop.f32.mrb[0].mxu0
    %v2953 = vadd.f32 %v2514, %v2952
    %2954 = vmatprep.mubr.bf16.mxu0 0
    %2955 = vmatmul.mubr.bf16.gmra.mrb[0].mxu0 %v2489
    %v2956 = vpop.f32.mrb[0].mxu0
    %v2957 = vadd.f32 %v2510, %v2956
    %v2958 = vpop.f32.mrb[0].mxu0
    %v2959 = vadd.f32 %v2514, %v2958
    %v2960 = vpop.f32.mrb[0].mxu0
    %v2961 = vadd.f32 %v2510, %v2960
    %v2962 = vpop.f32.mrb[0].mxu0
    %v2963 = vadd.f32 %v2514, %v2962
    %2964 = vmatprep.mubr.bf16.mxu0 0
    %2965 = vmatmul.mubr.bf16.gmra.mrb[0].mxu0 %v2490
    %v2966 = vpop.f32.mrb[0].mxu0
    %v2967 = vadd.f32 %v2510, %v2966
    %v2968 = vpop.f32.mrb[0].mxu0
    %v2969 = vadd.f32 %v2514, %v2968
    %v2970 = vpop.f32.mrb[0].mxu0
    %v2971 = vadd.f32 %v2510, %v2970
    %v2972 = vpop.f32.mrb[0].mxu0
    %v2973 = vadd.f32 %v2514, %v2972
    %2974 = vmatprep.mubr.bf16.mxu0 0
    %2975 = vmatmul.mubr.bf16.gmra.mrb[0].mxu0 %v2491
    %v2976 = vpop.f32.mrb[0].mxu0
    %v2977 = vadd.f32 %v2510, %v2976
    %v2978 = vpop.f32.mrb[0].mxu0
    %v2979 = vadd.f32 %v2514, %v2978
    %v2980 = vpop.f32.mrb[0].mxu0
    %v2981 = vadd.f32 %v2510, %v2980
    %v2982 = vpop.f32.mrb[0].mxu0
    %v2983 = vadd.f32 %v2514, %v2982
    %2984 = vmatprep.mubr.bf16.mxu0 0
    %2985 = vmatmul.mubr.bf16.gmra.mrb[0].mxu0 %v2492
    %v2986 = vpop.f32.mrb[0].mxu0
    %v2987 = vadd.f32 %v2510, %v2986
    %v2988 = vpop.f32.mrb[0].mxu0
    %v2989 = vadd.f32 %v2514, %v2988
    %v2990 = vpop.f32.mrb[0].mxu0
    %v2991 = vadd.f32 %v2510, %v2990
    %v2992 = vpop.f32.mrb[0].mxu0
    %v2993 = vadd.f32 %v2514, %v2992
    %2994 = vmatprep.mubr.bf16.mxu0 0
    %2995 = vmatmul.mubr.bf16.gmra.mrb[0].mxu0 %v2493
    %v2996 = vpop.f32.mrb[0].mxu0
    %v2997 = vadd.f32 %v2510, %v2996
    %v2998 = vpop.f32.mrb[0].mxu0
    %v2999 = vadd.f32 %v2514, %v2998
    %v3000 = vpop.f32.mrb[0].mxu0
    %v3001 = vadd.f32 %v2510, %v3000
    %v3002 = vpop.f32.mrb[0].mxu0
    %v3003 = vadd.f32 %v2514, %v3002
    %3004 = vmatprep.mubr.bf16.mxu0 0
    %3005 = vmatmul.mubr.bf16.gmra.mrb[0].mxu0 %v2494
    %v3006 = vpop.f32.mrb[0].mxu0
    %v3007 = vadd.f32 %v2510, %v3006
    %v3008 = vpop.f32.mrb[0].mxu0
    %v3009 = vadd.f32 %v2514, %v3008
    %v3010 = vpop.f32.mrb[0].mxu0
    %v3011 = vadd.f32 %v2510, %v3010
    %v3012 = vpop.f32.mrb[0].mxu0
    %v3013 = vadd.f32 %v2514, %v3012
    %3014 = vmatprep.mubr.bf16.mxu0 0
    %3015 = vmatmul.mubr.bf16.gmra.mrb[0].mxu0 %v2495
    %v3016 = vpop.f32.mrb[0].mxu0
    %v3017 = vadd.f32 %v2510, %v3016
    %v3018 = vpop.f32.mrb[0].mxu0
    %v3019 = vadd.f32 %v2514, %v3018
    %v3020 = vpop.f32.mrb[0].mxu0
    %v3021 = vadd.f32 %v2510, %v3020
    %v3022 = vpop.f32.mrb[0].mxu0
    %v3023 = vadd.f32 %v2514, %v3022
    %3024 = vmatprep.mubr.bf16.mxu0 0
    %3025 = vmatmul.mubr.bf16.gmra.mrb[0].mxu0 %v2496
    %v3026 = vpop.f32.mrb[0].mxu0
    %v3027 = vadd.f32 %v2510, %v3026
    %v3028 = vpop.f32.mrb[0].mxu0
    %v3029 = vadd.f32 %v2514, %v3028
    %v3030 = vpop.f32.mrb[0].mxu0
    %v3031 = vadd.f32 %v2510, %v3030
    %v3032 = vpop.f32.mrb[0].mxu0
    %v3033 = vadd.f32 %v2514, %v3032
    %3034 = vmatprep.mubr.bf16.mxu0 0
    %3035 = vmatmul.mubr.bf16.gmra.mrb[0].mxu0 %v2497
    %v3036 = vpop.f32.mrb[0].mxu0
    %v3037 = vadd.f32 %v2510, %v3036
    %v3038 = vpop.f32.mrb[0].mxu0
    %v3039 = vadd.f32 %v2514, %v3038
    %v3040 = vpop.f32.mrb[0].mxu0
    %v3041 = vadd.f32 %v2510, %v3040
    %v3042 = vpop.f32.mrb[0].mxu0
    %v3043 = vadd.f32 %v2514, %v3042
    %3044 = vdwg.mxu0
    %v3045 = vmax.f32 %v2714, 0.0
    %v3046 = vmax.f32 %v2716, 0.0
    %v3047 = vmax.f32 %v2897, 0.0
    %v3048 = vmax.f32 %v2899, 0.0
    %v3049 = vmax.f32 %v2718, 0.0
    %v3050 = vmax.f32 %v2720, 0.0
    %v3051 = vmax.f32 %v2901, 0.0
    %v3052 = vmax.f32 %v2903, 0.0
    %v3053 = vmax.f32 %v2724, 0.0
    %v3054 = vmax.f32 %v2726, 0.0
    %v3055 = vmax.f32 %v2907, 0.0
    %v3056 = vmax.f32 %v2909, 0.0
    %v3057 = vmax.f32 %v2728, 0.0
    %v3058 = vmax.f32 %v2730, 0.0
    %v3059 = vmax.f32 %v2911, 0.0
    %v3060 = vmax.f32 %v2913, 0.0
    %v3061 = vmax.f32 %v2734, 0.0
    %v3062 = vmax.f32 %v2736, 0.0
    %v3063 = vmax.f32 %v2917, 0.0
    %v3064 = vmax.f32 %v2919, 0.0
    %v3065 = vmax.f32 %v2738, 0.0
    %v3066 = vmax.f32 %v2740, 0.0
    %v3067 = vmax.f32 %v2921, 0.0
    %v3068 = vmax.f32 %v2923, 0.0
    %v3069 = vmax.f32 %v2744, 0.0
    %v3070 = vmax.f32 %v2746, 0.0
    %v3071 = vmax.f32 %v2927, 0.0
    %v3072 = vmax.f32 %v2929, 0.0
    %v3073 = vmax.f32 %v2748, 0.0
    %v3074 = vmax.f32 %v2750, 0.0
    %v3075 = vmax.f32 %v2931, 0.0
    %v3076 = vmax.f32 %v2933, 0.0
    %v3077 = vmax.f32 %v2754, 0.0
    %v3078 = vmax.f32 %v2756, 0.0
    %v3079 = vmax.f32 %v2937, 0.0
    %v3080 = vmax.f32 %v2939, 0.0
    %v3081 = vmax.f32 %v2758, 0.0
    %v3082 = vmax.f32 %v2760, 0.0
    %v3083 = vmax.f32 %v2941, 0.0
    %v3084 = vmax.f32 %v2943, 0.0
    %v3085 = vmax.f32 %v2764, 0.0
    %v3086 = vmax.f32 %v2766, 0.0
    %v3087 = vmax.f32 %v2947, 0.0
    %v3088 = vmax.f32 %v2949, 0.0
    %v3089 = vmax.f32 %v2768, 0.0
    %v3090 = vmax.f32 %v2770, 0.0
    %v3091 = vmax.f32 %v2951, 0.0
    %v3092 = vmax.f32 %v2953, 0.0
    %v3093 = vmax.f32 %v2774, 0.0
    %v3094 = vmax.f32 %v2776, 0.0
    %v3095 = vmax.f32 %v2957, 0.0
    %v3096 = vmax.f32 %v2959, 0.0
    %v3097 = vmax.f32 %v2778, 0.0
    %v3098 = vmax.f32 %v2780, 0.0
    %v3099 = vmax.f32 %v2961, 0.0
    %v3100 = vmax.f32 %v2963, 0.0
    %v3101 = vmax.f32 %v2784, 0.0
    %v3102 = vmax.f32 %v2786, 0.0
    %v3103 = vmax.f32 %v2967, 0.0
    %v3104 = vmax.f32 %v2969, 0.0
    %v3105 = vmax.f32 %v2788, 0.0
    %v3106 = vmax.f32 %v2790, 0.0
    %v3107 = vmax.f32 %v2971, 0.0
    %v3108 = vmax.f32 %v2973, 0.0
    %v3109 = vmax.f32 %v2794, 0.0
    %v3110 = vmax.f32 %v2796, 0.0
    %v3111 = vmax.f32 %v2977, 0.0
    %v3112 = vmax.f32 %v2979, 0.0
    %v3113 = vmax.f32 %v2798, 0.0
    %v3114 = vmax.f32 %v2800, 0.0
    %v3115 = vmax.f32 %v2981, 0.0
    %v3116 = vmax.f32 %v2983, 0.0
    %v3117 = vmax.f32 %v2804, 0.0
    %v3118 = vmax.f32 %v2806, 0.0
    %v3119 = vmax.f32 %v2987, 0.0
    %v3120 = vmax.f32 %v2989, 0.0
    %v3121 = vmax.f32 %v2808, 0.0
    %v3122 = vmax.f32 %v2810, 0.0
    %v3123 = vmax.f32 %v2991, 0.0
    %v3124 = vmax.f32 %v2993, 0.0
    %v3125 = vmax.f32 %v2814, 0.0
    %v3126 = vmax.f32 %v2816, 0.0
    %v3127 = vmax.f32 %v2997, 0.0
    %v3128 = vmax.f32 %v2999, 0.0
    %v3129 = vmax.f32 %v2818, 0.0
    %v3130 = vmax.f32 %v2820, 0.0
    %v3131 = vmax.f32 %v3001, 0.0
    %v3132 = vmax.f32 %v3003, 0.0
    %v3133 = vmax.f32 %v2824, 0.0
    %v3134 = vmax.f32 %v2826, 0.0
    %v3135 = vmax.f32 %v3007, 0.0
    %v3136 = vmax.f32 %v3009, 0.0
    %v3137 = vmax.f32 %v2828, 0.0
    %v3138 = vmax.f32 %v2830, 0.0
    %v3139 = vmax.f32 %v3011, 0.0
    %v3140 = vmax.f32 %v3013, 0.0
    %v3141 = vmax.f32 %v2834, 0.0
    %v3142 = vmax.f32 %v2836, 0.0
    %v3143 = vmax.f32 %v3017, 0.0
    %v3144 = vmax.f32 %v3019, 0.0
    %v3145 = vmax.f32 %v2838, 0.0
    %v3146 = vmax.f32 %v2840, 0.0
    %v3147 = vmax.f32 %v3021, 0.0
    %v3148 = vmax.f32 %v3023, 0.0
    %v3149 = vmax.f32 %v2844, 0.0
    %v3150 = vmax.f32 %v2846, 0.0
    %v3151 = vmax.f32 %v3027, 0.0
    %v3152 = vmax.f32 %v3029, 0.0
    %v3153 = vmax.f32 %v2848, 0.0
    %v3154 = vmax.f32 %v2850, 0.0
    %v3155 = vmax.f32 %v3031, 0.0
    %v3156 = vmax.f32 %v3033, 0.0
    %v3157 = vmax.f32 %v2854, 0.0
    %v3158 = vmax.f32 %v2856, 0.0
    %v3159 = vmax.f32 %v3037, 0.0
    %v3160 = vmax.f32 %v3039, 0.0
    %v3161 = vmax.f32 %v2858, 0.0
    %v3162 = vmax.f32 %v2860, 0.0
    %v3163 = vmax.f32 %v3041, 0.0
    %v3164 = vmax.f32 %v3043, 0.0
    %v3165 = vpack.c.bf16 %v3049, %v3045
    %v3166 = vpack.c.bf16 %v3050, %v3046
    %v3167 = vpack.c.bf16 %v3051, %v3047
    %v3168 = vpack.c.bf16 %v3052, %v3048
    %v3169 = vpack.c.bf16 %v3057, %v3053
    %v3170 = vpack.c.bf16 %v3058, %v3054
    %v3171 = vpack.c.bf16 %v3059, %v3055
    %v3172 = vpack.c.bf16 %v3060, %v3056
    %v3173 = vpack.c.bf16 %v3065, %v3061
    %v3174 = vpack.c.bf16 %v3066, %v3062
    %v3175 = vpack.c.bf16 %v3067, %v3063
    %v3176 = vpack.c.bf16 %v3068, %v3064
    %v3177 = vpack.c.bf16 %v3073, %v3069
    %v3178 = vpack.c.bf16 %v3074, %v3070
    %v3179 = vpack.c.bf16 %v3075, %v3071
    %v3180 = vpack.c.bf16 %v3076, %v3072
    %v3181 = vpack.c.bf16 %v3081, %v3077
    %v3182 = vpack.c.bf16 %v3082, %v3078
    %v3183 = vpack.c.bf16 %v3083, %v3079
    %v3184 = vpack.c.bf16 %v3084, %v3080
    %v3185 = vpack.c.bf16 %v3089, %v3085
    %v3186 = vpack.c.bf16 %v3090, %v3086
    %v3187 = vpack.c.bf16 %v3091, %v3087
    %v3188 = vpack.c.bf16 %v3092, %v3088
    %v3189 = vpack.c.bf16 %v3097, %v3093
    %v3190 = vpack.c.bf16 %v3098, %v3094
    %v3191 = vpack.c.bf16 %v3099, %v3095
    %v3192 = vpack.c.bf16 %v3100, %v3096
    %v3193 = vpack.c.bf16 %v3105, %v3101
    %v3194 = vpack.c.bf16 %v3106, %v3102
    %v3195 = vpack.c.bf16 %v3107, %v3103
    %v3196 = vpack.c.bf16 %v3108, %v3104
    %v3197 = vpack.c.bf16 %v3113, %v3109
    %v3198 = vpack.c.bf16 %v3114, %v3110
    %v3199 = vpack.c.bf16 %v3115, %v3111
    %v3200 = vpack.c.bf16 %v3116, %v3112
    %v3201 = vpack.c.bf16 %v3121, %v3117
    %v3202 = vpack.c.bf16 %v3122, %v3118
    %v3203 = vpack.c.bf16 %v3123, %v3119
    %v3204 = vpack.c.bf16 %v3124, %v3120
    %v3205 = vpack.c.bf16 %v3129, %v3125
    %v3206 = vpack.c.bf16 %v3130, %v3126
    %v3207 = vpack.c.bf16 %v3131, %v3127
    %v3208 = vpack.c.bf16 %v3132, %v3128
    %v3209 = vpack.c.bf16 %v3137, %v3133
    %v3210 = vpack.c.bf16 %v3138, %v3134
    %v3211 = vpack.c.bf16 %v3139, %v3135
    %v3212 = vpack.c.bf16 %v3140, %v3136
    %v3213 = vpack.c.bf16 %v3145, %v3141
    %v3214 = vpack.c.bf16 %v3146, %v3142
    %v3215 = vpack.c.bf16 %v3147, %v3143
    %v3216 = vpack.c.bf16 %v3148, %v3144
    %v3217 = vpack.c.bf16 %v3153, %v3149
    %v3218 = vpack.c.bf16 %v3154, %v3150
    %v3219 = vpack.c.bf16 %v3155, %v3151
    %v3220 = vpack.c.bf16 %v3156, %v3152
    %v3221 = vpack.c.bf16 %v3161, %v3157
    %v3222 = vpack.c.bf16 %v3162, %v3158
    %v3223 = vpack.c.bf16 %v3163, %v3159
    %v3224 = vpack.c.bf16 %v3164, %v3160
    %v3226 = vlaneseq
    %v3227 = vshrl.u32 %v3226, 7
    %v3228 = vsub.s32 0, %v3227
    %v3229 = vrot.slane %v464, %v3228
    %v3295 = vunpack.c.l.b16 %v400
    %v3296 = vunpack.c.l.b16 %v401
    %v3297 = vunpack.c.l.b16 %v402
    %v3298 = vunpack.c.l.b16 %v403
    %v3299 = vunpack.c.l.b16 %v404
    %v3300 = vunpack.c.l.b16 %v405
    %v3301 = vunpack.c.l.b16 %v406
    %v3302 = vunpack.c.l.b16 %v407
    %v3303 = vunpack.c.l.b16 %v408
    %v3304 = vunpack.c.l.b16 %v409
    %v3305 = vunpack.c.l.b16 %v410
    %v3306 = vunpack.c.l.b16 %v411
    %v3307 = vunpack.c.l.b16 %v412
    %v3308 = vunpack.c.l.b16 %v413
    %v3309 = vunpack.c.l.b16 %v414
    %v3310 = vunpack.c.l.b16 %v415
    %v3311 = vunpack.c.l.b16 %v416
    %v3312 = vunpack.c.l.b16 %v417
    %v3313 = vunpack.c.l.b16 %v418
    %v3314 = vunpack.c.l.b16 %v419
    %v3315 = vunpack.c.l.b16 %v420
    %v3316 = vunpack.c.l.b16 %v421
    %v3317 = vunpack.c.l.b16 %v422
    %v3318 = vunpack.c.l.b16 %v423
    %v3319 = vunpack.c.l.b16 %v424
    %v3320 = vunpack.c.l.b16 %v425
    %v3321 = vunpack.c.l.b16 %v426
    %v3322 = vunpack.c.l.b16 %v427
    %v3323 = vunpack.c.l.b16 %v428
    %v3324 = vunpack.c.l.b16 %v429
    %v3325 = vunpack.c.l.b16 %v430
    %v3326 = vunpack.c.l.b16 %v431
    %v3327 = vunpack.c.l.b16 %v432
    %v3328 = vunpack.c.l.b16 %v433
    %v3329 = vunpack.c.l.b16 %v434
    %v3330 = vunpack.c.l.b16 %v435
    %v3331 = vunpack.c.l.b16 %v436
    %v3332 = vunpack.c.l.b16 %v437
    %v3333 = vunpack.c.l.b16 %v438
    %v3334 = vunpack.c.l.b16 %v439
    %v3335 = vunpack.c.l.b16 %v440
    %v3336 = vunpack.c.l.b16 %v441
    %v3337 = vunpack.c.l.b16 %v442
    %v3338 = vunpack.c.l.b16 %v443
    %v3339 = vunpack.c.l.b16 %v444
    %v3340 = vunpack.c.l.b16 %v445
    %v3341 = vunpack.c.l.b16 %v446
    %v3342 = vunpack.c.l.b16 %v447
    %v3343 = vunpack.c.l.b16 %v448
    %v3344 = vunpack.c.l.b16 %v449
    %v3345 = vunpack.c.l.b16 %v450
    %v3346 = vunpack.c.l.b16 %v451
    %v3347 = vunpack.c.l.b16 %v452
    %v3348 = vunpack.c.l.b16 %v453
    %v3349 = vunpack.c.l.b16 %v454
    %v3350 = vunpack.c.l.b16 %v455
    %v3351 = vunpack.c.l.b16 %v456
    %v3352 = vunpack.c.l.b16 %v457
    %v3353 = vunpack.c.l.b16 %v458
    %v3354 = vunpack.c.l.b16 %v459
    %v3355 = vunpack.c.l.b16 %v460
    %v3356 = vunpack.c.l.b16 %v461
    %v3357 = vunpack.c.l.b16 %v462
    %v3358 = vunpack.c.l.b16 %v463
    %v3359 = vpack.c.b16 %v3296, %v3295
    %v3360 = vpack.c.b16 %v3298, %v3297
    %v3361 = vpack.c.b16 %v3300, %v3299
    %v3362 = vpack.c.b16 %v3302, %v3301
    %v3363 = vpack.c.b16 %v3304, %v3303
    %v3364 = vpack.c.b16 %v3306, %v3305
    %v3365 = vpack.c.b16 %v3308, %v3307
    %v3366 = vpack.c.b16 %v3310, %v3309
    %v3367 = vpack.c.b16 %v3312, %v3311
    %v3368 = vpack.c.b16 %v3314, %v3313
    %v3369 = vpack.c.b16 %v3316, %v3315
    %v3370 = vpack.c.b16 %v3318, %v3317
    %v3371 = vpack.c.b16 %v3320, %v3319
    %v3372 = vpack.c.b16 %v3322, %v3321
    %v3373 = vpack.c.b16 %v3324, %v3323
    %v3374 = vpack.c.b16 %v3326, %v3325
    %v3375 = vpack.c.b16 %v3328, %v3327
    %v3376 = vpack.c.b16 %v3330, %v3329
    %v3377 = vpack.c.b16 %v3332, %v3331
    %v3378 = vpack.c.b16 %v3334, %v3333
    %v3379 = vpack.c.b16 %v3336, %v3335
    %v3380 = vpack.c.b16 %v3338, %v3337
    %v3381 = vpack.c.b16 %v3340, %v3339
    %v3382 = vpack.c.b16 %v3342, %v3341
    %v3383 = vpack.c.b16 %v3344, %v3343
    %v3384 = vpack.c.b16 %v3346, %v3345
    %v3385 = vpack.c.b16 %v3348, %v3347
    %v3386 = vpack.c.b16 %v3350, %v3349
    %v3387 = vpack.c.b16 %v3352, %v3351
    %v3388 = vpack.c.b16 %v3354, %v3353
    %v3389 = vpack.c.b16 %v3356, %v3355
    %v3390 = vpack.c.b16 %v3358, %v3357
    %3423 = vmatprep.subr.bf16.mxu0 0
    %3424 = vmatpush1.bf16.msra.mxu0 %v3359
    %3425 = vmatprep.subr.bf16.mxu0 0
    %3426 = vmatpush1.bf16.msra.mxu0 %v3360
    %3427 = vmatprep.subr.bf16.mxu0 0
    %3428 = vmatpush1.bf16.msra.mxu0 %v3361
    %3429 = vmatprep.subr.bf16.mxu0 0
    %3430 = vmatpush1.bf16.msra.mxu0 %v3362
    %3431 = vmatprep.subr.bf16.mxu0 0
    %3432 = vmatpush1.bf16.msra.mxu0 %v3363
    %3433 = vmatprep.subr.bf16.mxu0 0
    %3434 = vmatpush1.bf16.msra.mxu0 %v3364
    %3435 = vmatprep.subr.bf16.mxu0 0
    %3436 = vmatpush1.bf16.msra.mxu0 %v3365
    %3437 = vmatprep.subr.bf16.mxu0 0
    %3438 = vmatpush1.bf16.msra.mxu0 %v3366
    %3439 = vmatprep.subr.bf16.mxu0 0
    %3440 = vmatpush1.bf16.msra.mxu0 %v3367
    %3441 = vmatprep.subr.bf16.mxu0 0
    %3442 = vmatpush1.bf16.msra.mxu0 %v3368
    %3443 = vmatprep.subr.bf16.mxu0 0
    %3444 = vmatpush1.bf16.msra.mxu0 %v3369
    %3445 = vmatprep.subr.bf16.mxu0 0
    %3446 = vmatpush1.bf16.msra.mxu0 %v3370
    %3447 = vmatprep.subr.bf16.mxu0 0
    %3448 = vmatpush1.bf16.msra.mxu0 %v3371
    %3449 = vmatprep.subr.bf16.mxu0 0
    %3450 = vmatpush1.bf16.msra.mxu0 %v3372
    %3451 = vmatprep.subr.bf16.mxu0 0
    %3452 = vmatpush1.bf16.msra.mxu0 %v3373
    %3453 = vmatprep.subr.bf16.mxu0 0
    %3454 = vmatpush1.bf16.msra.mxu0 %v3374
    %3455 = vmatprep.mubr.bf16.mxu0 %v3166
    %3456 = vmatmul.mubr.bf16.gmra.mrb[0].mxu0 %v3165
    %v3457 = vpop.f32.mrb[0].mxu0
    %v3458 = vadd.f32 %v3229, %v3457
    %v3459 = vpop.f32.mrb[0].mxu0
    %v3460 = vpop.f32.mrb[0].mxu0
    %v3461 = vadd.f32 %v3229, %v3460
    %v3462 = vpop.f32.mrb[0].mxu0
    %3463 = vmatprep.mubr.bf16.mxu0 %v3170
    %3464 = vmatmul.mubr.bf16.gmra.mrb[0].mxu0 %v3169
    %v3465 = vpop.f32.mrb[0].mxu0
    %v3466 = vadd.f32 %v3229, %v3465
    %v3467 = vpop.f32.mrb[0].mxu0
    %v3468 = vpop.f32.mrb[0].mxu0
    %v3469 = vadd.f32 %v3229, %v3468
    %v3470 = vpop.f32.mrb[0].mxu0
    %3471 = vmatprep.mubr.bf16.mxu0 %v3174
    %3472 = vmatmul.mubr.bf16.gmra.mrb[0].mxu0 %v3173
    %v3473 = vpop.f32.mrb[0].mxu0
    %v3474 = vadd.f32 %v3229, %v3473
    %v3475 = vpop.f32.mrb[0].mxu0
    %v3476 = vpop.f32.mrb[0].mxu0
    %v3477 = vadd.f32 %v3229, %v3476
    %v3478 = vpop.f32.mrb[0].mxu0
    %3479 = vmatprep.mubr.bf16.mxu0 %v3178
    %3480 = vmatmul.mubr.bf16.gmra.mrb[0].mxu0 %v3177
    %v3481 = vpop.f32.mrb[0].mxu0
    %v3482 = vadd.f32 %v3229, %v3481
    %v3483 = vpop.f32.mrb[0].mxu0
    %v3484 = vpop.f32.mrb[0].mxu0
    %v3485 = vadd.f32 %v3229, %v3484
    %v3486 = vpop.f32.mrb[0].mxu0
    %3487 = vmatprep.mubr.bf16.mxu0 %v3182
    %3488 = vmatmul.mubr.bf16.gmra.mrb[0].mxu0 %v3181
    %v3489 = vpop.f32.mrb[0].mxu0
    %v3490 = vadd.f32 %v3229, %v3489
    %v3491 = vpop.f32.mrb[0].mxu0
    %v3492 = vpop.f32.mrb[0].mxu0
    %v3493 = vadd.f32 %v3229, %v3492
    %v3494 = vpop.f32.mrb[0].mxu0
    %3495 = vmatprep.mubr.bf16.mxu0 %v3186
    %3496 = vmatmul.mubr.bf16.gmra.mrb[0].mxu0 %v3185
    %v3497 = vpop.f32.mrb[0].mxu0
    %v3498 = vadd.f32 %v3229, %v3497
    %v3499 = vpop.f32.mrb[0].mxu0
    %v3500 = vpop.f32.mrb[0].mxu0
    %v3501 = vadd.f32 %v3229, %v3500
    %v3502 = vpop.f32.mrb[0].mxu0
    %3503 = vmatprep.mubr.bf16.mxu0 %v3190
    %3504 = vmatmul.mubr.bf16.gmra.mrb[0].mxu0 %v3189
    %v3505 = vpop.f32.mrb[0].mxu0
    %v3506 = vadd.f32 %v3229, %v3505
    %v3507 = vpop.f32.mrb[0].mxu0
    %v3508 = vpop.f32.mrb[0].mxu0
    %v3509 = vadd.f32 %v3229, %v3508
    %v3510 = vpop.f32.mrb[0].mxu0
    %3511 = vmatprep.mubr.bf16.mxu0 %v3194
    %3512 = vmatmul.mubr.bf16.gmra.mrb[0].mxu0 %v3193
    %v3513 = vpop.f32.mrb[0].mxu0
    %v3514 = vadd.f32 %v3229, %v3513
    %v3515 = vpop.f32.mrb[0].mxu0
    %v3516 = vpop.f32.mrb[0].mxu0
    %v3517 = vadd.f32 %v3229, %v3516
    %v3518 = vpop.f32.mrb[0].mxu0
    %3519 = vmatprep.mubr.bf16.mxu0 %v3198
    %3520 = vmatmul.mubr.bf16.gmra.mrb[0].mxu0 %v3197
    %v3521 = vpop.f32.mrb[0].mxu0
    %v3522 = vadd.f32 %v3229, %v3521
    %v3523 = vpop.f32.mrb[0].mxu0
    %v3524 = vpop.f32.mrb[0].mxu0
    %v3525 = vadd.f32 %v3229, %v3524
    %v3526 = vpop.f32.mrb[0].mxu0
    %3527 = vmatprep.mubr.bf16.mxu0 %v3202
    %3528 = vmatmul.mubr.bf16.gmra.mrb[0].mxu0 %v3201
    %v3529 = vpop.f32.mrb[0].mxu0
    %v3530 = vadd.f32 %v3229, %v3529
    %v3531 = vpop.f32.mrb[0].mxu0
    %v3532 = vpop.f32.mrb[0].mxu0
    %v3533 = vadd.f32 %v3229, %v3532
    %v3534 = vpop.f32.mrb[0].mxu0
    %3535 = vmatprep.mubr.bf16.mxu0 %v3206
    %3536 = vmatmul.mubr.bf16.gmra.mrb[0].mxu0 %v3205
    %v3537 = vpop.f32.mrb[0].mxu0
    %v3538 = vadd.f32 %v3229, %v3537
    %v3539 = vpop.f32.mrb[0].mxu0
    %v3540 = vpop.f32.mrb[0].mxu0
    %v3541 = vadd.f32 %v3229, %v3540
    %v3542 = vpop.f32.mrb[0].mxu0
    %3543 = vmatprep.mubr.bf16.mxu0 %v3210
    %3544 = vmatmul.mubr.bf16.gmra.mrb[0].mxu0 %v3209
    %v3545 = vpop.f32.mrb[0].mxu0
    %v3546 = vadd.f32 %v3229, %v3545
    %v3547 = vpop.f32.mrb[0].mxu0
    %v3548 = vpop.f32.mrb[0].mxu0
    %v3549 = vadd.f32 %v3229, %v3548
    %v3550 = vpop.f32.mrb[0].mxu0
    %3551 = vmatprep.mubr.bf16.mxu0 %v3214
    %3552 = vmatmul.mubr.bf16.gmra.mrb[0].mxu0 %v3213
    %v3553 = vpop.f32.mrb[0].mxu0
    %v3554 = vadd.f32 %v3229, %v3553
    %v3555 = vpop.f32.mrb[0].mxu0
    %v3556 = vpop.f32.mrb[0].mxu0
    %v3557 = vadd.f32 %v3229, %v3556
    %v3558 = vpop.f32.mrb[0].mxu0
    %3559 = vmatprep.mubr.bf16.mxu0 %v3218
    %3560 = vmatmul.mubr.bf16.gmra.mrb[0].mxu0 %v3217
    %v3561 = vpop.f32.mrb[0].mxu0
    %v3562 = vadd.f32 %v3229, %v3561
    %v3563 = vpop.f32.mrb[0].mxu0
    %v3564 = vpop.f32.mrb[0].mxu0
    %v3565 = vadd.f32 %v3229, %v3564
    %v3566 = vpop.f32.mrb[0].mxu0
    %3567 = vmatprep.mubr.bf16.mxu0 %v3222
    %3568 = vmatmul.mubr.bf16.gmra.mrb[0].mxu0 %v3221
    %v3569 = vpop.f32.mrb[0].mxu0
    %v3570 = vadd.f32 %v3229, %v3569
    %v3571 = vpop.f32.mrb[0].mxu0
    %v3572 = vpop.f32.mrb[0].mxu0
    %v3573 = vadd.f32 %v3229, %v3572
    %v3574 = vpop.f32.mrb[0].mxu0
    %3575 = vdwg.mxu0
    %3576 = vmatprep.subr.bf16.mxu0 0
    %3577 = vmatpush1.bf16.msra.mxu0 %v3375
    %3578 = vmatprep.subr.bf16.mxu0 0
    %3579 = vmatpush1.bf16.msra.mxu0 %v3376
    %3580 = vmatprep.subr.bf16.mxu0 0
    %3581 = vmatpush1.bf16.msra.mxu0 %v3377
    %3582 = vmatprep.subr.bf16.mxu0 0
    %3583 = vmatpush1.bf16.msra.mxu0 %v3378
    %3584 = vmatprep.subr.bf16.mxu0 0
    %3585 = vmatpush1.bf16.msra.mxu0 %v3379
    %3586 = vmatprep.subr.bf16.mxu0 0
    %3587 = vmatpush1.bf16.msra.mxu0 %v3380
    %3588 = vmatprep.subr.bf16.mxu0 0
    %3589 = vmatpush1.bf16.msra.mxu0 %v3381
    %3590 = vmatprep.subr.bf16.mxu0 0
    %3591 = vmatpush1.bf16.msra.mxu0 %v3382
    %3592 = vmatprep.subr.bf16.mxu0 0
    %3593 = vmatpush1.bf16.msra.mxu0 %v3383
    %3594 = vmatprep.subr.bf16.mxu0 0
    %3595 = vmatpush1.bf16.msra.mxu0 %v3384
    %3596 = vmatprep.subr.bf16.mxu0 0
    %3597 = vmatpush1.bf16.msra.mxu0 %v3385
    %3598 = vmatprep.subr.bf16.mxu0 0
    %3599 = vmatpush1.bf16.msra.mxu0 %v3386
    %3600 = vmatprep.subr.bf16.mxu0 0
    %3601 = vmatpush1.bf16.msra.mxu0 %v3387
    %3602 = vmatprep.subr.bf16.mxu0 0
    %3603 = vmatpush1.bf16.msra.mxu0 %v3388
    %3604 = vmatprep.subr.bf16.mxu0 0
    %3605 = vmatpush1.bf16.msra.mxu0 %v3389
    %3606 = vmatprep.subr.bf16.mxu0 0
    %3607 = vmatpush1.bf16.msra.mxu0 %v3390
    %3608 = vmatprep.mubr.bf16.mxu0 %v3168
    %3609 = vmatmul.mubr.bf16.gmra.mrb[0].mxu0 %v3167
    %v3610 = vpop.f32.mrb[0].mxu0
    %v3611 = vadd.f32 %v3458, %v3610
    %v3612 = vpop.f32.mrb[0].mxu0
    %v3613 = vpop.f32.mrb[0].mxu0
    %v3614 = vadd.f32 %v3461, %v3613
    %v3615 = vpop.f32.mrb[0].mxu0
    %3616 = vmatprep.mubr.bf16.mxu0 %v3172
    %3617 = vmatmul.mubr.bf16.gmra.mrb[0].mxu0 %v3171
    %v3618 = vpop.f32.mrb[0].mxu0
    %v3619 = vadd.f32 %v3466, %v3618
    %v3620 = vpop.f32.mrb[0].mxu0
    %v3621 = vpop.f32.mrb[0].mxu0
    %v3622 = vadd.f32 %v3469, %v3621
    %v3623 = vpop.f32.mrb[0].mxu0
    %3624 = vmatprep.mubr.bf16.mxu0 %v3176
    %3625 = vmatmul.mubr.bf16.gmra.mrb[0].mxu0 %v3175
    %v3626 = vpop.f32.mrb[0].mxu0
    %v3627 = vadd.f32 %v3474, %v3626
    %v3628 = vpop.f32.mrb[0].mxu0
    %v3629 = vpop.f32.mrb[0].mxu0
    %v3630 = vadd.f32 %v3477, %v3629
    %v3631 = vpop.f32.mrb[0].mxu0
    %3632 = vmatprep.mubr.bf16.mxu0 %v3180
    %3633 = vmatmul.mubr.bf16.gmra.mrb[0].mxu0 %v3179
    %v3634 = vpop.f32.mrb[0].mxu0
    %v3635 = vadd.f32 %v3482, %v3634
    %v3636 = vpop.f32.mrb[0].mxu0
    %v3637 = vpop.f32.mrb[0].mxu0
    %v3638 = vadd.f32 %v3485, %v3637
    %v3639 = vpop.f32.mrb[0].mxu0
    %3640 = vmatprep.mubr.bf16.mxu0 %v3184
    %3641 = vmatmul.mubr.bf16.gmra.mrb[0].mxu0 %v3183
    %v3642 = vpop.f32.mrb[0].mxu0
    %v3643 = vadd.f32 %v3490, %v3642
    %v3644 = vpop.f32.mrb[0].mxu0
    %v3645 = vpop.f32.mrb[0].mxu0
    %v3646 = vadd.f32 %v3493, %v3645
    %v3647 = vpop.f32.mrb[0].mxu0
    %3648 = vmatprep.mubr.bf16.mxu0 %v3188
    %3649 = vmatmul.mubr.bf16.gmra.mrb[0].mxu0 %v3187
    %v3650 = vpop.f32.mrb[0].mxu0
    %v3651 = vadd.f32 %v3498, %v3650
    %v3652 = vpop.f32.mrb[0].mxu0
    %v3653 = vpop.f32.mrb[0].mxu0
    %v3654 = vadd.f32 %v3501, %v3653
    %v3655 = vpop.f32.mrb[0].mxu0
    %3656 = vmatprep.mubr.bf16.mxu0 %v3192
    %3657 = vmatmul.mubr.bf16.gmra.mrb[0].mxu0 %v3191
    %v3658 = vpop.f32.mrb[0].mxu0
    %v3659 = vadd.f32 %v3506, %v3658
    %v3660 = vpop.f32.mrb[0].mxu0
    %v3661 = vpop.f32.mrb[0].mxu0
    %v3662 = vadd.f32 %v3509, %v3661
    %v3663 = vpop.f32.mrb[0].mxu0
    %3664 = vmatprep.mubr.bf16.mxu0 %v3196
    %3665 = vmatmul.mubr.bf16.gmra.mrb[0].mxu0 %v3195
    %v3666 = vpop.f32.mrb[0].mxu0
    %v3667 = vadd.f32 %v3514, %v3666
    %v3668 = vpop.f32.mrb[0].mxu0
    %v3669 = vpop.f32.mrb[0].mxu0
    %v3670 = vadd.f32 %v3517, %v3669
    %v3671 = vpop.f32.mrb[0].mxu0
    %3672 = vmatprep.mubr.bf16.mxu0 %v3200
    %3673 = vmatmul.mubr.bf16.gmra.mrb[0].mxu0 %v3199
    %v3674 = vpop.f32.mrb[0].mxu0
    %v3675 = vadd.f32 %v3522, %v3674
    %v3676 = vpop.f32.mrb[0].mxu0
    %v3677 = vpop.f32.mrb[0].mxu0
    %v3678 = vadd.f32 %v3525, %v3677
    %v3679 = vpop.f32.mrb[0].mxu0
    %3680 = vmatprep.mubr.bf16.mxu0 %v3204
    %3681 = vmatmul.mubr.bf16.gmra.mrb[0].mxu0 %v3203
    %v3682 = vpop.f32.mrb[0].mxu0
    %v3683 = vadd.f32 %v3530, %v3682
    %v3684 = vpop.f32.mrb[0].mxu0
    %v3685 = vpop.f32.mrb[0].mxu0
    %v3686 = vadd.f32 %v3533, %v3685
    %v3687 = vpop.f32.mrb[0].mxu0
    %3688 = vmatprep.mubr.bf16.mxu0 %v3208
    %3689 = vmatmul.mubr.bf16.gmra.mrb[0].mxu0 %v3207
    %v3690 = vpop.f32.mrb[0].mxu0
    %v3691 = vadd.f32 %v3538, %v3690
    %v3692 = vpop.f32.mrb[0].mxu0
    %v3693 = vpop.f32.mrb[0].mxu0
    %v3694 = vadd.f32 %v3541, %v3693
    %v3695 = vpop.f32.mrb[0].mxu0
    %3696 = vmatprep.mubr.bf16.mxu0 %v3212
    %3697 = vmatmul.mubr.bf16.gmra.mrb[0].mxu0 %v3211
    %v3698 = vpop.f32.mrb[0].mxu0
    %v3699 = vadd.f32 %v3546, %v3698
    %v3700 = vpop.f32.mrb[0].mxu0
    %v3701 = vpop.f32.mrb[0].mxu0
    %v3702 = vadd.f32 %v3549, %v3701
    %v3703 = vpop.f32.mrb[0].mxu0
    %3704 = vmatprep.mubr.bf16.mxu0 %v3216
    %3705 = vmatmul.mubr.bf16.gmra.mrb[0].mxu0 %v3215
    %v3706 = vpop.f32.mrb[0].mxu0
    %v3707 = vadd.f32 %v3554, %v3706
    %v3708 = vpop.f32.mrb[0].mxu0
    %v3709 = vpop.f32.mrb[0].mxu0
    %v3710 = vadd.f32 %v3557, %v3709
    %v3711 = vpop.f32.mrb[0].mxu0
    %3712 = vmatprep.mubr.bf16.mxu0 %v3220
    %3713 = vmatmul.mubr.bf16.gmra.mrb[0].mxu0 %v3219
    %v3714 = vpop.f32.mrb[0].mxu0
    %v3715 = vadd.f32 %v3562, %v3714
    %v3716 = vpop.f32.mrb[0].mxu0
    %v3717 = vpop.f32.mrb[0].mxu0
    %v3718 = vadd.f32 %v3565, %v3717
    %v3719 = vpop.f32.mrb[0].mxu0
    %3720 = vmatprep.mubr.bf16.mxu0 %v3224
    %3721 = vmatmul.mubr.bf16.gmra.mrb[0].mxu0 %v3223
    %v3722 = vpop.f32.mrb[0].mxu0
    %v3723 = vadd.f32 %v3570, %v3722
    %v3724 = vpop.f32.mrb[0].mxu0
    %v3725 = vpop.f32.mrb[0].mxu0
    %v3726 = vadd.f32 %v3573, %v3725
    %v3727 = vpop.f32.mrb[0].mxu0
    %3728 = vdwg.mxu0
    %v3729 = vadd.f32 %v2453, %v3611
    %v3730 = vadd.f32 %v2454, %v3614
    %v3731 = vadd.f32 %v2455, %v3619
    %v3732 = vadd.f32 %v2456, %v3622
    %v3733 = vadd.f32 %v2457, %v3627
    %v3734 = vadd.f32 %v2458, %v3630
    %v3735 = vadd.f32 %v2459, %v3635
    %v3736 = vadd.f32 %v2460, %v3638
    %v3737 = vadd.f32 %v2461, %v3643
    %v3738 = vadd.f32 %v2462, %v3646
    %v3739 = vadd.f32 %v2463, %v3651
    %v3740 = vadd.f32 %v2464, %v3654
    %v3741 = vadd.f32 %v2465, %v3659
    %v3742 = vadd.f32 %v2466, %v3662
    %v3743 = vadd.f32 %v2467, %v3667
    %v3744 = vadd.f32 %v2468, %v3670
    %v3745 = vadd.f32 %v2469, %v3675
    %v3746 = vadd.f32 %v2470, %v3678
    %v3747 = vadd.f32 %v2471, %v3683
    %v3748 = vadd.f32 %v2472, %v3686
    %v3749 = vadd.f32 %v2473, %v3691
    %v3750 = vadd.f32 %v2474, %v3694
    %v3751 = vadd.f32 %v2475, %v3699
    %v3752 = vadd.f32 %v2476, %v3702
    %v3753 = vadd.f32 %v2477, %v3707
    %v3754 = vadd.f32 %v2478, %v3710
    %v3755 = vadd.f32 %v2479, %v3715
    %v3756 = vadd.f32 %v2480, %v3718
    %v3757 = vadd.f32 %v2481, %v3723
    %v3758 = vadd.f32 %v2482, %v3726
    %3759 = vadd.xlane.f32.xlu0 %v3729
    %v3760 = vpop.xlane.xlu0 %3759
    %3761 = vadd.xlane.f32.xlu0 %v3730
    %v3762 = vpop.xlane.xlu0 %3761
    %3763 = vadd.xlane.f32.xlu0 %v3731
    %v3764 = vpop.xlane.xlu0 %3763
    %3765 = vadd.xlane.f32.xlu0 %v3732
    %v3766 = vpop.xlane.xlu0 %3765
    %3767 = vadd.xlane.f32.xlu0 %v3733
    %v3768 = vpop.xlane.xlu0 %3767
    %3769 = vadd.xlane.f32.xlu0 %v3734
    %v3770 = vpop.xlane.xlu0 %3769
    %3771 = vadd.xlane.f32.xlu0 %v3735
    %v3772 = vpop.xlane.xlu0 %3771
    %3773 = vadd.xlane.f32.xlu0 %v3736
    %v3774 = vpop.xlane.xlu0 %3773
    %3775 = vadd.xlane.f32.xlu0 %v3737
    %v3776 = vpop.xlane.xlu0 %3775
    %3777 = vadd.xlane.f32.xlu0 %v3738
    %v3778 = vpop.xlane.xlu0 %3777
    %3779 = vadd.xlane.f32.xlu0 %v3739
    %v3780 = vpop.xlane.xlu0 %3779
    %3781 = vadd.xlane.f32.xlu0 %v3740
    %v3782 = vpop.xlane.xlu0 %3781
    %3783 = vadd.xlane.f32.xlu0 %v3741
    %v3784 = vpop.xlane.xlu0 %3783
    %3785 = vadd.xlane.f32.xlu0 %v3742
    %v3786 = vpop.xlane.xlu0 %3785
    %3787 = vadd.xlane.f32.xlu0 %v3743
    %v3788 = vpop.xlane.xlu0 %3787
    %3789 = vadd.xlane.f32.xlu0 %v3744
    %v3790 = vpop.xlane.xlu0 %3789
    %3791 = vadd.xlane.f32.xlu0 %v3745
    %v3792 = vpop.xlane.xlu0 %3791
    %3793 = vadd.xlane.f32.xlu0 %v3746
    %v3794 = vpop.xlane.xlu0 %3793
    %3795 = vadd.xlane.f32.xlu0 %v3747
    %v3796 = vpop.xlane.xlu0 %3795
    %3797 = vadd.xlane.f32.xlu0 %v3748
    %v3798 = vpop.xlane.xlu0 %3797
    %3799 = vadd.xlane.f32.xlu0 %v3749
    %v3800 = vpop.xlane.xlu0 %3799
    %3801 = vadd.xlane.f32.xlu0 %v3750
    %v3802 = vpop.xlane.xlu0 %3801
    %3803 = vadd.xlane.f32.xlu0 %v3751
    %v3804 = vpop.xlane.xlu0 %3803
    %3805 = vadd.xlane.f32.xlu0 %v3752
    %v3806 = vpop.xlane.xlu0 %3805
    %3807 = vadd.xlane.f32.xlu0 %v3753
    %v3808 = vpop.xlane.xlu0 %3807
    %3809 = vadd.xlane.f32.xlu0 %v3754
    %v3810 = vpop.xlane.xlu0 %3809
    %3811 = vadd.xlane.f32.xlu0 %v3755
    %v3812 = vpop.xlane.xlu0 %3811
    %3813 = vadd.xlane.f32.xlu0 %v3756
    %v3814 = vpop.xlane.xlu0 %3813
    %3815 = vadd.xlane.f32.xlu0 %v3757
    %v3816 = vpop.xlane.xlu0 %3815
    %3817 = vadd.xlane.f32.xlu0 %v3758
    %v3818 = vpop.xlane.xlu0 %3817
    %v3819 = vmul.f32 %v3760, %v2140
    %v3820 = vmul.f32 %v3762, %v2140
    %v3821 = vmul.f32 %v3764, %v2140
    %v3822 = vmul.f32 %v3766, %v2140
    %v3823 = vmul.f32 %v3768, %v2140
    %v3824 = vmul.f32 %v3770, %v2140
    %v3825 = vmul.f32 %v3772, %v2140
    %v3826 = vmul.f32 %v3774, %v2140
    %v3827 = vmul.f32 %v3776, %v2140
    %v3828 = vmul.f32 %v3778, %v2140
    %v3829 = vmul.f32 %v3780, %v2140
    %v3830 = vmul.f32 %v3782, %v2140
    %v3831 = vmul.f32 %v3784, %v2140
    %v3832 = vmul.f32 %v3786, %v2140
    %v3833 = vmul.f32 %v3788, %v2140
    %v3834 = vmul.f32 %v3790, %v2140
    %v3835 = vmul.f32 %v3792, %v2140
    %v3836 = vmul.f32 %v3794, %v2140
    %v3837 = vmul.f32 %v3796, %v2140
    %v3838 = vmul.f32 %v3798, %v2140
    %v3839 = vmul.f32 %v3800, %v2140
    %v3840 = vmul.f32 %v3802, %v2140
    %v3841 = vmul.f32 %v3804, %v2140
    %v3842 = vmul.f32 %v3806, %v2140
    %v3843 = vmul.f32 %v3808, %v2140
    %v3844 = vmul.f32 %v3810, %v2140
    %v3845 = vmul.f32 %v3812, %v2140
    %v3846 = vmul.f32 %v3814, %v2140
    %v3847 = vmul.f32 %v3816, %v2140
    %v3848 = vmul.f32 %v3818, %v2140
    %v3849 = vsub.f32 %v3729, %v3819
    %v3850 = vsub.f32 %v3730, %v3820
    %v3851 = vsub.f32 %v3731, %v3821
    %v3852 = vsub.f32 %v3732, %v3822
    %v3853 = vsub.f32 %v3733, %v3823
    %v3854 = vsub.f32 %v3734, %v3824
    %v3855 = vsub.f32 %v3735, %v3825
    %v3856 = vsub.f32 %v3736, %v3826
    %v3857 = vsub.f32 %v3737, %v3827
    %v3858 = vsub.f32 %v3738, %v3828
    %v3859 = vsub.f32 %v3739, %v3829
    %v3860 = vsub.f32 %v3740, %v3830
    %v3861 = vsub.f32 %v3741, %v3831
    %v3862 = vsub.f32 %v3742, %v3832
    %v3863 = vsub.f32 %v3743, %v3833
    %v3864 = vsub.f32 %v3744, %v3834
    %v3865 = vsub.f32 %v3745, %v3835
    %v3866 = vsub.f32 %v3746, %v3836
    %v3867 = vsub.f32 %v3747, %v3837
    %v3868 = vsub.f32 %v3748, %v3838
    %v3869 = vsub.f32 %v3749, %v3839
    %v3870 = vsub.f32 %v3750, %v3840
    %v3871 = vsub.f32 %v3751, %v3841
    %v3872 = vsub.f32 %v3752, %v3842
    %v3873 = vsub.f32 %v3753, %v3843
    %v3874 = vsub.f32 %v3754, %v3844
    %v3875 = vsub.f32 %v3755, %v3845
    %v3876 = vsub.f32 %v3756, %v3846
    %v3877 = vsub.f32 %v3757, %v3847
    %v3878 = vsub.f32 %v3758, %v3848
    %v3879 = vmul.f32 %v3849, %v3849
    %v3880 = vmul.f32 %v3850, %v3850
    %v3881 = vmul.f32 %v3851, %v3851
    %v3882 = vmul.f32 %v3852, %v3852
    %v3883 = vmul.f32 %v3853, %v3853
    %v3884 = vmul.f32 %v3854, %v3854
    %v3885 = vmul.f32 %v3855, %v3855
    %v3886 = vmul.f32 %v3856, %v3856
    %v3887 = vmul.f32 %v3857, %v3857
    %v3888 = vmul.f32 %v3858, %v3858
    %v3889 = vmul.f32 %v3859, %v3859
    %v3890 = vmul.f32 %v3860, %v3860
    %v3891 = vmul.f32 %v3861, %v3861
    %v3892 = vmul.f32 %v3862, %v3862
    %v3893 = vmul.f32 %v3863, %v3863
    %v3894 = vmul.f32 %v3864, %v3864
    %v3895 = vmul.f32 %v3865, %v3865
    %v3896 = vmul.f32 %v3866, %v3866
    %v3897 = vmul.f32 %v3867, %v3867
    %v3898 = vmul.f32 %v3868, %v3868
    %v3899 = vmul.f32 %v3869, %v3869
    %v3900 = vmul.f32 %v3870, %v3870
    %v3901 = vmul.f32 %v3871, %v3871
    %v3902 = vmul.f32 %v3872, %v3872
    %v3903 = vmul.f32 %v3873, %v3873
    %v3904 = vmul.f32 %v3874, %v3874
    %v3905 = vmul.f32 %v3875, %v3875
    %v3906 = vmul.f32 %v3876, %v3876
    %v3907 = vmul.f32 %v3877, %v3877
    %v3908 = vmul.f32 %v3878, %v3878
    %3909 = vadd.xlane.f32.xlu0 %v3879
    %v3910 = vpop.xlane.xlu0 %3909
    %3911 = vadd.xlane.f32.xlu0 %v3880
    %v3912 = vpop.xlane.xlu0 %3911
    %3913 = vadd.xlane.f32.xlu0 %v3881
    %v3914 = vpop.xlane.xlu0 %3913
    %3915 = vadd.xlane.f32.xlu0 %v3882
    %v3916 = vpop.xlane.xlu0 %3915
    %3917 = vadd.xlane.f32.xlu0 %v3883
    %v3918 = vpop.xlane.xlu0 %3917
    %3919 = vadd.xlane.f32.xlu0 %v3884
    %v3920 = vpop.xlane.xlu0 %3919
    %3921 = vadd.xlane.f32.xlu0 %v3885
    %v3922 = vpop.xlane.xlu0 %3921
    %3923 = vadd.xlane.f32.xlu0 %v3886
    %v3924 = vpop.xlane.xlu0 %3923
    %3925 = vadd.xlane.f32.xlu0 %v3887
    %v3926 = vpop.xlane.xlu0 %3925
    %3927 = vadd.xlane.f32.xlu0 %v3888
    %v3928 = vpop.xlane.xlu0 %3927
    %3929 = vadd.xlane.f32.xlu0 %v3889
    %v3930 = vpop.xlane.xlu0 %3929
    %3931 = vadd.xlane.f32.xlu0 %v3890
    %v3932 = vpop.xlane.xlu0 %3931
    %3933 = vadd.xlane.f32.xlu0 %v3891
    %v3934 = vpop.xlane.xlu0 %3933
    %3935 = vadd.xlane.f32.xlu0 %v3892
    %v3936 = vpop.xlane.xlu0 %3935
    %3937 = vadd.xlane.f32.xlu0 %v3893
    %v3938 = vpop.xlane.xlu0 %3937
    %3939 = vadd.xlane.f32.xlu0 %v3894
    %v3940 = vpop.xlane.xlu0 %3939
    %3941 = vadd.xlane.f32.xlu0 %v3895
    %v3942 = vpop.xlane.xlu0 %3941
    %3943 = vadd.xlane.f32.xlu0 %v3896
    %v3944 = vpop.xlane.xlu0 %3943
    %3945 = vadd.xlane.f32.xlu0 %v3897
    %v3946 = vpop.xlane.xlu0 %3945
    %3947 = vadd.xlane.f32.xlu0 %v3898
    %v3948 = vpop.xlane.xlu0 %3947
    %3949 = vadd.xlane.f32.xlu0 %v3899
    %v3950 = vpop.xlane.xlu0 %3949
    %3951 = vadd.xlane.f32.xlu0 %v3900
    %v3952 = vpop.xlane.xlu0 %3951
    %3953 = vadd.xlane.f32.xlu0 %v3901
    %v3954 = vpop.xlane.xlu0 %3953
    %3955 = vadd.xlane.f32.xlu0 %v3902
    %v3956 = vpop.xlane.xlu0 %3955
    %3957 = vadd.xlane.f32.xlu0 %v3903
    %v3958 = vpop.xlane.xlu0 %3957
    %3959 = vadd.xlane.f32.xlu0 %v3904
    %v3960 = vpop.xlane.xlu0 %3959
    %3961 = vadd.xlane.f32.xlu0 %v3905
    %v3962 = vpop.xlane.xlu0 %3961
    %3963 = vadd.xlane.f32.xlu0 %v3906
    %v3964 = vpop.xlane.xlu0 %3963
    %3965 = vadd.xlane.f32.xlu0 %v3907
    %v3966 = vpop.xlane.xlu0 %3965
    %3967 = vadd.xlane.f32.xlu0 %v3908
    %v3968 = vpop.xlane.xlu0 %3967
    %v3969 = vmul.f32 %v3910, %v2140
    %v3970 = vmul.f32 %v3912, %v2140
    %v3971 = vmul.f32 %v3914, %v2140
    %v3972 = vmul.f32 %v3916, %v2140
    %v3973 = vmul.f32 %v3918, %v2140
    %v3974 = vmul.f32 %v3920, %v2140
    %v3975 = vmul.f32 %v3922, %v2140
    %v3976 = vmul.f32 %v3924, %v2140
    %v3977 = vmul.f32 %v3926, %v2140
    %v3978 = vmul.f32 %v3928, %v2140
    %v3979 = vmul.f32 %v3930, %v2140
    %v3980 = vmul.f32 %v3932, %v2140
    %v3981 = vmul.f32 %v3934, %v2140
    %v3982 = vmul.f32 %v3936, %v2140
    %v3983 = vmul.f32 %v3938, %v2140
    %v3984 = vmul.f32 %v3940, %v2140
    %v3985 = vmul.f32 %v3942, %v2140
    %v3986 = vmul.f32 %v3944, %v2140
    %v3987 = vmul.f32 %v3946, %v2140
    %v3988 = vmul.f32 %v3948, %v2140
    %v3989 = vmul.f32 %v3950, %v2140
    %v3990 = vmul.f32 %v3952, %v2140
    %v3991 = vmul.f32 %v3954, %v2140
    %v3992 = vmul.f32 %v3956, %v2140
    %v3993 = vmul.f32 %v3958, %v2140
    %v3994 = vmul.f32 %v3960, %v2140
    %v3995 = vmul.f32 %v3962, %v2140
    %v3996 = vmul.f32 %v3964, %v2140
    %v3997 = vmul.f32 %v3966, %v2140
    %v3998 = vmul.f32 %v3968, %v2140
    %v3999 = vadd.f32 %v3969, 1e-05
    %v4000 = vadd.f32 %v3970, 1e-05
    %v4001 = vadd.f32 %v3971, 1e-05
    %v4002 = vadd.f32 %v3972, 1e-05
    %v4003 = vadd.f32 %v3973, 1e-05
    %v4004 = vadd.f32 %v3974, 1e-05
    %v4005 = vadd.f32 %v3975, 1e-05
    %v4006 = vadd.f32 %v3976, 1e-05
    %v4007 = vadd.f32 %v3977, 1e-05
    %v4008 = vadd.f32 %v3978, 1e-05
    %v4009 = vadd.f32 %v3979, 1e-05
    %v4010 = vadd.f32 %v3980, 1e-05
    %v4011 = vadd.f32 %v3981, 1e-05
    %v4012 = vadd.f32 %v3982, 1e-05
    %v4013 = vadd.f32 %v3983, 1e-05
    %v4014 = vadd.f32 %v3984, 1e-05
    %v4015 = vadd.f32 %v3985, 1e-05
    %v4016 = vadd.f32 %v3986, 1e-05
    %v4017 = vadd.f32 %v3987, 1e-05
    %v4018 = vadd.f32 %v3988, 1e-05
    %v4019 = vadd.f32 %v3989, 1e-05
    %v4020 = vadd.f32 %v3990, 1e-05
    %v4021 = vadd.f32 %v3991, 1e-05
    %v4022 = vadd.f32 %v3992, 1e-05
    %v4023 = vadd.f32 %v3993, 1e-05
    %v4024 = vadd.f32 %v3994, 1e-05
    %v4025 = vadd.f32 %v3995, 1e-05
    %v4026 = vadd.f32 %v3996, 1e-05
    %v4027 = vadd.f32 %v3997, 1e-05
    %v4028 = vadd.f32 %v3998, 1e-05
    %v4029 = vrsqrt.pop %v3999
    %v4030 = vrsqrt.pop %v4000
    %v4031 = vrsqrt.pop %v4001
    %v4032 = vrsqrt.pop %v4002
    %v4033 = vrsqrt.pop %v4003
    %v4034 = vrsqrt.pop %v4004
    %v4035 = vrsqrt.pop %v4005
    %v4036 = vrsqrt.pop %v4006
    %v4037 = vrsqrt.pop %v4007
    %v4038 = vrsqrt.pop %v4008
    %v4039 = vrsqrt.pop %v4009
    %v4040 = vrsqrt.pop %v4010
    %v4041 = vrsqrt.pop %v4011
    %v4042 = vrsqrt.pop %v4012
    %v4043 = vrsqrt.pop %v4013
    %v4044 = vrsqrt.pop %v4014
    %v4045 = vrsqrt.pop %v4015
    %v4046 = vrsqrt.pop %v4016
    %v4047 = vrsqrt.pop %v4017
    %v4048 = vrsqrt.pop %v4018
    %v4049 = vrsqrt.pop %v4019
    %v4050 = vrsqrt.pop %v4020
    %v4051 = vrsqrt.pop %v4021
    %v4052 = vrsqrt.pop %v4022
    %v4053 = vrsqrt.pop %v4023
    %v4054 = vrsqrt.pop %v4024
    %v4055 = vrsqrt.pop %v4025
    %v4056 = vrsqrt.pop %v4026
    %v4057 = vrsqrt.pop %v4027
    %v4058 = vrsqrt.pop %v4028
    %v4059 = vmul.f32 %v3849, %v4029
    %v4060 = vmul.f32 %v3850, %v4030
    %v4061 = vmul.f32 %v3851, %v4031
    %v4062 = vmul.f32 %v3852, %v4032
    %v4063 = vmul.f32 %v3853, %v4033
    %v4064 = vmul.f32 %v3854, %v4034
    %v4065 = vmul.f32 %v3855, %v4035
    %v4066 = vmul.f32 %v3856, %v4036
    %v4067 = vmul.f32 %v3857, %v4037
    %v4068 = vmul.f32 %v3858, %v4038
    %v4069 = vmul.f32 %v3859, %v4039
    %v4070 = vmul.f32 %v3860, %v4040
    %v4071 = vmul.f32 %v3861, %v4041
    %v4072 = vmul.f32 %v3862, %v4042
    %v4073 = vmul.f32 %v3863, %v4043
    %v4074 = vmul.f32 %v3864, %v4044
    %v4075 = vmul.f32 %v3865, %v4045
    %v4076 = vmul.f32 %v3866, %v4046
    %v4077 = vmul.f32 %v3867, %v4047
    %v4078 = vmul.f32 %v3868, %v4048
    %v4079 = vmul.f32 %v3869, %v4049
    %v4080 = vmul.f32 %v3870, %v4050
    %v4081 = vmul.f32 %v3871, %v4051
    %v4082 = vmul.f32 %v3872, %v4052
    %v4083 = vmul.f32 %v3873, %v4053
    %v4084 = vmul.f32 %v3874, %v4054
    %v4085 = vmul.f32 %v3875, %v4055
    %v4086 = vmul.f32 %v3876, %v4056
    %v4087 = vmul.f32 %v3877, %v4057
    %v4088 = vmul.f32 %v3878, %v4058
    %v4090 = vlaneseq
    %v4091 = vshrl.u32 %v4090, 7
    %v4092 = vsub.s32 0, %v4091
    %v4093 = vrot.slane %v467, %v4092
    %v4095 = vmul.f32 %v4059, %v4093
    %v4096 = vmul.f32 %v4060, %v4093
    %v4097 = vmul.f32 %v4061, %v4093
    %v4098 = vmul.f32 %v4062, %v4093
    %v4099 = vmul.f32 %v4063, %v4093
    %v4100 = vmul.f32 %v4064, %v4093
    %v4101 = vmul.f32 %v4065, %v4093
    %v4102 = vmul.f32 %v4066, %v4093
    %v4103 = vmul.f32 %v4067, %v4093
    %v4104 = vmul.f32 %v4068, %v4093
    %v4105 = vmul.f32 %v4069, %v4093
    %v4106 = vmul.f32 %v4070, %v4093
    %v4107 = vmul.f32 %v4071, %v4093
    %v4108 = vmul.f32 %v4072, %v4093
    %v4109 = vmul.f32 %v4073, %v4093
    %v4110 = vmul.f32 %v4074, %v4093
    %v4111 = vmul.f32 %v4075, %v4093
    %v4112 = vmul.f32 %v4076, %v4093
    %v4113 = vmul.f32 %v4077, %v4093
    %v4114 = vmul.f32 %v4078, %v4093
    %v4115 = vmul.f32 %v4079, %v4093
    %v4116 = vmul.f32 %v4080, %v4093
    %v4117 = vmul.f32 %v4081, %v4093
    %v4118 = vmul.f32 %v4082, %v4093
    %v4119 = vmul.f32 %v4083, %v4093
    %v4120 = vmul.f32 %v4084, %v4093
    %v4121 = vmul.f32 %v4085, %v4093
    %v4122 = vmul.f32 %v4086, %v4093
    %v4123 = vmul.f32 %v4087, %v4093
    %v4124 = vmul.f32 %v4088, %v4093
    %v4126 = vlaneseq
    %v4127 = vshrl.u32 %v4126, 7
    %v4128 = vsub.s32 0, %v4127
    %v4129 = vrot.slane %v468, %v4128
    %v4131 = vadd.f32 %v4095, %v4129
    %v4132 = vadd.f32 %v4096, %v4129
    %v4133 = vadd.f32 %v4097, %v4129
    %v4134 = vadd.f32 %v4098, %v4129
    %v4135 = vadd.f32 %v4099, %v4129
    %v4136 = vadd.f32 %v4100, %v4129
    %v4137 = vadd.f32 %v4101, %v4129
    %v4138 = vadd.f32 %v4102, %v4129
    %v4139 = vadd.f32 %v4103, %v4129
    %v4140 = vadd.f32 %v4104, %v4129
    %v4141 = vadd.f32 %v4105, %v4129
    %v4142 = vadd.f32 %v4106, %v4129
    %v4143 = vadd.f32 %v4107, %v4129
    %v4144 = vadd.f32 %v4108, %v4129
    %v4145 = vadd.f32 %v4109, %v4129
    %v4146 = vadd.f32 %v4110, %v4129
    %v4147 = vadd.f32 %v4111, %v4129
    %v4148 = vadd.f32 %v4112, %v4129
    %v4149 = vadd.f32 %v4113, %v4129
    %v4150 = vadd.f32 %v4114, %v4129
    %v4151 = vadd.f32 %v4115, %v4129
    %v4152 = vadd.f32 %v4116, %v4129
    %v4153 = vadd.f32 %v4117, %v4129
    %v4154 = vadd.f32 %v4118, %v4129
    %v4155 = vadd.f32 %v4119, %v4129
    %v4156 = vadd.f32 %v4120, %v4129
    %v4157 = vadd.f32 %v4121, %v4129
    %v4158 = vadd.f32 %v4122, %v4129
    %v4159 = vadd.f32 %v4123, %v4129
    %v4160 = vadd.f32 %v4124, %v4129
    %v4161 = vld [vmem:[%s77] sm:$0xf]
    %v4162 = vld [vmem:[%s77 + $0x4] sm:$0xf]
    %v4163 = vld [vmem:[%s77 + $0x8] sm:$0xf]
    %v4164 = vld [vmem:[%s77 + $0xc] sm:$0xf]
    %v4165 = vld [vmem:[%s77 + $0x10] sm:$0xf]
    %v4166 = vld [vmem:[%s77 + $0x14] sm:$0xf]
    %v4167 = vld [vmem:[%s77 + $0x18] sm:$0xf]
    %v4168 = vld [vmem:[%s77 + $0x1c] sm:$0xf]
    %v4169 = vld [vmem:[%s77 + $0x20] sm:$0xf]
    %v4170 = vld [vmem:[%s77 + $0x24] sm:$0xf]
    %v4171 = vld [vmem:[%s77 + $0x28] sm:$0xf]
    %v4172 = vld [vmem:[%s77 + $0x2c] sm:$0xf]
    %v4173 = vld [vmem:[%s77 + $0x30] sm:$0xf]
    %v4174 = vld [vmem:[%s77 + $0x34] sm:$0xf]
    %v4175 = vld [vmem:[%s77 + $0x38] sm:$0xf]
    %v4176 = vld [vmem:[%s77 + $0x3c] sm:$0xf]
    %v4177 = vpack.c.bf16 %v4146, %v4131
    %v4178 = vld [vmem:[%s77 + $0x40] sm:$0xf]
    %v4179 = vld [vmem:[%s77 + $0x44] sm:$0xf]
    %v4180 = vld [vmem:[%s77 + $0x48] sm:$0xf]
    %v4181 = vld [vmem:[%s77 + $0x4c] sm:$0xf]
    %v4182 = vld [vmem:[%s77 + $0x50] sm:$0xf]
    %v4183 = vld [vmem:[%s77 + $0x54] sm:$0xf]
    %v4184 = vld [vmem:[%s77 + $0x58] sm:$0xf]
    %v4185 = vld [vmem:[%s77 + $0x5c] sm:$0xf]
    %v4186 = vld [vmem:[%s77 + $0x60] sm:$0xf]
    %v4187 = vld [vmem:[%s77 + $0x64] sm:$0xf]
    %v4188 = vld [vmem:[%s77 + $0x68] sm:$0xf]
    %v4189 = vld [vmem:[%s77 + $0x6c] sm:$0xf]
    %v4190 = vld [vmem:[%s77 + $0x70] sm:$0xf]
    %v4191 = vld [vmem:[%s77 + $0x74] sm:$0xf]
    %v4192 = vld [vmem:[%s77 + $0x78] sm:$0xf]
    %v4193 = vld [vmem:[%s77 + $0x7c] sm:$0xf]
    %v4194 = vpack.c.bf16 %v4147, %v4132
    %v4211 = vunpack.c.l.b16 %v4178
    %v4212 = vunpack.c.l.b16 %v4179
    %v4213 = vunpack.c.l.b16 %v4180
    %v4214 = vunpack.c.l.b16 %v4181
    %v4215 = vunpack.c.l.b16 %v4182
    %v4216 = vunpack.c.l.b16 %v4183
    %v4217 = vunpack.c.l.b16 %v4184
    %v4218 = vunpack.c.l.b16 %v4185
    %v4219 = vunpack.c.l.b16 %v4186
    %v4220 = vunpack.c.l.b16 %v4187
    %v4221 = vunpack.c.l.b16 %v4188
    %v4222 = vunpack.c.l.b16 %v4189
    %v4223 = vunpack.c.l.b16 %v4190
    %v4224 = vunpack.c.l.b16 %v4191
    %v4225 = vunpack.c.l.b16 %v4192
    %v4226 = vunpack.c.l.b16 %v4193
    %v4227 = vpack.c.b16 %v4212, %v4211
    %v4228 = vpack.c.b16 %v4214, %v4213
    %v4229 = vpack.c.b16 %v4216, %v4215
    %v4230 = vpack.c.b16 %v4218, %v4217
    %v4231 = vpack.c.b16 %v4220, %v4219
    %v4232 = vpack.c.b16 %v4222, %v4221
    %v4233 = vpack.c.b16 %v4224, %v4223
    %v4234 = vpack.c.b16 %v4226, %v4225
    %4243 = vmatprep.subr.bf16.mxu0 0
    %4244 = vmatpush1.bf16.msra.mxu0 %v4227
    %4245 = vmatprep.subr.bf16.mxu0 0
    %4246 = vmatpush1.bf16.msra.mxu0 %v4228
    %4247 = vmatprep.subr.bf16.mxu0 0
    %4248 = vmatpush1.bf16.msra.mxu0 %v4229
    %4249 = vmatprep.subr.bf16.mxu0 0
    %4250 = vmatpush1.bf16.msra.mxu0 %v4230
    %4251 = vmatprep.subr.bf16.mxu0 0
    %4252 = vmatpush1.bf16.msra.mxu0 %v4231
    %4253 = vmatprep.subr.bf16.mxu0 0
    %4254 = vmatpush1.bf16.msra.mxu0 %v4232
    %4255 = vmatprep.subr.bf16.mxu0 0
    %4256 = vmatpush1.bf16.msra.mxu0 %v4233
    %4257 = vmatprep.subr.bf16.mxu0 0
    %4258 = vmatpush1.bf16.msra.mxu0 %v4234
    %4259 = vmatprep.subr.bf16.mxu0 0
    %4260 = vmatpush1.bf16.msra.mxu0 0
    %4261 = vmatprep.subr.bf16.mxu0 0
    %4262 = vmatpush1.bf16.msra.mxu0 0
    %4263 = vmatprep.subr.bf16.mxu0 0
    %4264 = vmatpush1.bf16.msra.mxu0 0
    %4265 = vmatprep.subr.bf16.mxu0 0
    %4266 = vmatpush1.bf16.msra.mxu0 0
    %4267 = vmatprep.subr.bf16.mxu0 0
    %4268 = vmatpush1.bf16.msra.mxu0 0
    %4269 = vmatprep.subr.bf16.mxu0 0
    %4270 = vmatpush1.bf16.msra.mxu0 0
    %4271 = vmatprep.subr.bf16.mxu0 0
    %4272 = vmatpush1.bf16.msra.mxu0 0
    %4273 = vmatprep.subr.bf16.mxu0 0
    %4274 = vmatpush1.bf16.msra.mxu0 0
    %4275 = vmatprep.mubr.bf16.mxu0 0
    %4276 = vmatmul.mubr.bf16.gmra.mrb[0].mxu0 %v4194
    %v4277 = vpop.f32.mrb[0].mxu0
    %v4278 = vadd.f32 0.0, %v4277
    %v4279 = vpop.f32.mrb[0].mxu0
    %v4280 = vpop.f32.mrb[0].mxu0
    %v4281 = vadd.f32 0.0, %v4280
    %v4282 = vpop.f32.mrb[0].mxu0
    %4283 = vdwg.mxu0
    %v4300 = vunpack.c.l.b16 %v4161
    %v4301 = vunpack.c.l.b16 %v4162
    %v4302 = vunpack.c.l.b16 %v4163
    %v4303 = vunpack.c.l.b16 %v4164
    %v4304 = vunpack.c.l.b16 %v4165
    %v4305 = vunpack.c.l.b16 %v4166
    %v4306 = vunpack.c.l.b16 %v4167
    %v4307 = vunpack.c.l.b16 %v4168
    %v4308 = vunpack.c.l.b16 %v4169
    %v4309 = vunpack.c.l.b16 %v4170
    %v4310 = vunpack.c.l.b16 %v4171
    %v4311 = vunpack.c.l.b16 %v4172
    %v4312 = vunpack.c.l.b16 %v4173
    %v4313 = vunpack.c.l.b16 %v4174
    %v4314 = vunpack.c.l.b16 %v4175
    %v4315 = vunpack.c.l.b16 %v4176
    %v4316 = vpack.c.b16 %v4301, %v4300
    %v4317 = vpack.c.b16 %v4303, %v4302
    %v4318 = vpack.c.b16 %v4305, %v4304
    %v4319 = vpack.c.b16 %v4307, %v4306
    %v4320 = vpack.c.b16 %v4309, %v4308
    %v4321 = vpack.c.b16 %v4311, %v4310
    %v4322 = vpack.c.b16 %v4313, %v4312
    %v4323 = vpack.c.b16 %v4315, %v4314
    %4332 = vmatprep.subr.bf16.mxu0 0
    %4333 = vmatpush1.bf16.msra.mxu0 %v4316
    %4334 = vmatprep.subr.bf16.mxu0 0
    %4335 = vmatpush1.bf16.msra.mxu0 %v4317
    %4336 = vmatprep.subr.bf16.mxu0 0
    %4337 = vmatpush1.bf16.msra.mxu0 %v4318
    %4338 = vmatprep.subr.bf16.mxu0 0
    %4339 = vmatpush1.bf16.msra.mxu0 %v4319
    %4340 = vmatprep.subr.bf16.mxu0 0
    %4341 = vmatpush1.bf16.msra.mxu0 %v4320
    %4342 = vmatprep.subr.bf16.mxu0 0
    %4343 = vmatpush1.bf16.msra.mxu0 %v4321
    %4344 = vmatprep.subr.bf16.mxu0 0
    %4345 = vmatpush1.bf16.msra.mxu0 %v4322
    %4346 = vmatprep.subr.bf16.mxu0 0
    %4347 = vmatpush1.bf16.msra.mxu0 %v4323
    %4348 = vmatprep.subr.bf16.mxu0 0
    %4349 = vmatpush1.bf16.msra.mxu0 0
    %4350 = vmatprep.subr.bf16.mxu0 0
    %4351 = vmatpush1.bf16.msra.mxu0 0
    %4352 = vmatprep.subr.bf16.mxu0 0
    %4353 = vmatpush1.bf16.msra.mxu0 0
    %4354 = vmatprep.subr.bf16.mxu0 0
    %4355 = vmatpush1.bf16.msra.mxu0 0
    %4356 = vmatprep.subr.bf16.mxu0 0
    %4357 = vmatpush1.bf16.msra.mxu0 0
    %4358 = vmatprep.subr.bf16.mxu0 0
    %4359 = vmatpush1.bf16.msra.mxu0 0
    %4360 = vmatprep.subr.bf16.mxu0 0
    %4361 = vmatpush1.bf16.msra.mxu0 0
    %4362 = vmatprep.subr.bf16.mxu0 0
    %4363 = vmatpush1.bf16.msra.mxu0 0
    %4364 = vmatprep.mubr.bf16.mxu0 0
    %4365 = vmatmul.mubr.bf16.gmra.mrb[0].mxu0 %v4177
    %v4366 = vpop.f32.mrb[0].mxu0
    %v4367 = vadd.f32 %v4278, %v4366
    %v4368 = vpop.f32.mrb[0].mxu0
    %v4369 = vpop.f32.mrb[0].mxu0
    %v4370 = vadd.f32 %v4281, %v4369
    %v4371 = vpop.f32.mrb[0].mxu0
    %4372 = vdwg.mxu0
    %v4373 = vld [vmem:[%s77 + $0x80] sm:$0xf]
    %v4374 = vld [vmem:[%s77 + $0x84] sm:$0xf]
    %v4375 = vld [vmem:[%s77 + $0x88] sm:$0xf]
    %v4376 = vld [vmem:[%s77 + $0x8c] sm:$0xf]
    %v4377 = vld [vmem:[%s77 + $0x90] sm:$0xf]
    %v4378 = vld [vmem:[%s77 + $0x94] sm:$0xf]
    %v4379 = vld [vmem:[%s77 + $0x98] sm:$0xf]
    %v4380 = vld [vmem:[%s77 + $0x9c] sm:$0xf]
    %v4381 = vld [vmem:[%s77 + $0xa0] sm:$0xf]
    %v4382 = vld [vmem:[%s77 + $0xa4] sm:$0xf]
    %v4383 = vld [vmem:[%s77 + $0xa8] sm:$0xf]
    %v4384 = vld [vmem:[%s77 + $0xac] sm:$0xf]
    %v4385 = vld [vmem:[%s77 + $0xb0] sm:$0xf]
    %v4386 = vld [vmem:[%s77 + $0xb4] sm:$0xf]
    %v4387 = vld [vmem:[%s77 + $0xb8] sm:$0xf]
    %v4388 = vld [vmem:[%s77 + $0xbc] sm:$0xf]
    %v4389 = vpack.c.bf16 %v4148, %v4133
    %v4406 = vunpack.c.l.b16 %v4373
    %v4407 = vunpack.c.l.b16 %v4374
    %v4408 = vunpack.c.l.b16 %v4375
    %v4409 = vunpack.c.l.b16 %v4376
    %v4410 = vunpack.c.l.b16 %v4377
    %v4411 = vunpack.c.l.b16 %v4378
    %v4412 = vunpack.c.l.b16 %v4379
    %v4413 = vunpack.c.l.b16 %v4380
    %v4414 = vunpack.c.l.b16 %v4381
    %v4415 = vunpack.c.l.b16 %v4382
    %v4416 = vunpack.c.l.b16 %v4383
    %v4417 = vunpack.c.l.b16 %v4384
    %v4418 = vunpack.c.l.b16 %v4385
    %v4419 = vunpack.c.l.b16 %v4386
    %v4420 = vunpack.c.l.b16 %v4387
    %v4421 = vunpack.c.l.b16 %v4388
    %v4422 = vpack.c.b16 %v4407, %v4406
    %v4423 = vpack.c.b16 %v4409, %v4408
    %v4424 = vpack.c.b16 %v4411, %v4410
    %v4425 = vpack.c.b16 %v4413, %v4412
    %v4426 = vpack.c.b16 %v4415, %v4414
    %v4427 = vpack.c.b16 %v4417, %v4416
    %v4428 = vpack.c.b16 %v4419, %v4418
    %v4429 = vpack.c.b16 %v4421, %v4420
    %4438 = vmatprep.subr.bf16.mxu0 0
    %4439 = vmatpush1.bf16.msra.mxu0 %v4422
    %4440 = vmatprep.subr.bf16.mxu0 0
    %4441 = vmatpush1.bf16.msra.mxu0 %v4423
    %4442 = vmatprep.subr.bf16.mxu0 0
    %4443 = vmatpush1.bf16.msra.mxu0 %v4424
    %4444 = vmatprep.subr.bf16.mxu0 0
    %4445 = vmatpush1.bf16.msra.mxu0 %v4425
    %4446 = vmatprep.subr.bf16.mxu0 0
    %4447 = vmatpush1.bf16.msra.mxu0 %v4426
    %4448 = vmatprep.subr.bf16.mxu0 0
    %4449 = vmatpush1.bf16.msra.mxu0 %v4427
    %4450 = vmatprep.subr.bf16.mxu0 0
    %4451 = vmatpush1.bf16.msra.mxu0 %v4428
    %4452 = vmatprep.subr.bf16.mxu0 0
    %4453 = vmatpush1.bf16.msra.mxu0 %v4429
    %4454 = vmatprep.subr.bf16.mxu0 0
    %4455 = vmatpush1.bf16.msra.mxu0 0
    %4456 = vmatprep.subr.bf16.mxu0 0
    %4457 = vmatpush1.bf16.msra.mxu0 0
    %4458 = vmatprep.subr.bf16.mxu0 0
    %4459 = vmatpush1.bf16.msra.mxu0 0
    %4460 = vmatprep.subr.bf16.mxu0 0
    %4461 = vmatpush1.bf16.msra.mxu0 0
    %4462 = vmatprep.subr.bf16.mxu0 0
    %4463 = vmatpush1.bf16.msra.mxu0 0
    %4464 = vmatprep.subr.bf16.mxu0 0
    %4465 = vmatpush1.bf16.msra.mxu0 0
    %4466 = vmatprep.subr.bf16.mxu0 0
    %4467 = vmatpush1.bf16.msra.mxu0 0
    %4468 = vmatprep.subr.bf16.mxu0 0
    %4469 = vmatpush1.bf16.msra.mxu0 0
    %4470 = vmatprep.mubr.bf16.mxu0 0
    %4471 = vmatmul.mubr.bf16.gmra.mrb[0].mxu0 %v4389
    %v4472 = vpop.f32.mrb[0].mxu0
    %v4473 = vadd.f32 0.0, %v4472
    %v4474 = vpop.f32.mrb[0].mxu0
    %v4475 = vpop.f32.mrb[0].mxu0
    %v4476 = vadd.f32 0.0, %v4475
    %v4477 = vpop.f32.mrb[0].mxu0
    %4478 = vdwg.mxu0
    %v4479 = vadd.f32 %v4367, %v4473
    %v4480 = vadd.f32 %v4370, %v4476
    %v4481 = vld [vmem:[%s77 + $0xc0] sm:$0xf]
    %v4482 = vld [vmem:[%s77 + $0xc4] sm:$0xf]
    %v4483 = vld [vmem:[%s77 + $0xc8] sm:$0xf]
    %v4484 = vld [vmem:[%s77 + $0xcc] sm:$0xf]
    %v4485 = vld [vmem:[%s77 + $0xd0] sm:$0xf]
    %v4486 = vld [vmem:[%s77 + $0xd4] sm:$0xf]
    %v4487 = vld [vmem:[%s77 + $0xd8] sm:$0xf]
    %v4488 = vld [vmem:[%s77 + $0xdc] sm:$0xf]
    %v4489 = vld [vmem:[%s77 + $0xe0] sm:$0xf]
    %v4490 = vld [vmem:[%s77 + $0xe4] sm:$0xf]
    %v4491 = vld [vmem:[%s77 + $0xe8] sm:$0xf]
    %v4492 = vld [vmem:[%s77 + $0xec] sm:$0xf]
    %v4493 = vld [vmem:[%s77 + $0xf0] sm:$0xf]
    %v4494 = vld [vmem:[%s77 + $0xf4] sm:$0xf]
    %v4495 = vld [vmem:[%s77 + $0xf8] sm:$0xf]
    %v4496 = vld [vmem:[%s77 + $0xfc] sm:$0xf]
    %v4497 = vpack.c.bf16 %v4149, %v4134
    %v4514 = vunpack.c.l.b16 %v4481
    %v4515 = vunpack.c.l.b16 %v4482
    %v4516 = vunpack.c.l.b16 %v4483
    %v4517 = vunpack.c.l.b16 %v4484
    %v4518 = vunpack.c.l.b16 %v4485
    %v4519 = vunpack.c.l.b16 %v4486
    %v4520 = vunpack.c.l.b16 %v4487
    %v4521 = vunpack.c.l.b16 %v4488
    %v4522 = vunpack.c.l.b16 %v4489
    %v4523 = vunpack.c.l.b16 %v4490
    %v4524 = vunpack.c.l.b16 %v4491
    %v4525 = vunpack.c.l.b16 %v4492
    %v4526 = vunpack.c.l.b16 %v4493
    %v4527 = vunpack.c.l.b16 %v4494
    %v4528 = vunpack.c.l.b16 %v4495
    %v4529 = vunpack.c.l.b16 %v4496
    %v4530 = vpack.c.b16 %v4515, %v4514
    %v4531 = vpack.c.b16 %v4517, %v4516
    %v4532 = vpack.c.b16 %v4519, %v4518
    %v4533 = vpack.c.b16 %v4521, %v4520
    %v4534 = vpack.c.b16 %v4523, %v4522
    %v4535 = vpack.c.b16 %v4525, %v4524
    %v4536 = vpack.c.b16 %v4527, %v4526
    %v4537 = vpack.c.b16 %v4529, %v4528
    %4546 = vmatprep.subr.bf16.mxu0 0
    %4547 = vmatpush1.bf16.msra.mxu0 %v4530
    %4548 = vmatprep.subr.bf16.mxu0 0
    %4549 = vmatpush1.bf16.msra.mxu0 %v4531
    %4550 = vmatprep.subr.bf16.mxu0 0
    %4551 = vmatpush1.bf16.msra.mxu0 %v4532
    %4552 = vmatprep.subr.bf16.mxu0 0
    %4553 = vmatpush1.bf16.msra.mxu0 %v4533
    %4554 = vmatprep.subr.bf16.mxu0 0
    %4555 = vmatpush1.bf16.msra.mxu0 %v4534
    %4556 = vmatprep.subr.bf16.mxu0 0
    %4557 = vmatpush1.bf16.msra.mxu0 %v4535
    %4558 = vmatprep.subr.bf16.mxu0 0
    %4559 = vmatpush1.bf16.msra.mxu0 %v4536
    %4560 = vmatprep.subr.bf16.mxu0 0
    %4561 = vmatpush1.bf16.msra.mxu0 %v4537
    %4562 = vmatprep.subr.bf16.mxu0 0
    %4563 = vmatpush1.bf16.msra.mxu0 0
    %4564 = vmatprep.subr.bf16.mxu0 0
    %4565 = vmatpush1.bf16.msra.mxu0 0
    %4566 = vmatprep.subr.bf16.mxu0 0
    %4567 = vmatpush1.bf16.msra.mxu0 0
    %4568 = vmatprep.subr.bf16.mxu0 0
    %4569 = vmatpush1.bf16.msra.mxu0 0
    %4570 = vmatprep.subr.bf16.mxu0 0
    %4571 = vmatpush1.bf16.msra.mxu0 0
    %4572 = vmatprep.subr.bf16.mxu0 0
    %4573 = vmatpush1.bf16.msra.mxu0 0
    %4574 = vmatprep.subr.bf16.mxu0 0
    %4575 = vmatpush1.bf16.msra.mxu0 0
    %4576 = vmatprep.subr.bf16.mxu0 0
    %4577 = vmatpush1.bf16.msra.mxu0 0
    %4578 = vmatprep.mubr.bf16.mxu0 0
    %4579 = vmatmul.mubr.bf16.gmra.mrb[0].mxu0 %v4497
    %v4580 = vpop.f32.mrb[0].mxu0
    %v4581 = vadd.f32 0.0, %v4580
    %v4582 = vpop.f32.mrb[0].mxu0
    %v4583 = vpop.f32.mrb[0].mxu0
    %v4584 = vadd.f32 0.0, %v4583
    %v4585 = vpop.f32.mrb[0].mxu0
    %4586 = vdwg.mxu0
    %v4587 = vadd.f32 %v4479, %v4581
    %v4588 = vadd.f32 %v4480, %v4584
    %v4589 = vld [vmem:[%s77 + $0x100] sm:$0xf]
    %v4590 = vld [vmem:[%s77 + $0x104] sm:$0xf]
    %v4591 = vld [vmem:[%s77 + $0x108] sm:$0xf]
    %v4592 = vld [vmem:[%s77 + $0x10c] sm:$0xf]
    %v4593 = vld [vmem:[%s77 + $0x110] sm:$0xf]
    %v4594 = vld [vmem:[%s77 + $0x114] sm:$0xf]
    %v4595 = vld [vmem:[%s77 + $0x118] sm:$0xf]
    %v4596 = vld [vmem:[%s77 + $0x11c] sm:$0xf]
    %v4597 = vld [vmem:[%s77 + $0x120] sm:$0xf]
    %v4598 = vld [vmem:[%s77 + $0x124] sm:$0xf]
    %v4599 = vld [vmem:[%s77 + $0x128] sm:$0xf]
    %v4600 = vld [vmem:[%s77 + $0x12c] sm:$0xf]
    %v4601 = vld [vmem:[%s77 + $0x130] sm:$0xf]
    %v4602 = vld [vmem:[%s77 + $0x134] sm:$0xf]
    %v4603 = vld [vmem:[%s77 + $0x138] sm:$0xf]
    %v4604 = vld [vmem:[%s77 + $0x13c] sm:$0xf]
    %v4605 = vpack.c.bf16 %v4150, %v4135
    %v4622 = vunpack.c.l.b16 %v4589
    %v4623 = vunpack.c.l.b16 %v4590
    %v4624 = vunpack.c.l.b16 %v4591
    %v4625 = vunpack.c.l.b16 %v4592
    %v4626 = vunpack.c.l.b16 %v4593
    %v4627 = vunpack.c.l.b16 %v4594
    %v4628 = vunpack.c.l.b16 %v4595
    %v4629 = vunpack.c.l.b16 %v4596
    %v4630 = vunpack.c.l.b16 %v4597
    %v4631 = vunpack.c.l.b16 %v4598
    %v4632 = vunpack.c.l.b16 %v4599
    %v4633 = vunpack.c.l.b16 %v4600
    %v4634 = vunpack.c.l.b16 %v4601
    %v4635 = vunpack.c.l.b16 %v4602
    %v4636 = vunpack.c.l.b16 %v4603
    %v4637 = vunpack.c.l.b16 %v4604
    %v4638 = vpack.c.b16 %v4623, %v4622
    %v4639 = vpack.c.b16 %v4625, %v4624
    %v4640 = vpack.c.b16 %v4627, %v4626
    %v4641 = vpack.c.b16 %v4629, %v4628
    %v4642 = vpack.c.b16 %v4631, %v4630
    %v4643 = vpack.c.b16 %v4633, %v4632
    %v4644 = vpack.c.b16 %v4635, %v4634
    %v4645 = vpack.c.b16 %v4637, %v4636
    %4654 = vmatprep.subr.bf16.mxu0 0
    %4655 = vmatpush1.bf16.msra.mxu0 %v4638
    %4656 = vmatprep.subr.bf16.mxu0 0
    %4657 = vmatpush1.bf16.msra.mxu0 %v4639
    %4658 = vmatprep.subr.bf16.mxu0 0
    %4659 = vmatpush1.bf16.msra.mxu0 %v4640
    %4660 = vmatprep.subr.bf16.mxu0 0
    %4661 = vmatpush1.bf16.msra.mxu0 %v4641
    %4662 = vmatprep.subr.bf16.mxu0 0
    %4663 = vmatpush1.bf16.msra.mxu0 %v4642
    %4664 = vmatprep.subr.bf16.mxu0 0
    %4665 = vmatpush1.bf16.msra.mxu0 %v4643
    %4666 = vmatprep.subr.bf16.mxu0 0
    %4667 = vmatpush1.bf16.msra.mxu0 %v4644
    %4668 = vmatprep.subr.bf16.mxu0 0
    %4669 = vmatpush1.bf16.msra.mxu0 %v4645
    %4670 = vmatprep.subr.bf16.mxu0 0
    %4671 = vmatpush1.bf16.msra.mxu0 0
    %4672 = vmatprep.subr.bf16.mxu0 0
    %4673 = vmatpush1.bf16.msra.mxu0 0
    %4674 = vmatprep.subr.bf16.mxu0 0
    %4675 = vmatpush1.bf16.msra.mxu0 0
    %4676 = vmatprep.subr.bf16.mxu0 0
    %4677 = vmatpush1.bf16.msra.mxu0 0
    %4678 = vmatprep.subr.bf16.mxu0 0
    %4679 = vmatpush1.bf16.msra.mxu0 0
    %4680 = vmatprep.subr.bf16.mxu0 0
    %4681 = vmatpush1.bf16.msra.mxu0 0
    %4682 = vmatprep.subr.bf16.mxu0 0
    %4683 = vmatpush1.bf16.msra.mxu0 0
    %4684 = vmatprep.subr.bf16.mxu0 0
    %4685 = vmatpush1.bf16.msra.mxu0 0
    %4686 = vmatprep.mubr.bf16.mxu0 0
    %4687 = vmatmul.mubr.bf16.gmra.mrb[0].mxu0 %v4605
    %v4688 = vpop.f32.mrb[0].mxu0
    %v4689 = vadd.f32 0.0, %v4688
    %v4690 = vpop.f32.mrb[0].mxu0
    %v4691 = vpop.f32.mrb[0].mxu0
    %v4692 = vadd.f32 0.0, %v4691
    %v4693 = vpop.f32.mrb[0].mxu0
    %4694 = vdwg.mxu0
    %v4695 = vadd.f32 %v4587, %v4689
    %v4696 = vadd.f32 %v4588, %v4692
    %v4697 = vld [vmem:[%s77 + $0x140] sm:$0xf]
    %v4698 = vld [vmem:[%s77 + $0x144] sm:$0xf]
    %v4699 = vld [vmem:[%s77 + $0x148] sm:$0xf]
    %v4700 = vld [vmem:[%s77 + $0x14c] sm:$0xf]
    %v4701 = vld [vmem:[%s77 + $0x150] sm:$0xf]
    %v4702 = vld [vmem:[%s77 + $0x154] sm:$0xf]
    %v4703 = vld [vmem:[%s77 + $0x158] sm:$0xf]
    %v4704 = vld [vmem:[%s77 + $0x15c] sm:$0xf]
    %v4705 = vld [vmem:[%s77 + $0x160] sm:$0xf]
    %v4706 = vld [vmem:[%s77 + $0x164] sm:$0xf]
    %v4707 = vld [vmem:[%s77 + $0x168] sm:$0xf]
    %v4708 = vld [vmem:[%s77 + $0x16c] sm:$0xf]
    %v4709 = vld [vmem:[%s77 + $0x170] sm:$0xf]
    %v4710 = vld [vmem:[%s77 + $0x174] sm:$0xf]
    %v4711 = vld [vmem:[%s77 + $0x178] sm:$0xf]
    %v4712 = vld [vmem:[%s77 + $0x17c] sm:$0xf]
    %v4713 = vpack.c.bf16 %v4151, %v4136
    %v4730 = vunpack.c.l.b16 %v4697
    %v4731 = vunpack.c.l.b16 %v4698
    %v4732 = vunpack.c.l.b16 %v4699
    %v4733 = vunpack.c.l.b16 %v4700
    %v4734 = vunpack.c.l.b16 %v4701
    %v4735 = vunpack.c.l.b16 %v4702
    %v4736 = vunpack.c.l.b16 %v4703
    %v4737 = vunpack.c.l.b16 %v4704
    %v4738 = vunpack.c.l.b16 %v4705
    %v4739 = vunpack.c.l.b16 %v4706
    %v4740 = vunpack.c.l.b16 %v4707
    %v4741 = vunpack.c.l.b16 %v4708
    %v4742 = vunpack.c.l.b16 %v4709
    %v4743 = vunpack.c.l.b16 %v4710
    %v4744 = vunpack.c.l.b16 %v4711
    %v4745 = vunpack.c.l.b16 %v4712
    %v4746 = vpack.c.b16 %v4731, %v4730
    %v4747 = vpack.c.b16 %v4733, %v4732
    %v4748 = vpack.c.b16 %v4735, %v4734
    %v4749 = vpack.c.b16 %v4737, %v4736
    %v4750 = vpack.c.b16 %v4739, %v4738
    %v4751 = vpack.c.b16 %v4741, %v4740
    %v4752 = vpack.c.b16 %v4743, %v4742
    %v4753 = vpack.c.b16 %v4745, %v4744
    %4762 = vmatprep.subr.bf16.mxu0 0
    %4763 = vmatpush1.bf16.msra.mxu0 %v4746
    %4764 = vmatprep.subr.bf16.mxu0 0
    %4765 = vmatpush1.bf16.msra.mxu0 %v4747
    %4766 = vmatprep.subr.bf16.mxu0 0
    %4767 = vmatpush1.bf16.msra.mxu0 %v4748
    %4768 = vmatprep.subr.bf16.mxu0 0
    %4769 = vmatpush1.bf16.msra.mxu0 %v4749
    %4770 = vmatprep.subr.bf16.mxu0 0
    %4771 = vmatpush1.bf16.msra.mxu0 %v4750
    %4772 = vmatprep.subr.bf16.mxu0 0
    %4773 = vmatpush1.bf16.msra.mxu0 %v4751
    %4774 = vmatprep.subr.bf16.mxu0 0
    %4775 = vmatpush1.bf16.msra.mxu0 %v4752
    %4776 = vmatprep.subr.bf16.mxu0 0
    %4777 = vmatpush1.bf16.msra.mxu0 %v4753
    %4778 = vmatprep.subr.bf16.mxu0 0
    %4779 = vmatpush1.bf16.msra.mxu0 0
    %4780 = vmatprep.subr.bf16.mxu0 0
    %4781 = vmatpush1.bf16.msra.mxu0 0
    %4782 = vmatprep.subr.bf16.mxu0 0
    %4783 = vmatpush1.bf16.msra.mxu0 0
    %4784 = vmatprep.subr.bf16.mxu0 0
    %4785 = vmatpush1.bf16.msra.mxu0 0
    %4786 = vmatprep.subr.bf16.mxu0 0
    %4787 = vmatpush1.bf16.msra.mxu0 0
    %4788 = vmatprep.subr.bf16.mxu0 0
    %4789 = vmatpush1.bf16.msra.mxu0 0
    %4790 = vmatprep.subr.bf16.mxu0 0
    %4791 = vmatpush1.bf16.msra.mxu0 0
    %4792 = vmatprep.subr.bf16.mxu0 0
    %4793 = vmatpush1.bf16.msra.mxu0 0
    %4794 = vmatprep.mubr.bf16.mxu0 0
    %4795 = vmatmul.mubr.bf16.gmra.mrb[0].mxu0 %v4713
    %v4796 = vpop.f32.mrb[0].mxu0
    %v4797 = vadd.f32 0.0, %v4796
    %v4798 = vpop.f32.mrb[0].mxu0
    %v4799 = vpop.f32.mrb[0].mxu0
    %v4800 = vadd.f32 0.0, %v4799
    %v4801 = vpop.f32.mrb[0].mxu0
    %4802 = vdwg.mxu0
    %v4803 = vadd.f32 %v4695, %v4797
    %v4804 = vadd.f32 %v4696, %v4800
    %v4805 = vld [vmem:[%s77 + $0x180] sm:$0xf]
    %v4806 = vld [vmem:[%s77 + $0x184] sm:$0xf]
    %v4807 = vld [vmem:[%s77 + $0x188] sm:$0xf]
    %v4808 = vld [vmem:[%s77 + $0x18c] sm:$0xf]
    %v4809 = vld [vmem:[%s77 + $0x190] sm:$0xf]
    %v4810 = vld [vmem:[%s77 + $0x194] sm:$0xf]
    %v4811 = vld [vmem:[%s77 + $0x198] sm:$0xf]
    %v4812 = vld [vmem:[%s77 + $0x19c] sm:$0xf]
    %v4813 = vld [vmem:[%s77 + $0x1a0] sm:$0xf]
    %v4814 = vld [vmem:[%s77 + $0x1a4] sm:$0xf]
    %v4815 = vld [vmem:[%s77 + $0x1a8] sm:$0xf]
    %v4816 = vld [vmem:[%s77 + $0x1ac] sm:$0xf]
    %v4817 = vld [vmem:[%s77 + $0x1b0] sm:$0xf]
    %v4818 = vld [vmem:[%s77 + $0x1b4] sm:$0xf]
    %v4819 = vld [vmem:[%s77 + $0x1b8] sm:$0xf]
    %v4820 = vld [vmem:[%s77 + $0x1bc] sm:$0xf]
    %v4821 = vpack.c.bf16 %v4152, %v4137
    %v4838 = vunpack.c.l.b16 %v4805
    %v4839 = vunpack.c.l.b16 %v4806
    %v4840 = vunpack.c.l.b16 %v4807
    %v4841 = vunpack.c.l.b16 %v4808
    %v4842 = vunpack.c.l.b16 %v4809
    %v4843 = vunpack.c.l.b16 %v4810
    %v4844 = vunpack.c.l.b16 %v4811
    %v4845 = vunpack.c.l.b16 %v4812
    %v4846 = vunpack.c.l.b16 %v4813
    %v4847 = vunpack.c.l.b16 %v4814
    %v4848 = vunpack.c.l.b16 %v4815
    %v4849 = vunpack.c.l.b16 %v4816
    %v4850 = vunpack.c.l.b16 %v4817
    %v4851 = vunpack.c.l.b16 %v4818
    %v4852 = vunpack.c.l.b16 %v4819
    %v4853 = vunpack.c.l.b16 %v4820
    %v4854 = vpack.c.b16 %v4839, %v4838
    %v4855 = vpack.c.b16 %v4841, %v4840
    %v4856 = vpack.c.b16 %v4843, %v4842
    %v4857 = vpack.c.b16 %v4845, %v4844
    %v4858 = vpack.c.b16 %v4847, %v4846
    %v4859 = vpack.c.b16 %v4849, %v4848
    %v4860 = vpack.c.b16 %v4851, %v4850
    %v4861 = vpack.c.b16 %v4853, %v4852
    %4870 = vmatprep.subr.bf16.mxu0 0
    %4871 = vmatpush1.bf16.msra.mxu0 %v4854
    %4872 = vmatprep.subr.bf16.mxu0 0
    %4873 = vmatpush1.bf16.msra.mxu0 %v4855
    %4874 = vmatprep.subr.bf16.mxu0 0
    %4875 = vmatpush1.bf16.msra.mxu0 %v4856
    %4876 = vmatprep.subr.bf16.mxu0 0
    %4877 = vmatpush1.bf16.msra.mxu0 %v4857
    %4878 = vmatprep.subr.bf16.mxu0 0
    %4879 = vmatpush1.bf16.msra.mxu0 %v4858
    %4880 = vmatprep.subr.bf16.mxu0 0
    %4881 = vmatpush1.bf16.msra.mxu0 %v4859
    %4882 = vmatprep.subr.bf16.mxu0 0
    %4883 = vmatpush1.bf16.msra.mxu0 %v4860
    %4884 = vmatprep.subr.bf16.mxu0 0
    %4885 = vmatpush1.bf16.msra.mxu0 %v4861
    %4886 = vmatprep.subr.bf16.mxu0 0
    %4887 = vmatpush1.bf16.msra.mxu0 0
    %4888 = vmatprep.subr.bf16.mxu0 0
    %4889 = vmatpush1.bf16.msra.mxu0 0
    %4890 = vmatprep.subr.bf16.mxu0 0
    %4891 = vmatpush1.bf16.msra.mxu0 0
    %4892 = vmatprep.subr.bf16.mxu0 0
    %4893 = vmatpush1.bf16.msra.mxu0 0
    %4894 = vmatprep.subr.bf16.mxu0 0
    %4895 = vmatpush1.bf16.msra.mxu0 0
    %4896 = vmatprep.subr.bf16.mxu0 0
    %4897 = vmatpush1.bf16.msra.mxu0 0
    %4898 = vmatprep.subr.bf16.mxu0 0
    %4899 = vmatpush1.bf16.msra.mxu0 0
    %4900 = vmatprep.subr.bf16.mxu0 0
    %4901 = vmatpush1.bf16.msra.mxu0 0
    %4902 = vmatprep.mubr.bf16.mxu0 0
    %4903 = vmatmul.mubr.bf16.gmra.mrb[0].mxu0 %v4821
    %v4904 = vpop.f32.mrb[0].mxu0
    %v4905 = vadd.f32 0.0, %v4904
    %v4906 = vpop.f32.mrb[0].mxu0
    %v4907 = vpop.f32.mrb[0].mxu0
    %v4908 = vadd.f32 0.0, %v4907
    %v4909 = vpop.f32.mrb[0].mxu0
    %4910 = vdwg.mxu0
    %v4911 = vadd.f32 %v4803, %v4905
    %v4912 = vadd.f32 %v4804, %v4908
    %v4913 = vld [vmem:[%s77 + $0x1c0] sm:$0xf]
    %v4914 = vld [vmem:[%s77 + $0x1c4] sm:$0xf]
    %v4915 = vld [vmem:[%s77 + $0x1c8] sm:$0xf]
    %v4916 = vld [vmem:[%s77 + $0x1cc] sm:$0xf]
    %v4917 = vld [vmem:[%s77 + $0x1d0] sm:$0xf]
    %v4918 = vld [vmem:[%s77 + $0x1d4] sm:$0xf]
    %v4919 = vld [vmem:[%s77 + $0x1d8] sm:$0xf]
    %v4920 = vld [vmem:[%s77 + $0x1dc] sm:$0xf]
    %v4921 = vld [vmem:[%s77 + $0x1e0] sm:$0xf]
    %v4922 = vld [vmem:[%s77 + $0x1e4] sm:$0xf]
    %v4923 = vld [vmem:[%s77 + $0x1e8] sm:$0xf]
    %v4924 = vld [vmem:[%s77 + $0x1ec] sm:$0xf]
    %v4925 = vld [vmem:[%s77 + $0x1f0] sm:$0xf]
    %v4926 = vld [vmem:[%s77 + $0x1f4] sm:$0xf]
    %v4927 = vld [vmem:[%s77 + $0x1f8] sm:$0xf]
    %v4928 = vld [vmem:[%s77 + $0x1fc] sm:$0xf]
    %v4929 = vpack.c.bf16 %v4153, %v4138
    %v4946 = vunpack.c.l.b16 %v4913
    %v4947 = vunpack.c.l.b16 %v4914
    %v4948 = vunpack.c.l.b16 %v4915
    %v4949 = vunpack.c.l.b16 %v4916
    %v4950 = vunpack.c.l.b16 %v4917
    %v4951 = vunpack.c.l.b16 %v4918
    %v4952 = vunpack.c.l.b16 %v4919
    %v4953 = vunpack.c.l.b16 %v4920
    %v4954 = vunpack.c.l.b16 %v4921
    %v4955 = vunpack.c.l.b16 %v4922
    %v4956 = vunpack.c.l.b16 %v4923
    %v4957 = vunpack.c.l.b16 %v4924
    %v4958 = vunpack.c.l.b16 %v4925
    %v4959 = vunpack.c.l.b16 %v4926
    %v4960 = vunpack.c.l.b16 %v4927
    %v4961 = vunpack.c.l.b16 %v4928
    %v4962 = vpack.c.b16 %v4947, %v4946
    %v4963 = vpack.c.b16 %v4949, %v4948
    %v4964 = vpack.c.b16 %v4951, %v4950
    %v4965 = vpack.c.b16 %v4953, %v4952
    %v4966 = vpack.c.b16 %v4955, %v4954
    %v4967 = vpack.c.b16 %v4957, %v4956
    %v4968 = vpack.c.b16 %v4959, %v4958
    %v4969 = vpack.c.b16 %v4961, %v4960
    %4978 = vmatprep.subr.bf16.mxu0 0
    %4979 = vmatpush1.bf16.msra.mxu0 %v4962
    %4980 = vmatprep.subr.bf16.mxu0 0
    %4981 = vmatpush1.bf16.msra.mxu0 %v4963
    %4982 = vmatprep.subr.bf16.mxu0 0
    %4983 = vmatpush1.bf16.msra.mxu0 %v4964
    %4984 = vmatprep.subr.bf16.mxu0 0
    %4985 = vmatpush1.bf16.msra.mxu0 %v4965
    %4986 = vmatprep.subr.bf16.mxu0 0
    %4987 = vmatpush1.bf16.msra.mxu0 %v4966
    %4988 = vmatprep.subr.bf16.mxu0 0
    %4989 = vmatpush1.bf16.msra.mxu0 %v4967
    %4990 = vmatprep.subr.bf16.mxu0 0
    %4991 = vmatpush1.bf16.msra.mxu0 %v4968
    %4992 = vmatprep.subr.bf16.mxu0 0
    %4993 = vmatpush1.bf16.msra.mxu0 %v4969
    %4994 = vmatprep.subr.bf16.mxu0 0
    %4995 = vmatpush1.bf16.msra.mxu0 0
    %4996 = vmatprep.subr.bf16.mxu0 0
    %4997 = vmatpush1.bf16.msra.mxu0 0
    %4998 = vmatprep.subr.bf16.mxu0 0
    %4999 = vmatpush1.bf16.msra.mxu0 0
    %5000 = vmatprep.subr.bf16.mxu0 0
    %5001 = vmatpush1.bf16.msra.mxu0 0
    %5002 = vmatprep.subr.bf16.mxu0 0
    %5003 = vmatpush1.bf16.msra.mxu0 0
    %5004 = vmatprep.subr.bf16.mxu0 0
    %5005 = vmatpush1.bf16.msra.mxu0 0
    %5006 = vmatprep.subr.bf16.mxu0 0
    %5007 = vmatpush1.bf16.msra.mxu0 0
    %5008 = vmatprep.subr.bf16.mxu0 0
    %5009 = vmatpush1.bf16.msra.mxu0 0
    %5010 = vmatprep.mubr.bf16.mxu0 0
    %5011 = vmatmul.mubr.bf16.gmra.mrb[0].mxu0 %v4929
    %v5012 = vpop.f32.mrb[0].mxu0
    %v5013 = vadd.f32 0.0, %v5012
    %v5014 = vpop.f32.mrb[0].mxu0
    %v5015 = vpop.f32.mrb[0].mxu0
    %v5016 = vadd.f32 0.0, %v5015
    %v5017 = vpop.f32.mrb[0].mxu0
    %5018 = vdwg.mxu0
    %v5019 = vadd.f32 %v4911, %v5013
    %v5020 = vadd.f32 %v4912, %v5016
    %v5021 = vld [vmem:[%s77 + $0x200] sm:$0xf]
    %v5022 = vld [vmem:[%s77 + $0x204] sm:$0xf]
    %v5023 = vld [vmem:[%s77 + $0x208] sm:$0xf]
    %v5024 = vld [vmem:[%s77 + $0x20c] sm:$0xf]
    %v5025 = vld [vmem:[%s77 + $0x210] sm:$0xf]
    %v5026 = vld [vmem:[%s77 + $0x214] sm:$0xf]
    %v5027 = vld [vmem:[%s77 + $0x218] sm:$0xf]
    %v5028 = vld [vmem:[%s77 + $0x21c] sm:$0xf]
    %v5029 = vld [vmem:[%s77 + $0x220] sm:$0xf]
    %v5030 = vld [vmem:[%s77 + $0x224] sm:$0xf]
    %v5031 = vld [vmem:[%s77 + $0x228] sm:$0xf]
    %v5032 = vld [vmem:[%s77 + $0x22c] sm:$0xf]
    %v5033 = vld [vmem:[%s77 + $0x230] sm:$0xf]
    %v5034 = vld [vmem:[%s77 + $0x234] sm:$0xf]
    %v5035 = vld [vmem:[%s77 + $0x238] sm:$0xf]
    %v5036 = vld [vmem:[%s77 + $0x23c] sm:$0xf]
    %v5037 = vpack.c.bf16 %v4154, %v4139
    %v5054 = vunpack.c.l.b16 %v5021
    %v5055 = vunpack.c.l.b16 %v5022
    %v5056 = vunpack.c.l.b16 %v5023
    %v5057 = vunpack.c.l.b16 %v5024
    %v5058 = vunpack.c.l.b16 %v5025
    %v5059 = vunpack.c.l.b16 %v5026
    %v5060 = vunpack.c.l.b16 %v5027
    %v5061 = vunpack.c.l.b16 %v5028
    %v5062 = vunpack.c.l.b16 %v5029
    %v5063 = vunpack.c.l.b16 %v5030
    %v5064 = vunpack.c.l.b16 %v5031
    %v5065 = vunpack.c.l.b16 %v5032
    %v5066 = vunpack.c.l.b16 %v5033
    %v5067 = vunpack.c.l.b16 %v5034
    %v5068 = vunpack.c.l.b16 %v5035
    %v5069 = vunpack.c.l.b16 %v5036
    %v5070 = vpack.c.b16 %v5055, %v5054
    %v5071 = vpack.c.b16 %v5057, %v5056
    %v5072 = vpack.c.b16 %v5059, %v5058
    %v5073 = vpack.c.b16 %v5061, %v5060
    %v5074 = vpack.c.b16 %v5063, %v5062
    %v5075 = vpack.c.b16 %v5065, %v5064
    %v5076 = vpack.c.b16 %v5067, %v5066
    %v5077 = vpack.c.b16 %v5069, %v5068
    %5086 = vmatprep.subr.bf16.mxu0 0
    %5087 = vmatpush1.bf16.msra.mxu0 %v5070
    %5088 = vmatprep.subr.bf16.mxu0 0
    %5089 = vmatpush1.bf16.msra.mxu0 %v5071
    %5090 = vmatprep.subr.bf16.mxu0 0
    %5091 = vmatpush1.bf16.msra.mxu0 %v5072
    %5092 = vmatprep.subr.bf16.mxu0 0
    %5093 = vmatpush1.bf16.msra.mxu0 %v5073
    %5094 = vmatprep.subr.bf16.mxu0 0
    %5095 = vmatpush1.bf16.msra.mxu0 %v5074
    %5096 = vmatprep.subr.bf16.mxu0 0
    %5097 = vmatpush1.bf16.msra.mxu0 %v5075
    %5098 = vmatprep.subr.bf16.mxu0 0
    %5099 = vmatpush1.bf16.msra.mxu0 %v5076
    %5100 = vmatprep.subr.bf16.mxu0 0
    %5101 = vmatpush1.bf16.msra.mxu0 %v5077
    %5102 = vmatprep.subr.bf16.mxu0 0
    %5103 = vmatpush1.bf16.msra.mxu0 0
    %5104 = vmatprep.subr.bf16.mxu0 0
    %5105 = vmatpush1.bf16.msra.mxu0 0
    %5106 = vmatprep.subr.bf16.mxu0 0
    %5107 = vmatpush1.bf16.msra.mxu0 0
    %5108 = vmatprep.subr.bf16.mxu0 0
    %5109 = vmatpush1.bf16.msra.mxu0 0
    %5110 = vmatprep.subr.bf16.mxu0 0
    %5111 = vmatpush1.bf16.msra.mxu0 0
    %5112 = vmatprep.subr.bf16.mxu0 0
    %5113 = vmatpush1.bf16.msra.mxu0 0
    %5114 = vmatprep.subr.bf16.mxu0 0
    %5115 = vmatpush1.bf16.msra.mxu0 0
    %5116 = vmatprep.subr.bf16.mxu0 0
    %5117 = vmatpush1.bf16.msra.mxu0 0
    %5118 = vmatprep.mubr.bf16.mxu0 0
    %5119 = vmatmul.mubr.bf16.gmra.mrb[0].mxu0 %v5037
    %v5120 = vpop.f32.mrb[0].mxu0
    %v5121 = vadd.f32 0.0, %v5120
    %v5122 = vpop.f32.mrb[0].mxu0
    %v5123 = vpop.f32.mrb[0].mxu0
    %v5124 = vadd.f32 0.0, %v5123
    %v5125 = vpop.f32.mrb[0].mxu0
    %5126 = vdwg.mxu0
    %v5127 = vadd.f32 %v5019, %v5121
    %v5128 = vadd.f32 %v5020, %v5124
    %v5129 = vld [vmem:[%s77 + $0x240] sm:$0xf]
    %v5130 = vld [vmem:[%s77 + $0x244] sm:$0xf]
    %v5131 = vld [vmem:[%s77 + $0x248] sm:$0xf]
    %v5132 = vld [vmem:[%s77 + $0x24c] sm:$0xf]
    %v5133 = vld [vmem:[%s77 + $0x250] sm:$0xf]
    %v5134 = vld [vmem:[%s77 + $0x254] sm:$0xf]
    %v5135 = vld [vmem:[%s77 + $0x258] sm:$0xf]
    %v5136 = vld [vmem:[%s77 + $0x25c] sm:$0xf]
    %v5137 = vld [vmem:[%s77 + $0x260] sm:$0xf]
    %v5138 = vld [vmem:[%s77 + $0x264] sm:$0xf]
    %v5139 = vld [vmem:[%s77 + $0x268] sm:$0xf]
    %v5140 = vld [vmem:[%s77 + $0x26c] sm:$0xf]
    %v5141 = vld [vmem:[%s77 + $0x270] sm:$0xf]
    %v5142 = vld [vmem:[%s77 + $0x274] sm:$0xf]
    %v5143 = vld [vmem:[%s77 + $0x278] sm:$0xf]
    %v5144 = vld [vmem:[%s77 + $0x27c] sm:$0xf]
    %v5145 = vpack.c.bf16 %v4155, %v4140
    %v5162 = vunpack.c.l.b16 %v5129
    %v5163 = vunpack.c.l.b16 %v5130
    %v5164 = vunpack.c.l.b16 %v5131
    %v5165 = vunpack.c.l.b16 %v5132
    %v5166 = vunpack.c.l.b16 %v5133
    %v5167 = vunpack.c.l.b16 %v5134
    %v5168 = vunpack.c.l.b16 %v5135
    %v5169 = vunpack.c.l.b16 %v5136
    %v5170 = vunpack.c.l.b16 %v5137
    %v5171 = vunpack.c.l.b16 %v5138
    %v5172 = vunpack.c.l.b16 %v5139
    %v5173 = vunpack.c.l.b16 %v5140
    %v5174 = vunpack.c.l.b16 %v5141
    %v5175 = vunpack.c.l.b16 %v5142
    %v5176 = vunpack.c.l.b16 %v5143
    %v5177 = vunpack.c.l.b16 %v5144
    %v5178 = vpack.c.b16 %v5163, %v5162
    %v5179 = vpack.c.b16 %v5165, %v5164
    %v5180 = vpack.c.b16 %v5167, %v5166
    %v5181 = vpack.c.b16 %v5169, %v5168
    %v5182 = vpack.c.b16 %v5171, %v5170
    %v5183 = vpack.c.b16 %v5173, %v5172
    %v5184 = vpack.c.b16 %v5175, %v5174
    %v5185 = vpack.c.b16 %v5177, %v5176
    %5194 = vmatprep.subr.bf16.mxu0 0
    %5195 = vmatpush1.bf16.msra.mxu0 %v5178
    %5196 = vmatprep.subr.bf16.mxu0 0
    %5197 = vmatpush1.bf16.msra.mxu0 %v5179
    %5198 = vmatprep.subr.bf16.mxu0 0
    %5199 = vmatpush1.bf16.msra.mxu0 %v5180
    %5200 = vmatprep.subr.bf16.mxu0 0
    %5201 = vmatpush1.bf16.msra.mxu0 %v5181
    %5202 = vmatprep.subr.bf16.mxu0 0
    %5203 = vmatpush1.bf16.msra.mxu0 %v5182
    %5204 = vmatprep.subr.bf16.mxu0 0
    %5205 = vmatpush1.bf16.msra.mxu0 %v5183
    %5206 = vmatprep.subr.bf16.mxu0 0
    %5207 = vmatpush1.bf16.msra.mxu0 %v5184
    %5208 = vmatprep.subr.bf16.mxu0 0
    %5209 = vmatpush1.bf16.msra.mxu0 %v5185
    %5210 = vmatprep.subr.bf16.mxu0 0
    %5211 = vmatpush1.bf16.msra.mxu0 0
    %5212 = vmatprep.subr.bf16.mxu0 0
    %5213 = vmatpush1.bf16.msra.mxu0 0
    %5214 = vmatprep.subr.bf16.mxu0 0
    %5215 = vmatpush1.bf16.msra.mxu0 0
    %5216 = vmatprep.subr.bf16.mxu0 0
    %5217 = vmatpush1.bf16.msra.mxu0 0
    %5218 = vmatprep.subr.bf16.mxu0 0
    %5219 = vmatpush1.bf16.msra.mxu0 0
    %5220 = vmatprep.subr.bf16.mxu0 0
    %5221 = vmatpush1.bf16.msra.mxu0 0
    %5222 = vmatprep.subr.bf16.mxu0 0
    %5223 = vmatpush1.bf16.msra.mxu0 0
    %5224 = vmatprep.subr.bf16.mxu0 0
    %5225 = vmatpush1.bf16.msra.mxu0 0
    %5226 = vmatprep.mubr.bf16.mxu0 0
    %5227 = vmatmul.mubr.bf16.gmra.mrb[0].mxu0 %v5145
    %v5228 = vpop.f32.mrb[0].mxu0
    %v5229 = vadd.f32 0.0, %v5228
    %v5230 = vpop.f32.mrb[0].mxu0
    %v5231 = vpop.f32.mrb[0].mxu0
    %v5232 = vadd.f32 0.0, %v5231
    %v5233 = vpop.f32.mrb[0].mxu0
    %5234 = vdwg.mxu0
    %v5235 = vadd.f32 %v5127, %v5229
    %v5236 = vadd.f32 %v5128, %v5232
    %v5237 = vld [vmem:[%s77 + $0x280] sm:$0xf]
    %v5238 = vld [vmem:[%s77 + $0x284] sm:$0xf]
    %v5239 = vld [vmem:[%s77 + $0x288] sm:$0xf]
    %v5240 = vld [vmem:[%s77 + $0x28c] sm:$0xf]
    %v5241 = vld [vmem:[%s77 + $0x290] sm:$0xf]
    %v5242 = vld [vmem:[%s77 + $0x294] sm:$0xf]
    %v5243 = vld [vmem:[%s77 + $0x298] sm:$0xf]
    %v5244 = vld [vmem:[%s77 + $0x29c] sm:$0xf]
    %v5245 = vld [vmem:[%s77 + $0x2a0] sm:$0xf]
    %v5246 = vld [vmem:[%s77 + $0x2a4] sm:$0xf]
    %v5247 = vld [vmem:[%s77 + $0x2a8] sm:$0xf]
    %v5248 = vld [vmem:[%s77 + $0x2ac] sm:$0xf]
    %v5249 = vld [vmem:[%s77 + $0x2b0] sm:$0xf]
    %v5250 = vld [vmem:[%s77 + $0x2b4] sm:$0xf]
    %v5251 = vld [vmem:[%s77 + $0x2b8] sm:$0xf]
    %v5252 = vld [vmem:[%s77 + $0x2bc] sm:$0xf]
    %v5253 = vpack.c.bf16 %v4156, %v4141
    %v5270 = vunpack.c.l.b16 %v5237
    %v5271 = vunpack.c.l.b16 %v5238
    %v5272 = vunpack.c.l.b16 %v5239
    %v5273 = vunpack.c.l.b16 %v5240
    %v5274 = vunpack.c.l.b16 %v5241
    %v5275 = vunpack.c.l.b16 %v5242
    %v5276 = vunpack.c.l.b16 %v5243
    %v5277 = vunpack.c.l.b16 %v5244
    %v5278 = vunpack.c.l.b16 %v5245
    %v5279 = vunpack.c.l.b16 %v5246
    %v5280 = vunpack.c.l.b16 %v5247
    %v5281 = vunpack.c.l.b16 %v5248
    %v5282 = vunpack.c.l.b16 %v5249
    %v5283 = vunpack.c.l.b16 %v5250
    %v5284 = vunpack.c.l.b16 %v5251
    %v5285 = vunpack.c.l.b16 %v5252
    %v5286 = vpack.c.b16 %v5271, %v5270
    %v5287 = vpack.c.b16 %v5273, %v5272
    %v5288 = vpack.c.b16 %v5275, %v5274
    %v5289 = vpack.c.b16 %v5277, %v5276
    %v5290 = vpack.c.b16 %v5279, %v5278
    %v5291 = vpack.c.b16 %v5281, %v5280
    %v5292 = vpack.c.b16 %v5283, %v5282
    %v5293 = vpack.c.b16 %v5285, %v5284
    %5302 = vmatprep.subr.bf16.mxu0 0
    %5303 = vmatpush1.bf16.msra.mxu0 %v5286
    %5304 = vmatprep.subr.bf16.mxu0 0
    %5305 = vmatpush1.bf16.msra.mxu0 %v5287
    %5306 = vmatprep.subr.bf16.mxu0 0
    %5307 = vmatpush1.bf16.msra.mxu0 %v5288
    %5308 = vmatprep.subr.bf16.mxu0 0
    %5309 = vmatpush1.bf16.msra.mxu0 %v5289
    %5310 = vmatprep.subr.bf16.mxu0 0
    %5311 = vmatpush1.bf16.msra.mxu0 %v5290
    %5312 = vmatprep.subr.bf16.mxu0 0
    %5313 = vmatpush1.bf16.msra.mxu0 %v5291
    %5314 = vmatprep.subr.bf16.mxu0 0
    %5315 = vmatpush1.bf16.msra.mxu0 %v5292
    %5316 = vmatprep.subr.bf16.mxu0 0
    %5317 = vmatpush1.bf16.msra.mxu0 %v5293
    %5318 = vmatprep.subr.bf16.mxu0 0
    %5319 = vmatpush1.bf16.msra.mxu0 0
    %5320 = vmatprep.subr.bf16.mxu0 0
    %5321 = vmatpush1.bf16.msra.mxu0 0
    %5322 = vmatprep.subr.bf16.mxu0 0
    %5323 = vmatpush1.bf16.msra.mxu0 0
    %5324 = vmatprep.subr.bf16.mxu0 0
    %5325 = vmatpush1.bf16.msra.mxu0 0
    %5326 = vmatprep.subr.bf16.mxu0 0
    %5327 = vmatpush1.bf16.msra.mxu0 0
    %5328 = vmatprep.subr.bf16.mxu0 0
    %5329 = vmatpush1.bf16.msra.mxu0 0
    %5330 = vmatprep.subr.bf16.mxu0 0
    %5331 = vmatpush1.bf16.msra.mxu0 0
    %5332 = vmatprep.subr.bf16.mxu0 0
    %5333 = vmatpush1.bf16.msra.mxu0 0
    %5334 = vmatprep.mubr.bf16.mxu0 0
    %5335 = vmatmul.mubr.bf16.gmra.mrb[0].mxu0 %v5253
    %v5336 = vpop.f32.mrb[0].mxu0
    %v5337 = vadd.f32 0.0, %v5336
    %v5338 = vpop.f32.mrb[0].mxu0
    %v5339 = vpop.f32.mrb[0].mxu0
    %v5340 = vadd.f32 0.0, %v5339
    %v5341 = vpop.f32.mrb[0].mxu0
    %5342 = vdwg.mxu0
    %v5343 = vadd.f32 %v5235, %v5337
    %v5344 = vadd.f32 %v5236, %v5340
    %v5345 = vld [vmem:[%s77 + $0x2c0] sm:$0xf]
    %v5346 = vld [vmem:[%s77 + $0x2c4] sm:$0xf]
    %v5347 = vld [vmem:[%s77 + $0x2c8] sm:$0xf]
    %v5348 = vld [vmem:[%s77 + $0x2cc] sm:$0xf]
    %v5349 = vld [vmem:[%s77 + $0x2d0] sm:$0xf]
    %v5350 = vld [vmem:[%s77 + $0x2d4] sm:$0xf]
    %v5351 = vld [vmem:[%s77 + $0x2d8] sm:$0xf]
    %v5352 = vld [vmem:[%s77 + $0x2dc] sm:$0xf]
    %v5353 = vld [vmem:[%s77 + $0x2e0] sm:$0xf]
    %v5354 = vld [vmem:[%s77 + $0x2e4] sm:$0xf]
    %v5355 = vld [vmem:[%s77 + $0x2e8] sm:$0xf]
    %v5356 = vld [vmem:[%s77 + $0x2ec] sm:$0xf]
    %v5357 = vld [vmem:[%s77 + $0x2f0] sm:$0xf]
    %v5358 = vld [vmem:[%s77 + $0x2f4] sm:$0xf]
    %v5359 = vld [vmem:[%s77 + $0x2f8] sm:$0xf]
    %v5360 = vld [vmem:[%s77 + $0x2fc] sm:$0xf]
    %v5361 = vpack.c.bf16 %v4157, %v4142
    %v5378 = vunpack.c.l.b16 %v5345
    %v5379 = vunpack.c.l.b16 %v5346
    %v5380 = vunpack.c.l.b16 %v5347
    %v5381 = vunpack.c.l.b16 %v5348
    %v5382 = vunpack.c.l.b16 %v5349
    %v5383 = vunpack.c.l.b16 %v5350
    %v5384 = vunpack.c.l.b16 %v5351
    %v5385 = vunpack.c.l.b16 %v5352
    %v5386 = vunpack.c.l.b16 %v5353
    %v5387 = vunpack.c.l.b16 %v5354
    %v5388 = vunpack.c.l.b16 %v5355
    %v5389 = vunpack.c.l.b16 %v5356
    %v5390 = vunpack.c.l.b16 %v5357
    %v5391 = vunpack.c.l.b16 %v5358
    %v5392 = vunpack.c.l.b16 %v5359
    %v5393 = vunpack.c.l.b16 %v5360
    %v5394 = vpack.c.b16 %v5379, %v5378
    %v5395 = vpack.c.b16 %v5381, %v5380
    %v5396 = vpack.c.b16 %v5383, %v5382
    %v5397 = vpack.c.b16 %v5385, %v5384
    %v5398 = vpack.c.b16 %v5387, %v5386
    %v5399 = vpack.c.b16 %v5389, %v5388
    %v5400 = vpack.c.b16 %v5391, %v5390
    %v5401 = vpack.c.b16 %v5393, %v5392
    %5410 = vmatprep.subr.bf16.mxu0 0
    %5411 = vmatpush1.bf16.msra.mxu0 %v5394
    %5412 = vmatprep.subr.bf16.mxu0 0
    %5413 = vmatpush1.bf16.msra.mxu0 %v5395
    %5414 = vmatprep.subr.bf16.mxu0 0
    %5415 = vmatpush1.bf16.msra.mxu0 %v5396
    %5416 = vmatprep.subr.bf16.mxu0 0
    %5417 = vmatpush1.bf16.msra.mxu0 %v5397
    %5418 = vmatprep.subr.bf16.mxu0 0
    %5419 = vmatpush1.bf16.msra.mxu0 %v5398
    %5420 = vmatprep.subr.bf16.mxu0 0
    %5421 = vmatpush1.bf16.msra.mxu0 %v5399
    %5422 = vmatprep.subr.bf16.mxu0 0
    %5423 = vmatpush1.bf16.msra.mxu0 %v5400
    %5424 = vmatprep.subr.bf16.mxu0 0
    %5425 = vmatpush1.bf16.msra.mxu0 %v5401
    %5426 = vmatprep.subr.bf16.mxu0 0
    %5427 = vmatpush1.bf16.msra.mxu0 0
    %5428 = vmatprep.subr.bf16.mxu0 0
    %5429 = vmatpush1.bf16.msra.mxu0 0
    %5430 = vmatprep.subr.bf16.mxu0 0
    %5431 = vmatpush1.bf16.msra.mxu0 0
    %5432 = vmatprep.subr.bf16.mxu0 0
    %5433 = vmatpush1.bf16.msra.mxu0 0
    %5434 = vmatprep.subr.bf16.mxu0 0
    %5435 = vmatpush1.bf16.msra.mxu0 0
    %5436 = vmatprep.subr.bf16.mxu0 0
    %5437 = vmatpush1.bf16.msra.mxu0 0
    %5438 = vmatprep.subr.bf16.mxu0 0
    %5439 = vmatpush1.bf16.msra.mxu0 0
    %5440 = vmatprep.subr.bf16.mxu0 0
    %5441 = vmatpush1.bf16.msra.mxu0 0
    %5442 = vmatprep.mubr.bf16.mxu0 0
    %5443 = vmatmul.mubr.bf16.gmra.mrb[0].mxu0 %v5361
    %v5444 = vpop.f32.mrb[0].mxu0
    %v5445 = vadd.f32 0.0, %v5444
    %v5446 = vpop.f32.mrb[0].mxu0
    %v5447 = vpop.f32.mrb[0].mxu0
    %v5448 = vadd.f32 0.0, %v5447
    %v5449 = vpop.f32.mrb[0].mxu0
    %5450 = vdwg.mxu0
    %v5451 = vadd.f32 %v5343, %v5445
    %v5452 = vadd.f32 %v5344, %v5448
    %v5453 = vld [vmem:[%s77 + $0x300] sm:$0xf]
    %v5454 = vld [vmem:[%s77 + $0x304] sm:$0xf]
    %v5455 = vld [vmem:[%s77 + $0x308] sm:$0xf]
    %v5456 = vld [vmem:[%s77 + $0x30c] sm:$0xf]
    %v5457 = vld [vmem:[%s77 + $0x310] sm:$0xf]
    %v5458 = vld [vmem:[%s77 + $0x314] sm:$0xf]
    %v5459 = vld [vmem:[%s77 + $0x318] sm:$0xf]
    %v5460 = vld [vmem:[%s77 + $0x31c] sm:$0xf]
    %v5461 = vld [vmem:[%s77 + $0x320] sm:$0xf]
    %v5462 = vld [vmem:[%s77 + $0x324] sm:$0xf]
    %v5463 = vld [vmem:[%s77 + $0x328] sm:$0xf]
    %v5464 = vld [vmem:[%s77 + $0x32c] sm:$0xf]
    %v5465 = vld [vmem:[%s77 + $0x330] sm:$0xf]
    %v5466 = vld [vmem:[%s77 + $0x334] sm:$0xf]
    %v5467 = vld [vmem:[%s77 + $0x338] sm:$0xf]
    %v5468 = vld [vmem:[%s77 + $0x33c] sm:$0xf]
    %v5469 = vpack.c.bf16 %v4158, %v4143
    %v5486 = vunpack.c.l.b16 %v5453
    %v5487 = vunpack.c.l.b16 %v5454
    %v5488 = vunpack.c.l.b16 %v5455
    %v5489 = vunpack.c.l.b16 %v5456
    %v5490 = vunpack.c.l.b16 %v5457
    %v5491 = vunpack.c.l.b16 %v5458
    %v5492 = vunpack.c.l.b16 %v5459
    %v5493 = vunpack.c.l.b16 %v5460
    %v5494 = vunpack.c.l.b16 %v5461
    %v5495 = vunpack.c.l.b16 %v5462
    %v5496 = vunpack.c.l.b16 %v5463
    %v5497 = vunpack.c.l.b16 %v5464
    %v5498 = vunpack.c.l.b16 %v5465
    %v5499 = vunpack.c.l.b16 %v5466
    %v5500 = vunpack.c.l.b16 %v5467
    %v5501 = vunpack.c.l.b16 %v5468
    %v5502 = vpack.c.b16 %v5487, %v5486
    %v5503 = vpack.c.b16 %v5489, %v5488
    %v5504 = vpack.c.b16 %v5491, %v5490
    %v5505 = vpack.c.b16 %v5493, %v5492
    %v5506 = vpack.c.b16 %v5495, %v5494
    %v5507 = vpack.c.b16 %v5497, %v5496
    %v5508 = vpack.c.b16 %v5499, %v5498
    %v5509 = vpack.c.b16 %v5501, %v5500
    %5518 = vmatprep.subr.bf16.mxu0 0
    %5519 = vmatpush1.bf16.msra.mxu0 %v5502
    %5520 = vmatprep.subr.bf16.mxu0 0
    %5521 = vmatpush1.bf16.msra.mxu0 %v5503
    %5522 = vmatprep.subr.bf16.mxu0 0
    %5523 = vmatpush1.bf16.msra.mxu0 %v5504
    %5524 = vmatprep.subr.bf16.mxu0 0
    %5525 = vmatpush1.bf16.msra.mxu0 %v5505
    %5526 = vmatprep.subr.bf16.mxu0 0
    %5527 = vmatpush1.bf16.msra.mxu0 %v5506
    %5528 = vmatprep.subr.bf16.mxu0 0
    %5529 = vmatpush1.bf16.msra.mxu0 %v5507
    %5530 = vmatprep.subr.bf16.mxu0 0
    %5531 = vmatpush1.bf16.msra.mxu0 %v5508
    %5532 = vmatprep.subr.bf16.mxu0 0
    %5533 = vmatpush1.bf16.msra.mxu0 %v5509
    %5534 = vmatprep.subr.bf16.mxu0 0
    %5535 = vmatpush1.bf16.msra.mxu0 0
    %5536 = vmatprep.subr.bf16.mxu0 0
    %5537 = vmatpush1.bf16.msra.mxu0 0
    %5538 = vmatprep.subr.bf16.mxu0 0
    %5539 = vmatpush1.bf16.msra.mxu0 0
    %5540 = vmatprep.subr.bf16.mxu0 0
    %5541 = vmatpush1.bf16.msra.mxu0 0
    %5542 = vmatprep.subr.bf16.mxu0 0
    %5543 = vmatpush1.bf16.msra.mxu0 0
    %5544 = vmatprep.subr.bf16.mxu0 0
    %5545 = vmatpush1.bf16.msra.mxu0 0
    %5546 = vmatprep.subr.bf16.mxu0 0
    %5547 = vmatpush1.bf16.msra.mxu0 0
    %5548 = vmatprep.subr.bf16.mxu0 0
    %5549 = vmatpush1.bf16.msra.mxu0 0
    %5550 = vmatprep.mubr.bf16.mxu0 0
    %5551 = vmatmul.mubr.bf16.gmra.mrb[0].mxu0 %v5469
    %v5552 = vpop.f32.mrb[0].mxu0
    %v5553 = vadd.f32 0.0, %v5552
    %v5554 = vpop.f32.mrb[0].mxu0
    %v5555 = vpop.f32.mrb[0].mxu0
    %v5556 = vadd.f32 0.0, %v5555
    %v5557 = vpop.f32.mrb[0].mxu0
    %5558 = vdwg.mxu0
    %v5559 = vadd.f32 %v5451, %v5553
    %v5560 = vadd.f32 %v5452, %v5556
    %v5561 = vld [vmem:[%s77 + $0x340] sm:$0xf]
    %v5562 = vld [vmem:[%s77 + $0x344] sm:$0xf]
    %v5563 = vld [vmem:[%s77 + $0x348] sm:$0xf]
    %v5564 = vld [vmem:[%s77 + $0x34c] sm:$0xf]
    %v5565 = vld [vmem:[%s77 + $0x350] sm:$0xf]
    %v5566 = vld [vmem:[%s77 + $0x354] sm:$0xf]
    %v5567 = vld [vmem:[%s77 + $0x358] sm:$0xf]
    %v5568 = vld [vmem:[%s77 + $0x35c] sm:$0xf]
    %v5569 = vld [vmem:[%s77 + $0x360] sm:$0xf]
    %v5570 = vld [vmem:[%s77 + $0x364] sm:$0xf]
    %v5571 = vld [vmem:[%s77 + $0x368] sm:$0xf]
    %v5572 = vld [vmem:[%s77 + $0x36c] sm:$0xf]
    %v5573 = vld [vmem:[%s77 + $0x370] sm:$0xf]
    %v5574 = vld [vmem:[%s77 + $0x374] sm:$0xf]
    %v5575 = vld [vmem:[%s77 + $0x378] sm:$0xf]
    %v5576 = vld [vmem:[%s77 + $0x37c] sm:$0xf]
    %v5577 = vpack.c.bf16 %v4159, %v4144
    %v5594 = vunpack.c.l.b16 %v5561
    %v5595 = vunpack.c.l.b16 %v5562
    %v5596 = vunpack.c.l.b16 %v5563
    %v5597 = vunpack.c.l.b16 %v5564
    %v5598 = vunpack.c.l.b16 %v5565
    %v5599 = vunpack.c.l.b16 %v5566
    %v5600 = vunpack.c.l.b16 %v5567
    %v5601 = vunpack.c.l.b16 %v5568
    %v5602 = vunpack.c.l.b16 %v5569
    %v5603 = vunpack.c.l.b16 %v5570
    %v5604 = vunpack.c.l.b16 %v5571
    %v5605 = vunpack.c.l.b16 %v5572
    %v5606 = vunpack.c.l.b16 %v5573
    %v5607 = vunpack.c.l.b16 %v5574
    %v5608 = vunpack.c.l.b16 %v5575
    %v5609 = vunpack.c.l.b16 %v5576
    %v5610 = vpack.c.b16 %v5595, %v5594
    %v5611 = vpack.c.b16 %v5597, %v5596
    %v5612 = vpack.c.b16 %v5599, %v5598
    %v5613 = vpack.c.b16 %v5601, %v5600
    %v5614 = vpack.c.b16 %v5603, %v5602
    %v5615 = vpack.c.b16 %v5605, %v5604
    %v5616 = vpack.c.b16 %v5607, %v5606
    %v5617 = vpack.c.b16 %v5609, %v5608
    %5626 = vmatprep.subr.bf16.mxu0 0
    %5627 = vmatpush1.bf16.msra.mxu0 %v5610
    %5628 = vmatprep.subr.bf16.mxu0 0
    %5629 = vmatpush1.bf16.msra.mxu0 %v5611
    %5630 = vmatprep.subr.bf16.mxu0 0
    %5631 = vmatpush1.bf16.msra.mxu0 %v5612
    %5632 = vmatprep.subr.bf16.mxu0 0
    %5633 = vmatpush1.bf16.msra.mxu0 %v5613
    %5634 = vmatprep.subr.bf16.mxu0 0
    %5635 = vmatpush1.bf16.msra.mxu0 %v5614
    %5636 = vmatprep.subr.bf16.mxu0 0
    %5637 = vmatpush1.bf16.msra.mxu0 %v5615
    %5638 = vmatprep.subr.bf16.mxu0 0
    %5639 = vmatpush1.bf16.msra.mxu0 %v5616
    %5640 = vmatprep.subr.bf16.mxu0 0
    %5641 = vmatpush1.bf16.msra.mxu0 %v5617
    %5642 = vmatprep.subr.bf16.mxu0 0
    %5643 = vmatpush1.bf16.msra.mxu0 0
    %5644 = vmatprep.subr.bf16.mxu0 0
    %5645 = vmatpush1.bf16.msra.mxu0 0
    %5646 = vmatprep.subr.bf16.mxu0 0
    %5647 = vmatpush1.bf16.msra.mxu0 0
    %5648 = vmatprep.subr.bf16.mxu0 0
    %5649 = vmatpush1.bf16.msra.mxu0 0
    %5650 = vmatprep.subr.bf16.mxu0 0
    %5651 = vmatpush1.bf16.msra.mxu0 0
    %5652 = vmatprep.subr.bf16.mxu0 0
    %5653 = vmatpush1.bf16.msra.mxu0 0
    %5654 = vmatprep.subr.bf16.mxu0 0
    %5655 = vmatpush1.bf16.msra.mxu0 0
    %5656 = vmatprep.subr.bf16.mxu0 0
    %5657 = vmatpush1.bf16.msra.mxu0 0
    %5658 = vmatprep.mubr.bf16.mxu0 0
    %5659 = vmatmul.mubr.bf16.gmra.mrb[0].mxu0 %v5577
    %v5660 = vpop.f32.mrb[0].mxu0
    %v5661 = vadd.f32 0.0, %v5660
    %v5662 = vpop.f32.mrb[0].mxu0
    %v5663 = vpop.f32.mrb[0].mxu0
    %v5664 = vadd.f32 0.0, %v5663
    %v5665 = vpop.f32.mrb[0].mxu0
    %5666 = vdwg.mxu0
    %v5667 = vadd.f32 %v5559, %v5661
    %v5668 = vadd.f32 %v5560, %v5664
    %v5669 = vld [vmem:[%s77 + $0x380] sm:$0xf]
    %v5670 = vld [vmem:[%s77 + $0x384] sm:$0xf]
    %v5671 = vld [vmem:[%s77 + $0x388] sm:$0xf]
    %v5672 = vld [vmem:[%s77 + $0x38c] sm:$0xf]
    %v5673 = vld [vmem:[%s77 + $0x390] sm:$0xf]
    %v5674 = vld [vmem:[%s77 + $0x394] sm:$0xf]
    %v5675 = vld [vmem:[%s77 + $0x398] sm:$0xf]
    %v5676 = vld [vmem:[%s77 + $0x39c] sm:$0xf]
    %v5677 = vld [vmem:[%s77 + $0x3a0] sm:$0xf]
    %v5678 = vld [vmem:[%s77 + $0x3a4] sm:$0xf]
    %v5679 = vld [vmem:[%s77 + $0x3a8] sm:$0xf]
    %v5680 = vld [vmem:[%s77 + $0x3ac] sm:$0xf]
    %v5681 = vld [vmem:[%s77 + $0x3b0] sm:$0xf]
    %v5682 = vld [vmem:[%s77 + $0x3b4] sm:$0xf]
    %v5683 = vld [vmem:[%s77 + $0x3b8] sm:$0xf]
    %v5684 = vld [vmem:[%s77 + $0x3bc] sm:$0xf]
    %v5685 = vpack.c.bf16 %v4160, %v4145
    %v5702 = vunpack.c.l.b16 %v5669
    %v5703 = vunpack.c.l.b16 %v5670
    %v5704 = vunpack.c.l.b16 %v5671
    %v5705 = vunpack.c.l.b16 %v5672
    %v5706 = vunpack.c.l.b16 %v5673
    %v5707 = vunpack.c.l.b16 %v5674
    %v5708 = vunpack.c.l.b16 %v5675
    %v5709 = vunpack.c.l.b16 %v5676
    %v5710 = vunpack.c.l.b16 %v5677
    %v5711 = vunpack.c.l.b16 %v5678
    %v5712 = vunpack.c.l.b16 %v5679
    %v5713 = vunpack.c.l.b16 %v5680
    %v5714 = vunpack.c.l.b16 %v5681
    %v5715 = vunpack.c.l.b16 %v5682
    %v5716 = vunpack.c.l.b16 %v5683
    %v5717 = vunpack.c.l.b16 %v5684
    %v5718 = vpack.c.b16 %v5703, %v5702
    %v5719 = vpack.c.b16 %v5705, %v5704
    %v5720 = vpack.c.b16 %v5707, %v5706
    %v5721 = vpack.c.b16 %v5709, %v5708
    %v5722 = vpack.c.b16 %v5711, %v5710
    %v5723 = vpack.c.b16 %v5713, %v5712
    %v5724 = vpack.c.b16 %v5715, %v5714
    %v5725 = vpack.c.b16 %v5717, %v5716
    %5734 = vmatprep.subr.bf16.mxu0 0
    %5735 = vmatpush1.bf16.msra.mxu0 %v5718
    %5736 = vmatprep.subr.bf16.mxu0 0
    %5737 = vmatpush1.bf16.msra.mxu0 %v5719
    %5738 = vmatprep.subr.bf16.mxu0 0
    %5739 = vmatpush1.bf16.msra.mxu0 %v5720
    %5740 = vmatprep.subr.bf16.mxu0 0
    %5741 = vmatpush1.bf16.msra.mxu0 %v5721
    %5742 = vmatprep.subr.bf16.mxu0 0
    %5743 = vmatpush1.bf16.msra.mxu0 %v5722
    %5744 = vmatprep.subr.bf16.mxu0 0
    %5745 = vmatpush1.bf16.msra.mxu0 %v5723
    %5746 = vmatprep.subr.bf16.mxu0 0
    %5747 = vmatpush1.bf16.msra.mxu0 %v5724
    %5748 = vmatprep.subr.bf16.mxu0 0
    %5749 = vmatpush1.bf16.msra.mxu0 %v5725
    %5750 = vmatprep.subr.bf16.mxu0 0
    %5751 = vmatpush1.bf16.msra.mxu0 0
    %5752 = vmatprep.subr.bf16.mxu0 0
    %5753 = vmatpush1.bf16.msra.mxu0 0
    %5754 = vmatprep.subr.bf16.mxu0 0
    %5755 = vmatpush1.bf16.msra.mxu0 0
    %5756 = vmatprep.subr.bf16.mxu0 0
    %5757 = vmatpush1.bf16.msra.mxu0 0
    %5758 = vmatprep.subr.bf16.mxu0 0
    %5759 = vmatpush1.bf16.msra.mxu0 0
    %5760 = vmatprep.subr.bf16.mxu0 0
    %5761 = vmatpush1.bf16.msra.mxu0 0
    %5762 = vmatprep.subr.bf16.mxu0 0
    %5763 = vmatpush1.bf16.msra.mxu0 0
    %5764 = vmatprep.subr.bf16.mxu0 0
    %5765 = vmatpush1.bf16.msra.mxu0 0
    %5766 = vmatprep.mubr.bf16.mxu0 0
    %5767 = vmatmul.mubr.bf16.gmra.mrb[0].mxu0 %v5685
    %v5768 = vpop.f32.mrb[0].mxu0
    %v5769 = vadd.f32 0.0, %v5768
    %v5770 = vpop.f32.mrb[0].mxu0
    %v5771 = vpop.f32.mrb[0].mxu0
    %v5772 = vadd.f32 0.0, %v5771
    %v5773 = vpop.f32.mrb[0].mxu0
    %5774 = vdwg.mxu0
    %v5775 = vadd.f32 %v5667, %v5769
    %v5776 = vadd.f32 %v5668, %v5772
    %v5777 = vld [vmem:[%s79] sm:$0x1]
    %v5779 = vlaneseq
    %v5780 = vshrl.u32 %v5779, 7
    %v5781 = vsub.s32 0, %v5780
    %v5782 = vrot.slane %v5777, %v5781
    %v5784 = vadd.f32 %v5775, %v5782
    %v5785 = vadd.f32 %v5776, %v5782
    %v5786 = vld [vmem:[%s29] sm:$0xff]
    %v5787 = vld [vmem:[%s29 + $0x8] sm:$0xf]
    %v5788 = vld [vmem:[%s29 + $0xc] sm:$0xff]
    %v5789 = vld [vmem:[%s29 + $0x14] sm:$0xf]
    %v5790 = vld [vmem:[%s29 + $0x18] sm:$0xff]
    %v5791 = vld [vmem:[%s29 + $0x20] sm:$0xf]
    %v5792 = vld [vmem:[%s29 + $0x24] sm:$0xff]
    %v5793 = vld [vmem:[%s29 + $0x2c] sm:$0xf]
    %v5794 = vld [vmem:[%s29 + $0x30] sm:$0xff]
    %v5795 = vld [vmem:[%s29 + $0x38] sm:$0xf]
    %v5796 = vld [vmem:[%s29 + $0x3c] sm:$0xff]
    %v5797 = vld [vmem:[%s29 + $0x44] sm:$0xf]
    %v5798 = vld [vmem:[%s29 + $0x48] sm:$0xff]
    %v5799 = vld [vmem:[%s29 + $0x50] sm:$0xf]
    %v5800 = vld [vmem:[%s29 + $0x54] sm:$0xff]
    %v5801 = vld [vmem:[%s29 + $0x5c] sm:$0xf]
    %v5802 = vld [vmem:[%s29 + $0x60] sm:$0xff]
    %v5803 = vld [vmem:[%s29 + $0x68] sm:$0xf]
    %v5804 = vld [vmem:[%s29 + $0x6c] sm:$0xff]
    %v5805 = vld [vmem:[%s29 + $0x74] sm:$0xf]
    %v5806 = vld [vmem:[%s29 + $0x78] sm:$0xff]
    %v5807 = vld [vmem:[%s29 + $0x80] sm:$0xf]
    %v5808 = vld [vmem:[%s29 + $0x84] sm:$0xff]
    %v5809 = vld [vmem:[%s29 + $0x8c] sm:$0xf]
    %v5810 = vld [vmem:[%s29 + $0x90] sm:$0xff]
    %v5811 = vld [vmem:[%s29 + $0x98] sm:$0xf]
    %v5812 = vld [vmem:[%s29 + $0x9c] sm:$0xff]
    %v5813 = vld [vmem:[%s29 + $0xa4] sm:$0xf]
    %v5814 = vld [vmem:[%s29 + $0xa8] sm:$0xff]
    %v5815 = vld [vmem:[%s29 + $0xb0] sm:$0xf]
    %v5816 = vld [vmem:[%s29 + $0xb4] sm:$0xff]
    %v5817 = vld [vmem:[%s29 + $0xbc] sm:$0xf]
    %v5818 = vld [vmem:[%s31] sm:$0x7]
    %v5819 = vld [vmem:[%s33] sm:$0xf]
    %v5820 = vld [vmem:[%s33 + $0x4] sm:$0xf]
    %v5821 = vld [vmem:[%s33 + $0x8] sm:$0xf]
    %v5822 = vld [vmem:[%s33 + $0xc] sm:$0xf]
    %v5823 = vld [vmem:[%s33 + $0x10] sm:$0xf]
    %v5824 = vld [vmem:[%s33 + $0x14] sm:$0xf]
    %v5825 = vld [vmem:[%s33 + $0x18] sm:$0xf]
    %v5826 = vld [vmem:[%s33 + $0x1c] sm:$0xf]
    %v5827 = vld [vmem:[%s33 + $0x20] sm:$0xf]
    %v5828 = vld [vmem:[%s33 + $0x24] sm:$0xf]
    %v5829 = vld [vmem:[%s33 + $0x28] sm:$0xf]
    %v5830 = vld [vmem:[%s33 + $0x2c] sm:$0xf]
    %v5831 = vld [vmem:[%s33 + $0x30] sm:$0xf]
    %v5832 = vld [vmem:[%s33 + $0x34] sm:$0xf]
    %v5833 = vld [vmem:[%s33 + $0x38] sm:$0xf]
    %v5834 = vld [vmem:[%s33 + $0x3c] sm:$0xf]
    %v5835 = vld [vmem:[%s35] sm:$0x1]
    %v5836 = vld [vmem:[#allocation5] sm:$0xff]
    %v5837 = vld [vmem:[#allocation5 + $0x8] sm:$0xff]
    %v5838 = vld [vmem:[#allocation5 + $0x10] sm:$0xff]
    %v5839 = vld [vmem:[#allocation5 + $0x18] sm:$0xff]
    %v5840 = vld [vmem:[#allocation5 + $0x20] sm:$0xff]
    %v5841 = vld [vmem:[#allocation5 + $0x28] sm:$0xff]
    %v5842 = vld [vmem:[#allocation5 + $0x30] sm:$0xff]
    %v5843 = vld [vmem:[#allocation5 + $0x38] sm:$0xff]
    %v5844 = vld [vmem:[#allocation5 + $0x40] sm:$0xff]
    %v5845 = vld [vmem:[#allocation5 + $0x48] sm:$0xff]
    %v5846 = vld [vmem:[#allocation5 + $0x50] sm:$0xff]
    %v5847 = vld [vmem:[#allocation5 + $0x58] sm:$0xff]
    %v5848 = vld [vmem:[#allocation5 + $0x60] sm:$0xff]
    %v5849 = vld [vmem:[#allocation5 + $0x68] sm:$0xff]
    %v5850 = vld [vmem:[#allocation5 + $0x70] sm:$0xff]
    %v5851 = vld [vmem:[#allocation5 + $0x78] sm:$0xff]
    %v5852 = vld [vmem:[#allocation5 + $0x80] sm:$0xff]
    %v5853 = vld [vmem:[#allocation5 + $0x88] sm:$0xff]
    %v5854 = vld [vmem:[#allocation5 + $0x90] sm:$0xff]
    %v5855 = vld [vmem:[#allocation5 + $0x98] sm:$0xff]
    %v5856 = vld [vmem:[#allocation5 + $0xa0] sm:$0xff]
    %v5857 = vld [vmem:[#allocation5 + $0xa8] sm:$0xff]
    %v5858 = vld [vmem:[#allocation5 + $0xb0] sm:$0xff]
    %v5859 = vld [vmem:[#allocation5 + $0xb8] sm:$0xff]
    %v5860 = vld [vmem:[#allocation5 + $0xc0] sm:$0xff]
    %v5861 = vld [vmem:[#allocation5 + $0xc8] sm:$0xff]
    %v5862 = vld [vmem:[#allocation5 + $0xd0] sm:$0xff]
    %v5863 = vld [vmem:[#allocation5 + $0xd8] sm:$0xff]
    %v5864 = vld [vmem:[#allocation5 + $0xe0] sm:$0xff]
    %v5865 = vld [vmem:[#allocation5 + $0xe8] sm:$0xff]
    %v5866 = vld [vmem:[#allocation5 + $0xf0] sm:$0xff]
    %v5867 = vld [vmem:[#allocation5 + $0xf8] sm:$0xff]
    %v5868 = vld [vmem:[%s39] sm:$0xf]
    %v5869 = vld [vmem:[#allocation7] sm:$0xf]
    %v5870 = vld [vmem:[#allocation7 + $0x4] sm:$0xf]
    %v5871 = vld [vmem:[#allocation7 + $0x8] sm:$0xf]
    %v5872 = vld [vmem:[#allocation7 + $0xc] sm:$0xf]
    %v5873 = vld [vmem:[#allocation7 + $0x10] sm:$0xf]
    %v5874 = vld [vmem:[#allocation7 + $0x14] sm:$0xf]
    %v5875 = vld [vmem:[#allocation7 + $0x18] sm:$0xf]
    %v5876 = vld [vmem:[#allocation7 + $0x1c] sm:$0xf]
    %v5877 = vld [vmem:[#allocation7 + $0x20] sm:$0xf]
    %v5878 = vld [vmem:[#allocation7 + $0x24] sm:$0xf]
    %v5879 = vld [vmem:[#allocation7 + $0x28] sm:$0xf]
    %v5880 = vld [vmem:[#allocation7 + $0x2c] sm:$0xf]
    %v5881 = vld [vmem:[#allocation7 + $0x30] sm:$0xf]
    %v5882 = vld [vmem:[#allocation7 + $0x34] sm:$0xf]
    %v5883 = vld [vmem:[#allocation7 + $0x38] sm:$0xf]
    %v5884 = vld [vmem:[#allocation7 + $0x3c] sm:$0xf]
    %v5885 = vld [vmem:[#allocation7 + $0x40] sm:$0xf]
    %v5886 = vld [vmem:[#allocation7 + $0x44] sm:$0xf]
    %v5887 = vld [vmem:[#allocation7 + $0x48] sm:$0xf]
    %v5888 = vld [vmem:[#allocation7 + $0x4c] sm:$0xf]
    %v5889 = vld [vmem:[#allocation7 + $0x50] sm:$0xf]
    %v5890 = vld [vmem:[#allocation7 + $0x54] sm:$0xf]
    %v5891 = vld [vmem:[#allocation7 + $0x58] sm:$0xf]
    %v5892 = vld [vmem:[#allocation7 + $0x5c] sm:$0xf]
    %v5893 = vld [vmem:[#allocation7 + $0x60] sm:$0xf]
    %v5894 = vld [vmem:[#allocation7 + $0x64] sm:$0xf]
    %v5895 = vld [vmem:[#allocation7 + $0x68] sm:$0xf]
    %v5896 = vld [vmem:[#allocation7 + $0x6c] sm:$0xf]
    %v5897 = vld [vmem:[#allocation7 + $0x70] sm:$0xf]
    %v5898 = vld [vmem:[#allocation7 + $0x74] sm:$0xf]
    %v5899 = vld [vmem:[#allocation7 + $0x78] sm:$0xf]
    %v5900 = vld [vmem:[#allocation7 + $0x7c] sm:$0xf]
    %v5901 = vld [vmem:[#allocation7 + $0x80] sm:$0xf]
    %v5902 = vld [vmem:[#allocation7 + $0x84] sm:$0xf]
    %v5903 = vld [vmem:[#allocation7 + $0x88] sm:$0xf]
    %v5904 = vld [vmem:[#allocation7 + $0x8c] sm:$0xf]
    %v5905 = vld [vmem:[#allocation7 + $0x90] sm:$0xf]
    %v5906 = vld [vmem:[#allocation7 + $0x94] sm:$0xf]
    %v5907 = vld [vmem:[#allocation7 + $0x98] sm:$0xf]
    %v5908 = vld [vmem:[#allocation7 + $0x9c] sm:$0xf]
    %v5909 = vld [vmem:[#allocation7 + $0xa0] sm:$0xf]
    %v5910 = vld [vmem:[#allocation7 + $0xa4] sm:$0xf]
    %v5911 = vld [vmem:[#allocation7 + $0xa8] sm:$0xf]
    %v5912 = vld [vmem:[#allocation7 + $0xac] sm:$0xf]
    %v5913 = vld [vmem:[#allocation7 + $0xb0] sm:$0xf]
    %v5914 = vld [vmem:[#allocation7 + $0xb4] sm:$0xf]
    %v5915 = vld [vmem:[#allocation7 + $0xb8] sm:$0xf]
    %v5916 = vld [vmem:[#allocation7 + $0xbc] sm:$0xf]
    %v5917 = vld [vmem:[#allocation7 + $0xc0] sm:$0xf]
    %v5918 = vld [vmem:[#allocation7 + $0xc4] sm:$0xf]
    %v5919 = vld [vmem:[#allocation7 + $0xc8] sm:$0xf]
    %v5920 = vld [vmem:[#allocation7 + $0xcc] sm:$0xf]
    %v5921 = vld [vmem:[#allocation7 + $0xd0] sm:$0xf]
    %v5922 = vld [vmem:[#allocation7 + $0xd4] sm:$0xf]
    %v5923 = vld [vmem:[#allocation7 + $0xd8] sm:$0xf]
    %v5924 = vld [vmem:[#allocation7 + $0xdc] sm:$0xf]
    %v5925 = vld [vmem:[#allocation7 + $0xe0] sm:$0xf]
    %v5926 = vld [vmem:[#allocation7 + $0xe4] sm:$0xf]
    %v5927 = vld [vmem:[#allocation7 + $0xe8] sm:$0xf]
    %v5928 = vld [vmem:[#allocation7 + $0xec] sm:$0xf]
    %v5929 = vld [vmem:[#allocation7 + $0xf0] sm:$0xf]
    %v5930 = vld [vmem:[#allocation7 + $0xf4] sm:$0xf]
    %v5931 = vld [vmem:[#allocation7 + $0xf8] sm:$0xf]
    %v5932 = vld [vmem:[#allocation7 + $0xfc] sm:$0xf]
    %v5933 = vld [vmem:[%s43] sm:$0x1]
    %v5934 = vld [vmem:[%s45] sm:$0x1]
    %v5935 = vld [vmem:[%s47] sm:$0x1]
    %v5936 = vld [vmem:[%s49] sm:$0x1]
    %v5937 = vld [vmem:[%s51] sm:$0x1]
    %v5938 = vpack.c.bf16 %v5785, %v5784
    %v5940 = vlaneseq
    %v5941 = vshrl.u32 %v5940, 7
    %v5942 = vsub.s32 0, %v5941
    %v5943 = vrot.slane %v5818, %v5942
    %v5944 = vlaneseq
    %v5945 = vshrl.u32 %v5944, 7
    %v5946 = vsub.s32 1, %v5945
    %v5947 = vrot.slane %v5818, %v5946
    %v5948 = vlaneseq
    %v5949 = vshrl.u32 %v5948, 7
    %v5950 = vsub.s32 2, %v5949
    %v5951 = vrot.slane %v5818, %v5950
    %v5987 = vunpack.c.l.b16 %v5786
    %v5988 = vunpack.c.h.b16 %v5786
    %v5989 = vunpack.c.l.b16 %v5787
    %v5990 = vunpack.c.l.b16 %v5788
    %v5991 = vunpack.c.h.b16 %v5788
    %v5992 = vunpack.c.l.b16 %v5789
    %v5993 = vunpack.c.l.b16 %v5790
    %v5994 = vunpack.c.h.b16 %v5790
    %v5995 = vunpack.c.l.b16 %v5791
    %v5996 = vunpack.c.l.b16 %v5792
    %v5997 = vunpack.c.h.b16 %v5792
    %v5998 = vunpack.c.l.b16 %v5793
    %v5999 = vunpack.c.l.b16 %v5794
    %v6000 = vunpack.c.h.b16 %v5794
    %v6001 = vunpack.c.l.b16 %v5795
    %v6002 = vunpack.c.l.b16 %v5796
    %v6003 = vunpack.c.h.b16 %v5796
    %v6004 = vunpack.c.l.b16 %v5797
    %v6005 = vunpack.c.l.b16 %v5798
    %v6006 = vunpack.c.h.b16 %v5798
    %v6007 = vunpack.c.l.b16 %v5799
    %v6008 = vunpack.c.l.b16 %v5800
    %v6009 = vunpack.c.h.b16 %v5800
    %v6010 = vunpack.c.l.b16 %v5801
    %v6011 = vunpack.c.l.b16 %v5802
    %v6012 = vunpack.c.h.b16 %v5802
    %v6013 = vunpack.c.l.b16 %v5803
    %v6014 = vunpack.c.l.b16 %v5804
    %v6015 = vunpack.c.h.b16 %v5804
    %v6016 = vunpack.c.l.b16 %v5805
    %v6017 = vunpack.c.l.b16 %v5806
    %v6018 = vunpack.c.h.b16 %v5806
    %v6019 = vunpack.c.l.b16 %v5807
    %v6020 = vunpack.c.l.b16 %v5808
    %v6021 = vunpack.c.h.b16 %v5808
    %v6022 = vunpack.c.l.b16 %v5809
    %v6023 = vunpack.c.l.b16 %v5810
    %v6024 = vunpack.c.h.b16 %v5810
    %v6025 = vunpack.c.l.b16 %v5811
    %v6026 = vunpack.c.l.b16 %v5812
    %v6027 = vunpack.c.h.b16 %v5812
    %v6028 = vunpack.c.l.b16 %v5813
    %v6029 = vunpack.c.l.b16 %v5814
    %v6030 = vunpack.c.h.b16 %v5814
    %v6031 = vunpack.c.l.b16 %v5815
    %v6032 = vunpack.c.l.b16 %v5816
    %v6033 = vunpack.c.h.b16 %v5816
    %v6034 = vunpack.c.l.b16 %v5817
    %v6035 = vpack.c.b16 %v5990, %v5987
    %v6036 = vpack.c.b16 %v5991, %v5988
    %v6037 = vpack.c.b16 %v5992, %v5989
    %v6038 = vpack.c.b16 %v5996, %v5993
    %v6039 = vpack.c.b16 %v5997, %v5994
    %v6040 = vpack.c.b16 %v5998, %v5995
    %v6041 = vpack.c.b16 %v6002, %v5999
    %v6042 = vpack.c.b16 %v6003, %v6000
    %v6043 = vpack.c.b16 %v6004, %v6001
    %v6044 = vpack.c.b16 %v6008, %v6005
    %v6045 = vpack.c.b16 %v6009, %v6006
    %v6046 = vpack.c.b16 %v6010, %v6007
    %v6047 = vpack.c.b16 %v6014, %v6011
    %v6048 = vpack.c.b16 %v6015, %v6012
    %v6049 = vpack.c.b16 %v6016, %v6013
    %v6050 = vpack.c.b16 %v6020, %v6017
    %v6051 = vpack.c.b16 %v6021, %v6018
    %v6052 = vpack.c.b16 %v6022, %v6019
    %v6053 = vpack.c.b16 %v6026, %v6023
    %v6054 = vpack.c.b16 %v6027, %v6024
    %v6055 = vpack.c.b16 %v6028, %v6025
    %v6056 = vpack.c.b16 %v6032, %v6029
    %v6057 = vpack.c.b16 %v6033, %v6030
    %v6058 = vpack.c.b16 %v6034, %v6031
    %6083 = vmatprep.subr.bf16.mxu0 %v6036
    %6084 = vmatpush1.bf16.msra.mxu0 %v6035
    %6085 = vmatprep.subr.bf16.mxu0 %v6039
    %6086 = vmatpush1.bf16.msra.mxu0 %v6038
    %6087 = vmatprep.subr.bf16.mxu0 %v6042
    %6088 = vmatpush1.bf16.msra.mxu0 %v6041
    %6089 = vmatprep.subr.bf16.mxu0 %v6045
    %6090 = vmatpush1.bf16.msra.mxu0 %v6044
    %6091 = vmatprep.subr.bf16.mxu0 %v6048
    %6092 = vmatpush1.bf16.msra.mxu0 %v6047
    %6093 = vmatprep.subr.bf16.mxu0 %v6051
    %6094 = vmatpush1.bf16.msra.mxu0 %v6050
    %6095 = vmatprep.subr.bf16.mxu0 %v6054
    %6096 = vmatpush1.bf16.msra.mxu0 %v6053
    %6097 = vmatprep.subr.bf16.mxu0 %v6057
    %6098 = vmatpush1.bf16.msra.mxu0 %v6056
    %6099 = vmatprep.subr.bf16.mxu0 0
    %6100 = vmatpush1.bf16.msra.mxu0 0
    %6101 = vmatprep.subr.bf16.mxu0 0
    %6102 = vmatpush1.bf16.msra.mxu0 0
    %6103 = vmatprep.subr.bf16.mxu0 0
    %6104 = vmatpush1.bf16.msra.mxu0 0
    %6105 = vmatprep.subr.bf16.mxu0 0
    %6106 = vmatpush1.bf16.msra.mxu0 0
    %6107 = vmatprep.subr.bf16.mxu0 0
    %6108 = vmatpush1.bf16.msra.mxu0 0
    %6109 = vmatprep.subr.bf16.mxu0 0
    %6110 = vmatpush1.bf16.msra.mxu0 0
    %6111 = vmatprep.subr.bf16.mxu0 0
    %6112 = vmatpush1.bf16.msra.mxu0 0
    %6113 = vmatprep.subr.bf16.mxu0 0
    %6114 = vmatpush1.bf16.msra.mxu0 0
    %6115 = vmatprep.mubr.bf16.mxu0 0
    %6116 = vmatmul.mubr.bf16.gmra.mrb[0].mxu0 %v5938
    %v6117 = vpop.f32.mrb[0].mxu0
    %v6118 = vadd.f32 %v5943, %v6117
    %v6119 = vpop.f32.mrb[0].mxu0
    %v6120 = vadd.f32 %v5947, %v6119
    %v6121 = vpop.f32.mrb[0].mxu0
    %v6122 = vadd.f32 %v5943, %v6121
    %v6123 = vpop.f32.mrb[0].mxu0
    %v6124 = vadd.f32 %v5947, %v6123
    %6125 = vdwg.mxu0
    %6126 = vmatprep.subr.bf16.mxu0 0
    %6127 = vmatpush1.bf16.msra.mxu0 %v6037
    %6128 = vmatprep.subr.bf16.mxu0 0
    %6129 = vmatpush1.bf16.msra.mxu0 %v6040
    %6130 = vmatprep.subr.bf16.mxu0 0
    %6131 = vmatpush1.bf16.msra.mxu0 %v6043
    %6132 = vmatprep.subr.bf16.mxu0 0
    %6133 = vmatpush1.bf16.msra.mxu0 %v6046
    %6134 = vmatprep.subr.bf16.mxu0 0
    %6135 = vmatpush1.bf16.msra.mxu0 %v6049
    %6136 = vmatprep.subr.bf16.mxu0 0
    %6137 = vmatpush1.bf16.msra.mxu0 %v6052
    %6138 = vmatprep.subr.bf16.mxu0 0
    %6139 = vmatpush1.bf16.msra.mxu0 %v6055
    %6140 = vmatprep.subr.bf16.mxu0 0
    %6141 = vmatpush1.bf16.msra.mxu0 %v6058
    %6142 = vmatprep.subr.bf16.mxu0 0
    %6143 = vmatpush1.bf16.msra.mxu0 0
    %6144 = vmatprep.subr.bf16.mxu0 0
    %6145 = vmatpush1.bf16.msra.mxu0 0
    %6146 = vmatprep.subr.bf16.mxu0 0
    %6147 = vmatpush1.bf16.msra.mxu0 0
    %6148 = vmatprep.subr.bf16.mxu0 0
    %6149 = vmatpush1.bf16.msra.mxu0 0
    %6150 = vmatprep.subr.bf16.mxu0 0
    %6151 = vmatpush1.bf16.msra.mxu0 0
    %6152 = vmatprep.subr.bf16.mxu0 0
    %6153 = vmatpush1.bf16.msra.mxu0 0
    %6154 = vmatprep.subr.bf16.mxu0 0
    %6155 = vmatpush1.bf16.msra.mxu0 0
    %6156 = vmatprep.subr.bf16.mxu0 0
    %6157 = vmatpush1.bf16.msra.mxu0 0
    %6158 = vmatprep.mubr.bf16.mxu0 0
    %6159 = vmatmul.mubr.bf16.gmra.mrb[0].mxu0 %v5938
    %v6160 = vpop.f32.mrb[0].mxu0
    %v6161 = vadd.f32 %v5951, %v6160
    %v6162 = vpop.f32.mrb[0].mxu0
    %v6163 = vpop.f32.mrb[0].mxu0
    %v6164 = vadd.f32 %v5951, %v6163
    %v6165 = vpop.f32.mrb[0].mxu0
    %6166 = vdwg.mxu0
    %v6167 = vmul.f32 %v6118, 0.25
    %v6168 = vmul.f32 %v6122, 0.25
    %v6169 = vlaneseq
    %v6170 = vshrl.u32 %v6169, 7
    %v6171 = vsub.s32 0, %v6170
    %v6172 = vrot.slane %v6120, %v6171
    %v6173 = vlaneseq
    %v6174 = vshrl.u32 %v6173, 7
    %v6175 = vsub.s32 0, %v6174
    %v6176 = vrot.slane %v6124, %v6175
    %v6177 = vlaneseq
    %v6178 = vshrl.u32 %v6177, 7
    %v6179 = vsub.s32 0, %v6178
    %v6180 = vrot.slane %v6161, %v6179
    %v6181 = vlaneseq
    %v6182 = vshrl.u32 %v6181, 7
    %v6183 = vsub.s32 0, %v6182
    %v6184 = vrot.slane %v6164, %v6183
    %v6185 = vmul.f32 %v6167, %v6172
    %v6186 = vmul.f32 %v6168, %v6176
    %v6187 = vpack.c.bf16 %v6186, %v6185
    %6188 = vmatprep.subr.bf16.mxu0 0
    %6189 = vmatpush1.bf16.msra.mxu0 %v1071
    %6190 = vmatprep.subr.bf16.mxu0 0
    %6191 = vmatpush1.bf16.msra.mxu0 %v1072
    %6192 = vmatprep.subr.bf16.mxu0 0
    %6193 = vmatpush1.bf16.msra.mxu0 %v1073
    %6194 = vmatprep.subr.bf16.mxu0 0
    %6195 = vmatpush1.bf16.msra.mxu0 %v1074
    %6196 = vmatprep.subr.bf16.mxu0 0
    %6197 = vmatpush1.bf16.msra.mxu0 %v1075
    %6198 = vmatprep.subr.bf16.mxu0 0
    %6199 = vmatpush1.bf16.msra.mxu0 %v1076
    %6200 = vmatprep.subr.bf16.mxu0 0
    %6201 = vmatpush1.bf16.msra.mxu0 %v1077
    %6202 = vmatprep.subr.bf16.mxu0 0
    %6203 = vmatpush1.bf16.msra.mxu0 %v1078
    %6204 = vmatprep.subr.bf16.mxu0 0
    %6205 = vmatpush1.bf16.msra.mxu0 0
    %6206 = vmatprep.subr.bf16.mxu0 0
    %6207 = vmatpush1.bf16.msra.mxu0 0
    %6208 = vmatprep.subr.bf16.mxu0 0
    %6209 = vmatpush1.bf16.msra.mxu0 0
    %6210 = vmatprep.subr.bf16.mxu0 0
    %6211 = vmatpush1.bf16.msra.mxu0 0
    %6212 = vmatprep.subr.bf16.mxu0 0
    %6213 = vmatpush1.bf16.msra.mxu0 0
    %6214 = vmatprep.subr.bf16.mxu0 0
    %6215 = vmatpush1.bf16.msra.mxu0 0
    %6216 = vmatprep.subr.bf16.mxu0 0
    %6217 = vmatpush1.bf16.msra.mxu0 0
    %6218 = vmatprep.subr.bf16.mxu0 0
    %6219 = vmatpush1.bf16.msra.mxu0 0
    %6220 = vmatprep.mubr.bf16.mxu0 0
    %6221 = vmatmul.mubr.bf16.gmra.mrb[0].mxu0 %v6187
    %v6222 = vpop.f32.mrb[0].mxu0
    %v6223 = vadd.f32 0.0, %v6222
    %v6224 = vpop.f32.mrb[0].mxu0
    %v6225 = vpop.f32.mrb[0].mxu0
    %v6226 = vadd.f32 0.0, %v6225
    %v6227 = vpop.f32.mrb[0].mxu0
    %6228 = vdwg.mxu0
    %v6229 = vlaneseq
    %v6230 = vshrl.u32 %v6229, 7
    %v6231 = vsub.s32 1, %v6230
    %v6232 = vrot.slane %v6120, %v6231
    %v6233 = vlaneseq
    %v6234 = vshrl.u32 %v6233, 7
    %v6235 = vsub.s32 1, %v6234
    %v6236 = vrot.slane %v6124, %v6235
    %v6237 = vlaneseq
    %v6238 = vshrl.u32 %v6237, 7
    %v6239 = vsub.s32 1, %v6238
    %v6240 = vrot.slane %v6161, %v6239
    %v6241 = vlaneseq
    %v6242 = vshrl.u32 %v6241, 7
    %v6243 = vsub.s32 1, %v6242
    %v6244 = vrot.slane %v6164, %v6243
    %v6245 = vmul.f32 %v6167, %v6232
    %v6246 = vmul.f32 %v6168, %v6236
    %v6247 = vpack.c.bf16 %v6246, %v6245
    %6248 = vmatprep.subr.bf16.mxu0 0
    %6249 = vmatpush1.bf16.msra.mxu0 %v1071
    %6250 = vmatprep.subr.bf16.mxu0 0
    %6251 = vmatpush1.bf16.msra.mxu0 %v1072
    %6252 = vmatprep.subr.bf16.mxu0 0
    %6253 = vmatpush1.bf16.msra.mxu0 %v1073
    %6254 = vmatprep.subr.bf16.mxu0 0
    %6255 = vmatpush1.bf16.msra.mxu0 %v1074
    %6256 = vmatprep.subr.bf16.mxu0 0
    %6257 = vmatpush1.bf16.msra.mxu0 %v1075
    %6258 = vmatprep.subr.bf16.mxu0 0
    %6259 = vmatpush1.bf16.msra.mxu0 %v1076
    %6260 = vmatprep.subr.bf16.mxu0 0
    %6261 = vmatpush1.bf16.msra.mxu0 %v1077
    %6262 = vmatprep.subr.bf16.mxu0 0
    %6263 = vmatpush1.bf16.msra.mxu0 %v1078
    %6264 = vmatprep.subr.bf16.mxu0 0
    %6265 = vmatpush1.bf16.msra.mxu0 0
    %6266 = vmatprep.subr.bf16.mxu0 0
    %6267 = vmatpush1.bf16.msra.mxu0 0
    %6268 = vmatprep.subr.bf16.mxu0 0
    %6269 = vmatpush1.bf16.msra.mxu0 0
    %6270 = vmatprep.subr.bf16.mxu0 0
    %6271 = vmatpush1.bf16.msra.mxu0 0
    %6272 = vmatprep.subr.bf16.mxu0 0
    %6273 = vmatpush1.bf16.msra.mxu0 0
    %6274 = vmatprep.subr.bf16.mxu0 0
    %6275 = vmatpush1.bf16.msra.mxu0 0
    %6276 = vmatprep.subr.bf16.mxu0 0
    %6277 = vmatpush1.bf16.msra.mxu0 0
    %6278 = vmatprep.subr.bf16.mxu0 0
    %6279 = vmatpush1.bf16.msra.mxu0 0
    %6280 = vmatprep.mubr.bf16.mxu0 0
    %6281 = vmatmul.mubr.bf16.gmra.mrb[0].mxu0 %v6247
    %v6282 = vpop.f32.mrb[0].mxu0
    %v6283 = vadd.f32 0.0, %v6282
    %v6284 = vpop.f32.mrb[0].mxu0
    %v6285 = vpop.f32.mrb[0].mxu0
    %v6286 = vadd.f32 0.0, %v6285
    %v6287 = vpop.f32.mrb[0].mxu0
    %6288 = vdwg.mxu0
    %v6289 = vlaneseq
    %v6290 = vshrl.u32 %v6289, 7
    %v6291 = vsub.s32 2, %v6290
    %v6292 = vrot.slane %v6120, %v6291
    %v6293 = vlaneseq
    %v6294 = vshrl.u32 %v6293, 7
    %v6295 = vsub.s32 2, %v6294
    %v6296 = vrot.slane %v6124, %v6295
    %v6297 = vlaneseq
    %v6298 = vshrl.u32 %v6297, 7
    %v6299 = vsub.s32 2, %v6298
    %v6300 = vrot.slane %v6161, %v6299
    %v6301 = vlaneseq
    %v6302 = vshrl.u32 %v6301, 7
    %v6303 = vsub.s32 2, %v6302
    %v6304 = vrot.slane %v6164, %v6303
    %v6305 = vmul.f32 %v6167, %v6292
    %v6306 = vmul.f32 %v6168, %v6296
    %v6307 = vpack.c.bf16 %v6306, %v6305
    %6308 = vmatprep.subr.bf16.mxu0 0
    %6309 = vmatpush1.bf16.msra.mxu0 %v1071
    %6310 = vmatprep.subr.bf16.mxu0 0
    %6311 = vmatpush1.bf16.msra.mxu0 %v1072
    %6312 = vmatprep.subr.bf16.mxu0 0
    %6313 = vmatpush1.bf16.msra.mxu0 %v1073
    %6314 = vmatprep.subr.bf16.mxu0 0
    %6315 = vmatpush1.bf16.msra.mxu0 %v1074
    %6316 = vmatprep.subr.bf16.mxu0 0
    %6317 = vmatpush1.bf16.msra.mxu0 %v1075
    %6318 = vmatprep.subr.bf16.mxu0 0
    %6319 = vmatpush1.bf16.msra.mxu0 %v1076
    %6320 = vmatprep.subr.bf16.mxu0 0
    %6321 = vmatpush1.bf16.msra.mxu0 %v1077
    %6322 = vmatprep.subr.bf16.mxu0 0
    %6323 = vmatpush1.bf16.msra.mxu0 %v1078
    %6324 = vmatprep.subr.bf16.mxu0 0
    %6325 = vmatpush1.bf16.msra.mxu0 0
    %6326 = vmatprep.subr.bf16.mxu0 0
    %6327 = vmatpush1.bf16.msra.mxu0 0
    %6328 = vmatprep.subr.bf16.mxu0 0
    %6329 = vmatpush1.bf16.msra.mxu0 0
    %6330 = vmatprep.subr.bf16.mxu0 0
    %6331 = vmatpush1.bf16.msra.mxu0 0
    %6332 = vmatprep.subr.bf16.mxu0 0
    %6333 = vmatpush1.bf16.msra.mxu0 0
    %6334 = vmatprep.subr.bf16.mxu0 0
    %6335 = vmatpush1.bf16.msra.mxu0 0
    %6336 = vmatprep.subr.bf16.mxu0 0
    %6337 = vmatpush1.bf16.msra.mxu0 0
    %6338 = vmatprep.subr.bf16.mxu0 0
    %6339 = vmatpush1.bf16.msra.mxu0 0
    %6340 = vmatprep.mubr.bf16.mxu0 0
    %6341 = vmatmul.mubr.bf16.gmra.mrb[0].mxu0 %v6307
    %v6342 = vpop.f32.mrb[0].mxu0
    %v6343 = vadd.f32 0.0, %v6342
    %v6344 = vpop.f32.mrb[0].mxu0
    %v6345 = vpop.f32.mrb[0].mxu0
    %v6346 = vadd.f32 0.0, %v6345
    %v6347 = vpop.f32.mrb[0].mxu0
    %6348 = vdwg.mxu0
    %v6349 = vlaneseq
    %v6350 = vshrl.u32 %v6349, 7
    %v6351 = vsub.s32 3, %v6350
    %v6352 = vrot.slane %v6120, %v6351
    %v6353 = vlaneseq
    %v6354 = vshrl.u32 %v6353, 7
    %v6355 = vsub.s32 3, %v6354
    %v6356 = vrot.slane %v6124, %v6355
    %v6357 = vlaneseq
    %v6358 = vshrl.u32 %v6357, 7
    %v6359 = vsub.s32 3, %v6358
    %v6360 = vrot.slane %v6161, %v6359
    %v6361 = vlaneseq
    %v6362 = vshrl.u32 %v6361, 7
    %v6363 = vsub.s32 3, %v6362
    %v6364 = vrot.slane %v6164, %v6363
    %v6365 = vmul.f32 %v6167, %v6352
    %v6366 = vmul.f32 %v6168, %v6356
    %v6367 = vpack.c.bf16 %v6366, %v6365
    %6368 = vmatprep.subr.bf16.mxu0 0
    %6369 = vmatpush1.bf16.msra.mxu0 %v1071
    %6370 = vmatprep.subr.bf16.mxu0 0
    %6371 = vmatpush1.bf16.msra.mxu0 %v1072
    %6372 = vmatprep.subr.bf16.mxu0 0
    %6373 = vmatpush1.bf16.msra.mxu0 %v1073
    %6374 = vmatprep.subr.bf16.mxu0 0
    %6375 = vmatpush1.bf16.msra.mxu0 %v1074
    %6376 = vmatprep.subr.bf16.mxu0 0
    %6377 = vmatpush1.bf16.msra.mxu0 %v1075
    %6378 = vmatprep.subr.bf16.mxu0 0
    %6379 = vmatpush1.bf16.msra.mxu0 %v1076
    %6380 = vmatprep.subr.bf16.mxu0 0
    %6381 = vmatpush1.bf16.msra.mxu0 %v1077
    %6382 = vmatprep.subr.bf16.mxu0 0
    %6383 = vmatpush1.bf16.msra.mxu0 %v1078
    %6384 = vmatprep.subr.bf16.mxu0 0
    %6385 = vmatpush1.bf16.msra.mxu0 0
    %6386 = vmatprep.subr.bf16.mxu0 0
    %6387 = vmatpush1.bf16.msra.mxu0 0
    %6388 = vmatprep.subr.bf16.mxu0 0
    %6389 = vmatpush1.bf16.msra.mxu0 0
    %6390 = vmatprep.subr.bf16.mxu0 0
    %6391 = vmatpush1.bf16.msra.mxu0 0
    %6392 = vmatprep.subr.bf16.mxu0 0
    %6393 = vmatpush1.bf16.msra.mxu0 0
    %6394 = vmatprep.subr.bf16.mxu0 0
    %6395 = vmatpush1.bf16.msra.mxu0 0
    %6396 = vmatprep.subr.bf16.mxu0 0
    %6397 = vmatpush1.bf16.msra.mxu0 0
    %6398 = vmatprep.subr.bf16.mxu0 0
    %6399 = vmatpush1.bf16.msra.mxu0 0
    %6400 = vmatprep.mubr.bf16.mxu0 0
    %6401 = vmatmul.mubr.bf16.gmra.mrb[0].mxu0 %v6367
    %v6402 = vpop.f32.mrb[0].mxu0
    %v6403 = vadd.f32 0.0, %v6402
    %v6404 = vpop.f32.mrb[0].mxu0
    %v6405 = vpop.f32.mrb[0].mxu0
    %v6406 = vadd.f32 0.0, %v6405
    %v6407 = vpop.f32.mrb[0].mxu0
    %6408 = vdwg.mxu0
    %v6409 = vlaneseq
    %v6410 = vshrl.u32 %v6409, 7
    %v6411 = vsub.s32 4, %v6410
    %v6412 = vrot.slane %v6120, %v6411
    %v6413 = vlaneseq
    %v6414 = vshrl.u32 %v6413, 7
    %v6415 = vsub.s32 4, %v6414
    %v6416 = vrot.slane %v6124, %v6415
    %v6417 = vlaneseq
    %v6418 = vshrl.u32 %v6417, 7
    %v6419 = vsub.s32 4, %v6418
    %v6420 = vrot.slane %v6161, %v6419
    %v6421 = vlaneseq
    %v6422 = vshrl.u32 %v6421, 7
    %v6423 = vsub.s32 4, %v6422
    %v6424 = vrot.slane %v6164, %v6423
    %v6425 = vmul.f32 %v6167, %v6412
    %v6426 = vmul.f32 %v6168, %v6416
    %v6427 = vpack.c.bf16 %v6426, %v6425
    %6428 = vmatprep.subr.bf16.mxu0 0
    %6429 = vmatpush1.bf16.msra.mxu0 %v1071
    %6430 = vmatprep.subr.bf16.mxu0 0
    %6431 = vmatpush1.bf16.msra.mxu0 %v1072
    %6432 = vmatprep.subr.bf16.mxu0 0
    %6433 = vmatpush1.bf16.msra.mxu0 %v1073
    %6434 = vmatprep.subr.bf16.mxu0 0
    %6435 = vmatpush1.bf16.msra.mxu0 %v1074
    %6436 = vmatprep.subr.bf16.mxu0 0
    %6437 = vmatpush1.bf16.msra.mxu0 %v1075
    %6438 = vmatprep.subr.bf16.mxu0 0
    %6439 = vmatpush1.bf16.msra.mxu0 %v1076
    %6440 = vmatprep.subr.bf16.mxu0 0
    %6441 = vmatpush1.bf16.msra.mxu0 %v1077
    %6442 = vmatprep.subr.bf16.mxu0 0
    %6443 = vmatpush1.bf16.msra.mxu0 %v1078
    %6444 = vmatprep.subr.bf16.mxu0 0
    %6445 = vmatpush1.bf16.msra.mxu0 0
    %6446 = vmatprep.subr.bf16.mxu0 0
    %6447 = vmatpush1.bf16.msra.mxu0 0
    %6448 = vmatprep.subr.bf16.mxu0 0
    %6449 = vmatpush1.bf16.msra.mxu0 0
    %6450 = vmatprep.subr.bf16.mxu0 0
    %6451 = vmatpush1.bf16.msra.mxu0 0
    %6452 = vmatprep.subr.bf16.mxu0 0
    %6453 = vmatpush1.bf16.msra.mxu0 0
    %6454 = vmatprep.subr.bf16.mxu0 0
    %6455 = vmatpush1.bf16.msra.mxu0 0
    %6456 = vmatprep.subr.bf16.mxu0 0
    %6457 = vmatpush1.bf16.msra.mxu0 0
    %6458 = vmatprep.subr.bf16.mxu0 0
    %6459 = vmatpush1.bf16.msra.mxu0 0
    %6460 = vmatprep.mubr.bf16.mxu0 0
    %6461 = vmatmul.mubr.bf16.gmra.mrb[0].mxu0 %v6427
    %v6462 = vpop.f32.mrb[0].mxu0
    %v6463 = vadd.f32 0.0, %v6462
    %v6464 = vpop.f32.mrb[0].mxu0
    %v6465 = vpop.f32.mrb[0].mxu0
    %v6466 = vadd.f32 0.0, %v6465
    %v6467 = vpop.f32.mrb[0].mxu0
    %6468 = vdwg.mxu0
    %v6469 = vlaneseq
    %v6470 = vshrl.u32 %v6469, 7
    %v6471 = vsub.s32 5, %v6470
    %v6472 = vrot.slane %v6120, %v6471
    %v6473 = vlaneseq
    %v6474 = vshrl.u32 %v6473, 7
    %v6475 = vsub.s32 5, %v6474
    %v6476 = vrot.slane %v6124, %v6475
    %v6477 = vlaneseq
    %v6478 = vshrl.u32 %v6477, 7
    %v6479 = vsub.s32 5, %v6478
    %v6480 = vrot.slane %v6161, %v6479
    %v6481 = vlaneseq
    %v6482 = vshrl.u32 %v6481, 7
    %v6483 = vsub.s32 5, %v6482
    %v6484 = vrot.slane %v6164, %v6483
    %v6485 = vmul.f32 %v6167, %v6472
    %v6486 = vmul.f32 %v6168, %v6476
    %v6487 = vpack.c.bf16 %v6486, %v6485
    %6488 = vmatprep.subr.bf16.mxu0 0
    %6489 = vmatpush1.bf16.msra.mxu0 %v1071
    %6490 = vmatprep.subr.bf16.mxu0 0
    %6491 = vmatpush1.bf16.msra.mxu0 %v1072
    %6492 = vmatprep.subr.bf16.mxu0 0
    %6493 = vmatpush1.bf16.msra.mxu0 %v1073
    %6494 = vmatprep.subr.bf16.mxu0 0
    %6495 = vmatpush1.bf16.msra.mxu0 %v1074
    %6496 = vmatprep.subr.bf16.mxu0 0
    %6497 = vmatpush1.bf16.msra.mxu0 %v1075
    %6498 = vmatprep.subr.bf16.mxu0 0
    %6499 = vmatpush1.bf16.msra.mxu0 %v1076
    %6500 = vmatprep.subr.bf16.mxu0 0
    %6501 = vmatpush1.bf16.msra.mxu0 %v1077
    %6502 = vmatprep.subr.bf16.mxu0 0
    %6503 = vmatpush1.bf16.msra.mxu0 %v1078
    %6504 = vmatprep.subr.bf16.mxu0 0
    %6505 = vmatpush1.bf16.msra.mxu0 0
    %6506 = vmatprep.subr.bf16.mxu0 0
    %6507 = vmatpush1.bf16.msra.mxu0 0
    %6508 = vmatprep.subr.bf16.mxu0 0
    %6509 = vmatpush1.bf16.msra.mxu0 0
    %6510 = vmatprep.subr.bf16.mxu0 0
    %6511 = vmatpush1.bf16.msra.mxu0 0
    %6512 = vmatprep.subr.bf16.mxu0 0
    %6513 = vmatpush1.bf16.msra.mxu0 0
    %6514 = vmatprep.subr.bf16.mxu0 0
    %6515 = vmatpush1.bf16.msra.mxu0 0
    %6516 = vmatprep.subr.bf16.mxu0 0
    %6517 = vmatpush1.bf16.msra.mxu0 0
    %6518 = vmatprep.subr.bf16.mxu0 0
    %6519 = vmatpush1.bf16.msra.mxu0 0
    %6520 = vmatprep.mubr.bf16.mxu0 0
    %6521 = vmatmul.mubr.bf16.gmra.mrb[0].mxu0 %v6487
    %v6522 = vpop.f32.mrb[0].mxu0
    %v6523 = vadd.f32 0.0, %v6522
    %v6524 = vpop.f32.mrb[0].mxu0
    %v6525 = vpop.f32.mrb[0].mxu0
    %v6526 = vadd.f32 0.0, %v6525
    %v6527 = vpop.f32.mrb[0].mxu0
    %6528 = vdwg.mxu0
    %v6529 = vlaneseq
    %v6530 = vshrl.u32 %v6529, 7
    %v6531 = vsub.s32 6, %v6530
    %v6532 = vrot.slane %v6120, %v6531
    %v6533 = vlaneseq
    %v6534 = vshrl.u32 %v6533, 7
    %v6535 = vsub.s32 6, %v6534
    %v6536 = vrot.slane %v6124, %v6535
    %v6537 = vlaneseq
    %v6538 = vshrl.u32 %v6537, 7
    %v6539 = vsub.s32 6, %v6538
    %v6540 = vrot.slane %v6161, %v6539
    %v6541 = vlaneseq
    %v6542 = vshrl.u32 %v6541, 7
    %v6543 = vsub.s32 6, %v6542
    %v6544 = vrot.slane %v6164, %v6543
    %v6545 = vmul.f32 %v6167, %v6532
    %v6546 = vmul.f32 %v6168, %v6536
    %v6547 = vpack.c.bf16 %v6546, %v6545
    %6548 = vmatprep.subr.bf16.mxu0 0
    %6549 = vmatpush1.bf16.msra.mxu0 %v1071
    %6550 = vmatprep.subr.bf16.mxu0 0
    %6551 = vmatpush1.bf16.msra.mxu0 %v1072
    %6552 = vmatprep.subr.bf16.mxu0 0
    %6553 = vmatpush1.bf16.msra.mxu0 %v1073
    %6554 = vmatprep.subr.bf16.mxu0 0
    %6555 = vmatpush1.bf16.msra.mxu0 %v1074
    %6556 = vmatprep.subr.bf16.mxu0 0
    %6557 = vmatpush1.bf16.msra.mxu0 %v1075
    %6558 = vmatprep.subr.bf16.mxu0 0
    %6559 = vmatpush1.bf16.msra.mxu0 %v1076
    %6560 = vmatprep.subr.bf16.mxu0 0
    %6561 = vmatpush1.bf16.msra.mxu0 %v1077
    %6562 = vmatprep.subr.bf16.mxu0 0
    %6563 = vmatpush1.bf16.msra.mxu0 %v1078
    %6564 = vmatprep.subr.bf16.mxu0 0
    %6565 = vmatpush1.bf16.msra.mxu0 0
    %6566 = vmatprep.subr.bf16.mxu0 0
    %6567 = vmatpush1.bf16.msra.mxu0 0
    %6568 = vmatprep.subr.bf16.mxu0 0
    %6569 = vmatpush1.bf16.msra.mxu0 0
    %6570 = vmatprep.subr.bf16.mxu0 0
    %6571 = vmatpush1.bf16.msra.mxu0 0
    %6572 = vmatprep.subr.bf16.mxu0 0
    %6573 = vmatpush1.bf16.msra.mxu0 0
    %6574 = vmatprep.subr.bf16.mxu0 0
    %6575 = vmatpush1.bf16.msra.mxu0 0
    %6576 = vmatprep.subr.bf16.mxu0 0
    %6577 = vmatpush1.bf16.msra.mxu0 0
    %6578 = vmatprep.subr.bf16.mxu0 0
    %6579 = vmatpush1.bf16.msra.mxu0 0
    %6580 = vmatprep.mubr.bf16.mxu0 0
    %6581 = vmatmul.mubr.bf16.gmra.mrb[0].mxu0 %v6547
    %v6582 = vpop.f32.mrb[0].mxu0
    %v6583 = vadd.f32 0.0, %v6582
    %v6584 = vpop.f32.mrb[0].mxu0
    %v6585 = vpop.f32.mrb[0].mxu0
    %v6586 = vadd.f32 0.0, %v6585
    %v6587 = vpop.f32.mrb[0].mxu0
    %6588 = vdwg.mxu0
    %v6589 = vlaneseq
    %v6590 = vshrl.u32 %v6589, 7
    %v6591 = vsub.s32 7, %v6590
    %v6592 = vrot.slane %v6120, %v6591
    %v6593 = vlaneseq
    %v6594 = vshrl.u32 %v6593, 7
    %v6595 = vsub.s32 7, %v6594
    %v6596 = vrot.slane %v6124, %v6595
    %v6597 = vlaneseq
    %v6598 = vshrl.u32 %v6597, 7
    %v6599 = vsub.s32 7, %v6598
    %v6600 = vrot.slane %v6161, %v6599
    %v6601 = vlaneseq
    %v6602 = vshrl.u32 %v6601, 7
    %v6603 = vsub.s32 7, %v6602
    %v6604 = vrot.slane %v6164, %v6603
    %v6605 = vmul.f32 %v6167, %v6592
    %v6606 = vmul.f32 %v6168, %v6596
    %v6607 = vpack.c.bf16 %v6606, %v6605
    %6608 = vmatprep.subr.bf16.mxu0 0
    %6609 = vmatpush1.bf16.msra.mxu0 %v1071
    %6610 = vmatprep.subr.bf16.mxu0 0
    %6611 = vmatpush1.bf16.msra.mxu0 %v1072
    %6612 = vmatprep.subr.bf16.mxu0 0
    %6613 = vmatpush1.bf16.msra.mxu0 %v1073
    %6614 = vmatprep.subr.bf16.mxu0 0
    %6615 = vmatpush1.bf16.msra.mxu0 %v1074
    %6616 = vmatprep.subr.bf16.mxu0 0
    %6617 = vmatpush1.bf16.msra.mxu0 %v1075
    %6618 = vmatprep.subr.bf16.mxu0 0
    %6619 = vmatpush1.bf16.msra.mxu0 %v1076
    %6620 = vmatprep.subr.bf16.mxu0 0
    %6621 = vmatpush1.bf16.msra.mxu0 %v1077
    %6622 = vmatprep.subr.bf16.mxu0 0
    %6623 = vmatpush1.bf16.msra.mxu0 %v1078
    %6624 = vmatprep.subr.bf16.mxu0 0
    %6625 = vmatpush1.bf16.msra.mxu0 0
    %6626 = vmatprep.subr.bf16.mxu0 0
    %6627 = vmatpush1.bf16.msra.mxu0 0
    %6628 = vmatprep.subr.bf16.mxu0 0
    %6629 = vmatpush1.bf16.msra.mxu0 0
    %6630 = vmatprep.subr.bf16.mxu0 0
    %6631 = vmatpush1.bf16.msra.mxu0 0
    %6632 = vmatprep.subr.bf16.mxu0 0
    %6633 = vmatpush1.bf16.msra.mxu0 0
    %6634 = vmatprep.subr.bf16.mxu0 0
    %6635 = vmatpush1.bf16.msra.mxu0 0
    %6636 = vmatprep.subr.bf16.mxu0 0
    %6637 = vmatpush1.bf16.msra.mxu0 0
    %6638 = vmatprep.subr.bf16.mxu0 0
    %6639 = vmatpush1.bf16.msra.mxu0 0
    %6640 = vmatprep.mubr.bf16.mxu0 0
    %6641 = vmatmul.mubr.bf16.gmra.mrb[0].mxu0 %v6607
    %v6642 = vpop.f32.mrb[0].mxu0
    %v6643 = vadd.f32 0.0, %v6642
    %v6644 = vpop.f32.mrb[0].mxu0
    %v6645 = vpop.f32.mrb[0].mxu0
    %v6646 = vadd.f32 0.0, %v6645
    %v6647 = vpop.f32.mrb[0].mxu0
    %6648 = vdwg.mxu0
    %v6649 = vmax.f32 %v6223, %v6283
    %v6650 = vmax.f32 %v6226, %v6286
    %v6651 = vmax.f32 %v6649, %v6343
    %v6652 = vmax.f32 %v6650, %v6346
    %v6653 = vmax.f32 %v6651, %v6403
    %v6654 = vmax.f32 %v6652, %v6406
    %v6655 = vmax.f32 %v6653, %v6463
    %v6656 = vmax.f32 %v6654, %v6466
    %v6657 = vmax.f32 %v6655, %v6523
    %v6658 = vmax.f32 %v6656, %v6526
    %v6659 = vmax.f32 %v6657, %v6583
    %v6660 = vmax.f32 %v6658, %v6586
    %v6661 = vmax.f32 %v6659, %v6643
    %v6662 = vmax.f32 %v6660, %v6646
    %v6663 = vsub.f32 %v6223, %v6661
    %v6664 = vsub.f32 %v6226, %v6662
    %v6665 = vmul.f32 %v6663, 1.442695
    %v6666 = vpow.pop %v6665
    %v6667 = vmul.f32 %v6664, 1.442695
    %v6668 = vpow.pop %v6667
    %v6669 = vsub.f32 %v6283, %v6661
    %v6670 = vsub.f32 %v6286, %v6662
    %v6671 = vmul.f32 %v6669, 1.442695
    %v6672 = vpow.pop %v6671
    %v6673 = vmul.f32 %v6670, 1.442695
    %v6674 = vpow.pop %v6673
    %v6675 = vsub.f32 %v6343, %v6661
    %v6676 = vsub.f32 %v6346, %v6662
    %v6677 = vmul.f32 %v6675, 1.442695
    %v6678 = vpow.pop %v6677
    %v6679 = vmul.f32 %v6676, 1.442695
    %v6680 = vpow.pop %v6679
    %v6681 = vsub.f32 %v6403, %v6661
    %v6682 = vsub.f32 %v6406, %v6662
    %v6683 = vmul.f32 %v6681, 1.442695
    %v6684 = vpow.pop %v6683
    %v6685 = vmul.f32 %v6682, 1.442695
    %v6686 = vpow.pop %v6685
    %v6687 = vsub.f32 %v6463, %v6661
    %v6688 = vsub.f32 %v6466, %v6662
    %v6689 = vmul.f32 %v6687, 1.442695
    %v6690 = vpow.pop %v6689
    %v6691 = vmul.f32 %v6688, 1.442695
    %v6692 = vpow.pop %v6691
    %v6693 = vsub.f32 %v6523, %v6661
    %v6694 = vsub.f32 %v6526, %v6662
    %v6695 = vmul.f32 %v6693, 1.442695
    %v6696 = vpow.pop %v6695
    %v6697 = vmul.f32 %v6694, 1.442695
    %v6698 = vpow.pop %v6697
    %v6699 = vsub.f32 %v6583, %v6661
    %v6700 = vsub.f32 %v6586, %v6662
    %v6701 = vmul.f32 %v6699, 1.442695
    %v6702 = vpow.pop %v6701
    %v6703 = vmul.f32 %v6700, 1.442695
    %v6704 = vpow.pop %v6703
    %v6705 = vsub.f32 %v6643, %v6661
    %v6706 = vsub.f32 %v6646, %v6662
    %v6707 = vmul.f32 %v6705, 1.442695
    %v6708 = vpow.pop %v6707
    %v6709 = vmul.f32 %v6706, 1.442695
    %v6710 = vpow.pop %v6709
    %v6711 = vadd.f32 %v6666, %v6672
    %v6712 = vadd.f32 %v6668, %v6674
    %v6713 = vadd.f32 %v6711, %v6678
    %v6714 = vadd.f32 %v6712, %v6680
    %v6715 = vadd.f32 %v6713, %v6684
    %v6716 = vadd.f32 %v6714, %v6686
    %v6717 = vadd.f32 %v6715, %v6690
    %v6718 = vadd.f32 %v6716, %v6692
    %v6719 = vadd.f32 %v6717, %v6696
    %v6720 = vadd.f32 %v6718, %v6698
    %v6721 = vadd.f32 %v6719, %v6702
    %v6722 = vadd.f32 %v6720, %v6704
    %v6723 = vadd.f32 %v6721, %v6708
    %v6724 = vadd.f32 %v6722, %v6710
    %v6725 = vrcp.pop %v6723
    %v6726 = vrcp.pop %v6724
    %v6727 = vmul.f32 %v6666, %v6180
    %v6728 = vmul.f32 %v6668, %v6184
    %v6729 = vmul.f32 %v6672, %v6240
    %v6730 = vmul.f32 %v6674, %v6244
    %v6731 = vmul.f32 %v6678, %v6300
    %v6732 = vmul.f32 %v6680, %v6304
    %v6733 = vmul.f32 %v6684, %v6360
    %v6734 = vmul.f32 %v6686, %v6364
    %v6735 = vmul.f32 %v6690, %v6420
    %v6736 = vmul.f32 %v6692, %v6424
    %v6737 = vmul.f32 %v6696, %v6480
    %v6738 = vmul.f32 %v6698, %v6484
    %v6739 = vmul.f32 %v6702, %v6540
    %v6740 = vmul.f32 %v6704, %v6544
    %v6741 = vmul.f32 %v6708, %v6600
    %v6742 = vmul.f32 %v6710, %v6604
    %v6743 = vadd.f32 %v6727, %v6729
    %v6744 = vadd.f32 %v6728, %v6730
    %v6745 = vadd.f32 %v6743, %v6731
    %v6746 = vadd.f32 %v6744, %v6732
    %v6747 = vadd.f32 %v6745, %v6733
    %v6748 = vadd.f32 %v6746, %v6734
    %v6749 = vadd.f32 %v6747, %v6735
    %v6750 = vadd.f32 %v6748, %v6736
    %v6751 = vadd.f32 %v6749, %v6737
    %v6752 = vadd.f32 %v6750, %v6738
    %v6753 = vadd.f32 %v6751, %v6739
    %v6754 = vadd.f32 %v6752, %v6740
    %v6755 = vadd.f32 %v6753, %v6741
    %v6756 = vadd.f32 %v6754, %v6742
    %v6757 = vmul.f32 %v6755, %v6725
    %v6758 = vmul.f32 %v6756, %v6726
    %v6759 = vpack.c.bf16 %v6758, %v6757
    %v6761 = vlaneseq
    %v6762 = vshrl.u32 %v6761, 7
    %v6763 = vsub.s32 0, %v6762
    %v6764 = vrot.slane %v5835, %v6763
    %v6782 = vunpack.c.l.b16 %v5819
    %v6783 = vunpack.c.l.b16 %v5820
    %v6784 = vunpack.c.l.b16 %v5821
    %v6785 = vunpack.c.l.b16 %v5822
    %v6786 = vunpack.c.l.b16 %v5823
    %v6787 = vunpack.c.l.b16 %v5824
    %v6788 = vunpack.c.l.b16 %v5825
    %v6789 = vunpack.c.l.b16 %v5826
    %v6790 = vunpack.c.l.b16 %v5827
    %v6791 = vunpack.c.l.b16 %v5828
    %v6792 = vunpack.c.l.b16 %v5829
    %v6793 = vunpack.c.l.b16 %v5830
    %v6794 = vunpack.c.l.b16 %v5831
    %v6795 = vunpack.c.l.b16 %v5832
    %v6796 = vunpack.c.l.b16 %v5833
    %v6797 = vunpack.c.l.b16 %v5834
    %v6798 = vpack.c.b16 %v6783, %v6782
    %v6799 = vpack.c.b16 %v6785, %v6784
    %v6800 = vpack.c.b16 %v6787, %v6786
    %v6801 = vpack.c.b16 %v6789, %v6788
    %v6802 = vpack.c.b16 %v6791, %v6790
    %v6803 = vpack.c.b16 %v6793, %v6792
    %v6804 = vpack.c.b16 %v6795, %v6794
    %v6805 = vpack.c.b16 %v6797, %v6796
    %6814 = vmatprep.subr.bf16.mxu0 0
    %6815 = vmatpush1.bf16.msra.mxu0 %v6798
    %6816 = vmatprep.subr.bf16.mxu0 0
    %6817 = vmatpush1.bf16.msra.mxu0 %v6799
    %6818 = vmatprep.subr.bf16.mxu0 0
    %6819 = vmatpush1.bf16.msra.mxu0 %v6800
    %6820 = vmatprep.subr.bf16.mxu0 0
    %6821 = vmatpush1.bf16.msra.mxu0 %v6801
    %6822 = vmatprep.subr.bf16.mxu0 0
    %6823 = vmatpush1.bf16.msra.mxu0 %v6802
    %6824 = vmatprep.subr.bf16.mxu0 0
    %6825 = vmatpush1.bf16.msra.mxu0 %v6803
    %6826 = vmatprep.subr.bf16.mxu0 0
    %6827 = vmatpush1.bf16.msra.mxu0 %v6804
    %6828 = vmatprep.subr.bf16.mxu0 0
    %6829 = vmatpush1.bf16.msra.mxu0 %v6805
    %6830 = vmatprep.subr.bf16.mxu0 0
    %6831 = vmatpush1.bf16.msra.mxu0 0
    %6832 = vmatprep.subr.bf16.mxu0 0
    %6833 = vmatpush1.bf16.msra.mxu0 0
    %6834 = vmatprep.subr.bf16.mxu0 0
    %6835 = vmatpush1.bf16.msra.mxu0 0
    %6836 = vmatprep.subr.bf16.mxu0 0
    %6837 = vmatpush1.bf16.msra.mxu0 0
    %6838 = vmatprep.subr.bf16.mxu0 0
    %6839 = vmatpush1.bf16.msra.mxu0 0
    %6840 = vmatprep.subr.bf16.mxu0 0
    %6841 = vmatpush1.bf16.msra.mxu0 0
    %6842 = vmatprep.subr.bf16.mxu0 0
    %6843 = vmatpush1.bf16.msra.mxu0 0
    %6844 = vmatprep.subr.bf16.mxu0 0
    %6845 = vmatpush1.bf16.msra.mxu0 0
    %6846 = vmatprep.mubr.bf16.mxu0 0
    %6847 = vmatmul.mubr.bf16.gmra.mrb[0].mxu0 %v6759
    %v6848 = vpop.f32.mrb[0].mxu0
    %v6849 = vadd.f32 %v6764, %v6848
    %v6850 = vpop.f32.mrb[0].mxu0
    %v6851 = vpop.f32.mrb[0].mxu0
    %v6852 = vadd.f32 %v6764, %v6851
    %v6853 = vpop.f32.mrb[0].mxu0
    %6854 = vdwg.mxu0
    %v6855 = vadd.f32 %v5784, %v6849
    %v6856 = vadd.f32 %v5785, %v6852
    %6857 = vadd.xlane.f32.xlu0 %v6855
    %v6858 = vpop.xlane.xlu0 %6857
    %6859 = vadd.xlane.f32.xlu0 %v6856
    %v6860 = vpop.xlane.xlu0 %6859
    %v6861 = vmul.f32 %v6858, %v2140
    %v6862 = vmul.f32 %v6860, %v2140
    %v6863 = vsub.f32 %v6855, %v6861
    %v6864 = vsub.f32 %v6856, %v6862
    %v6865 = vmul.f32 %v6863, %v6863
    %v6866 = vmul.f32 %v6864, %v6864
    %6867 = vadd.xlane.f32.xlu0 %v6865
    %v6868 = vpop.xlane.xlu0 %6867
    %6869 = vadd.xlane.f32.xlu0 %v6866
    %v6870 = vpop.xlane.xlu0 %6869
    %v6871 = vmul.f32 %v6868, %v2140
    %v6872 = vmul.f32 %v6870, %v2140
    %v6873 = vadd.f32 %v6871, 1e-05
    %v6874 = vadd.f32 %v6872, 1e-05
    %v6875 = vrsqrt.pop %v6873
    %v6876 = vrsqrt.pop %v6874
    %v6877 = vmul.f32 %v6863, %v6875
    %v6878 = vmul.f32 %v6864, %v6876
    %v6880 = vlaneseq
    %v6881 = vshrl.u32 %v6880, 7
    %v6882 = vsub.s32 0, %v6881
    %v6883 = vrot.slane %v5934, %v6882
    %v6885 = vmul.f32 %v6877, %v6883
    %v6886 = vmul.f32 %v6878, %v6883
    %v6888 = vlaneseq
    %v6889 = vshrl.u32 %v6888, 7
    %v6890 = vsub.s32 0, %v6889
    %v6891 = vrot.slane %v5935, %v6890
    %v6893 = vadd.f32 %v6885, %v6891
    %v6894 = vadd.f32 %v6886, %v6891
    %v6895 = vpack.c.bf16 %v6894, %v6893
    %v6897 = vlaneseq
    %v6898 = vshrl.u32 %v6897, 7
    %v6899 = vsub.s32 0, %v6898
    %v6900 = vrot.slane %v5868, %v6899
    %v6901 = vlaneseq
    %v6902 = vshrl.u32 %v6901, 7
    %v6903 = vsub.s32 1, %v6902
    %v6904 = vrot.slane %v5868, %v6903
    %v6905 = vlaneseq
    %v6906 = vshrl.u32 %v6905, 7
    %v6907 = vsub.s32 2, %v6906
    %v6908 = vrot.slane %v5868, %v6907
    %v6909 = vlaneseq
    %v6910 = vshrl.u32 %v6909, 7
    %v6911 = vsub.s32 3, %v6910
    %v6912 = vrot.slane %v5868, %v6911
    %v6949 = vunpack.c.l.b16 %v5836
    %v6950 = vunpack.c.h.b16 %v5836
    %v6951 = vunpack.c.l.b16 %v5837
    %v6952 = vunpack.c.h.b16 %v5837
    %v6953 = vunpack.c.l.b16 %v5838
    %v6954 = vunpack.c.h.b16 %v5838
    %v6955 = vunpack.c.l.b16 %v5839
    %v6956 = vunpack.c.h.b16 %v5839
    %v6957 = vunpack.c.l.b16 %v5840
    %v6958 = vunpack.c.h.b16 %v5840
    %v6959 = vunpack.c.l.b16 %v5841
    %v6960 = vunpack.c.h.b16 %v5841
    %v6961 = vunpack.c.l.b16 %v5842
    %v6962 = vunpack.c.h.b16 %v5842
    %v6963 = vunpack.c.l.b16 %v5843
    %v6964 = vunpack.c.h.b16 %v5843
    %v6965 = vunpack.c.l.b16 %v5844
    %v6966 = vunpack.c.h.b16 %v5844
    %v6967 = vunpack.c.l.b16 %v5845
    %v6968 = vunpack.c.h.b16 %v5845
    %v6969 = vunpack.c.l.b16 %v5846
    %v6970 = vunpack.c.h.b16 %v5846
    %v6971 = vunpack.c.l.b16 %v5847
    %v6972 = vunpack.c.h.b16 %v5847
    %v6973 = vunpack.c.l.b16 %v5848
    %v6974 = vunpack.c.h.b16 %v5848
    %v6975 = vunpack.c.l.b16 %v5849
    %v6976 = vunpack.c.h.b16 %v5849
    %v6977 = vunpack.c.l.b16 %v5850
    %v6978 = vunpack.c.h.b16 %v5850
    %v6979 = vunpack.c.l.b16 %v5851
    %v6980 = vunpack.c.h.b16 %v5851
    %v6981 = vunpack.c.l.b16 %v5852
    %v6982 = vunpack.c.h.b16 %v5852
    %v6983 = vunpack.c.l.b16 %v5853
    %v6984 = vunpack.c.h.b16 %v5853
    %v6985 = vunpack.c.l.b16 %v5854
    %v6986 = vunpack.c.h.b16 %v5854
    %v6987 = vunpack.c.l.b16 %v5855
    %v6988 = vunpack.c.h.b16 %v5855
    %v6989 = vunpack.c.l.b16 %v5856
    %v6990 = vunpack.c.h.b16 %v5856
    %v6991 = vunpack.c.l.b16 %v5857
    %v6992 = vunpack.c.h.b16 %v5857
    %v6993 = vunpack.c.l.b16 %v5858
    %v6994 = vunpack.c.h.b16 %v5858
    %v6995 = vunpack.c.l.b16 %v5859
    %v6996 = vunpack.c.h.b16 %v5859
    %v6997 = vunpack.c.l.b16 %v5860
    %v6998 = vunpack.c.h.b16 %v5860
    %v6999 = vunpack.c.l.b16 %v5861
    %v7000 = vunpack.c.h.b16 %v5861
    %v7001 = vunpack.c.l.b16 %v5862
    %v7002 = vunpack.c.h.b16 %v5862
    %v7003 = vunpack.c.l.b16 %v5863
    %v7004 = vunpack.c.h.b16 %v5863
    %v7005 = vunpack.c.l.b16 %v5864
    %v7006 = vunpack.c.h.b16 %v5864
    %v7007 = vunpack.c.l.b16 %v5865
    %v7008 = vunpack.c.h.b16 %v5865
    %v7009 = vunpack.c.l.b16 %v5866
    %v7010 = vunpack.c.h.b16 %v5866
    %v7011 = vunpack.c.l.b16 %v5867
    %v7012 = vunpack.c.h.b16 %v5867
    %v7013 = vpack.c.b16 %v6953, %v6949
    %v7014 = vpack.c.b16 %v6954, %v6950
    %v7015 = vpack.c.b16 %v6955, %v6951
    %v7016 = vpack.c.b16 %v6956, %v6952
    %v7017 = vpack.c.b16 %v6961, %v6957
    %v7018 = vpack.c.b16 %v6962, %v6958
    %v7019 = vpack.c.b16 %v6963, %v6959
    %v7020 = vpack.c.b16 %v6964, %v6960
    %v7021 = vpack.c.b16 %v6969, %v6965
    %v7022 = vpack.c.b16 %v6970, %v6966
    %v7023 = vpack.c.b16 %v6971, %v6967
    %v7024 = vpack.c.b16 %v6972, %v6968
    %v7025 = vpack.c.b16 %v6977, %v6973
    %v7026 = vpack.c.b16 %v6978, %v6974
    %v7027 = vpack.c.b16 %v6979, %v6975
    %v7028 = vpack.c.b16 %v6980, %v6976
    %v7029 = vpack.c.b16 %v6985, %v6981
    %v7030 = vpack.c.b16 %v6986, %v6982
    %v7031 = vpack.c.b16 %v6987, %v6983
    %v7032 = vpack.c.b16 %v6988, %v6984
    %v7033 = vpack.c.b16 %v6993, %v6989
    %v7034 = vpack.c.b16 %v6994, %v6990
    %v7035 = vpack.c.b16 %v6995, %v6991
    %v7036 = vpack.c.b16 %v6996, %v6992
    %v7037 = vpack.c.b16 %v7001, %v6997
    %v7038 = vpack.c.b16 %v7002, %v6998
    %v7039 = vpack.c.b16 %v7003, %v6999
    %v7040 = vpack.c.b16 %v7004, %v7000
    %v7041 = vpack.c.b16 %v7009, %v7005
    %v7042 = vpack.c.b16 %v7010, %v7006
    %v7043 = vpack.c.b16 %v7011, %v7007
    %v7044 = vpack.c.b16 %v7012, %v7008
    %7077 = vmatprep.subr.bf16.mxu0 %v7014
    %7078 = vmatpush1.bf16.msra.mxu0 %v7013
    %7079 = vmatprep.subr.bf16.mxu0 %v7018
    %7080 = vmatpush1.bf16.msra.mxu0 %v7017
    %7081 = vmatprep.subr.bf16.mxu0 %v7022
    %7082 = vmatpush1.bf16.msra.mxu0 %v7021
    %7083 = vmatprep.subr.bf16.mxu0 %v7026
    %7084 = vmatpush1.bf16.msra.mxu0 %v7025
    %7085 = vmatprep.subr.bf16.mxu0 %v7030
    %7086 = vmatpush1.bf16.msra.mxu0 %v7029
    %7087 = vmatprep.subr.bf16.mxu0 %v7034
    %7088 = vmatpush1.bf16.msra.mxu0 %v7033
    %7089 = vmatprep.subr.bf16.mxu0 %v7038
    %7090 = vmatpush1.bf16.msra.mxu0 %v7037
    %7091 = vmatprep.subr.bf16.mxu0 %v7042
    %7092 = vmatpush1.bf16.msra.mxu0 %v7041
    %7093 = vmatprep.subr.bf16.mxu0 0
    %7094 = vmatpush1.bf16.msra.mxu0 0
    %7095 = vmatprep.subr.bf16.mxu0 0
    %7096 = vmatpush1.bf16.msra.mxu0 0
    %7097 = vmatprep.subr.bf16.mxu0 0
    %7098 = vmatpush1.bf16.msra.mxu0 0
    %7099 = vmatprep.subr.bf16.mxu0 0
    %7100 = vmatpush1.bf16.msra.mxu0 0
    %7101 = vmatprep.subr.bf16.mxu0 0
    %7102 = vmatpush1.bf16.msra.mxu0 0
    %7103 = vmatprep.subr.bf16.mxu0 0
    %7104 = vmatpush1.bf16.msra.mxu0 0
    %7105 = vmatprep.subr.bf16.mxu0 0
    %7106 = vmatpush1.bf16.msra.mxu0 0
    %7107 = vmatprep.subr.bf16.mxu0 0
    %7108 = vmatpush1.bf16.msra.mxu0 0
    %7109 = vmatprep.mubr.bf16.mxu0 0
    %7110 = vmatmul.mubr.bf16.gmra.mrb[0].mxu0 %v6895
    %v7111 = vpop.f32.mrb[0].mxu0
    %v7112 = vadd.f32 %v6900, %v7111
    %v7113 = vpop.f32.mrb[0].mxu0
    %v7114 = vadd.f32 %v6904, %v7113
    %v7115 = vpop.f32.mrb[0].mxu0
    %v7116 = vadd.f32 %v6900, %v7115
    %v7117 = vpop.f32.mrb[0].mxu0
    %v7118 = vadd.f32 %v6904, %v7117
    %7119 = vdwg.mxu0
    %7120 = vmatprep.subr.bf16.mxu0 %v7016
    %7121 = vmatpush1.bf16.msra.mxu0 %v7015
    %7122 = vmatprep.subr.bf16.mxu0 %v7020
    %7123 = vmatpush1.bf16.msra.mxu0 %v7019
    %7124 = vmatprep.subr.bf16.mxu0 %v7024
    %7125 = vmatpush1.bf16.msra.mxu0 %v7023
    %7126 = vmatprep.subr.bf16.mxu0 %v7028
    %7127 = vmatpush1.bf16.msra.mxu0 %v7027
    %7128 = vmatprep.subr.bf16.mxu0 %v7032
    %7129 = vmatpush1.bf16.msra.mxu0 %v7031
    %7130 = vmatprep.subr.bf16.mxu0 %v7036
    %7131 = vmatpush1.bf16.msra.mxu0 %v7035
    %7132 = vmatprep.subr.bf16.mxu0 %v7040
    %7133 = vmatpush1.bf16.msra.mxu0 %v7039
    %7134 = vmatprep.subr.bf16.mxu0 %v7044
    %7135 = vmatpush1.bf16.msra.mxu0 %v7043
    %7136 = vmatprep.subr.bf16.mxu0 0
    %7137 = vmatpush1.bf16.msra.mxu0 0
    %7138 = vmatprep.subr.bf16.mxu0 0
    %7139 = vmatpush1.bf16.msra.mxu0 0
    %7140 = vmatprep.subr.bf16.mxu0 0
    %7141 = vmatpush1.bf16.msra.mxu0 0
    %7142 = vmatprep.subr.bf16.mxu0 0
    %7143 = vmatpush1.bf16.msra.mxu0 0
    %7144 = vmatprep.subr.bf16.mxu0 0
    %7145 = vmatpush1.bf16.msra.mxu0 0
    %7146 = vmatprep.subr.bf16.mxu0 0
    %7147 = vmatpush1.bf16.msra.mxu0 0
    %7148 = vmatprep.subr.bf16.mxu0 0
    %7149 = vmatpush1.bf16.msra.mxu0 0
    %7150 = vmatprep.subr.bf16.mxu0 0
    %7151 = vmatpush1.bf16.msra.mxu0 0
    %7152 = vmatprep.mubr.bf16.mxu0 0
    %7153 = vmatmul.mubr.bf16.gmra.mrb[0].mxu0 %v6895
    %v7154 = vpop.f32.mrb[0].mxu0
    %v7155 = vadd.f32 %v6908, %v7154
    %v7156 = vpop.f32.mrb[0].mxu0
    %v7157 = vadd.f32 %v6912, %v7156
    %v7158 = vpop.f32.mrb[0].mxu0
    %v7159 = vadd.f32 %v6908, %v7158
    %v7160 = vpop.f32.mrb[0].mxu0
    %v7161 = vadd.f32 %v6912, %v7160
    %7162 = vdwg.mxu0
    %v7163 = vmax.f32 %v7112, 0.0
    %v7164 = vmax.f32 %v7114, 0.0
    %v7165 = vmax.f32 %v7155, 0.0
    %v7166 = vmax.f32 %v7157, 0.0
    %v7167 = vmax.f32 %v7116, 0.0
    %v7168 = vmax.f32 %v7118, 0.0
    %v7169 = vmax.f32 %v7159, 0.0
    %v7170 = vmax.f32 %v7161, 0.0
    %v7171 = vpack.c.bf16 %v7167, %v7163
    %v7172 = vpack.c.bf16 %v7168, %v7164
    %v7173 = vpack.c.bf16 %v7169, %v7165
    %v7174 = vpack.c.bf16 %v7170, %v7166
    %v7176 = vlaneseq
    %v7177 = vshrl.u32 %v7176, 7
    %v7178 = vsub.s32 0, %v7177
    %v7179 = vrot.slane %v5933, %v7178
    %v7245 = vunpack.c.l.b16 %v5869
    %v7246 = vunpack.c.l.b16 %v5870
    %v7247 = vunpack.c.l.b16 %v5871
    %v7248 = vunpack.c.l.b16 %v5872
    %v7249 = vunpack.c.l.b16 %v5873
    %v7250 = vunpack.c.l.b16 %v5874
    %v7251 = vunpack.c.l.b16 %v5875
    %v7252 = vunpack.c.l.b16 %v5876
    %v7253 = vunpack.c.l.b16 %v5877
    %v7254 = vunpack.c.l.b16 %v5878
    %v7255 = vunpack.c.l.b16 %v5879
    %v7256 = vunpack.c.l.b16 %v5880
    %v7257 = vunpack.c.l.b16 %v5881
    %v7258 = vunpack.c.l.b16 %v5882
    %v7259 = vunpack.c.l.b16 %v5883
    %v7260 = vunpack.c.l.b16 %v5884
    %v7261 = vunpack.c.l.b16 %v5885
    %v7262 = vunpack.c.l.b16 %v5886
    %v7263 = vunpack.c.l.b16 %v5887
    %v7264 = vunpack.c.l.b16 %v5888
    %v7265 = vunpack.c.l.b16 %v5889
    %v7266 = vunpack.c.l.b16 %v5890
    %v7267 = vunpack.c.l.b16 %v5891
    %v7268 = vunpack.c.l.b16 %v5892
    %v7269 = vunpack.c.l.b16 %v5893
    %v7270 = vunpack.c.l.b16 %v5894
    %v7271 = vunpack.c.l.b16 %v5895
    %v7272 = vunpack.c.l.b16 %v5896
    %v7273 = vunpack.c.l.b16 %v5897
    %v7274 = vunpack.c.l.b16 %v5898
    %v7275 = vunpack.c.l.b16 %v5899
    %v7276 = vunpack.c.l.b16 %v5900
    %v7277 = vunpack.c.l.b16 %v5901
    %v7278 = vunpack.c.l.b16 %v5902
    %v7279 = vunpack.c.l.b16 %v5903
    %v7280 = vunpack.c.l.b16 %v5904
    %v7281 = vunpack.c.l.b16 %v5905
    %v7282 = vunpack.c.l.b16 %v5906
    %v7283 = vunpack.c.l.b16 %v5907
    %v7284 = vunpack.c.l.b16 %v5908
    %v7285 = vunpack.c.l.b16 %v5909
    %v7286 = vunpack.c.l.b16 %v5910
    %v7287 = vunpack.c.l.b16 %v5911
    %v7288 = vunpack.c.l.b16 %v5912
    %v7289 = vunpack.c.l.b16 %v5913
    %v7290 = vunpack.c.l.b16 %v5914
    %v7291 = vunpack.c.l.b16 %v5915
    %v7292 = vunpack.c.l.b16 %v5916
    %v7293 = vunpack.c.l.b16 %v5917
    %v7294 = vunpack.c.l.b16 %v5918
    %v7295 = vunpack.c.l.b16 %v5919
    %v7296 = vunpack.c.l.b16 %v5920
    %v7297 = vunpack.c.l.b16 %v5921
    %v7298 = vunpack.c.l.b16 %v5922
    %v7299 = vunpack.c.l.b16 %v5923
    %v7300 = vunpack.c.l.b16 %v5924
    %v7301 = vunpack.c.l.b16 %v5925
    %v7302 = vunpack.c.l.b16 %v5926
    %v7303 = vunpack.c.l.b16 %v5927
    %v7304 = vunpack.c.l.b16 %v5928
    %v7305 = vunpack.c.l.b16 %v5929
    %v7306 = vunpack.c.l.b16 %v5930
    %v7307 = vunpack.c.l.b16 %v5931
    %v7308 = vunpack.c.l.b16 %v5932
    %v7309 = vpack.c.b16 %v7246, %v7245
    %v7310 = vpack.c.b16 %v7248, %v7247
    %v7311 = vpack.c.b16 %v7250, %v7249
    %v7312 = vpack.c.b16 %v7252, %v7251
    %v7313 = vpack.c.b16 %v7254, %v7253
    %v7314 = vpack.c.b16 %v7256, %v7255
    %v7315 = vpack.c.b16 %v7258, %v7257
    %v7316 = vpack.c.b16 %v7260, %v7259
    %v7317 = vpack.c.b16 %v7262, %v7261
    %v7318 = vpack.c.b16 %v7264, %v7263
    %v7319 = vpack.c.b16 %v7266, %v7265
    %v7320 = vpack.c.b16 %v7268, %v7267
    %v7321 = vpack.c.b16 %v7270, %v7269
    %v7322 = vpack.c.b16 %v7272, %v7271
    %v7323 = vpack.c.b16 %v7274, %v7273
    %v7324 = vpack.c.b16 %v7276, %v7275
    %v7325 = vpack.c.b16 %v7278, %v7277
    %v7326 = vpack.c.b16 %v7280, %v7279
    %v7327 = vpack.c.b16 %v7282, %v7281
    %v7328 = vpack.c.b16 %v7284, %v7283
    %v7329 = vpack.c.b16 %v7286, %v7285
    %v7330 = vpack.c.b16 %v7288, %v7287
    %v7331 = vpack.c.b16 %v7290, %v7289
    %v7332 = vpack.c.b16 %v7292, %v7291
    %v7333 = vpack.c.b16 %v7294, %v7293
    %v7334 = vpack.c.b16 %v7296, %v7295
    %v7335 = vpack.c.b16 %v7298, %v7297
    %v7336 = vpack.c.b16 %v7300, %v7299
    %v7337 = vpack.c.b16 %v7302, %v7301
    %v7338 = vpack.c.b16 %v7304, %v7303
    %v7339 = vpack.c.b16 %v7306, %v7305
    %v7340 = vpack.c.b16 %v7308, %v7307
    %7373 = vmatprep.subr.bf16.mxu0 0
    %7374 = vmatpush1.bf16.msra.mxu0 %v7309
    %7375 = vmatprep.subr.bf16.mxu0 0
    %7376 = vmatpush1.bf16.msra.mxu0 %v7310
    %7377 = vmatprep.subr.bf16.mxu0 0
    %7378 = vmatpush1.bf16.msra.mxu0 %v7311
    %7379 = vmatprep.subr.bf16.mxu0 0
    %7380 = vmatpush1.bf16.msra.mxu0 %v7312
    %7381 = vmatprep.subr.bf16.mxu0 0
    %7382 = vmatpush1.bf16.msra.mxu0 %v7313
    %7383 = vmatprep.subr.bf16.mxu0 0
    %7384 = vmatpush1.bf16.msra.mxu0 %v7314
    %7385 = vmatprep.subr.bf16.mxu0 0
    %7386 = vmatpush1.bf16.msra.mxu0 %v7315
    %7387 = vmatprep.subr.bf16.mxu0 0
    %7388 = vmatpush1.bf16.msra.mxu0 %v7316
    %7389 = vmatprep.subr.bf16.mxu0 0
    %7390 = vmatpush1.bf16.msra.mxu0 %v7317
    %7391 = vmatprep.subr.bf16.mxu0 0
    %7392 = vmatpush1.bf16.msra.mxu0 %v7318
    %7393 = vmatprep.subr.bf16.mxu0 0
    %7394 = vmatpush1.bf16.msra.mxu0 %v7319
    %7395 = vmatprep.subr.bf16.mxu0 0
    %7396 = vmatpush1.bf16.msra.mxu0 %v7320
    %7397 = vmatprep.subr.bf16.mxu0 0
    %7398 = vmatpush1.bf16.msra.mxu0 %v7321
    %7399 = vmatprep.subr.bf16.mxu0 0
    %7400 = vmatpush1.bf16.msra.mxu0 %v7322
    %7401 = vmatprep.subr.bf16.mxu0 0
    %7402 = vmatpush1.bf16.msra.mxu0 %v7323
    %7403 = vmatprep.subr.bf16.mxu0 0
    %7404 = vmatpush1.bf16.msra.mxu0 %v7324
    %7405 = vmatprep.mubr.bf16.mxu0 %v7172
    %7406 = vmatmul.mubr.bf16.gmra.mrb[0].mxu0 %v7171
    %v7407 = vpop.f32.mrb[0].mxu0
    %v7408 = vadd.f32 %v7179, %v7407
    %v7409 = vpop.f32.mrb[0].mxu0
    %v7410 = vpop.f32.mrb[0].mxu0
    %v7411 = vadd.f32 %v7179, %v7410
    %v7412 = vpop.f32.mrb[0].mxu0
    %7413 = vdwg.mxu0
    %7414 = vmatprep.subr.bf16.mxu0 0
    %7415 = vmatpush1.bf16.msra.mxu0 %v7325
    %7416 = vmatprep.subr.bf16.mxu0 0
    %7417 = vmatpush1.bf16.msra.mxu0 %v7326
    %7418 = vmatprep.subr.bf16.mxu0 0
    %7419 = vmatpush1.bf16.msra.mxu0 %v7327
    %7420 = vmatprep.subr.bf16.mxu0 0
    %7421 = vmatpush1.bf16.msra.mxu0 %v7328
    %7422 = vmatprep.subr.bf16.mxu0 0
    %7423 = vmatpush1.bf16.msra.mxu0 %v7329
    %7424 = vmatprep.subr.bf16.mxu0 0
    %7425 = vmatpush1.bf16.msra.mxu0 %v7330
    %7426 = vmatprep.subr.bf16.mxu0 0
    %7427 = vmatpush1.bf16.msra.mxu0 %v7331
    %7428 = vmatprep.subr.bf16.mxu0 0
    %7429 = vmatpush1.bf16.msra.mxu0 %v7332
    %7430 = vmatprep.subr.bf16.mxu0 0
    %7431 = vmatpush1.bf16.msra.mxu0 %v7333
    %7432 = vmatprep.subr.bf16.mxu0 0
    %7433 = vmatpush1.bf16.msra.mxu0 %v7334
    %7434 = vmatprep.subr.bf16.mxu0 0
    %7435 = vmatpush1.bf16.msra.mxu0 %v7335
    %7436 = vmatprep.subr.bf16.mxu0 0
    %7437 = vmatpush1.bf16.msra.mxu0 %v7336
    %7438 = vmatprep.subr.bf16.mxu0 0
    %7439 = vmatpush1.bf16.msra.mxu0 %v7337
    %7440 = vmatprep.subr.bf16.mxu0 0
    %7441 = vmatpush1.bf16.msra.mxu0 %v7338
    %7442 = vmatprep.subr.bf16.mxu0 0
    %7443 = vmatpush1.bf16.msra.mxu0 %v7339
    %7444 = vmatprep.subr.bf16.mxu0 0
    %7445 = vmatpush1.bf16.msra.mxu0 %v7340
    %7446 = vmatprep.mubr.bf16.mxu0 %v7174
    %7447 = vmatmul.mubr.bf16.gmra.mrb[0].mxu0 %v7173
    %v7448 = vpop.f32.mrb[0].mxu0
    %v7449 = vadd.f32 %v7408, %v7448
    %v7450 = vpop.f32.mrb[0].mxu0
    %v7451 = vpop.f32.mrb[0].mxu0
    %v7452 = vadd.f32 %v7411, %v7451
    %v7453 = vpop.f32.mrb[0].mxu0
    %7454 = vdwg.mxu0
    %v7455 = vadd.f32 %v6893, %v7449
    %v7456 = vadd.f32 %v6894, %v7452
    %7457 = vadd.xlane.f32.xlu0 %v7455
    %v7458 = vpop.xlane.xlu0 %7457
    %7459 = vadd.xlane.f32.xlu0 %v7456
    %v7460 = vpop.xlane.xlu0 %7459
    %v7461 = vmul.f32 %v7458, %v2140
    %v7462 = vmul.f32 %v7460, %v2140
    %v7463 = vsub.f32 %v7455, %v7461
    %v7464 = vsub.f32 %v7456, %v7462
    %v7465 = vmul.f32 %v7463, %v7463
    %v7466 = vmul.f32 %v7464, %v7464
    %7467 = vadd.xlane.f32.xlu0 %v7465
    %v7468 = vpop.xlane.xlu0 %7467
    %7469 = vadd.xlane.f32.xlu0 %v7466
    %v7470 = vpop.xlane.xlu0 %7469
    %v7471 = vmul.f32 %v7468, %v2140
    %v7472 = vmul.f32 %v7470, %v2140
    %v7473 = vadd.f32 %v7471, 1e-05
    %v7474 = vadd.f32 %v7472, 1e-05
    %v7475 = vrsqrt.pop %v7473
    %v7476 = vrsqrt.pop %v7474
    %v7477 = vmul.f32 %v7463, %v7475
    %v7478 = vmul.f32 %v7464, %v7476
    %v7480 = vlaneseq
    %v7481 = vshrl.u32 %v7480, 7
    %v7482 = vsub.s32 0, %v7481
    %v7483 = vrot.slane %v5936, %v7482
    %v7485 = vmul.f32 %v7477, %v7483
    %v7486 = vmul.f32 %v7478, %v7483
    %v7488 = vlaneseq
    %v7489 = vshrl.u32 %v7488, 7
    %v7490 = vsub.s32 0, %v7489
    %v7491 = vrot.slane %v5937, %v7490
    %v7493 = vadd.f32 %v7485, %v7491
    %v7494 = vadd.f32 %v7486, %v7491
    %v7495 = vld [vmem:[#allocation8] sm:$0xff]
    %v7496 = vld [vmem:[#allocation8 + $0x8] sm:$0xf]
    %v7497 = vld [vmem:[#allocation8 + $0xc] sm:$0xff]
    %v7498 = vld [vmem:[#allocation8 + $0x14] sm:$0xf]
    %v7499 = vld [vmem:[#allocation8 + $0x18] sm:$0xff]
    %v7500 = vld [vmem:[#allocation8 + $0x20] sm:$0xf]
    %v7501 = vld [vmem:[#allocation8 + $0x24] sm:$0xff]
    %v7502 = vld [vmem:[#allocation8 + $0x2c] sm:$0xf]
    %v7503 = vld [vmem:[#allocation8 + $0x30] sm:$0xff]
    %v7504 = vld [vmem:[#allocation8 + $0x38] sm:$0xf]
    %v7505 = vld [vmem:[#allocation8 + $0x3c] sm:$0xff]
    %v7506 = vld [vmem:[#allocation8 + $0x44] sm:$0xf]
    %v7507 = vld [vmem:[#allocation8 + $0x48] sm:$0xff]
    %v7508 = vld [vmem:[#allocation8 + $0x50] sm:$0xf]
    %v7509 = vld [vmem:[#allocation8 + $0x54] sm:$0xff]
    %v7510 = vld [vmem:[#allocation8 + $0x5c] sm:$0xf]
    %v7511 = vld [vmem:[#allocation8 + $0x60] sm:$0xff]
    %v7512 = vld [vmem:[#allocation8 + $0x68] sm:$0xf]
    %v7513 = vld [vmem:[#allocation8 + $0x6c] sm:$0xff]
    %v7514 = vld [vmem:[#allocation8 + $0x74] sm:$0xf]
    %v7515 = vld [vmem:[#allocation8 + $0x78] sm:$0xff]
    %v7516 = vld [vmem:[#allocation8 + $0x80] sm:$0xf]
    %v7517 = vld [vmem:[#allocation8 + $0x84] sm:$0xff]
    %v7518 = vld [vmem:[#allocation8 + $0x8c] sm:$0xf]
    %v7519 = vld [vmem:[#allocation8 + $0x90] sm:$0xff]
    %v7520 = vld [vmem:[#allocation8 + $0x98] sm:$0xf]
    %v7521 = vld [vmem:[#allocation8 + $0x9c] sm:$0xff]
    %v7522 = vld [vmem:[#allocation8 + $0xa4] sm:$0xf]
    %v7523 = vld [vmem:[#allocation8 + $0xa8] sm:$0xff]
    %v7524 = vld [vmem:[#allocation8 + $0xb0] sm:$0xf]
    %v7525 = vld [vmem:[#allocation8 + $0xb4] sm:$0xff]
    %v7526 = vld [vmem:[#allocation8 + $0xbc] sm:$0xf]
    %v7527 = vld [vmem:[%s55] sm:$0x7]
    %v7528 = vld [vmem:[#allocation10] sm:$0xf]
    %v7529 = vld [vmem:[#allocation10 + $0x4] sm:$0xf]
    %v7530 = vld [vmem:[#allocation10 + $0x8] sm:$0xf]
    %v7531 = vld [vmem:[#allocation10 + $0xc] sm:$0xf]
    %v7532 = vld [vmem:[#allocation10 + $0x10] sm:$0xf]
    %v7533 = vld [vmem:[#allocation10 + $0x14] sm:$0xf]
    %v7534 = vld [vmem:[#allocation10 + $0x18] sm:$0xf]
    %v7535 = vld [vmem:[#allocation10 + $0x1c] sm:$0xf]
    %v7536 = vld [vmem:[#allocation10 + $0x20] sm:$0xf]
    %v7537 = vld [vmem:[#allocation10 + $0x24] sm:$0xf]
    %v7538 = vld [vmem:[#allocation10 + $0x28] sm:$0xf]
    %v7539 = vld [vmem:[#allocation10 + $0x2c] sm:$0xf]
    %v7540 = vld [vmem:[#allocation10 + $0x30] sm:$0xf]
    %v7541 = vld [vmem:[#allocation10 + $0x34] sm:$0xf]
    %v7542 = vld [vmem:[#allocation10 + $0x38] sm:$0xf]
    %v7543 = vld [vmem:[#allocation10 + $0x3c] sm:$0xf]
    %v7544 = vld [vmem:[%s59] sm:$0x1]
    %v7545 = vld [vmem:[#allocation11] sm:$0xff]
    %v7546 = vld [vmem:[#allocation11 + $0x8] sm:$0xff]
    %v7547 = vld [vmem:[#allocation11 + $0x10] sm:$0xff]
    %v7548 = vld [vmem:[#allocation11 + $0x18] sm:$0xff]
    %v7549 = vld [vmem:[#allocation11 + $0x20] sm:$0xff]
    %v7550 = vld [vmem:[#allocation11 + $0x28] sm:$0xff]
    %v7551 = vld [vmem:[#allocation11 + $0x30] sm:$0xff]
    %v7552 = vld [vmem:[#allocation11 + $0x38] sm:$0xff]
    %v7553 = vld [vmem:[#allocation11 + $0x40] sm:$0xff]
    %v7554 = vld [vmem:[#allocation11 + $0x48] sm:$0xff]
    %v7555 = vld [vmem:[#allocation11 + $0x50] sm:$0xff]
    %v7556 = vld [vmem:[#allocation11 + $0x58] sm:$0xff]
    %v7557 = vld [vmem:[#allocation11 + $0x60] sm:$0xff]
    %v7558 = vld [vmem:[#allocation11 + $0x68] sm:$0xff]
    %v7559 = vld [vmem:[#allocation11 + $0x70] sm:$0xff]
    %v7560 = vld [vmem:[#allocation11 + $0x78] sm:$0xff]
    %v7561 = vld [vmem:[#allocation11 + $0x80] sm:$0xff]
    %v7562 = vld [vmem:[#allocation11 + $0x88] sm:$0xff]
    %v7563 = vld [vmem:[#allocation11 + $0x90] sm:$0xff]
    %v7564 = vld [vmem:[#allocation11 + $0x98] sm:$0xff]
    %v7565 = vld [vmem:[#allocation11 + $0xa0] sm:$0xff]
    %v7566 = vld [vmem:[#allocation11 + $0xa8] sm:$0xff]
    %v7567 = vld [vmem:[#allocation11 + $0xb0] sm:$0xff]
    %v7568 = vld [vmem:[#allocation11 + $0xb8] sm:$0xff]
    %v7569 = vld [vmem:[#allocation11 + $0xc0] sm:$0xff]
    %v7570 = vld [vmem:[#allocation11 + $0xc8] sm:$0xff]
    %v7571 = vld [vmem:[#allocation11 + $0xd0] sm:$0xff]
    %v7572 = vld [vmem:[#allocation11 + $0xd8] sm:$0xff]
    %v7573 = vld [vmem:[#allocation11 + $0xe0] sm:$0xff]
    %v7574 = vld [vmem:[#allocation11 + $0xe8] sm:$0xff]
    %v7575 = vld [vmem:[#allocation11 + $0xf0] sm:$0xff]
    %v7576 = vld [vmem:[#allocation11 + $0xf8] sm:$0xff]
    %v7577 = vld [vmem:[%s63] sm:$0xf]
    %v7578 = vld [vmem:[#allocation13] sm:$0xf]
    %v7579 = vld [vmem:[#allocation13 + $0x4] sm:$0xf]
    %v7580 = vld [vmem:[#allocation13 + $0x8] sm:$0xf]
    %v7581 = vld [vmem:[#allocation13 + $0xc] sm:$0xf]
    %v7582 = vld [vmem:[#allocation13 + $0x10] sm:$0xf]
    %v7583 = vld [vmem:[#allocation13 + $0x14] sm:$0xf]
    %v7584 = vld [vmem:[#allocation13 + $0x18] sm:$0xf]
    %v7585 = vld [vmem:[#allocation13 + $0x1c] sm:$0xf]
    %v7586 = vld [vmem:[#allocation13 + $0x20] sm:$0xf]
    %v7587 = vld [vmem:[#allocation13 + $0x24] sm:$0xf]
    %v7588 = vld [vmem:[#allocation13 + $0x28] sm:$0xf]
    %v7589 = vld [vmem:[#allocation13 + $0x2c] sm:$0xf]
    %v7590 = vld [vmem:[#allocation13 + $0x30] sm:$0xf]
    %v7591 = vld [vmem:[#allocation13 + $0x34] sm:$0xf]
    %v7592 = vld [vmem:[#allocation13 + $0x38] sm:$0xf]
    %v7593 = vld [vmem:[#allocation13 + $0x3c] sm:$0xf]
    %v7594 = vld [vmem:[#allocation13 + $0x40] sm:$0xf]
    %v7595 = vld [vmem:[#allocation13 + $0x44] sm:$0xf]
    %v7596 = vld [vmem:[#allocation13 + $0x48] sm:$0xf]
    %v7597 = vld [vmem:[#allocation13 + $0x4c] sm:$0xf]
    %v7598 = vld [vmem:[#allocation13 + $0x50] sm:$0xf]
    %v7599 = vld [vmem:[#allocation13 + $0x54] sm:$0xf]
    %v7600 = vld [vmem:[#allocation13 + $0x58] sm:$0xf]
    %v7601 = vld [vmem:[#allocation13 + $0x5c] sm:$0xf]
    %v7602 = vld [vmem:[#allocation13 + $0x60] sm:$0xf]
    %v7603 = vld [vmem:[#allocation13 + $0x64] sm:$0xf]
    %v7604 = vld [vmem:[#allocation13 + $0x68] sm:$0xf]
    %v7605 = vld [vmem:[#allocation13 + $0x6c] sm:$0xf]
    %v7606 = vld [vmem:[#allocation13 + $0x70] sm:$0xf]
    %v7607 = vld [vmem:[#allocation13 + $0x74] sm:$0xf]
    %v7608 = vld [vmem:[#allocation13 + $0x78] sm:$0xf]
    %v7609 = vld [vmem:[#allocation13 + $0x7c] sm:$0xf]
    %v7610 = vld [vmem:[#allocation13 + $0x80] sm:$0xf]
    %v7611 = vld [vmem:[#allocation13 + $0x84] sm:$0xf]
    %v7612 = vld [vmem:[#allocation13 + $0x88] sm:$0xf]
    %v7613 = vld [vmem:[#allocation13 + $0x8c] sm:$0xf]
    %v7614 = vld [vmem:[#allocation13 + $0x90] sm:$0xf]
    %v7615 = vld [vmem:[#allocation13 + $0x94] sm:$0xf]
    %v7616 = vld [vmem:[#allocation13 + $0x98] sm:$0xf]
    %v7617 = vld [vmem:[#allocation13 + $0x9c] sm:$0xf]
    %v7618 = vld [vmem:[#allocation13 + $0xa0] sm:$0xf]
    %v7619 = vld [vmem:[#allocation13 + $0xa4] sm:$0xf]
    %v7620 = vld [vmem:[#allocation13 + $0xa8] sm:$0xf]
    %v7621 = vld [vmem:[#allocation13 + $0xac] sm:$0xf]
    %v7622 = vld [vmem:[#allocation13 + $0xb0] sm:$0xf]
    %v7623 = vld [vmem:[#allocation13 + $0xb4] sm:$0xf]
    %v7624 = vld [vmem:[#allocation13 + $0xb8] sm:$0xf]
    %v7625 = vld [vmem:[#allocation13 + $0xbc] sm:$0xf]
    %v7626 = vld [vmem:[#allocation13 + $0xc0] sm:$0xf]
    %v7627 = vld [vmem:[#allocation13 + $0xc4] sm:$0xf]
    %v7628 = vld [vmem:[#allocation13 + $0xc8] sm:$0xf]
    %v7629 = vld [vmem:[#allocation13 + $0xcc] sm:$0xf]
    %v7630 = vld [vmem:[#allocation13 + $0xd0] sm:$0xf]
    %v7631 = vld [vmem:[#allocation13 + $0xd4] sm:$0xf]
    %v7632 = vld [vmem:[#allocation13 + $0xd8] sm:$0xf]
    %v7633 = vld [vmem:[#allocation13 + $0xdc] sm:$0xf]
    %v7634 = vld [vmem:[#allocation13 + $0xe0] sm:$0xf]
    %v7635 = vld [vmem:[#allocation13 + $0xe4] sm:$0xf]
    %v7636 = vld [vmem:[#allocation13 + $0xe8] sm:$0xf]
    %v7637 = vld [vmem:[#allocation13 + $0xec] sm:$0xf]
    %v7638 = vld [vmem:[#allocation13 + $0xf0] sm:$0xf]
    %v7639 = vld [vmem:[#allocation13 + $0xf4] sm:$0xf]
    %v7640 = vld [vmem:[#allocation13 + $0xf8] sm:$0xf]
    %v7641 = vld [vmem:[#allocation13 + $0xfc] sm:$0xf]
    %v7642 = vld [vmem:[%s67] sm:$0x1]
    %v7643 = vld [vmem:[%s69] sm:$0x1]
    %v7644 = vld [vmem:[%s71] sm:$0x1]
    %v7645 = vld [vmem:[%s73] sm:$0x1]
    %v7646 = vld [vmem:[%s75] sm:$0x1]
    %v7647 = vpack.c.bf16 %v7494, %v7493
    %v7649 = vlaneseq
    %v7650 = vshrl.u32 %v7649, 7
    %v7651 = vsub.s32 0, %v7650
    %v7652 = vrot.slane %v7527, %v7651
    %v7653 = vlaneseq
    %v7654 = vshrl.u32 %v7653, 7
    %v7655 = vsub.s32 1, %v7654
    %v7656 = vrot.slane %v7527, %v7655
    %v7657 = vlaneseq
    %v7658 = vshrl.u32 %v7657, 7
    %v7659 = vsub.s32 2, %v7658
    %v7660 = vrot.slane %v7527, %v7659
    %v7696 = vunpack.c.l.b16 %v7495
    %v7697 = vunpack.c.h.b16 %v7495
    %v7698 = vunpack.c.l.b16 %v7496
    %v7699 = vunpack.c.l.b16 %v7497
    %v7700 = vunpack.c.h.b16 %v7497
    %v7701 = vunpack.c.l.b16 %v7498
    %v7702 = vunpack.c.l.b16 %v7499
    %v7703 = vunpack.c.h.b16 %v7499
    %v7704 = vunpack.c.l.b16 %v7500
    %v7705 = vunpack.c.l.b16 %v7501
    %v7706 = vunpack.c.h.b16 %v7501
    %v7707 = vunpack.c.l.b16 %v7502
    %v7708 = vunpack.c.l.b16 %v7503
    %v7709 = vunpack.c.h.b16 %v7503
    %v7710 = vunpack.c.l.b16 %v7504
    %v7711 = vunpack.c.l.b16 %v7505
    %v7712 = vunpack.c.h.b16 %v7505
    %v7713 = vunpack.c.l.b16 %v7506
    %v7714 = vunpack.c.l.b16 %v7507
    %v7715 = vunpack.c.h.b16 %v7507
    %v7716 = vunpack.c.l.b16 %v7508
    %v7717 = vunpack.c.l.b16 %v7509
    %v7718 = vunpack.c.h.b16 %v7509
    %v7719 = vunpack.c.l.b16 %v7510
    %v7720 = vunpack.c.l.b16 %v7511
    %v7721 = vunpack.c.h.b16 %v7511
    %v7722 = vunpack.c.l.b16 %v7512
    %v7723 = vunpack.c.l.b16 %v7513
    %v7724 = vunpack.c.h.b16 %v7513
    %v7725 = vunpack.c.l.b16 %v7514
    %v7726 = vunpack.c.l.b16 %v7515
    %v7727 = vunpack.c.h.b16 %v7515
    %v7728 = vunpack.c.l.b16 %v7516
    %v7729 = vunpack.c.l.b16 %v7517
    %v7730 = vunpack.c.h.b16 %v7517
    %v7731 = vunpack.c.l.b16 %v7518
    %v7732 = vunpack.c.l.b16 %v7519
    %v7733 = vunpack.c.h.b16 %v7519
    %v7734 = vunpack.c.l.b16 %v7520
    %v7735 = vunpack.c.l.b16 %v7521
    %v7736 = vunpack.c.h.b16 %v7521
    %v7737 = vunpack.c.l.b16 %v7522
    %v7738 = vunpack.c.l.b16 %v7523
    %v7739 = vunpack.c.h.b16 %v7523
    %v7740 = vunpack.c.l.b16 %v7524
    %v7741 = vunpack.c.l.b16 %v7525
    %v7742 = vunpack.c.h.b16 %v7525
    %v7743 = vunpack.c.l.b16 %v7526
    %v7744 = vpack.c.b16 %v7699, %v7696
    %v7745 = vpack.c.b16 %v7700, %v7697
    %v7746 = vpack.c.b16 %v7701, %v7698
    %v7747 = vpack.c.b16 %v7705, %v7702
    %v7748 = vpack.c.b16 %v7706, %v7703
    %v7749 = vpack.c.b16 %v7707, %v7704
    %v7750 = vpack.c.b16 %v7711, %v7708
    %v7751 = vpack.c.b16 %v7712, %v7709
    %v7752 = vpack.c.b16 %v7713, %v7710
    %v7753 = vpack.c.b16 %v7717, %v7714
    %v7754 = vpack.c.b16 %v7718, %v7715
    %v7755 = vpack.c.b16 %v7719, %v7716
    %v7756 = vpack.c.b16 %v7723, %v7720
    %v7757 = vpack.c.b16 %v7724, %v7721
    %v7758 = vpack.c.b16 %v7725, %v7722
    %v7759 = vpack.c.b16 %v7729, %v7726
    %v7760 = vpack.c.b16 %v7730, %v7727
    %v7761 = vpack.c.b16 %v7731, %v7728
    %v7762 = vpack.c.b16 %v7735, %v7732
    %v7763 = vpack.c.b16 %v7736, %v7733
    %v7764 = vpack.c.b16 %v7737, %v7734
    %v7765 = vpack.c.b16 %v7741, %v7738
    %v7766 = vpack.c.b16 %v7742, %v7739
    %v7767 = vpack.c.b16 %v7743, %v7740
    %7792 = vmatprep.subr.bf16.mxu0 %v7745
    %7793 = vmatpush1.bf16.msra.mxu0 %v7744
    %7794 = vmatprep.subr.bf16.mxu0 %v7748
    %7795 = vmatpush1.bf16.msra.mxu0 %v7747
    %7796 = vmatprep.subr.bf16.mxu0 %v7751
    %7797 = vmatpush1.bf16.msra.mxu0 %v7750
    %7798 = vmatprep.subr.bf16.mxu0 %v7754
    %7799 = vmatpush1.bf16.msra.mxu0 %v7753
    %7800 = vmatprep.subr.bf16.mxu0 %v7757
    %7801 = vmatpush1.bf16.msra.mxu0 %v7756
    %7802 = vmatprep.subr.bf16.mxu0 %v7760
    %7803 = vmatpush1.bf16.msra.mxu0 %v7759
    %7804 = vmatprep.subr.bf16.mxu0 %v7763
    %7805 = vmatpush1.bf16.msra.mxu0 %v7762
    %7806 = vmatprep.subr.bf16.mxu0 %v7766
    %7807 = vmatpush1.bf16.msra.mxu0 %v7765
    %7808 = vmatprep.subr.bf16.mxu0 0
    %7809 = vmatpush1.bf16.msra.mxu0 0
    %7810 = vmatprep.subr.bf16.mxu0 0
    %7811 = vmatpush1.bf16.msra.mxu0 0
    %7812 = vmatprep.subr.bf16.mxu0 0
    %7813 = vmatpush1.bf16.msra.mxu0 0
    %7814 = vmatprep.subr.bf16.mxu0 0
    %7815 = vmatpush1.bf16.msra.mxu0 0
    %7816 = vmatprep.subr.bf16.mxu0 0
    %7817 = vmatpush1.bf16.msra.mxu0 0
    %7818 = vmatprep.subr.bf16.mxu0 0
    %7819 = vmatpush1.bf16.msra.mxu0 0
    %7820 = vmatprep.subr.bf16.mxu0 0
    %7821 = vmatpush1.bf16.msra.mxu0 0
    %7822 = vmatprep.subr.bf16.mxu0 0
    %7823 = vmatpush1.bf16.msra.mxu0 0
    %7824 = vmatprep.mubr.bf16.mxu0 0
    %7825 = vmatmul.mubr.bf16.gmra.mrb[0].mxu0 %v7647
    %v7826 = vpop.f32.mrb[0].mxu0
    %v7827 = vadd.f32 %v7652, %v7826
    %v7828 = vpop.f32.mrb[0].mxu0
    %v7829 = vadd.f32 %v7656, %v7828
    %v7830 = vpop.f32.mrb[0].mxu0
    %v7831 = vadd.f32 %v7652, %v7830
    %v7832 = vpop.f32.mrb[0].mxu0
    %v7833 = vadd.f32 %v7656, %v7832
    %7834 = vdwg.mxu0
    %7835 = vmatprep.subr.bf16.mxu0 0
    %7836 = vmatpush1.bf16.msra.mxu0 %v7746
    %7837 = vmatprep.subr.bf16.mxu0 0
    %7838 = vmatpush1.bf16.msra.mxu0 %v7749
    %7839 = vmatprep.subr.bf16.mxu0 0
    %7840 = vmatpush1.bf16.msra.mxu0 %v7752
    %7841 = vmatprep.subr.bf16.mxu0 0
    %7842 = vmatpush1.bf16.msra.mxu0 %v7755
    %7843 = vmatprep.subr.bf16.mxu0 0
    %7844 = vmatpush1.bf16.msra.mxu0 %v7758
    %7845 = vmatprep.subr.bf16.mxu0 0
    %7846 = vmatpush1.bf16.msra.mxu0 %v7761
    %7847 = vmatprep.subr.bf16.mxu0 0
    %7848 = vmatpush1.bf16.msra.mxu0 %v7764
    %7849 = vmatprep.subr.bf16.mxu0 0
    %7850 = vmatpush1.bf16.msra.mxu0 %v7767
    %7851 = vmatprep.subr.bf16.mxu0 0
    %7852 = vmatpush1.bf16.msra.mxu0 0
    %7853 = vmatprep.subr.bf16.mxu0 0
    %7854 = vmatpush1.bf16.msra.mxu0 0
    %7855 = vmatprep.subr.bf16.mxu0 0
    %7856 = vmatpush1.bf16.msra.mxu0 0
    %7857 = vmatprep.subr.bf16.mxu0 0
    %7858 = vmatpush1.bf16.msra.mxu0 0
    %7859 = vmatprep.subr.bf16.mxu0 0
    %7860 = vmatpush1.bf16.msra.mxu0 0
    %7861 = vmatprep.subr.bf16.mxu0 0
    %7862 = vmatpush1.bf16.msra.mxu0 0
    %7863 = vmatprep.subr.bf16.mxu0 0
    %7864 = vmatpush1.bf16.msra.mxu0 0
    %7865 = vmatprep.subr.bf16.mxu0 0
    %7866 = vmatpush1.bf16.msra.mxu0 0
    %7867 = vmatprep.mubr.bf16.mxu0 0
    %7868 = vmatmul.mubr.bf16.gmra.mrb[0].mxu0 %v7647
    %v7869 = vpop.f32.mrb[0].mxu0
    %v7870 = vadd.f32 %v7660, %v7869
    %v7871 = vpop.f32.mrb[0].mxu0
    %v7872 = vpop.f32.mrb[0].mxu0
    %v7873 = vadd.f32 %v7660, %v7872
    %v7874 = vpop.f32.mrb[0].mxu0
    %7875 = vdwg.mxu0
    %v7876 = vmul.f32 %v7827, 0.25
    %v7877 = vmul.f32 %v7831, 0.25
    %v7878 = vlaneseq
    %v7879 = vshrl.u32 %v7878, 7
    %v7880 = vsub.s32 0, %v7879
    %v7881 = vrot.slane %v7829, %v7880
    %v7882 = vlaneseq
    %v7883 = vshrl.u32 %v7882, 7
    %v7884 = vsub.s32 0, %v7883
    %v7885 = vrot.slane %v7833, %v7884
    %v7886 = vlaneseq
    %v7887 = vshrl.u32 %v7886, 7
    %v7888 = vsub.s32 0, %v7887
    %v7889 = vrot.slane %v7870, %v7888
    %v7890 = vlaneseq
    %v7891 = vshrl.u32 %v7890, 7
    %v7892 = vsub.s32 0, %v7891
    %v7893 = vrot.slane %v7873, %v7892
    %v7894 = vmul.f32 %v7876, %v7881
    %v7895 = vmul.f32 %v7877, %v7885
    %v7896 = vpack.c.bf16 %v7895, %v7894
    %7897 = vmatprep.subr.bf16.mxu0 0
    %7898 = vmatpush1.bf16.msra.mxu0 %v1071
    %7899 = vmatprep.subr.bf16.mxu0 0
    %7900 = vmatpush1.bf16.msra.mxu0 %v1072
    %7901 = vmatprep.subr.bf16.mxu0 0
    %7902 = vmatpush1.bf16.msra.mxu0 %v1073
    %7903 = vmatprep.subr.bf16.mxu0 0
    %7904 = vmatpush1.bf16.msra.mxu0 %v1074
    %7905 = vmatprep.subr.bf16.mxu0 0
    %7906 = vmatpush1.bf16.msra.mxu0 %v1075
    %7907 = vmatprep.subr.bf16.mxu0 0
    %7908 = vmatpush1.bf16.msra.mxu0 %v1076
    %7909 = vmatprep.subr.bf16.mxu0 0
    %7910 = vmatpush1.bf16.msra.mxu0 %v1077
    %7911 = vmatprep.subr.bf16.mxu0 0
    %7912 = vmatpush1.bf16.msra.mxu0 %v1078
    %7913 = vmatprep.subr.bf16.mxu0 0
    %7914 = vmatpush1.bf16.msra.mxu0 0
    %7915 = vmatprep.subr.bf16.mxu0 0
    %7916 = vmatpush1.bf16.msra.mxu0 0
    %7917 = vmatprep.subr.bf16.mxu0 0
    %7918 = vmatpush1.bf16.msra.mxu0 0
    %7919 = vmatprep.subr.bf16.mxu0 0
    %7920 = vmatpush1.bf16.msra.mxu0 0
    %7921 = vmatprep.subr.bf16.mxu0 0
    %7922 = vmatpush1.bf16.msra.mxu0 0
    %7923 = vmatprep.subr.bf16.mxu0 0
    %7924 = vmatpush1.bf16.msra.mxu0 0
    %7925 = vmatprep.subr.bf16.mxu0 0
    %7926 = vmatpush1.bf16.msra.mxu0 0
    %7927 = vmatprep.subr.bf16.mxu0 0
    %7928 = vmatpush1.bf16.msra.mxu0 0
    %7929 = vmatprep.mubr.bf16.mxu0 0
    %7930 = vmatmul.mubr.bf16.gmra.mrb[0].mxu0 %v7896
    %v7931 = vpop.f32.mrb[0].mxu0
    %v7932 = vadd.f32 0.0, %v7931
    %v7933 = vpop.f32.mrb[0].mxu0
    %v7934 = vpop.f32.mrb[0].mxu0
    %v7935 = vadd.f32 0.0, %v7934
    %v7936 = vpop.f32.mrb[0].mxu0
    %7937 = vdwg.mxu0
    %v7938 = vlaneseq
    %v7939 = vshrl.u32 %v7938, 7
    %v7940 = vsub.s32 1, %v7939
    %v7941 = vrot.slane %v7829, %v7940
    %v7942 = vlaneseq
    %v7943 = vshrl.u32 %v7942, 7
    %v7944 = vsub.s32 1, %v7943
    %v7945 = vrot.slane %v7833, %v7944
    %v7946 = vlaneseq
    %v7947 = vshrl.u32 %v7946, 7
    %v7948 = vsub.s32 1, %v7947
    %v7949 = vrot.slane %v7870, %v7948
    %v7950 = vlaneseq
    %v7951 = vshrl.u32 %v7950, 7
    %v7952 = vsub.s32 1, %v7951
    %v7953 = vrot.slane %v7873, %v7952
    %v7954 = vmul.f32 %v7876, %v7941
    %v7955 = vmul.f32 %v7877, %v7945
    %v7956 = vpack.c.bf16 %v7955, %v7954
    %7957 = vmatprep.subr.bf16.mxu0 0
    %7958 = vmatpush1.bf16.msra.mxu0 %v1071
    %7959 = vmatprep.subr.bf16.mxu0 0
    %7960 = vmatpush1.bf16.msra.mxu0 %v1072
    %7961 = vmatprep.subr.bf16.mxu0 0
    %7962 = vmatpush1.bf16.msra.mxu0 %v1073
    %7963 = vmatprep.subr.bf16.mxu0 0
    %7964 = vmatpush1.bf16.msra.mxu0 %v1074
    %7965 = vmatprep.subr.bf16.mxu0 0
    %7966 = vmatpush1.bf16.msra.mxu0 %v1075
    %7967 = vmatprep.subr.bf16.mxu0 0
    %7968 = vmatpush1.bf16.msra.mxu0 %v1076
    %7969 = vmatprep.subr.bf16.mxu0 0
    %7970 = vmatpush1.bf16.msra.mxu0 %v1077
    %7971 = vmatprep.subr.bf16.mxu0 0
    %7972 = vmatpush1.bf16.msra.mxu0 %v1078
    %7973 = vmatprep.subr.bf16.mxu0 0
    %7974 = vmatpush1.bf16.msra.mxu0 0
    %7975 = vmatprep.subr.bf16.mxu0 0
    %7976 = vmatpush1.bf16.msra.mxu0 0
    %7977 = vmatprep.subr.bf16.mxu0 0
    %7978 = vmatpush1.bf16.msra.mxu0 0
    %7979 = vmatprep.subr.bf16.mxu0 0
    %7980 = vmatpush1.bf16.msra.mxu0 0
    %7981 = vmatprep.subr.bf16.mxu0 0
    %7982 = vmatpush1.bf16.msra.mxu0 0
    %7983 = vmatprep.subr.bf16.mxu0 0
    %7984 = vmatpush1.bf16.msra.mxu0 0
    %7985 = vmatprep.subr.bf16.mxu0 0
    %7986 = vmatpush1.bf16.msra.mxu0 0
    %7987 = vmatprep.subr.bf16.mxu0 0
    %7988 = vmatpush1.bf16.msra.mxu0 0
    %7989 = vmatprep.mubr.bf16.mxu0 0
    %7990 = vmatmul.mubr.bf16.gmra.mrb[0].mxu0 %v7956
    %v7991 = vpop.f32.mrb[0].mxu0
    %v7992 = vadd.f32 0.0, %v7991
    %v7993 = vpop.f32.mrb[0].mxu0
    %v7994 = vpop.f32.mrb[0].mxu0
    %v7995 = vadd.f32 0.0, %v7994
    %v7996 = vpop.f32.mrb[0].mxu0
    %7997 = vdwg.mxu0
    %v7998 = vlaneseq
    %v7999 = vshrl.u32 %v7998, 7
    %v8000 = vsub.s32 2, %v7999
    %v8001 = vrot.slane %v7829, %v8000
    %v8002 = vlaneseq
    %v8003 = vshrl.u32 %v8002, 7
    %v8004 = vsub.s32 2, %v8003
    %v8005 = vrot.slane %v7833, %v8004
    %v8006 = vlaneseq
    %v8007 = vshrl.u32 %v8006, 7
    %v8008 = vsub.s32 2, %v8007
    %v8009 = vrot.slane %v7870, %v8008
    %v8010 = vlaneseq
    %v8011 = vshrl.u32 %v8010, 7
    %v8012 = vsub.s32 2, %v8011
    %v8013 = vrot.slane %v7873, %v8012
    %v8014 = vmul.f32 %v7876, %v8001
    %v8015 = vmul.f32 %v7877, %v8005
    %v8016 = vpack.c.bf16 %v8015, %v8014
    %8017 = vmatprep.subr.bf16.mxu0 0
    %8018 = vmatpush1.bf16.msra.mxu0 %v1071
    %8019 = vmatprep.subr.bf16.mxu0 0
    %8020 = vmatpush1.bf16.msra.mxu0 %v1072
    %8021 = vmatprep.subr.bf16.mxu0 0
    %8022 = vmatpush1.bf16.msra.mxu0 %v1073
    %8023 = vmatprep.subr.bf16.mxu0 0
    %8024 = vmatpush1.bf16.msra.mxu0 %v1074
    %8025 = vmatprep.subr.bf16.mxu0 0
    %8026 = vmatpush1.bf16.msra.mxu0 %v1075
    %8027 = vmatprep.subr.bf16.mxu0 0
    %8028 = vmatpush1.bf16.msra.mxu0 %v1076
    %8029 = vmatprep.subr.bf16.mxu0 0
    %8030 = vmatpush1.bf16.msra.mxu0 %v1077
    %8031 = vmatprep.subr.bf16.mxu0 0
    %8032 = vmatpush1.bf16.msra.mxu0 %v1078
    %8033 = vmatprep.subr.bf16.mxu0 0
    %8034 = vmatpush1.bf16.msra.mxu0 0
    %8035 = vmatprep.subr.bf16.mxu0 0
    %8036 = vmatpush1.bf16.msra.mxu0 0
    %8037 = vmatprep.subr.bf16.mxu0 0
    %8038 = vmatpush1.bf16.msra.mxu0 0
    %8039 = vmatprep.subr.bf16.mxu0 0
    %8040 = vmatpush1.bf16.msra.mxu0 0
    %8041 = vmatprep.subr.bf16.mxu0 0
    %8042 = vmatpush1.bf16.msra.mxu0 0
    %8043 = vmatprep.subr.bf16.mxu0 0
    %8044 = vmatpush1.bf16.msra.mxu0 0
    %8045 = vmatprep.subr.bf16.mxu0 0
    %8046 = vmatpush1.bf16.msra.mxu0 0
    %8047 = vmatprep.subr.bf16.mxu0 0
    %8048 = vmatpush1.bf16.msra.mxu0 0
    %8049 = vmatprep.mubr.bf16.mxu0 0
    %8050 = vmatmul.mubr.bf16.gmra.mrb[0].mxu0 %v8016
    %v8051 = vpop.f32.mrb[0].mxu0
    %v8052 = vadd.f32 0.0, %v8051
    %v8053 = vpop.f32.mrb[0].mxu0
    %v8054 = vpop.f32.mrb[0].mxu0
    %v8055 = vadd.f32 0.0, %v8054
    %v8056 = vpop.f32.mrb[0].mxu0
    %8057 = vdwg.mxu0
    %v8058 = vlaneseq
    %v8059 = vshrl.u32 %v8058, 7
    %v8060 = vsub.s32 3, %v8059
    %v8061 = vrot.slane %v7829, %v8060
    %v8062 = vlaneseq
    %v8063 = vshrl.u32 %v8062, 7
    %v8064 = vsub.s32 3, %v8063
    %v8065 = vrot.slane %v7833, %v8064
    %v8066 = vlaneseq
    %v8067 = vshrl.u32 %v8066, 7
    %v8068 = vsub.s32 3, %v8067
    %v8069 = vrot.slane %v7870, %v8068
    %v8070 = vlaneseq
    %v8071 = vshrl.u32 %v8070, 7
    %v8072 = vsub.s32 3, %v8071
    %v8073 = vrot.slane %v7873, %v8072
    %v8074 = vmul.f32 %v7876, %v8061
    %v8075 = vmul.f32 %v7877, %v8065
    %v8076 = vpack.c.bf16 %v8075, %v8074
    %8077 = vmatprep.subr.bf16.mxu0 0
    %8078 = vmatpush1.bf16.msra.mxu0 %v1071
    %8079 = vmatprep.subr.bf16.mxu0 0
    %8080 = vmatpush1.bf16.msra.mxu0 %v1072
    %8081 = vmatprep.subr.bf16.mxu0 0
    %8082 = vmatpush1.bf16.msra.mxu0 %v1073
    %8083 = vmatprep.subr.bf16.mxu0 0
    %8084 = vmatpush1.bf16.msra.mxu0 %v1074
    %8085 = vmatprep.subr.bf16.mxu0 0
    %8086 = vmatpush1.bf16.msra.mxu0 %v1075
    %8087 = vmatprep.subr.bf16.mxu0 0
    %8088 = vmatpush1.bf16.msra.mxu0 %v1076
    %8089 = vmatprep.subr.bf16.mxu0 0
    %8090 = vmatpush1.bf16.msra.mxu0 %v1077
    %8091 = vmatprep.subr.bf16.mxu0 0
    %8092 = vmatpush1.bf16.msra.mxu0 %v1078
    %8093 = vmatprep.subr.bf16.mxu0 0
    %8094 = vmatpush1.bf16.msra.mxu0 0
    %8095 = vmatprep.subr.bf16.mxu0 0
    %8096 = vmatpush1.bf16.msra.mxu0 0
    %8097 = vmatprep.subr.bf16.mxu0 0
    %8098 = vmatpush1.bf16.msra.mxu0 0
    %8099 = vmatprep.subr.bf16.mxu0 0
    %8100 = vmatpush1.bf16.msra.mxu0 0
    %8101 = vmatprep.subr.bf16.mxu0 0
    %8102 = vmatpush1.bf16.msra.mxu0 0
    %8103 = vmatprep.subr.bf16.mxu0 0
    %8104 = vmatpush1.bf16.msra.mxu0 0
    %8105 = vmatprep.subr.bf16.mxu0 0
    %8106 = vmatpush1.bf16.msra.mxu0 0
    %8107 = vmatprep.subr.bf16.mxu0 0
    %8108 = vmatpush1.bf16.msra.mxu0 0
    %8109 = vmatprep.mubr.bf16.mxu0 0
    %8110 = vmatmul.mubr.bf16.gmra.mrb[0].mxu0 %v8076
    %v8111 = vpop.f32.mrb[0].mxu0
    %v8112 = vadd.f32 0.0, %v8111
    %v8113 = vpop.f32.mrb[0].mxu0
    %v8114 = vpop.f32.mrb[0].mxu0
    %v8115 = vadd.f32 0.0, %v8114
    %v8116 = vpop.f32.mrb[0].mxu0
    %8117 = vdwg.mxu0
    %v8118 = vlaneseq
    %v8119 = vshrl.u32 %v8118, 7
    %v8120 = vsub.s32 4, %v8119
    %v8121 = vrot.slane %v7829, %v8120
    %v8122 = vlaneseq
    %v8123 = vshrl.u32 %v8122, 7
    %v8124 = vsub.s32 4, %v8123
    %v8125 = vrot.slane %v7833, %v8124
    %v8126 = vlaneseq
    %v8127 = vshrl.u32 %v8126, 7
    %v8128 = vsub.s32 4, %v8127
    %v8129 = vrot.slane %v7870, %v8128
    %v8130 = vlaneseq
    %v8131 = vshrl.u32 %v8130, 7
    %v8132 = vsub.s32 4, %v8131
    %v8133 = vrot.slane %v7873, %v8132
    %v8134 = vmul.f32 %v7876, %v8121
    %v8135 = vmul.f32 %v7877, %v8125
    %v8136 = vpack.c.bf16 %v8135, %v8134
    %8137 = vmatprep.subr.bf16.mxu0 0
    %8138 = vmatpush1.bf16.msra.mxu0 %v1071
    %8139 = vmatprep.subr.bf16.mxu0 0
    %8140 = vmatpush1.bf16.msra.mxu0 %v1072
    %8141 = vmatprep.subr.bf16.mxu0 0
    %8142 = vmatpush1.bf16.msra.mxu0 %v1073
    %8143 = vmatprep.subr.bf16.mxu0 0
    %8144 = vmatpush1.bf16.msra.mxu0 %v1074
    %8145 = vmatprep.subr.bf16.mxu0 0
    %8146 = vmatpush1.bf16.msra.mxu0 %v1075
    %8147 = vmatprep.subr.bf16.mxu0 0
    %8148 = vmatpush1.bf16.msra.mxu0 %v1076
    %8149 = vmatprep.subr.bf16.mxu0 0
    %8150 = vmatpush1.bf16.msra.mxu0 %v1077
    %8151 = vmatprep.subr.bf16.mxu0 0
    %8152 = vmatpush1.bf16.msra.mxu0 %v1078
    %8153 = vmatprep.subr.bf16.mxu0 0
    %8154 = vmatpush1.bf16.msra.mxu0 0
    %8155 = vmatprep.subr.bf16.mxu0 0
    %8156 = vmatpush1.bf16.msra.mxu0 0
    %8157 = vmatprep.subr.bf16.mxu0 0
    %8158 = vmatpush1.bf16.msra.mxu0 0
    %8159 = vmatprep.subr.bf16.mxu0 0
    %8160 = vmatpush1.bf16.msra.mxu0 0
    %8161 = vmatprep.subr.bf16.mxu0 0
    %8162 = vmatpush1.bf16.msra.mxu0 0
    %8163 = vmatprep.subr.bf16.mxu0 0
    %8164 = vmatpush1.bf16.msra.mxu0 0
    %8165 = vmatprep.subr.bf16.mxu0 0
    %8166 = vmatpush1.bf16.msra.mxu0 0
    %8167 = vmatprep.subr.bf16.mxu0 0
    %8168 = vmatpush1.bf16.msra.mxu0 0
    %8169 = vmatprep.mubr.bf16.mxu0 0
    %8170 = vmatmul.mubr.bf16.gmra.mrb[0].mxu0 %v8136
    %v8171 = vpop.f32.mrb[0].mxu0
    %v8172 = vadd.f32 0.0, %v8171
    %v8173 = vpop.f32.mrb[0].mxu0
    %v8174 = vpop.f32.mrb[0].mxu0
    %v8175 = vadd.f32 0.0, %v8174
    %v8176 = vpop.f32.mrb[0].mxu0
    %8177 = vdwg.mxu0
    %v8178 = vlaneseq
    %v8179 = vshrl.u32 %v8178, 7
    %v8180 = vsub.s32 5, %v8179
    %v8181 = vrot.slane %v7829, %v8180
    %v8182 = vlaneseq
    %v8183 = vshrl.u32 %v8182, 7
    %v8184 = vsub.s32 5, %v8183
    %v8185 = vrot.slane %v7833, %v8184
    %v8186 = vlaneseq
    %v8187 = vshrl.u32 %v8186, 7
    %v8188 = vsub.s32 5, %v8187
    %v8189 = vrot.slane %v7870, %v8188
    %v8190 = vlaneseq
    %v8191 = vshrl.u32 %v8190, 7
    %v8192 = vsub.s32 5, %v8191
    %v8193 = vrot.slane %v7873, %v8192
    %v8194 = vmul.f32 %v7876, %v8181
    %v8195 = vmul.f32 %v7877, %v8185
    %v8196 = vpack.c.bf16 %v8195, %v8194
    %8197 = vmatprep.subr.bf16.mxu0 0
    %8198 = vmatpush1.bf16.msra.mxu0 %v1071
    %8199 = vmatprep.subr.bf16.mxu0 0
    %8200 = vmatpush1.bf16.msra.mxu0 %v1072
    %8201 = vmatprep.subr.bf16.mxu0 0
    %8202 = vmatpush1.bf16.msra.mxu0 %v1073
    %8203 = vmatprep.subr.bf16.mxu0 0
    %8204 = vmatpush1.bf16.msra.mxu0 %v1074
    %8205 = vmatprep.subr.bf16.mxu0 0
    %8206 = vmatpush1.bf16.msra.mxu0 %v1075
    %8207 = vmatprep.subr.bf16.mxu0 0
    %8208 = vmatpush1.bf16.msra.mxu0 %v1076
    %8209 = vmatprep.subr.bf16.mxu0 0
    %8210 = vmatpush1.bf16.msra.mxu0 %v1077
    %8211 = vmatprep.subr.bf16.mxu0 0
    %8212 = vmatpush1.bf16.msra.mxu0 %v1078
    %8213 = vmatprep.subr.bf16.mxu0 0
    %8214 = vmatpush1.bf16.msra.mxu0 0
    %8215 = vmatprep.subr.bf16.mxu0 0
    %8216 = vmatpush1.bf16.msra.mxu0 0
    %8217 = vmatprep.subr.bf16.mxu0 0
    %8218 = vmatpush1.bf16.msra.mxu0 0
    %8219 = vmatprep.subr.bf16.mxu0 0
    %8220 = vmatpush1.bf16.msra.mxu0 0
    %8221 = vmatprep.subr.bf16.mxu0 0
    %8222 = vmatpush1.bf16.msra.mxu0 0
    %8223 = vmatprep.subr.bf16.mxu0 0
    %8224 = vmatpush1.bf16.msra.mxu0 0
    %8225 = vmatprep.subr.bf16.mxu0 0
    %8226 = vmatpush1.bf16.msra.mxu0 0
    %8227 = vmatprep.subr.bf16.mxu0 0
    %8228 = vmatpush1.bf16.msra.mxu0 0
    %8229 = vmatprep.mubr.bf16.mxu0 0
    %8230 = vmatmul.mubr.bf16.gmra.mrb[0].mxu0 %v8196
    %v8231 = vpop.f32.mrb[0].mxu0
    %v8232 = vadd.f32 0.0, %v8231
    %v8233 = vpop.f32.mrb[0].mxu0
    %v8234 = vpop.f32.mrb[0].mxu0
    %v8235 = vadd.f32 0.0, %v8234
    %v8236 = vpop.f32.mrb[0].mxu0
    %8237 = vdwg.mxu0
    %v8238 = vlaneseq
    %v8239 = vshrl.u32 %v8238, 7
    %v8240 = vsub.s32 6, %v8239
    %v8241 = vrot.slane %v7829, %v8240
    %v8242 = vlaneseq
    %v8243 = vshrl.u32 %v8242, 7
    %v8244 = vsub.s32 6, %v8243
    %v8245 = vrot.slane %v7833, %v8244
    %v8246 = vlaneseq
    %v8247 = vshrl.u32 %v8246, 7
    %v8248 = vsub.s32 6, %v8247
    %v8249 = vrot.slane %v7870, %v8248
    %v8250 = vlaneseq
    %v8251 = vshrl.u32 %v8250, 7
    %v8252 = vsub.s32 6, %v8251
    %v8253 = vrot.slane %v7873, %v8252
    %v8254 = vmul.f32 %v7876, %v8241
    %v8255 = vmul.f32 %v7877, %v8245
    %v8256 = vpack.c.bf16 %v8255, %v8254
    %8257 = vmatprep.subr.bf16.mxu0 0
    %8258 = vmatpush1.bf16.msra.mxu0 %v1071
    %8259 = vmatprep.subr.bf16.mxu0 0
    %8260 = vmatpush1.bf16.msra.mxu0 %v1072
    %8261 = vmatprep.subr.bf16.mxu0 0
    %8262 = vmatpush1.bf16.msra.mxu0 %v1073
    %8263 = vmatprep.subr.bf16.mxu0 0
    %8264 = vmatpush1.bf16.msra.mxu0 %v1074
    %8265 = vmatprep.subr.bf16.mxu0 0
    %8266 = vmatpush1.bf16.msra.mxu0 %v1075
    %8267 = vmatprep.subr.bf16.mxu0 0
    %8268 = vmatpush1.bf16.msra.mxu0 %v1076
    %8269 = vmatprep.subr.bf16.mxu0 0
    %8270 = vmatpush1.bf16.msra.mxu0 %v1077
    %8271 = vmatprep.subr.bf16.mxu0 0
    %8272 = vmatpush1.bf16.msra.mxu0 %v1078
    %8273 = vmatprep.subr.bf16.mxu0 0
    %8274 = vmatpush1.bf16.msra.mxu0 0
    %8275 = vmatprep.subr.bf16.mxu0 0
    %8276 = vmatpush1.bf16.msra.mxu0 0
    %8277 = vmatprep.subr.bf16.mxu0 0
    %8278 = vmatpush1.bf16.msra.mxu0 0
    %8279 = vmatprep.subr.bf16.mxu0 0
    %8280 = vmatpush1.bf16.msra.mxu0 0
    %8281 = vmatprep.subr.bf16.mxu0 0
    %8282 = vmatpush1.bf16.msra.mxu0 0
    %8283 = vmatprep.subr.bf16.mxu0 0
    %8284 = vmatpush1.bf16.msra.mxu0 0
    %8285 = vmatprep.subr.bf16.mxu0 0
    %8286 = vmatpush1.bf16.msra.mxu0 0
    %8287 = vmatprep.subr.bf16.mxu0 0
    %8288 = vmatpush1.bf16.msra.mxu0 0
    %8289 = vmatprep.mubr.bf16.mxu0 0
    %8290 = vmatmul.mubr.bf16.gmra.mrb[0].mxu0 %v8256
    %v8291 = vpop.f32.mrb[0].mxu0
    %v8292 = vadd.f32 0.0, %v8291
    %v8293 = vpop.f32.mrb[0].mxu0
    %v8294 = vpop.f32.mrb[0].mxu0
    %v8295 = vadd.f32 0.0, %v8294
    %v8296 = vpop.f32.mrb[0].mxu0
    %8297 = vdwg.mxu0
    %v8298 = vlaneseq
    %v8299 = vshrl.u32 %v8298, 7
    %v8300 = vsub.s32 7, %v8299
    %v8301 = vrot.slane %v7829, %v8300
    %v8302 = vlaneseq
    %v8303 = vshrl.u32 %v8302, 7
    %v8304 = vsub.s32 7, %v8303
    %v8305 = vrot.slane %v7833, %v8304
    %v8306 = vlaneseq
    %v8307 = vshrl.u32 %v8306, 7
    %v8308 = vsub.s32 7, %v8307
    %v8309 = vrot.slane %v7870, %v8308
    %v8310 = vlaneseq
    %v8311 = vshrl.u32 %v8310, 7
    %v8312 = vsub.s32 7, %v8311
    %v8313 = vrot.slane %v7873, %v8312
    %v8314 = vmul.f32 %v7876, %v8301
    %v8315 = vmul.f32 %v7877, %v8305
    %v8316 = vpack.c.bf16 %v8315, %v8314
    %8317 = vmatprep.subr.bf16.mxu0 0
    %8318 = vmatpush1.bf16.msra.mxu0 %v1071
    %8319 = vmatprep.subr.bf16.mxu0 0
    %8320 = vmatpush1.bf16.msra.mxu0 %v1072
    %8321 = vmatprep.subr.bf16.mxu0 0
    %8322 = vmatpush1.bf16.msra.mxu0 %v1073
    %8323 = vmatprep.subr.bf16.mxu0 0
    %8324 = vmatpush1.bf16.msra.mxu0 %v1074
    %8325 = vmatprep.subr.bf16.mxu0 0
    %8326 = vmatpush1.bf16.msra.mxu0 %v1075
    %8327 = vmatprep.subr.bf16.mxu0 0
    %8328 = vmatpush1.bf16.msra.mxu0 %v1076
    %8329 = vmatprep.subr.bf16.mxu0 0
    %8330 = vmatpush1.bf16.msra.mxu0 %v1077
    %8331 = vmatprep.subr.bf16.mxu0 0
    %8332 = vmatpush1.bf16.msra.mxu0 %v1078
    %8333 = vmatprep.subr.bf16.mxu0 0
    %8334 = vmatpush1.bf16.msra.mxu0 0
    %8335 = vmatprep.subr.bf16.mxu0 0
    %8336 = vmatpush1.bf16.msra.mxu0 0
    %8337 = vmatprep.subr.bf16.mxu0 0
    %8338 = vmatpush1.bf16.msra.mxu0 0
    %8339 = vmatprep.subr.bf16.mxu0 0
    %8340 = vmatpush1.bf16.msra.mxu0 0
    %8341 = vmatprep.subr.bf16.mxu0 0
    %8342 = vmatpush1.bf16.msra.mxu0 0
    %8343 = vmatprep.subr.bf16.mxu0 0
    %8344 = vmatpush1.bf16.msra.mxu0 0
    %8345 = vmatprep.subr.bf16.mxu0 0
    %8346 = vmatpush1.bf16.msra.mxu0 0
    %8347 = vmatprep.subr.bf16.mxu0 0
    %8348 = vmatpush1.bf16.msra.mxu0 0
    %8349 = vmatprep.mubr.bf16.mxu0 0
    %8350 = vmatmul.mubr.bf16.gmra.mrb[0].mxu0 %v8316
    %v8351 = vpop.f32.mrb[0].mxu0
    %v8352 = vadd.f32 0.0, %v8351
    %v8353 = vpop.f32.mrb[0].mxu0
    %v8354 = vpop.f32.mrb[0].mxu0
    %v8355 = vadd.f32 0.0, %v8354
    %v8356 = vpop.f32.mrb[0].mxu0
    %8357 = vdwg.mxu0
    %v8358 = vmax.f32 %v7932, %v7992
    %v8359 = vmax.f32 %v7935, %v7995
    %v8360 = vmax.f32 %v8358, %v8052
    %v8361 = vmax.f32 %v8359, %v8055
    %v8362 = vmax.f32 %v8360, %v8112
    %v8363 = vmax.f32 %v8361, %v8115
    %v8364 = vmax.f32 %v8362, %v8172
    %v8365 = vmax.f32 %v8363, %v8175
    %v8366 = vmax.f32 %v8364, %v8232
    %v8367 = vmax.f32 %v8365, %v8235
    %v8368 = vmax.f32 %v8366, %v8292
    %v8369 = vmax.f32 %v8367, %v8295
    %v8370 = vmax.f32 %v8368, %v8352
    %v8371 = vmax.f32 %v8369, %v8355
    %v8372 = vsub.f32 %v7932, %v8370
    %v8373 = vsub.f32 %v7935, %v8371
    %v8374 = vmul.f32 %v8372, 1.442695
    %v8375 = vpow.pop %v8374
    %v8376 = vmul.f32 %v8373, 1.442695
    %v8377 = vpow.pop %v8376
    %v8378 = vsub.f32 %v7992, %v8370
    %v8379 = vsub.f32 %v7995, %v8371
    %v8380 = vmul.f32 %v8378, 1.442695
    %v8381 = vpow.pop %v8380
    %v8382 = vmul.f32 %v8379, 1.442695
    %v8383 = vpow.pop %v8382
    %v8384 = vsub.f32 %v8052, %v8370
    %v8385 = vsub.f32 %v8055, %v8371
    %v8386 = vmul.f32 %v8384, 1.442695
    %v8387 = vpow.pop %v8386
    %v8388 = vmul.f32 %v8385, 1.442695
    %v8389 = vpow.pop %v8388
    %v8390 = vsub.f32 %v8112, %v8370
    %v8391 = vsub.f32 %v8115, %v8371
    %v8392 = vmul.f32 %v8390, 1.442695
    %v8393 = vpow.pop %v8392
    %v8394 = vmul.f32 %v8391, 1.442695
    %v8395 = vpow.pop %v8394
    %v8396 = vsub.f32 %v8172, %v8370
    %v8397 = vsub.f32 %v8175, %v8371
    %v8398 = vmul.f32 %v8396, 1.442695
    %v8399 = vpow.pop %v8398
    %v8400 = vmul.f32 %v8397, 1.442695
    %v8401 = vpow.pop %v8400
    %v8402 = vsub.f32 %v8232, %v8370
    %v8403 = vsub.f32 %v8235, %v8371
    %v8404 = vmul.f32 %v8402, 1.442695
    %v8405 = vpow.pop %v8404
    %v8406 = vmul.f32 %v8403, 1.442695
    %v8407 = vpow.pop %v8406
    %v8408 = vsub.f32 %v8292, %v8370
    %v8409 = vsub.f32 %v8295, %v8371
    %v8410 = vmul.f32 %v8408, 1.442695
    %v8411 = vpow.pop %v8410
    %v8412 = vmul.f32 %v8409, 1.442695
    %v8413 = vpow.pop %v8412
    %v8414 = vsub.f32 %v8352, %v8370
    %v8415 = vsub.f32 %v8355, %v8371
    %v8416 = vmul.f32 %v8414, 1.442695
    %v8417 = vpow.pop %v8416
    %v8418 = vmul.f32 %v8415, 1.442695
    %v8419 = vpow.pop %v8418
    %v8420 = vadd.f32 %v8375, %v8381
    %v8421 = vadd.f32 %v8377, %v8383
    %v8422 = vadd.f32 %v8420, %v8387
    %v8423 = vadd.f32 %v8421, %v8389
    %v8424 = vadd.f32 %v8422, %v8393
    %v8425 = vadd.f32 %v8423, %v8395
    %v8426 = vadd.f32 %v8424, %v8399
    %v8427 = vadd.f32 %v8425, %v8401
    %v8428 = vadd.f32 %v8426, %v8405
    %v8429 = vadd.f32 %v8427, %v8407
    %v8430 = vadd.f32 %v8428, %v8411
    %v8431 = vadd.f32 %v8429, %v8413
    %v8432 = vadd.f32 %v8430, %v8417
    %v8433 = vadd.f32 %v8431, %v8419
    %v8434 = vrcp.pop %v8432
    %v8435 = vrcp.pop %v8433
    %v8436 = vmul.f32 %v8375, %v7889
    %v8437 = vmul.f32 %v8377, %v7893
    %v8438 = vmul.f32 %v8381, %v7949
    %v8439 = vmul.f32 %v8383, %v7953
    %v8440 = vmul.f32 %v8387, %v8009
    %v8441 = vmul.f32 %v8389, %v8013
    %v8442 = vmul.f32 %v8393, %v8069
    %v8443 = vmul.f32 %v8395, %v8073
    %v8444 = vmul.f32 %v8399, %v8129
    %v8445 = vmul.f32 %v8401, %v8133
    %v8446 = vmul.f32 %v8405, %v8189
    %v8447 = vmul.f32 %v8407, %v8193
    %v8448 = vmul.f32 %v8411, %v8249
    %v8449 = vmul.f32 %v8413, %v8253
    %v8450 = vmul.f32 %v8417, %v8309
    %v8451 = vmul.f32 %v8419, %v8313
    %v8452 = vadd.f32 %v8436, %v8438
    %v8453 = vadd.f32 %v8437, %v8439
    %v8454 = vadd.f32 %v8452, %v8440
    %v8455 = vadd.f32 %v8453, %v8441
    %v8456 = vadd.f32 %v8454, %v8442
    %v8457 = vadd.f32 %v8455, %v8443
    %v8458 = vadd.f32 %v8456, %v8444
    %v8459 = vadd.f32 %v8457, %v8445
    %v8460 = vadd.f32 %v8458, %v8446
    %v8461 = vadd.f32 %v8459, %v8447
    %v8462 = vadd.f32 %v8460, %v8448
    %v8463 = vadd.f32 %v8461, %v8449
    %v8464 = vadd.f32 %v8462, %v8450
    %v8465 = vadd.f32 %v8463, %v8451
    %v8466 = vmul.f32 %v8464, %v8434
    %v8467 = vmul.f32 %v8465, %v8435
    %v8468 = vpack.c.bf16 %v8467, %v8466
    %v8470 = vlaneseq
    %v8471 = vshrl.u32 %v8470, 7
    %v8472 = vsub.s32 0, %v8471
    %v8473 = vrot.slane %v7544, %v8472
    %v8491 = vunpack.c.l.b16 %v7528
    %v8492 = vunpack.c.l.b16 %v7529
    %v8493 = vunpack.c.l.b16 %v7530
    %v8494 = vunpack.c.l.b16 %v7531
    %v8495 = vunpack.c.l.b16 %v7532
    %v8496 = vunpack.c.l.b16 %v7533
    %v8497 = vunpack.c.l.b16 %v7534
    %v8498 = vunpack.c.l.b16 %v7535
    %v8499 = vunpack.c.l.b16 %v7536
    %v8500 = vunpack.c.l.b16 %v7537
    %v8501 = vunpack.c.l.b16 %v7538
    %v8502 = vunpack.c.l.b16 %v7539
    %v8503 = vunpack.c.l.b16 %v7540
    %v8504 = vunpack.c.l.b16 %v7541
    %v8505 = vunpack.c.l.b16 %v7542
    %v8506 = vunpack.c.l.b16 %v7543
    %v8507 = vpack.c.b16 %v8492, %v8491
    %v8508 = vpack.c.b16 %v8494, %v8493
    %v8509 = vpack.c.b16 %v8496, %v8495
    %v8510 = vpack.c.b16 %v8498, %v8497
    %v8511 = vpack.c.b16 %v8500, %v8499
    %v8512 = vpack.c.b16 %v8502, %v8501
    %v8513 = vpack.c.b16 %v8504, %v8503
    %v8514 = vpack.c.b16 %v8506, %v8505
    %8523 = vmatprep.subr.bf16.mxu0 0
    %8524 = vmatpush1.bf16.msra.mxu0 %v8507
    %8525 = vmatprep.subr.bf16.mxu0 0
    %8526 = vmatpush1.bf16.msra.mxu0 %v8508
    %8527 = vmatprep.subr.bf16.mxu0 0
    %8528 = vmatpush1.bf16.msra.mxu0 %v8509
    %8529 = vmatprep.subr.bf16.mxu0 0
    %8530 = vmatpush1.bf16.msra.mxu0 %v8510
    %8531 = vmatprep.subr.bf16.mxu0 0
    %8532 = vmatpush1.bf16.msra.mxu0 %v8511
    %8533 = vmatprep.subr.bf16.mxu0 0
    %8534 = vmatpush1.bf16.msra.mxu0 %v8512
    %8535 = vmatprep.subr.bf16.mxu0 0
    %8536 = vmatpush1.bf16.msra.mxu0 %v8513
    %8537 = vmatprep.subr.bf16.mxu0 0
    %8538 = vmatpush1.bf16.msra.mxu0 %v8514
    %8539 = vmatprep.subr.bf16.mxu0 0
    %8540 = vmatpush1.bf16.msra.mxu0 0
    %8541 = vmatprep.subr.bf16.mxu0 0
    %8542 = vmatpush1.bf16.msra.mxu0 0
    %8543 = vmatprep.subr.bf16.mxu0 0
    %8544 = vmatpush1.bf16.msra.mxu0 0
    %8545 = vmatprep.subr.bf16.mxu0 0
    %8546 = vmatpush1.bf16.msra.mxu0 0
    %8547 = vmatprep.subr.bf16.mxu0 0
    %8548 = vmatpush1.bf16.msra.mxu0 0
    %8549 = vmatprep.subr.bf16.mxu0 0
    %8550 = vmatpush1.bf16.msra.mxu0 0
    %8551 = vmatprep.subr.bf16.mxu0 0
    %8552 = vmatpush1.bf16.msra.mxu0 0
    %8553 = vmatprep.subr.bf16.mxu0 0
    %8554 = vmatpush1.bf16.msra.mxu0 0
    %8555 = vmatprep.mubr.bf16.mxu0 0
    %8556 = vmatmul.mubr.bf16.gmra.mrb[0].mxu0 %v8468
    %v8557 = vpop.f32.mrb[0].mxu0
    %v8558 = vadd.f32 %v8473, %v8557
    %v8559 = vpop.f32.mrb[0].mxu0
    %v8560 = vpop.f32.mrb[0].mxu0
    %v8561 = vadd.f32 %v8473, %v8560
    %v8562 = vpop.f32.mrb[0].mxu0
    %8563 = vdwg.mxu0
    %v8564 = vadd.f32 %v7493, %v8558
    %v8565 = vadd.f32 %v7494, %v8561
    %8566 = vadd.xlane.f32.xlu0 %v8564
    %v8567 = vpop.xlane.xlu0 %8566
    %8568 = vadd.xlane.f32.xlu0 %v8565
    %v8569 = vpop.xlane.xlu0 %8568
    %v8570 = vmul.f32 %v8567, %v2140
    %v8571 = vmul.f32 %v8569, %v2140
    %v8572 = vsub.f32 %v8564, %v8570
    %v8573 = vsub.f32 %v8565, %v8571
    %v8574 = vmul.f32 %v8572, %v8572
    %v8575 = vmul.f32 %v8573, %v8573
    %8576 = vadd.xlane.f32.xlu0 %v8574
    %v8577 = vpop.xlane.xlu0 %8576
    %8578 = vadd.xlane.f32.xlu0 %v8575
    %v8579 = vpop.xlane.xlu0 %8578
    %v8580 = vmul.f32 %v8577, %v2140
    %v8581 = vmul.f32 %v8579, %v2140
    %v8582 = vadd.f32 %v8580, 1e-05
    %v8583 = vadd.f32 %v8581, 1e-05
    %v8584 = vrsqrt.pop %v8582
    %v8585 = vrsqrt.pop %v8583
    %v8586 = vmul.f32 %v8572, %v8584
    %v8587 = vmul.f32 %v8573, %v8585
    %v8589 = vlaneseq
    %v8590 = vshrl.u32 %v8589, 7
    %v8591 = vsub.s32 0, %v8590
    %v8592 = vrot.slane %v7643, %v8591
    %v8594 = vmul.f32 %v8586, %v8592
    %v8595 = vmul.f32 %v8587, %v8592
    %v8597 = vlaneseq
    %v8598 = vshrl.u32 %v8597, 7
    %v8599 = vsub.s32 0, %v8598
    %v8600 = vrot.slane %v7644, %v8599
    %v8602 = vadd.f32 %v8594, %v8600
    %v8603 = vadd.f32 %v8595, %v8600
    %v8604 = vpack.c.bf16 %v8603, %v8602
    %v8606 = vlaneseq
    %v8607 = vshrl.u32 %v8606, 7
    %v8608 = vsub.s32 0, %v8607
    %v8609 = vrot.slane %v7577, %v8608
    %v8610 = vlaneseq
    %v8611 = vshrl.u32 %v8610, 7
    %v8612 = vsub.s32 1, %v8611
    %v8613 = vrot.slane %v7577, %v8612
    %v8614 = vlaneseq
    %v8615 = vshrl.u32 %v8614, 7
    %v8616 = vsub.s32 2, %v8615
    %v8617 = vrot.slane %v7577, %v8616
    %v8618 = vlaneseq
    %v8619 = vshrl.u32 %v8618, 7
    %v8620 = vsub.s32 3, %v8619
    %v8621 = vrot.slane %v7577, %v8620
    %v8658 = vunpack.c.l.b16 %v7545
    %v8659 = vunpack.c.h.b16 %v7545
    %v8660 = vunpack.c.l.b16 %v7546
    %v8661 = vunpack.c.h.b16 %v7546
    %v8662 = vunpack.c.l.b16 %v7547
    %v8663 = vunpack.c.h.b16 %v7547
    %v8664 = vunpack.c.l.b16 %v7548
    %v8665 = vunpack.c.h.b16 %v7548
    %v8666 = vunpack.c.l.b16 %v7549
    %v8667 = vunpack.c.h.b16 %v7549
    %v8668 = vunpack.c.l.b16 %v7550
    %v8669 = vunpack.c.h.b16 %v7550
    %v8670 = vunpack.c.l.b16 %v7551
    %v8671 = vunpack.c.h.b16 %v7551
    %v8672 = vunpack.c.l.b16 %v7552
    %v8673 = vunpack.c.h.b16 %v7552
    %v8674 = vunpack.c.l.b16 %v7553
    %v8675 = vunpack.c.h.b16 %v7553
    %v8676 = vunpack.c.l.b16 %v7554
    %v8677 = vunpack.c.h.b16 %v7554
    %v8678 = vunpack.c.l.b16 %v7555
    %v8679 = vunpack.c.h.b16 %v7555
    %v8680 = vunpack.c.l.b16 %v7556
    %v8681 = vunpack.c.h.b16 %v7556
    %v8682 = vunpack.c.l.b16 %v7557
    %v8683 = vunpack.c.h.b16 %v7557
    %v8684 = vunpack.c.l.b16 %v7558
    %v8685 = vunpack.c.h.b16 %v7558
    %v8686 = vunpack.c.l.b16 %v7559
    %v8687 = vunpack.c.h.b16 %v7559
    %v8688 = vunpack.c.l.b16 %v7560
    %v8689 = vunpack.c.h.b16 %v7560
    %v8690 = vunpack.c.l.b16 %v7561
    %v8691 = vunpack.c.h.b16 %v7561
    %v8692 = vunpack.c.l.b16 %v7562
    %v8693 = vunpack.c.h.b16 %v7562
    %v8694 = vunpack.c.l.b16 %v7563
    %v8695 = vunpack.c.h.b16 %v7563
    %v8696 = vunpack.c.l.b16 %v7564
    %v8697 = vunpack.c.h.b16 %v7564
    %v8698 = vunpack.c.l.b16 %v7565
    %v8699 = vunpack.c.h.b16 %v7565
    %v8700 = vunpack.c.l.b16 %v7566
    %v8701 = vunpack.c.h.b16 %v7566
    %v8702 = vunpack.c.l.b16 %v7567
    %v8703 = vunpack.c.h.b16 %v7567
    %v8704 = vunpack.c.l.b16 %v7568
    %v8705 = vunpack.c.h.b16 %v7568
    %v8706 = vunpack.c.l.b16 %v7569
    %v8707 = vunpack.c.h.b16 %v7569
    %v8708 = vunpack.c.l.b16 %v7570
    %v8709 = vunpack.c.h.b16 %v7570
    %v8710 = vunpack.c.l.b16 %v7571
    %v8711 = vunpack.c.h.b16 %v7571
    %v8712 = vunpack.c.l.b16 %v7572
    %v8713 = vunpack.c.h.b16 %v7572
    %v8714 = vunpack.c.l.b16 %v7573
    %v8715 = vunpack.c.h.b16 %v7573
    %v8716 = vunpack.c.l.b16 %v7574
    %v8717 = vunpack.c.h.b16 %v7574
    %v8718 = vunpack.c.l.b16 %v7575
    %v8719 = vunpack.c.h.b16 %v7575
    %v8720 = vunpack.c.l.b16 %v7576
    %v8721 = vunpack.c.h.b16 %v7576
    %v8722 = vpack.c.b16 %v8662, %v8658
    %v8723 = vpack.c.b16 %v8663, %v8659
    %v8724 = vpack.c.b16 %v8664, %v8660
    %v8725 = vpack.c.b16 %v8665, %v8661
    %v8726 = vpack.c.b16 %v8670, %v8666
    %v8727 = vpack.c.b16 %v8671, %v8667
    %v8728 = vpack.c.b16 %v8672, %v8668
    %v8729 = vpack.c.b16 %v8673, %v8669
    %v8730 = vpack.c.b16 %v8678, %v8674
    %v8731 = vpack.c.b16 %v8679, %v8675
    %v8732 = vpack.c.b16 %v8680, %v8676
    %v8733 = vpack.c.b16 %v8681, %v8677
    %v8734 = vpack.c.b16 %v8686, %v8682
    %v8735 = vpack.c.b16 %v8687, %v8683
    %v8736 = vpack.c.b16 %v8688, %v8684
    %v8737 = vpack.c.b16 %v8689, %v8685
    %v8738 = vpack.c.b16 %v8694, %v8690
    %v8739 = vpack.c.b16 %v8695, %v8691
    %v8740 = vpack.c.b16 %v8696, %v8692
    %v8741 = vpack.c.b16 %v8697, %v8693
    %v8742 = vpack.c.b16 %v8702, %v8698
    %v8743 = vpack.c.b16 %v8703, %v8699
    %v8744 = vpack.c.b16 %v8704, %v8700
    %v8745 = vpack.c.b16 %v8705, %v8701
    %v8746 = vpack.c.b16 %v8710, %v8706
    %v8747 = vpack.c.b16 %v8711, %v8707
    %v8748 = vpack.c.b16 %v8712, %v8708
    %v8749 = vpack.c.b16 %v8713, %v8709
    %v8750 = vpack.c.b16 %v8718, %v8714
    %v8751 = vpack.c.b16 %v8719, %v8715
    %v8752 = vpack.c.b16 %v8720, %v8716
    %v8753 = vpack.c.b16 %v8721, %v8717
    %8786 = vmatprep.subr.bf16.mxu0 %v8723
    %8787 = vmatpush1.bf16.msra.mxu0 %v8722
    %8788 = vmatprep.subr.bf16.mxu0 %v8727
    %8789 = vmatpush1.bf16.msra.mxu0 %v8726
    %8790 = vmatprep.subr.bf16.mxu0 %v8731
    %8791 = vmatpush1.bf16.msra.mxu0 %v8730
    %8792 = vmatprep.subr.bf16.mxu0 %v8735
    %8793 = vmatpush1.bf16.msra.mxu0 %v8734
    %8794 = vmatprep.subr.bf16.mxu0 %v8739
    %8795 = vmatpush1.bf16.msra.mxu0 %v8738
    %8796 = vmatprep.subr.bf16.mxu0 %v8743
    %8797 = vmatpush1.bf16.msra.mxu0 %v8742
    %8798 = vmatprep.subr.bf16.mxu0 %v8747
    %8799 = vmatpush1.bf16.msra.mxu0 %v8746
    %8800 = vmatprep.subr.bf16.mxu0 %v8751
    %8801 = vmatpush1.bf16.msra.mxu0 %v8750
    %8802 = vmatprep.subr.bf16.mxu0 0
    %8803 = vmatpush1.bf16.msra.mxu0 0
    %8804 = vmatprep.subr.bf16.mxu0 0
    %8805 = vmatpush1.bf16.msra.mxu0 0
    %8806 = vmatprep.subr.bf16.mxu0 0
    %8807 = vmatpush1.bf16.msra.mxu0 0
    %8808 = vmatprep.subr.bf16.mxu0 0
    %8809 = vmatpush1.bf16.msra.mxu0 0
    %8810 = vmatprep.subr.bf16.mxu0 0
    %8811 = vmatpush1.bf16.msra.mxu0 0
    %8812 = vmatprep.subr.bf16.mxu0 0
    %8813 = vmatpush1.bf16.msra.mxu0 0
    %8814 = vmatprep.subr.bf16.mxu0 0
    %8815 = vmatpush1.bf16.msra.mxu0 0
    %8816 = vmatprep.subr.bf16.mxu0 0
    %8817 = vmatpush1.bf16.msra.mxu0 0
    %8818 = vmatprep.mubr.bf16.mxu0 0
    %8819 = vmatmul.mubr.bf16.gmra.mrb[0].mxu0 %v8604
    %v8820 = vpop.f32.mrb[0].mxu0
    %v8821 = vadd.f32 %v8609, %v8820
    %v8822 = vpop.f32.mrb[0].mxu0
    %v8823 = vadd.f32 %v8613, %v8822
    %v8824 = vpop.f32.mrb[0].mxu0
    %v8825 = vadd.f32 %v8609, %v8824
    %v8826 = vpop.f32.mrb[0].mxu0
    %v8827 = vadd.f32 %v8613, %v8826
    %8828 = vdwg.mxu0
    %8829 = vmatprep.subr.bf16.mxu0 %v8725
    %8830 = vmatpush1.bf16.msra.mxu0 %v8724
    %8831 = vmatprep.subr.bf16.mxu0 %v8729
    %8832 = vmatpush1.bf16.msra.mxu0 %v8728
    %8833 = vmatprep.subr.bf16.mxu0 %v8733
    %8834 = vmatpush1.bf16.msra.mxu0 %v8732
    %8835 = vmatprep.subr.bf16.mxu0 %v8737
    %8836 = vmatpush1.bf16.msra.mxu0 %v8736
    %8837 = vmatprep.subr.bf16.mxu0 %v8741
    %8838 = vmatpush1.bf16.msra.mxu0 %v8740
    %8839 = vmatprep.subr.bf16.mxu0 %v8745
    %8840 = vmatpush1.bf16.msra.mxu0 %v8744
    %8841 = vmatprep.subr.bf16.mxu0 %v8749
    %8842 = vmatpush1.bf16.msra.mxu0 %v8748
    %8843 = vmatprep.subr.bf16.mxu0 %v8753
    %8844 = vmatpush1.bf16.msra.mxu0 %v8752
    %8845 = vmatprep.subr.bf16.mxu0 0
    %8846 = vmatpush1.bf16.msra.mxu0 0
    %8847 = vmatprep.subr.bf16.mxu0 0
    %8848 = vmatpush1.bf16.msra.mxu0 0
    %8849 = vmatprep.subr.bf16.mxu0 0
    %8850 = vmatpush1.bf16.msra.mxu0 0
    %8851 = vmatprep.subr.bf16.mxu0 0
    %8852 = vmatpush1.bf16.msra.mxu0 0
    %8853 = vmatprep.subr.bf16.mxu0 0
    %8854 = vmatpush1.bf16.msra.mxu0 0
    %8855 = vmatprep.subr.bf16.mxu0 0
    %8856 = vmatpush1.bf16.msra.mxu0 0
    %8857 = vmatprep.subr.bf16.mxu0 0
    %8858 = vmatpush1.bf16.msra.mxu0 0
    %8859 = vmatprep.subr.bf16.mxu0 0
    %8860 = vmatpush1.bf16.msra.mxu0 0
    %8861 = vmatprep.mubr.bf16.mxu0 0
    %8862 = vmatmul.mubr.bf16.gmra.mrb[0].mxu0 %v8604
    %v8863 = vpop.f32.mrb[0].mxu0
    %v8864 = vadd.f32 %v8617, %v8863
    %v8865 = vpop.f32.mrb[0].mxu0
    %v8866 = vadd.f32 %v8621, %v8865
    %v8867 = vpop.f32.mrb[0].mxu0
    %v8868 = vadd.f32 %v8617, %v8867
    %v8869 = vpop.f32.mrb[0].mxu0
    %v8870 = vadd.f32 %v8621, %v8869
    %8871 = vdwg.mxu0
    %v8872 = vmax.f32 %v8821, 0.0
    %v8873 = vmax.f32 %v8823, 0.0
    %v8874 = vmax.f32 %v8864, 0.0
    %v8875 = vmax.f32 %v8866, 0.0
    %v8876 = vmax.f32 %v8825, 0.0
    %v8877 = vmax.f32 %v8827, 0.0
    %v8878 = vmax.f32 %v8868, 0.0
    %v8879 = vmax.f32 %v8870, 0.0
    %v8880 = vpack.c.bf16 %v8876, %v8872
    %v8881 = vpack.c.bf16 %v8877, %v8873
    %v8882 = vpack.c.bf16 %v8878, %v8874
    %v8883 = vpack.c.bf16 %v8879, %v8875
    %v8885 = vlaneseq
    %v8886 = vshrl.u32 %v8885, 7
    %v8887 = vsub.s32 0, %v8886
    %v8888 = vrot.slane %v7642, %v8887
    %v8954 = vunpack.c.l.b16 %v7578
    %v8955 = vunpack.c.l.b16 %v7579
    %v8956 = vunpack.c.l.b16 %v7580
    %v8957 = vunpack.c.l.b16 %v7581
    %v8958 = vunpack.c.l.b16 %v7582
    %v8959 = vunpack.c.l.b16 %v7583
    %v8960 = vunpack.c.l.b16 %v7584
    %v8961 = vunpack.c.l.b16 %v7585
    %v8962 = vunpack.c.l.b16 %v7586
    %v8963 = vunpack.c.l.b16 %v7587
    %v8964 = vunpack.c.l.b16 %v7588
    %v8965 = vunpack.c.l.b16 %v7589
    %v8966 = vunpack.c.l.b16 %v7590
    %v8967 = vunpack.c.l.b16 %v7591
    %v8968 = vunpack.c.l.b16 %v7592
    %v8969 = vunpack.c.l.b16 %v7593
    %v8970 = vunpack.c.l.b16 %v7594
    %v8971 = vunpack.c.l.b16 %v7595
    %v8972 = vunpack.c.l.b16 %v7596
    %v8973 = vunpack.c.l.b16 %v7597
    %v8974 = vunpack.c.l.b16 %v7598
    %v8975 = vunpack.c.l.b16 %v7599
    %v8976 = vunpack.c.l.b16 %v7600
    %v8977 = vunpack.c.l.b16 %v7601
    %v8978 = vunpack.c.l.b16 %v7602
    %v8979 = vunpack.c.l.b16 %v7603
    %v8980 = vunpack.c.l.b16 %v7604
    %v8981 = vunpack.c.l.b16 %v7605
    %v8982 = vunpack.c.l.b16 %v7606
    %v8983 = vunpack.c.l.b16 %v7607
    %v8984 = vunpack.c.l.b16 %v7608
    %v8985 = vunpack.c.l.b16 %v7609
    %v8986 = vunpack.c.l.b16 %v7610
    %v8987 = vunpack.c.l.b16 %v7611
    %v8988 = vunpack.c.l.b16 %v7612
    %v8989 = vunpack.c.l.b16 %v7613
    %v8990 = vunpack.c.l.b16 %v7614
    %v8991 = vunpack.c.l.b16 %v7615
    %v8992 = vunpack.c.l.b16 %v7616
    %v8993 = vunpack.c.l.b16 %v7617
    %v8994 = vunpack.c.l.b16 %v7618
    %v8995 = vunpack.c.l.b16 %v7619
    %v8996 = vunpack.c.l.b16 %v7620
    %v8997 = vunpack.c.l.b16 %v7621
    %v8998 = vunpack.c.l.b16 %v7622
    %v8999 = vunpack.c.l.b16 %v7623
    %v9000 = vunpack.c.l.b16 %v7624
    %v9001 = vunpack.c.l.b16 %v7625
    %v9002 = vunpack.c.l.b16 %v7626
    %v9003 = vunpack.c.l.b16 %v7627
    %v9004 = vunpack.c.l.b16 %v7628
    %v9005 = vunpack.c.l.b16 %v7629
    %v9006 = vunpack.c.l.b16 %v7630
    %v9007 = vunpack.c.l.b16 %v7631
    %v9008 = vunpack.c.l.b16 %v7632
    %v9009 = vunpack.c.l.b16 %v7633
    %v9010 = vunpack.c.l.b16 %v7634
    %v9011 = vunpack.c.l.b16 %v7635
    %v9012 = vunpack.c.l.b16 %v7636
    %v9013 = vunpack.c.l.b16 %v7637
    %v9014 = vunpack.c.l.b16 %v7638
    %v9015 = vunpack.c.l.b16 %v7639
    %v9016 = vunpack.c.l.b16 %v7640
    %v9017 = vunpack.c.l.b16 %v7641
    %v9018 = vpack.c.b16 %v8955, %v8954
    %v9019 = vpack.c.b16 %v8957, %v8956
    %v9020 = vpack.c.b16 %v8959, %v8958
    %v9021 = vpack.c.b16 %v8961, %v8960
    %v9022 = vpack.c.b16 %v8963, %v8962
    %v9023 = vpack.c.b16 %v8965, %v8964
    %v9024 = vpack.c.b16 %v8967, %v8966
    %v9025 = vpack.c.b16 %v8969, %v8968
    %v9026 = vpack.c.b16 %v8971, %v8970
    %v9027 = vpack.c.b16 %v8973, %v8972
    %v9028 = vpack.c.b16 %v8975, %v8974
    %v9029 = vpack.c.b16 %v8977, %v8976
    %v9030 = vpack.c.b16 %v8979, %v8978
    %v9031 = vpack.c.b16 %v8981, %v8980
    %v9032 = vpack.c.b16 %v8983, %v8982
    %v9033 = vpack.c.b16 %v8985, %v8984
    %v9034 = vpack.c.b16 %v8987, %v8986
    %v9035 = vpack.c.b16 %v8989, %v8988
    %v9036 = vpack.c.b16 %v8991, %v8990
    %v9037 = vpack.c.b16 %v8993, %v8992
    %v9038 = vpack.c.b16 %v8995, %v8994
    %v9039 = vpack.c.b16 %v8997, %v8996
    %v9040 = vpack.c.b16 %v8999, %v8998
    %v9041 = vpack.c.b16 %v9001, %v9000
    %v9042 = vpack.c.b16 %v9003, %v9002
    %v9043 = vpack.c.b16 %v9005, %v9004
    %v9044 = vpack.c.b16 %v9007, %v9006
    %v9045 = vpack.c.b16 %v9009, %v9008
    %v9046 = vpack.c.b16 %v9011, %v9010
    %v9047 = vpack.c.b16 %v9013, %v9012
    %v9048 = vpack.c.b16 %v9015, %v9014
    %v9049 = vpack.c.b16 %v9017, %v9016
    %9082 = vmatprep.subr.bf16.mxu0 0
    %9083 = vmatpush1.bf16.msra.mxu0 %v9018
    %9084 = vmatprep.subr.bf16.mxu0 0
    %9085 = vmatpush1.bf16.msra.mxu0 %v9019
    %9086 = vmatprep.subr.bf16.mxu0 0
    %9087 = vmatpush1.bf16.msra.mxu0 %v9020
    %9088 = vmatprep.subr.bf16.mxu0 0
    %9089 = vmatpush1.bf16.msra.mxu0 %v9021
    %9090 = vmatprep.subr.bf16.mxu0 0
    %9091 = vmatpush1.bf16.msra.mxu0 %v9022
    %9092 = vmatprep.subr.bf16.mxu0 0
    %9093 = vmatpush1.bf16.msra.mxu0 %v9023
    %9094 = vmatprep.subr.bf16.mxu0 0
    %9095 = vmatpush1.bf16.msra.mxu0 %v9024
    %9096 = vmatprep.subr.bf16.mxu0 0
    %9097 = vmatpush1.bf16.msra.mxu0 %v9025
    %9098 = vmatprep.subr.bf16.mxu0 0
    %9099 = vmatpush1.bf16.msra.mxu0 %v9026
    %9100 = vmatprep.subr.bf16.mxu0 0
    %9101 = vmatpush1.bf16.msra.mxu0 %v9027
    %9102 = vmatprep.subr.bf16.mxu0 0
    %9103 = vmatpush1.bf16.msra.mxu0 %v9028
    %9104 = vmatprep.subr.bf16.mxu0 0
    %9105 = vmatpush1.bf16.msra.mxu0 %v9029
    %9106 = vmatprep.subr.bf16.mxu0 0
    %9107 = vmatpush1.bf16.msra.mxu0 %v9030
    %9108 = vmatprep.subr.bf16.mxu0 0
    %9109 = vmatpush1.bf16.msra.mxu0 %v9031
    %9110 = vmatprep.subr.bf16.mxu0 0
    %9111 = vmatpush1.bf16.msra.mxu0 %v9032
    %9112 = vmatprep.subr.bf16.mxu0 0
    %9113 = vmatpush1.bf16.msra.mxu0 %v9033
    %9114 = vmatprep.mubr.bf16.mxu0 %v8881
    %9115 = vmatmul.mubr.bf16.gmra.mrb[0].mxu0 %v8880
    %v9116 = vpop.f32.mrb[0].mxu0
    %v9117 = vadd.f32 %v8888, %v9116
    %v9118 = vpop.f32.mrb[0].mxu0
    %v9119 = vpop.f32.mrb[0].mxu0
    %v9120 = vadd.f32 %v8888, %v9119
    %v9121 = vpop.f32.mrb[0].mxu0
    %9122 = vdwg.mxu0
    %9123 = vmatprep.subr.bf16.mxu0 0
    %9124 = vmatpush1.bf16.msra.mxu0 %v9034
    %9125 = vmatprep.subr.bf16.mxu0 0
    %9126 = vmatpush1.bf16.msra.mxu0 %v9035
    %9127 = vmatprep.subr.bf16.mxu0 0
    %9128 = vmatpush1.bf16.msra.mxu0 %v9036
    %9129 = vmatprep.subr.bf16.mxu0 0
    %9130 = vmatpush1.bf16.msra.mxu0 %v9037
    %9131 = vmatprep.subr.bf16.mxu0 0
    %9132 = vmatpush1.bf16.msra.mxu0 %v9038
    %9133 = vmatprep.subr.bf16.mxu0 0
    %9134 = vmatpush1.bf16.msra.mxu0 %v9039
    %9135 = vmatprep.subr.bf16.mxu0 0
    %9136 = vmatpush1.bf16.msra.mxu0 %v9040
    %9137 = vmatprep.subr.bf16.mxu0 0
    %9138 = vmatpush1.bf16.msra.mxu0 %v9041
    %9139 = vmatprep.subr.bf16.mxu0 0
    %9140 = vmatpush1.bf16.msra.mxu0 %v9042
    %9141 = vmatprep.subr.bf16.mxu0 0
    %9142 = vmatpush1.bf16.msra.mxu0 %v9043
    %9143 = vmatprep.subr.bf16.mxu0 0
    %9144 = vmatpush1.bf16.msra.mxu0 %v9044
    %9145 = vmatprep.subr.bf16.mxu0 0
    %9146 = vmatpush1.bf16.msra.mxu0 %v9045
    %9147 = vmatprep.subr.bf16.mxu0 0
    %9148 = vmatpush1.bf16.msra.mxu0 %v9046
    %9149 = vmatprep.subr.bf16.mxu0 0
    %9150 = vmatpush1.bf16.msra.mxu0 %v9047
    %9151 = vmatprep.subr.bf16.mxu0 0
    %9152 = vmatpush1.bf16.msra.mxu0 %v9048
    %9153 = vmatprep.subr.bf16.mxu0 0
    %9154 = vmatpush1.bf16.msra.mxu0 %v9049
    %9155 = vmatprep.mubr.bf16.mxu0 %v8883
    %9156 = vmatmul.mubr.bf16.gmra.mrb[0].mxu0 %v8882
    %v9157 = vpop.f32.mrb[0].mxu0
    %v9158 = vadd.f32 %v9117, %v9157
    %v9159 = vpop.f32.mrb[0].mxu0
    %v9160 = vpop.f32.mrb[0].mxu0
    %v9161 = vadd.f32 %v9120, %v9160
    %v9162 = vpop.f32.mrb[0].mxu0
    %9163 = vdwg.mxu0
    %v9164 = vadd.f32 %v8602, %v9158
    %v9165 = vadd.f32 %v8603, %v9161
    %9166 = vadd.xlane.f32.xlu0 %v9164
    %v9167 = vpop.xlane.xlu0 %9166
    %9168 = vadd.xlane.f32.xlu0 %v9165
    %v9169 = vpop.xlane.xlu0 %9168
    %v9170 = vmul.f32 %v9167, %v2140
    %v9171 = vmul.f32 %v9169, %v2140
    %v9172 = vsub.f32 %v9164, %v9170
    %v9173 = vsub.f32 %v9165, %v9171
    %v9174 = vmul.f32 %v9172, %v9172
    %v9175 = vmul.f32 %v9173, %v9173
    %9176 = vadd.xlane.f32.xlu0 %v9174
    %v9177 = vpop.xlane.xlu0 %9176
    %9178 = vadd.xlane.f32.xlu0 %v9175
    %v9179 = vpop.xlane.xlu0 %9178
    %v9180 = vmul.f32 %v9177, %v2140
    %v9181 = vmul.f32 %v9179, %v2140
    %v9182 = vadd.f32 %v9180, 1e-05
    %v9183 = vadd.f32 %v9181, 1e-05
    %v9184 = vrsqrt.pop %v9182
    %v9185 = vrsqrt.pop %v9183
    %v9186 = vmul.f32 %v9172, %v9184
    %v9187 = vmul.f32 %v9173, %v9185
    %v9189 = vlaneseq
    %v9190 = vshrl.u32 %v9189, 7
    %v9191 = vsub.s32 0, %v9190
    %v9192 = vrot.slane %v7645, %v9191
    %v9194 = vmul.f32 %v9186, %v9192
    %v9195 = vmul.f32 %v9187, %v9192
    %v9197 = vlaneseq
    %v9198 = vshrl.u32 %v9197, 7
    %v9199 = vsub.s32 0, %v9198
    %v9200 = vrot.slane %v7646, %v9199
    %v9202 = vadd.f32 %v9194, %v9200
    %v9203 = vadd.f32 %v9195, %v9200
    %v9205 = vrot.slane %v9203, 7
    %vm9207 = vcmask 1040384
    %v9208 = vsel %vm9207, %v9202, %v9205
    %v9209 = vld [vmem:[%s81] sm:$0xf]
    %v9210 = vld [vmem:[%s81 + $0x4] sm:$0xf]
    %v9211 = vld [vmem:[%s81 + $0x8] sm:$0xf]
    %v9212 = vld [vmem:[%s81 + $0xc] sm:$0xf]
    %v9213 = vld [vmem:[%s81 + $0x10] sm:$0xf]
    %v9214 = vld [vmem:[%s81 + $0x14] sm:$0xf]
    %v9215 = vld [vmem:[%s81 + $0x18] sm:$0xf]
    %v9216 = vld [vmem:[%s81 + $0x1c] sm:$0xf]
    %v9217 = vld [vmem:[%s81 + $0x20] sm:$0xf]
    %v9218 = vld [vmem:[%s81 + $0x24] sm:$0xf]
    %v9219 = vld [vmem:[%s81 + $0x28] sm:$0xf]
    %v9220 = vld [vmem:[%s81 + $0x2c] sm:$0xf]
    %v9221 = vld [vmem:[%s81 + $0x30] sm:$0xf]
    %v9222 = vld [vmem:[%s81 + $0x34] sm:$0xf]
    %v9223 = vld [vmem:[%s81 + $0x38] sm:$0xf]
    %v9224 = vld [vmem:[%s81 + $0x3c] sm:$0xf]
    %v9225 = vpack.c.bf16 %v9208, %v9208
    %v9227 = vrot.slane %v9202, 1
    %v9229 = vsel %vm9207, %v9227, %v9203
    %v9230 = vld [vmem:[%s81 + $0x40] sm:$0xf]
    %v9231 = vld [vmem:[%s81 + $0x44] sm:$0xf]
    %v9232 = vld [vmem:[%s81 + $0x48] sm:$0xf]
    %v9233 = vld [vmem:[%s81 + $0x4c] sm:$0xf]
    %v9234 = vld [vmem:[%s81 + $0x50] sm:$0xf]
    %v9235 = vld [vmem:[%s81 + $0x54] sm:$0xf]
    %v9236 = vld [vmem:[%s81 + $0x58] sm:$0xf]
    %v9237 = vld [vmem:[%s81 + $0x5c] sm:$0xf]
    %v9238 = vld [vmem:[%s81 + $0x60] sm:$0xf]
    %v9239 = vld [vmem:[%s81 + $0x64] sm:$0xf]
    %v9240 = vld [vmem:[%s81 + $0x68] sm:$0xf]
    %v9241 = vld [vmem:[%s81 + $0x6c] sm:$0xf]
    %v9242 = vld [vmem:[%s81 + $0x70] sm:$0xf]
    %v9243 = vld [vmem:[%s81 + $0x74] sm:$0xf]
    %v9244 = vld [vmem:[%s81 + $0x78] sm:$0xf]
    %v9245 = vld [vmem:[%s81 + $0x7c] sm:$0xf]
    %v9246 = vpack.c.bf16 %v9229, %v9229
    %v9263 = vunpack.c.l.b16 %v9230
    %v9264 = vunpack.c.l.b16 %v9231
    %v9265 = vunpack.c.l.b16 %v9232
    %v9266 = vunpack.c.l.b16 %v9233
    %v9267 = vunpack.c.l.b16 %v9234
    %v9268 = vunpack.c.l.b16 %v9235
    %v9269 = vunpack.c.l.b16 %v9236
    %v9270 = vunpack.c.l.b16 %v9237
    %v9271 = vunpack.c.l.b16 %v9238
    %v9272 = vunpack.c.l.b16 %v9239
    %v9273 = vunpack.c.l.b16 %v9240
    %v9274 = vunpack.c.l.b16 %v9241
    %v9275 = vunpack.c.l.b16 %v9242
    %v9276 = vunpack.c.l.b16 %v9243
    %v9277 = vunpack.c.l.b16 %v9244
    %v9278 = vunpack.c.l.b16 %v9245
    %v9279 = vpack.c.b16 %v9264, %v9263
    %v9280 = vpack.c.b16 %v9266, %v9265
    %v9281 = vpack.c.b16 %v9268, %v9267
    %v9282 = vpack.c.b16 %v9270, %v9269
    %v9283 = vpack.c.b16 %v9272, %v9271
    %v9284 = vpack.c.b16 %v9274, %v9273
    %v9285 = vpack.c.b16 %v9276, %v9275
    %v9286 = vpack.c.b16 %v9278, %v9277
    %9295 = vmatprep.subr.bf16.mxu0 0
    %9296 = vmatpush1.bf16.msra.mxu0 %v9279
    %9297 = vmatprep.subr.bf16.mxu0 0
    %9298 = vmatpush1.bf16.msra.mxu0 %v9280
    %9299 = vmatprep.subr.bf16.mxu0 0
    %9300 = vmatpush1.bf16.msra.mxu0 %v9281
    %9301 = vmatprep.subr.bf16.mxu0 0
    %9302 = vmatpush1.bf16.msra.mxu0 %v9282
    %9303 = vmatprep.subr.bf16.mxu0 0
    %9304 = vmatpush1.bf16.msra.mxu0 %v9283
    %9305 = vmatprep.subr.bf16.mxu0 0
    %9306 = vmatpush1.bf16.msra.mxu0 %v9284
    %9307 = vmatprep.subr.bf16.mxu0 0
    %9308 = vmatpush1.bf16.msra.mxu0 %v9285
    %9309 = vmatprep.subr.bf16.mxu0 0
    %9310 = vmatpush1.bf16.msra.mxu0 %v9286
    %9311 = vmatprep.subr.bf16.mxu0 0
    %9312 = vmatpush1.bf16.msra.mxu0 0
    %9313 = vmatprep.subr.bf16.mxu0 0
    %9314 = vmatpush1.bf16.msra.mxu0 0
    %9315 = vmatprep.subr.bf16.mxu0 0
    %9316 = vmatpush1.bf16.msra.mxu0 0
    %9317 = vmatprep.subr.bf16.mxu0 0
    %9318 = vmatpush1.bf16.msra.mxu0 0
    %9319 = vmatprep.subr.bf16.mxu0 0
    %9320 = vmatpush1.bf16.msra.mxu0 0
    %9321 = vmatprep.subr.bf16.mxu0 0
    %9322 = vmatpush1.bf16.msra.mxu0 0
    %9323 = vmatprep.subr.bf16.mxu0 0
    %9324 = vmatpush1.bf16.msra.mxu0 0
    %9325 = vmatprep.subr.bf16.mxu0 0
    %9326 = vmatpush1.bf16.msra.mxu0 0
    %9327 = vmatprep.mubr.bf16.mxu0 0
    %9328 = vmatmul.mubr.bf16.gmra.mrb[0].mxu0 %v9246
    %v9329 = vpop.f32.mrb[0].mxu0
    %v9330 = vadd.f32 0.0, %v9329
    %v9331 = vpop.f32.mrb[0].mxu0
    %v9332 = vpop.f32.mrb[0].mxu0
    %v9333 = vpop.f32.mrb[0].mxu0
    %9334 = vdwg.mxu0
    %v9351 = vunpack.c.l.b16 %v9209
    %v9352 = vunpack.c.l.b16 %v9210
    %v9353 = vunpack.c.l.b16 %v9211
    %v9354 = vunpack.c.l.b16 %v9212
    %v9355 = vunpack.c.l.b16 %v9213
    %v9356 = vunpack.c.l.b16 %v9214
    %v9357 = vunpack.c.l.b16 %v9215
    %v9358 = vunpack.c.l.b16 %v9216
    %v9359 = vunpack.c.l.b16 %v9217
    %v9360 = vunpack.c.l.b16 %v9218
    %v9361 = vunpack.c.l.b16 %v9219
    %v9362 = vunpack.c.l.b16 %v9220
    %v9363 = vunpack.c.l.b16 %v9221
    %v9364 = vunpack.c.l.b16 %v9222
    %v9365 = vunpack.c.l.b16 %v9223
    %v9366 = vunpack.c.l.b16 %v9224
    %v9367 = vpack.c.b16 %v9352, %v9351
    %v9368 = vpack.c.b16 %v9354, %v9353
    %v9369 = vpack.c.b16 %v9356, %v9355
    %v9370 = vpack.c.b16 %v9358, %v9357
    %v9371 = vpack.c.b16 %v9360, %v9359
    %v9372 = vpack.c.b16 %v9362, %v9361
    %v9373 = vpack.c.b16 %v9364, %v9363
    %v9374 = vpack.c.b16 %v9366, %v9365
    %9383 = vmatprep.subr.bf16.mxu0 0
    %9384 = vmatpush1.bf16.msra.mxu0 %v9367
    %9385 = vmatprep.subr.bf16.mxu0 0
    %9386 = vmatpush1.bf16.msra.mxu0 %v9368
    %9387 = vmatprep.subr.bf16.mxu0 0
    %9388 = vmatpush1.bf16.msra.mxu0 %v9369
    %9389 = vmatprep.subr.bf16.mxu0 0
    %9390 = vmatpush1.bf16.msra.mxu0 %v9370
    %9391 = vmatprep.subr.bf16.mxu0 0
    %9392 = vmatpush1.bf16.msra.mxu0 %v9371
    %9393 = vmatprep.subr.bf16.mxu0 0
    %9394 = vmatpush1.bf16.msra.mxu0 %v9372
    %9395 = vmatprep.subr.bf16.mxu0 0
    %9396 = vmatpush1.bf16.msra.mxu0 %v9373
    %9397 = vmatprep.subr.bf16.mxu0 0
    %9398 = vmatpush1.bf16.msra.mxu0 %v9374
    %9399 = vmatprep.subr.bf16.mxu0 0
    %9400 = vmatpush1.bf16.msra.mxu0 0
    %9401 = vmatprep.subr.bf16.mxu0 0
    %9402 = vmatpush1.bf16.msra.mxu0 0
    %9403 = vmatprep.subr.bf16.mxu0 0
    %9404 = vmatpush1.bf16.msra.mxu0 0
    %9405 = vmatprep.subr.bf16.mxu0 0
    %9406 = vmatpush1.bf16.msra.mxu0 0
    %9407 = vmatprep.subr.bf16.mxu0 0
    %9408 = vmatpush1.bf16.msra.mxu0 0
    %9409 = vmatprep.subr.bf16.mxu0 0
    %9410 = vmatpush1.bf16.msra.mxu0 0
    %9411 = vmatprep.subr.bf16.mxu0 0
    %9412 = vmatpush1.bf16.msra.mxu0 0
    %9413 = vmatprep.subr.bf16.mxu0 0
    %9414 = vmatpush1.bf16.msra.mxu0 0
    %9415 = vmatprep.mubr.bf16.mxu0 0
    %9416 = vmatmul.mubr.bf16.gmra.mrb[0].mxu0 %v9225
    %v9417 = vpop.f32.mrb[0].mxu0
    %v9418 = vadd.f32 %v9330, %v9417
    %v9419 = vpop.f32.mrb[0].mxu0
    %v9420 = vpop.f32.mrb[0].mxu0
    %v9421 = vpop.f32.mrb[0].mxu0
    %9422 = vdwg.mxu0
    %v9423 = vrot.slane %v9202, 2
    %v9425 = vrot.slane %v9203, 1
    %v9427 = vsel %vm9207, %v9423, %v9425
    %v9428 = vld [vmem:[%s81 + $0x80] sm:$0xf]
    %v9429 = vld [vmem:[%s81 + $0x84] sm:$0xf]
    %v9430 = vld [vmem:[%s81 + $0x88] sm:$0xf]
    %v9431 = vld [vmem:[%s81 + $0x8c] sm:$0xf]
    %v9432 = vld [vmem:[%s81 + $0x90] sm:$0xf]
    %v9433 = vld [vmem:[%s81 + $0x94] sm:$0xf]
    %v9434 = vld [vmem:[%s81 + $0x98] sm:$0xf]
    %v9435 = vld [vmem:[%s81 + $0x9c] sm:$0xf]
    %v9436 = vld [vmem:[%s81 + $0xa0] sm:$0xf]
    %v9437 = vld [vmem:[%s81 + $0xa4] sm:$0xf]
    %v9438 = vld [vmem:[%s81 + $0xa8] sm:$0xf]
    %v9439 = vld [vmem:[%s81 + $0xac] sm:$0xf]
    %v9440 = vld [vmem:[%s81 + $0xb0] sm:$0xf]
    %v9441 = vld [vmem:[%s81 + $0xb4] sm:$0xf]
    %v9442 = vld [vmem:[%s81 + $0xb8] sm:$0xf]
    %v9443 = vld [vmem:[%s81 + $0xbc] sm:$0xf]
    %v9444 = vpack.c.bf16 %v9427, %v9427
    %v9461 = vunpack.c.l.b16 %v9428
    %v9462 = vunpack.c.l.b16 %v9429
    %v9463 = vunpack.c.l.b16 %v9430
    %v9464 = vunpack.c.l.b16 %v9431
    %v9465 = vunpack.c.l.b16 %v9432
    %v9466 = vunpack.c.l.b16 %v9433
    %v9467 = vunpack.c.l.b16 %v9434
    %v9468 = vunpack.c.l.b16 %v9435
    %v9469 = vunpack.c.l.b16 %v9436
    %v9470 = vunpack.c.l.b16 %v9437
    %v9471 = vunpack.c.l.b16 %v9438
    %v9472 = vunpack.c.l.b16 %v9439
    %v9473 = vunpack.c.l.b16 %v9440
    %v9474 = vunpack.c.l.b16 %v9441
    %v9475 = vunpack.c.l.b16 %v9442
    %v9476 = vunpack.c.l.b16 %v9443
    %v9477 = vpack.c.b16 %v9462, %v9461
    %v9478 = vpack.c.b16 %v9464, %v9463
    %v9479 = vpack.c.b16 %v9466, %v9465
    %v9480 = vpack.c.b16 %v9468, %v9467
    %v9481 = vpack.c.b16 %v9470, %v9469
    %v9482 = vpack.c.b16 %v9472, %v9471
    %v9483 = vpack.c.b16 %v9474, %v9473
    %v9484 = vpack.c.b16 %v9476, %v9475
    %9493 = vmatprep.subr.bf16.mxu0 0
    %9494 = vmatpush1.bf16.msra.mxu0 %v9477
    %9495 = vmatprep.subr.bf16.mxu0 0
    %9496 = vmatpush1.bf16.msra.mxu0 %v9478
    %9497 = vmatprep.subr.bf16.mxu0 0
    %9498 = vmatpush1.bf16.msra.mxu0 %v9479
    %9499 = vmatprep.subr.bf16.mxu0 0
    %9500 = vmatpush1.bf16.msra.mxu0 %v9480
    %9501 = vmatprep.subr.bf16.mxu0 0
    %9502 = vmatpush1.bf16.msra.mxu0 %v9481
    %9503 = vmatprep.subr.bf16.mxu0 0
    %9504 = vmatpush1.bf16.msra.mxu0 %v9482
    %9505 = vmatprep.subr.bf16.mxu0 0
    %9506 = vmatpush1.bf16.msra.mxu0 %v9483
    %9507 = vmatprep.subr.bf16.mxu0 0
    %9508 = vmatpush1.bf16.msra.mxu0 %v9484
    %9509 = vmatprep.subr.bf16.mxu0 0
    %9510 = vmatpush1.bf16.msra.mxu0 0
    %9511 = vmatprep.subr.bf16.mxu0 0
    %9512 = vmatpush1.bf16.msra.mxu0 0
    %9513 = vmatprep.subr.bf16.mxu0 0
    %9514 = vmatpush1.bf16.msra.mxu0 0
    %9515 = vmatprep.subr.bf16.mxu0 0
    %9516 = vmatpush1.bf16.msra.mxu0 0
    %9517 = vmatprep.subr.bf16.mxu0 0
    %9518 = vmatpush1.bf16.msra.mxu0 0
    %9519 = vmatprep.subr.bf16.mxu0 0
    %9520 = vmatpush1.bf16.msra.mxu0 0
    %9521 = vmatprep.subr.bf16.mxu0 0
    %9522 = vmatpush1.bf16.msra.mxu0 0
    %9523 = vmatprep.subr.bf16.mxu0 0
    %9524 = vmatpush1.bf16.msra.mxu0 0
    %9525 = vmatprep.mubr.bf16.mxu0 0
    %9526 = vmatmul.mubr.bf16.gmra.mrb[0].mxu0 %v9444
    %v9527 = vpop.f32.mrb[0].mxu0
    %v9528 = vadd.f32 0.0, %v9527
    %v9529 = vpop.f32.mrb[0].mxu0
    %v9530 = vpop.f32.mrb[0].mxu0
    %v9531 = vpop.f32.mrb[0].mxu0
    %9532 = vdwg.mxu0
    %v9533 = vadd.f32 %v9418, %v9528
    %v9534 = vrot.slane %v9202, 3
    %v9536 = vrot.slane %v9203, 2
    %v9538 = vsel %vm9207, %v9534, %v9536
    %v9539 = vld [vmem:[%s81 + $0xc0] sm:$0xf]
    %v9540 = vld [vmem:[%s81 + $0xc4] sm:$0xf]
    %v9541 = vld [vmem:[%s81 + $0xc8] sm:$0xf]
    %v9542 = vld [vmem:[%s81 + $0xcc] sm:$0xf]
    %v9543 = vld [vmem:[%s81 + $0xd0] sm:$0xf]
    %v9544 = vld [vmem:[%s81 + $0xd4] sm:$0xf]
    %v9545 = vld [vmem:[%s81 + $0xd8] sm:$0xf]
    %v9546 = vld [vmem:[%s81 + $0xdc] sm:$0xf]
    %v9547 = vld [vmem:[%s81 + $0xe0] sm:$0xf]
    %v9548 = vld [vmem:[%s81 + $0xe4] sm:$0xf]
    %v9549 = vld [vmem:[%s81 + $0xe8] sm:$0xf]
    %v9550 = vld [vmem:[%s81 + $0xec] sm:$0xf]
    %v9551 = vld [vmem:[%s81 + $0xf0] sm:$0xf]
    %v9552 = vld [vmem:[%s81 + $0xf4] sm:$0xf]
    %v9553 = vld [vmem:[%s81 + $0xf8] sm:$0xf]
    %v9554 = vld [vmem:[%s81 + $0xfc] sm:$0xf]
    %v9555 = vpack.c.bf16 %v9538, %v9538
    %v9572 = vunpack.c.l.b16 %v9539
    %v9573 = vunpack.c.l.b16 %v9540
    %v9574 = vunpack.c.l.b16 %v9541
    %v9575 = vunpack.c.l.b16 %v9542
    %v9576 = vunpack.c.l.b16 %v9543
    %v9577 = vunpack.c.l.b16 %v9544
    %v9578 = vunpack.c.l.b16 %v9545
    %v9579 = vunpack.c.l.b16 %v9546
    %v9580 = vunpack.c.l.b16 %v9547
    %v9581 = vunpack.c.l.b16 %v9548
    %v9582 = vunpack.c.l.b16 %v9549
    %v9583 = vunpack.c.l.b16 %v9550
    %v9584 = vunpack.c.l.b16 %v9551
    %v9585 = vunpack.c.l.b16 %v9552
    %v9586 = vunpack.c.l.b16 %v9553
    %v9587 = vunpack.c.l.b16 %v9554
    %v9588 = vpack.c.b16 %v9573, %v9572
    %v9589 = vpack.c.b16 %v9575, %v9574
    %v9590 = vpack.c.b16 %v9577, %v9576
    %v9591 = vpack.c.b16 %v9579, %v9578
    %v9592 = vpack.c.b16 %v9581, %v9580
    %v9593 = vpack.c.b16 %v9583, %v9582
    %v9594 = vpack.c.b16 %v9585, %v9584
    %v9595 = vpack.c.b16 %v9587, %v9586
    %9604 = vmatprep.subr.bf16.mxu0 0
    %9605 = vmatpush1.bf16.msra.mxu0 %v9588
    %9606 = vmatprep.subr.bf16.mxu0 0
    %9607 = vmatpush1.bf16.msra.mxu0 %v9589
    %9608 = vmatprep.subr.bf16.mxu0 0
    %9609 = vmatpush1.bf16.msra.mxu0 %v9590
    %9610 = vmatprep.subr.bf16.mxu0 0
    %9611 = vmatpush1.bf16.msra.mxu0 %v9591
    %9612 = vmatprep.subr.bf16.mxu0 0
    %9613 = vmatpush1.bf16.msra.mxu0 %v9592
    %9614 = vmatprep.subr.bf16.mxu0 0
    %9615 = vmatpush1.bf16.msra.mxu0 %v9593
    %9616 = vmatprep.subr.bf16.mxu0 0
    %9617 = vmatpush1.bf16.msra.mxu0 %v9594
    %9618 = vmatprep.subr.bf16.mxu0 0
    %9619 = vmatpush1.bf16.msra.mxu0 %v9595
    %9620 = vmatprep.subr.bf16.mxu0 0
    %9621 = vmatpush1.bf16.msra.mxu0 0
    %9622 = vmatprep.subr.bf16.mxu0 0
    %9623 = vmatpush1.bf16.msra.mxu0 0
    %9624 = vmatprep.subr.bf16.mxu0 0
    %9625 = vmatpush1.bf16.msra.mxu0 0
    %9626 = vmatprep.subr.bf16.mxu0 0
    %9627 = vmatpush1.bf16.msra.mxu0 0
    %9628 = vmatprep.subr.bf16.mxu0 0
    %9629 = vmatpush1.bf16.msra.mxu0 0
    %9630 = vmatprep.subr.bf16.mxu0 0
    %9631 = vmatpush1.bf16.msra.mxu0 0
    %9632 = vmatprep.subr.bf16.mxu0 0
    %9633 = vmatpush1.bf16.msra.mxu0 0
    %9634 = vmatprep.subr.bf16.mxu0 0
    %9635 = vmatpush1.bf16.msra.mxu0 0
    %9636 = vmatprep.mubr.bf16.mxu0 0
    %9637 = vmatmul.mubr.bf16.gmra.mrb[0].mxu0 %v9555
    %v9638 = vpop.f32.mrb[0].mxu0
    %v9639 = vadd.f32 0.0, %v9638
    %v9640 = vpop.f32.mrb[0].mxu0
    %v9641 = vpop.f32.mrb[0].mxu0
    %v9642 = vpop.f32.mrb[0].mxu0
    %9643 = vdwg.mxu0
    %v9644 = vadd.f32 %v9533, %v9639
    %v9645 = vrot.slane %v9202, 4
    %v9647 = vrot.slane %v9203, 3
    %v9649 = vsel %vm9207, %v9645, %v9647
    %v9650 = vld [vmem:[%s81 + $0x100] sm:$0xf]
    %v9651 = vld [vmem:[%s81 + $0x104] sm:$0xf]
    %v9652 = vld [vmem:[%s81 + $0x108] sm:$0xf]
    %v9653 = vld [vmem:[%s81 + $0x10c] sm:$0xf]
    %v9654 = vld [vmem:[%s81 + $0x110] sm:$0xf]
    %v9655 = vld [vmem:[%s81 + $0x114] sm:$0xf]
    %v9656 = vld [vmem:[%s81 + $0x118] sm:$0xf]
    %v9657 = vld [vmem:[%s81 + $0x11c] sm:$0xf]
    %v9658 = vld [vmem:[%s81 + $0x120] sm:$0xf]
    %v9659 = vld [vmem:[%s81 + $0x124] sm:$0xf]
    %v9660 = vld [vmem:[%s81 + $0x128] sm:$0xf]
    %v9661 = vld [vmem:[%s81 + $0x12c] sm:$0xf]
    %v9662 = vld [vmem:[%s81 + $0x130] sm:$0xf]
    %v9663 = vld [vmem:[%s81 + $0x134] sm:$0xf]
    %v9664 = vld [vmem:[%s81 + $0x138] sm:$0xf]
    %v9665 = vld [vmem:[%s81 + $0x13c] sm:$0xf]
    %v9666 = vpack.c.bf16 %v9649, %v9649
    %v9683 = vunpack.c.l.b16 %v9650
    %v9684 = vunpack.c.l.b16 %v9651
    %v9685 = vunpack.c.l.b16 %v9652
    %v9686 = vunpack.c.l.b16 %v9653
    %v9687 = vunpack.c.l.b16 %v9654
    %v9688 = vunpack.c.l.b16 %v9655
    %v9689 = vunpack.c.l.b16 %v9656
    %v9690 = vunpack.c.l.b16 %v9657
    %v9691 = vunpack.c.l.b16 %v9658
    %v9692 = vunpack.c.l.b16 %v9659
    %v9693 = vunpack.c.l.b16 %v9660
    %v9694 = vunpack.c.l.b16 %v9661
    %v9695 = vunpack.c.l.b16 %v9662
    %v9696 = vunpack.c.l.b16 %v9663
    %v9697 = vunpack.c.l.b16 %v9664
    %v9698 = vunpack.c.l.b16 %v9665
    %v9699 = vpack.c.b16 %v9684, %v9683
    %v9700 = vpack.c.b16 %v9686, %v9685
    %v9701 = vpack.c.b16 %v9688, %v9687
    %v9702 = vpack.c.b16 %v9690, %v9689
    %v9703 = vpack.c.b16 %v9692, %v9691
    %v9704 = vpack.c.b16 %v9694, %v9693
    %v9705 = vpack.c.b16 %v9696, %v9695
    %v9706 = vpack.c.b16 %v9698, %v9697
    %9715 = vmatprep.subr.bf16.mxu0 0
    %9716 = vmatpush1.bf16.msra.mxu0 %v9699
    %9717 = vmatprep.subr.bf16.mxu0 0
    %9718 = vmatpush1.bf16.msra.mxu0 %v9700
    %9719 = vmatprep.subr.bf16.mxu0 0
    %9720 = vmatpush1.bf16.msra.mxu0 %v9701
    %9721 = vmatprep.subr.bf16.mxu0 0
    %9722 = vmatpush1.bf16.msra.mxu0 %v9702
    %9723 = vmatprep.subr.bf16.mxu0 0
    %9724 = vmatpush1.bf16.msra.mxu0 %v9703
    %9725 = vmatprep.subr.bf16.mxu0 0
    %9726 = vmatpush1.bf16.msra.mxu0 %v9704
    %9727 = vmatprep.subr.bf16.mxu0 0
    %9728 = vmatpush1.bf16.msra.mxu0 %v9705
    %9729 = vmatprep.subr.bf16.mxu0 0
    %9730 = vmatpush1.bf16.msra.mxu0 %v9706
    %9731 = vmatprep.subr.bf16.mxu0 0
    %9732 = vmatpush1.bf16.msra.mxu0 0
    %9733 = vmatprep.subr.bf16.mxu0 0
    %9734 = vmatpush1.bf16.msra.mxu0 0
    %9735 = vmatprep.subr.bf16.mxu0 0
    %9736 = vmatpush1.bf16.msra.mxu0 0
    %9737 = vmatprep.subr.bf16.mxu0 0
    %9738 = vmatpush1.bf16.msra.mxu0 0
    %9739 = vmatprep.subr.bf16.mxu0 0
    %9740 = vmatpush1.bf16.msra.mxu0 0
    %9741 = vmatprep.subr.bf16.mxu0 0
    %9742 = vmatpush1.bf16.msra.mxu0 0
    %9743 = vmatprep.subr.bf16.mxu0 0
    %9744 = vmatpush1.bf16.msra.mxu0 0
    %9745 = vmatprep.subr.bf16.mxu0 0
    %9746 = vmatpush1.bf16.msra.mxu0 0
    %9747 = vmatprep.mubr.bf16.mxu0 0
    %9748 = vmatmul.mubr.bf16.gmra.mrb[0].mxu0 %v9666
    %v9749 = vpop.f32.mrb[0].mxu0
    %v9750 = vadd.f32 0.0, %v9749
    %v9751 = vpop.f32.mrb[0].mxu0
    %v9752 = vpop.f32.mrb[0].mxu0
    %v9753 = vpop.f32.mrb[0].mxu0
    %9754 = vdwg.mxu0
    %v9755 = vadd.f32 %v9644, %v9750
    %v9756 = vrot.slane %v9202, 5
    %v9758 = vrot.slane %v9203, 4
    %v9760 = vsel %vm9207, %v9756, %v9758
    %v9761 = vld [vmem:[%s81 + $0x140] sm:$0xf]
    %v9762 = vld [vmem:[%s81 + $0x144] sm:$0xf]
    %v9763 = vld [vmem:[%s81 + $0x148] sm:$0xf]
    %v9764 = vld [vmem:[%s81 + $0x14c] sm:$0xf]
    %v9765 = vld [vmem:[%s81 + $0x150] sm:$0xf]
    %v9766 = vld [vmem:[%s81 + $0x154] sm:$0xf]
    %v9767 = vld [vmem:[%s81 + $0x158] sm:$0xf]
    %v9768 = vld [vmem:[%s81 + $0x15c] sm:$0xf]
    %v9769 = vld [vmem:[%s81 + $0x160] sm:$0xf]
    %v9770 = vld [vmem:[%s81 + $0x164] sm:$0xf]
    %v9771 = vld [vmem:[%s81 + $0x168] sm:$0xf]
    %v9772 = vld [vmem:[%s81 + $0x16c] sm:$0xf]
    %v9773 = vld [vmem:[%s81 + $0x170] sm:$0xf]
    %v9774 = vld [vmem:[%s81 + $0x174] sm:$0xf]
    %v9775 = vld [vmem:[%s81 + $0x178] sm:$0xf]
    %v9776 = vld [vmem:[%s81 + $0x17c] sm:$0xf]
    %v9777 = vpack.c.bf16 %v9760, %v9760
    %v9794 = vunpack.c.l.b16 %v9761
    %v9795 = vunpack.c.l.b16 %v9762
    %v9796 = vunpack.c.l.b16 %v9763
    %v9797 = vunpack.c.l.b16 %v9764
    %v9798 = vunpack.c.l.b16 %v9765
    %v9799 = vunpack.c.l.b16 %v9766
    %v9800 = vunpack.c.l.b16 %v9767
    %v9801 = vunpack.c.l.b16 %v9768
    %v9802 = vunpack.c.l.b16 %v9769
    %v9803 = vunpack.c.l.b16 %v9770
    %v9804 = vunpack.c.l.b16 %v9771
    %v9805 = vunpack.c.l.b16 %v9772
    %v9806 = vunpack.c.l.b16 %v9773
    %v9807 = vunpack.c.l.b16 %v9774
    %v9808 = vunpack.c.l.b16 %v9775
    %v9809 = vunpack.c.l.b16 %v9776
    %v9810 = vpack.c.b16 %v9795, %v9794
    %v9811 = vpack.c.b16 %v9797, %v9796
    %v9812 = vpack.c.b16 %v9799, %v9798
    %v9813 = vpack.c.b16 %v9801, %v9800
    %v9814 = vpack.c.b16 %v9803, %v9802
    %v9815 = vpack.c.b16 %v9805, %v9804
    %v9816 = vpack.c.b16 %v9807, %v9806
    %v9817 = vpack.c.b16 %v9809, %v9808
    %9826 = vmatprep.subr.bf16.mxu0 0
    %9827 = vmatpush1.bf16.msra.mxu0 %v9810
    %9828 = vmatprep.subr.bf16.mxu0 0
    %9829 = vmatpush1.bf16.msra.mxu0 %v9811
    %9830 = vmatprep.subr.bf16.mxu0 0
    %9831 = vmatpush1.bf16.msra.mxu0 %v9812
    %9832 = vmatprep.subr.bf16.mxu0 0
    %9833 = vmatpush1.bf16.msra.mxu0 %v9813
    %9834 = vmatprep.subr.bf16.mxu0 0
    %9835 = vmatpush1.bf16.msra.mxu0 %v9814
    %9836 = vmatprep.subr.bf16.mxu0 0
    %9837 = vmatpush1.bf16.msra.mxu0 %v9815
    %9838 = vmatprep.subr.bf16.mxu0 0
    %9839 = vmatpush1.bf16.msra.mxu0 %v9816
    %9840 = vmatprep.subr.bf16.mxu0 0
    %9841 = vmatpush1.bf16.msra.mxu0 %v9817
    %9842 = vmatprep.subr.bf16.mxu0 0
    %9843 = vmatpush1.bf16.msra.mxu0 0
    %9844 = vmatprep.subr.bf16.mxu0 0
    %9845 = vmatpush1.bf16.msra.mxu0 0
    %9846 = vmatprep.subr.bf16.mxu0 0
    %9847 = vmatpush1.bf16.msra.mxu0 0
    %9848 = vmatprep.subr.bf16.mxu0 0
    %9849 = vmatpush1.bf16.msra.mxu0 0
    %9850 = vmatprep.subr.bf16.mxu0 0
    %9851 = vmatpush1.bf16.msra.mxu0 0
    %9852 = vmatprep.subr.bf16.mxu0 0
    %9853 = vmatpush1.bf16.msra.mxu0 0
    %9854 = vmatprep.subr.bf16.mxu0 0
    %9855 = vmatpush1.bf16.msra.mxu0 0
    %9856 = vmatprep.subr.bf16.mxu0 0
    %9857 = vmatpush1.bf16.msra.mxu0 0
    %9858 = vmatprep.mubr.bf16.mxu0 0
    %9859 = vmatmul.mubr.bf16.gmra.mrb[0].mxu0 %v9777
    %v9860 = vpop.f32.mrb[0].mxu0
    %v9861 = vadd.f32 0.0, %v9860
    %v9862 = vpop.f32.mrb[0].mxu0
    %v9863 = vpop.f32.mrb[0].mxu0
    %v9864 = vpop.f32.mrb[0].mxu0
    %9865 = vdwg.mxu0
    %v9866 = vadd.f32 %v9755, %v9861
    %v9867 = vrot.slane %v9202, 6
    %v9869 = vrot.slane %v9203, 5
    %v9871 = vsel %vm9207, %v9867, %v9869
    %v9872 = vld [vmem:[%s81 + $0x180] sm:$0xf]
    %v9873 = vld [vmem:[%s81 + $0x184] sm:$0xf]
    %v9874 = vld [vmem:[%s81 + $0x188] sm:$0xf]
    %v9875 = vld [vmem:[%s81 + $0x18c] sm:$0xf]
    %v9876 = vld [vmem:[%s81 + $0x190] sm:$0xf]
    %v9877 = vld [vmem:[%s81 + $0x194] sm:$0xf]
    %v9878 = vld [vmem:[%s81 + $0x198] sm:$0xf]
    %v9879 = vld [vmem:[%s81 + $0x19c] sm:$0xf]
    %v9880 = vld [vmem:[%s81 + $0x1a0] sm:$0xf]
    %v9881 = vld [vmem:[%s81 + $0x1a4] sm:$0xf]
    %v9882 = vld [vmem:[%s81 + $0x1a8] sm:$0xf]
    %v9883 = vld [vmem:[%s81 + $0x1ac] sm:$0xf]
    %v9884 = vld [vmem:[%s81 + $0x1b0] sm:$0xf]
    %v9885 = vld [vmem:[%s81 + $0x1b4] sm:$0xf]
    %v9886 = vld [vmem:[%s81 + $0x1b8] sm:$0xf]
    %v9887 = vld [vmem:[%s81 + $0x1bc] sm:$0xf]
    %v9888 = vpack.c.bf16 %v9871, %v9871
    %v9905 = vunpack.c.l.b16 %v9872
    %v9906 = vunpack.c.l.b16 %v9873
    %v9907 = vunpack.c.l.b16 %v9874
    %v9908 = vunpack.c.l.b16 %v9875
    %v9909 = vunpack.c.l.b16 %v9876
    %v9910 = vunpack.c.l.b16 %v9877
    %v9911 = vunpack.c.l.b16 %v9878
    %v9912 = vunpack.c.l.b16 %v9879
    %v9913 = vunpack.c.l.b16 %v9880
    %v9914 = vunpack.c.l.b16 %v9881
    %v9915 = vunpack.c.l.b16 %v9882
    %v9916 = vunpack.c.l.b16 %v9883
    %v9917 = vunpack.c.l.b16 %v9884
    %v9918 = vunpack.c.l.b16 %v9885
    %v9919 = vunpack.c.l.b16 %v9886
    %v9920 = vunpack.c.l.b16 %v9887
    %v9921 = vpack.c.b16 %v9906, %v9905
    %v9922 = vpack.c.b16 %v9908, %v9907
    %v9923 = vpack.c.b16 %v9910, %v9909
    %v9924 = vpack.c.b16 %v9912, %v9911
    %v9925 = vpack.c.b16 %v9914, %v9913
    %v9926 = vpack.c.b16 %v9916, %v9915
    %v9927 = vpack.c.b16 %v9918, %v9917
    %v9928 = vpack.c.b16 %v9920, %v9919
    %9937 = vmatprep.subr.bf16.mxu0 0
    %9938 = vmatpush1.bf16.msra.mxu0 %v9921
    %9939 = vmatprep.subr.bf16.mxu0 0
    %9940 = vmatpush1.bf16.msra.mxu0 %v9922
    %9941 = vmatprep.subr.bf16.mxu0 0
    %9942 = vmatpush1.bf16.msra.mxu0 %v9923
    %9943 = vmatprep.subr.bf16.mxu0 0
    %9944 = vmatpush1.bf16.msra.mxu0 %v9924
    %9945 = vmatprep.subr.bf16.mxu0 0
    %9946 = vmatpush1.bf16.msra.mxu0 %v9925
    %9947 = vmatprep.subr.bf16.mxu0 0
    %9948 = vmatpush1.bf16.msra.mxu0 %v9926
    %9949 = vmatprep.subr.bf16.mxu0 0
    %9950 = vmatpush1.bf16.msra.mxu0 %v9927
    %9951 = vmatprep.subr.bf16.mxu0 0
    %9952 = vmatpush1.bf16.msra.mxu0 %v9928
    %9953 = vmatprep.subr.bf16.mxu0 0
    %9954 = vmatpush1.bf16.msra.mxu0 0
    %9955 = vmatprep.subr.bf16.mxu0 0
    %9956 = vmatpush1.bf16.msra.mxu0 0
    %9957 = vmatprep.subr.bf16.mxu0 0
    %9958 = vmatpush1.bf16.msra.mxu0 0
    %9959 = vmatprep.subr.bf16.mxu0 0
    %9960 = vmatpush1.bf16.msra.mxu0 0
    %9961 = vmatprep.subr.bf16.mxu0 0
    %9962 = vmatpush1.bf16.msra.mxu0 0
    %9963 = vmatprep.subr.bf16.mxu0 0
    %9964 = vmatpush1.bf16.msra.mxu0 0
    %9965 = vmatprep.subr.bf16.mxu0 0
    %9966 = vmatpush1.bf16.msra.mxu0 0
    %9967 = vmatprep.subr.bf16.mxu0 0
    %9968 = vmatpush1.bf16.msra.mxu0 0
    %9969 = vmatprep.mubr.bf16.mxu0 0
    %9970 = vmatmul.mubr.bf16.gmra.mrb[0].mxu0 %v9888
    %v9971 = vpop.f32.mrb[0].mxu0
    %v9972 = vadd.f32 0.0, %v9971
    %v9973 = vpop.f32.mrb[0].mxu0
    %v9974 = vpop.f32.mrb[0].mxu0
    %v9975 = vpop.f32.mrb[0].mxu0
    %9976 = vdwg.mxu0
    %v9977 = vadd.f32 %v9866, %v9972
    %v9978 = vrot.slane %v9202, 7
    %v9980 = vrot.slane %v9203, 6
    %v9982 = vsel %vm9207, %v9978, %v9980
    %v9983 = vld [vmem:[%s81 + $0x1c0] sm:$0xf]
    %v9984 = vld [vmem:[%s81 + $0x1c4] sm:$0xf]
    %v9985 = vld [vmem:[%s81 + $0x1c8] sm:$0xf]
    %v9986 = vld [vmem:[%s81 + $0x1cc] sm:$0xf]
    %v9987 = vld [vmem:[%s81 + $0x1d0] sm:$0xf]
    %v9988 = vld [vmem:[%s81 + $0x1d4] sm:$0xf]
    %v9989 = vld [vmem:[%s81 + $0x1d8] sm:$0xf]
    %v9990 = vld [vmem:[%s81 + $0x1dc] sm:$0xf]
    %v9991 = vld [vmem:[%s81 + $0x1e0] sm:$0xf]
    %v9992 = vld [vmem:[%s81 + $0x1e4] sm:$0xf]
    %v9993 = vld [vmem:[%s81 + $0x1e8] sm:$0xf]
    %v9994 = vld [vmem:[%s81 + $0x1ec] sm:$0xf]
    %v9995 = vld [vmem:[%s81 + $0x1f0] sm:$0xf]
    %v9996 = vld [vmem:[%s81 + $0x1f4] sm:$0xf]
    %v9997 = vld [vmem:[%s81 + $0x1f8] sm:$0xf]
    %v9998 = vld [vmem:[%s81 + $0x1fc] sm:$0xf]
    %v9999 = vpack.c.bf16 %v9982, %v9982
    %v10016 = vunpack.c.l.b16 %v9983
    %v10017 = vunpack.c.l.b16 %v9984
    %v10018 = vunpack.c.l.b16 %v9985
    %v10019 = vunpack.c.l.b16 %v9986
    %v10020 = vunpack.c.l.b16 %v9987
    %v10021 = vunpack.c.l.b16 %v9988
    %v10022 = vunpack.c.l.b16 %v9989
    %v10023 = vunpack.c.l.b16 %v9990
    %v10024 = vunpack.c.l.b16 %v9991
    %v10025 = vunpack.c.l.b16 %v9992
    %v10026 = vunpack.c.l.b16 %v9993
    %v10027 = vunpack.c.l.b16 %v9994
    %v10028 = vunpack.c.l.b16 %v9995
    %v10029 = vunpack.c.l.b16 %v9996
    %v10030 = vunpack.c.l.b16 %v9997
    %v10031 = vunpack.c.l.b16 %v9998
    %v10032 = vpack.c.b16 %v10017, %v10016
    %v10033 = vpack.c.b16 %v10019, %v10018
    %v10034 = vpack.c.b16 %v10021, %v10020
    %v10035 = vpack.c.b16 %v10023, %v10022
    %v10036 = vpack.c.b16 %v10025, %v10024
    %v10037 = vpack.c.b16 %v10027, %v10026
    %v10038 = vpack.c.b16 %v10029, %v10028
    %v10039 = vpack.c.b16 %v10031, %v10030
    %10048 = vmatprep.subr.bf16.mxu0 0
    %10049 = vmatpush1.bf16.msra.mxu0 %v10032
    %10050 = vmatprep.subr.bf16.mxu0 0
    %10051 = vmatpush1.bf16.msra.mxu0 %v10033
    %10052 = vmatprep.subr.bf16.mxu0 0
    %10053 = vmatpush1.bf16.msra.mxu0 %v10034
    %10054 = vmatprep.subr.bf16.mxu0 0
    %10055 = vmatpush1.bf16.msra.mxu0 %v10035
    %10056 = vmatprep.subr.bf16.mxu0 0
    %10057 = vmatpush1.bf16.msra.mxu0 %v10036
    %10058 = vmatprep.subr.bf16.mxu0 0
    %10059 = vmatpush1.bf16.msra.mxu0 %v10037
    %10060 = vmatprep.subr.bf16.mxu0 0
    %10061 = vmatpush1.bf16.msra.mxu0 %v10038
    %10062 = vmatprep.subr.bf16.mxu0 0
    %10063 = vmatpush1.bf16.msra.mxu0 %v10039
    %10064 = vmatprep.subr.bf16.mxu0 0
    %10065 = vmatpush1.bf16.msra.mxu0 0
    %10066 = vmatprep.subr.bf16.mxu0 0
    %10067 = vmatpush1.bf16.msra.mxu0 0
    %10068 = vmatprep.subr.bf16.mxu0 0
    %10069 = vmatpush1.bf16.msra.mxu0 0
    %10070 = vmatprep.subr.bf16.mxu0 0
    %10071 = vmatpush1.bf16.msra.mxu0 0
    %10072 = vmatprep.subr.bf16.mxu0 0
    %10073 = vmatpush1.bf16.msra.mxu0 0
    %10074 = vmatprep.subr.bf16.mxu0 0
    %10075 = vmatpush1.bf16.msra.mxu0 0
    %10076 = vmatprep.subr.bf16.mxu0 0
    %10077 = vmatpush1.bf16.msra.mxu0 0
    %10078 = vmatprep.subr.bf16.mxu0 0
    %10079 = vmatpush1.bf16.msra.mxu0 0
    %10080 = vmatprep.mubr.bf16.mxu0 0
    %10081 = vmatmul.mubr.bf16.gmra.mrb[0].mxu0 %v9999
    %v10082 = vpop.f32.mrb[0].mxu0
    %v10083 = vadd.f32 0.0, %v10082
    %v10084 = vpop.f32.mrb[0].mxu0
    %v10085 = vpop.f32.mrb[0].mxu0
    %v10086 = vpop.f32.mrb[0].mxu0
    %10087 = vdwg.mxu0
    %v10088 = vadd.f32 %v9977, %v10083
    %v10089 = vld [vmem:[%s83] sm:$0x1]
    %v10091 = vlaneseq
    %v10092 = vshrl.u32 %v10091, 7
    %v10093 = vsub.s32 0, %v10092
    %v10094 = vrot.slane %v10089, %v10093
    %v10096 = vadd.f32 %v10088, %v10094
    %10097 = vst [vmem:[#allocation14] sm:$0x3] %v10096
    // Predicated region
    $region198: #{policy_forward.1} parent=1 // pred_check
      _
    $region199: #{policy_forward.1} parent=1 // pred_check_branch
      %10099 = sbr.rel (0) target = $region201
    $region200: #{policy_forward.1} parent=1 // pred_region
      %s10101 = ssub.s32 32, 32
      %10102 = vsyncadd [#allocation4], %s10101
      %s10104 = sshll.u32 [#allocation14], 4
      %s10105 = int_to_ptr.vmem [resolvable:$true] %s10104
      %10107 = dma.vmem_to_hbm [thread:$0]  %s10105, 32, %s85, [#allocation4]
    $region201: #{policy_forward.1} parent=1 // pred_fallthru
      _
    // Predicated region
    $region202: #{policy_forward.1} parent=1 // pred_check
      _
    $region203: #{policy_forward.1} parent=1 // pred_check_branch
      %10109 = sbr.rel (0) target = $region205
    $region204: #{policy_forward.1} parent=1 // pred_region
      %10110 = dma.done [#allocation4], 32
    $region205: #{policy_forward.1} parent=1 // pred_fallthru
      _
    %10111 = vsyncpa [#allocation3], 1
    %10112 = vsyncpa [#allocation6], 1
    %10113 = vsyncpa [#allocation9], 1
    %10114 = vsyncpa [#allocation12], 1
    %10115 = vsyncpa [#allocation4], 1

</llo_original>
